<compile_context>
chip_gen: v7x
topology: tpu7x:2x2x1
jax: 0.10.0
libtpu: 0.0.40
codegen_flags: <defaults>
</compile_context>

<pallas_src>
import jax
import jax.numpy as jnp
from jax import lax
from jax.experimental import pallas as pl
from jax.experimental.pallas import tpu as pltpu

KH = KW = 5
PAD = 2
EPS = 1e-3                       # BatchNorm2d eps=0.001

H = W = 25
CIN = 48
COUT = 64
COUT_P = 128                     # lane-dense padded output channels

HP = H + 2 * PAD                 # 29 padded rows
STRIDE = 32                      # padded output-row pitch (sublane-aligned taps)
WPAD = STRIDE + KW - 1           # 36 padded cols so every kx-shift of width 32 exists
MOUT = H * STRIDE                # 800 output-grid rows (cols 25..31 are garbage)
M_LHS = HP * STRIDE              # 928 = MOUT + (KH-1)*STRIDE flat LHS rows
K_FUSED = KW * CIN               # 240 fused contraction dim
CHUNK = 160                      # M tile (multiple of STRIDE -> same mask every chunk)
NCHUNK = MOUT // CHUNK           # 5
N_VALID = float(H * W)           # 625 real output positions


def _fused_kernel(lhs_ref, w_ref, g_ref, b_ref, o_ref, xr_ref):
    # lhs_ref: (M_LHS, K_FUSED)      bf16  kx-unrolled zero-padded input (pre-ReLU)
    # w_ref:   (KH, K_FUSED, COUT_P) bf16  per-ky conv weights (kx,cin fused on dim 1)
    # g_ref:   (1, COUT_P)           f32   batchnorm gamma (zero padded)
    # b_ref:   (1, COUT_P)           f32   batchnorm beta  (zero padded)
    # o_ref:   (MOUT, COUT_P)        f32   output (also holds raw conv between passes)
    # xr_ref:  (M_LHS, K_FUSED)      bf16  scratch: ReLU(input), computed once

    # Leading ReLU, applied once to the whole LHS (pad value 0 is ReLU-invariant).
    xr_ref[...] = jnp.maximum(lhs_ref[...], 0)

    # Validity mask: with row pitch 32 and MOUT = 25*32 the only garbage is
    # column-in-pitch >= 25.  CHUNK % STRIDE == 0 so the mask is identical per chunk.
    col = lax.broadcasted_iota(jnp.int32, (CHUNK, COUT_P), 0) % STRIDE
    mask = (col < W).astype(jnp.float32)

    s1 = jnp.zeros((1, COUT_P), jnp.float32)
    s2 = jnp.zeros((1, COUT_P), jnp.float32)

    # Pass A: conv (5 wide-K matmuls per M-chunk) + masked BN partial sums.
    for m in range(NCHUNK):
        base = m * CHUNK
        acc = jnp.zeros((CHUNK, COUT_P), jnp.float32)
        for ky in range(KH):
            acc = acc + jnp.dot(
                xr_ref[pl.ds(base + ky * STRIDE, CHUNK), :],
                w_ref[ky],
                preferred_element_type=jnp.float32)
        cm = acc * mask
        s1 = s1 + jnp.sum(cm, axis=0, keepdims=True)
        s2 = s2 + jnp.sum(cm * cm, axis=0, keepdims=True)
        o_ref[pl.ds(base, CHUNK), :] = acc            # park raw conv result

    # BatchNorm (training mode): biased stats over the 625 valid positions.
    mean = s1 * (1.0 / N_VALID)
    var = jnp.maximum(s2 * (1.0 / N_VALID) - mean * mean, 0.0)
    scale = g_ref[...] * lax.rsqrt(var + EPS)          # rsqrt -> EUP slot
    shift = b_ref[...] - mean * scale

    # Pass B: normalise + trailing ReLU in place.
    o_ref[...] = jnp.maximum(o_ref[...] * scale + shift, 0.0)


def fused_relu_conv_bn_relu(x_nchw, w_oihw, gamma, beta):
    """x_nchw: (1, 48, 25, 25); w_oihw: (64, 48, 5, 5); gamma/beta: (64,)."""
    N, Cin, Hx, Wx = x_nchw.shape
    assert N == 1 and Cin == CIN and Hx == H and Wx == W
    Cout = w_oihw.shape[0]
    assert Cout == COUT

    # --- wrapper glue (tiny, pure data movement; conv/BN/ReLU math is in-kernel) ---
    # channels-last, bf16, zero pad rows to 29 and cols to 36 (pitch 32 + kx reach 4).
    x_hwc = jnp.transpose(x_nchw[0], (1, 2, 0)).astype(jnp.bfloat16)       # (25,25,48)
    xp = jnp.pad(x_hwc, ((PAD, PAD), (PAD, WPAD - W - PAD), (0, 0)))       # (29,36,48)
    # kx-unrolled LHS: lhs[r*32 + c0, kx*48 + c] = xp[r, c0 + kx, c]
    lhs = jnp.stack([xp[:, kx:kx + STRIDE, :] for kx in range(KW)], axis=2)  # (29,32,5,48)
    lhs = lhs.reshape(M_LHS, K_FUSED)                                        # (928,240)

    # OIHW -> (ky, kx, cin, cout) -> (5, 240, 64) -> pad cout to 128, bf16
    w_t = jnp.transpose(w_oihw, (2, 3, 1, 0)).reshape(KH, K_FUSED, Cout)
    w_t = jnp.pad(w_t, ((0, 0), (0, 0), (0, COUT_P - Cout))).astype(jnp.bfloat16)

    g2 = jnp.pad(gamma.astype(jnp.float32), (0, COUT_P - Cout)).reshape(1, COUT_P)
    b2 = jnp.pad(beta.astype(jnp.float32), (0, COUT_P - Cout)).reshape(1, COUT_P)

    out = pl.pallas_call(
        _fused_kernel,
        out_shape=jax.ShapeDtypeStruct((MOUT, COUT_P), jnp.float32),
        in_specs=[pl.BlockSpec(memory_space=pltpu.MemorySpace.VMEM)] * 4,
        out_specs=pl.BlockSpec(memory_space=pltpu.MemorySpace.VMEM),
        scratch_shapes=[pltpu.VMEM((M_LHS, K_FUSED), jnp.bfloat16)],
    )(lhs, w_t, g2, b2)

    # (800, 128) -> drop garbage cols / padded channels -> (1, 64, 25, 25)
    out = out.reshape(H, STRIDE, COUT_P)[:, :W, :Cout]
    return jnp.transpose(out, (2, 0, 1))[None]


def _reference(x_nchw, w_oihw, gamma, beta):
    """Pure-JAX f32 reference matching the PyTorch forward (training-mode BN)."""
    x = jnp.maximum(x_nchw, 0.0)
    conv = lax.conv_general_dilated(
        x, w_oihw, window_strides=(1, 1), padding=((PAD, PAD), (PAD, PAD)),
        dimension_numbers=("NCHW", "OIHW", "NCHW"))
    mean = jnp.mean(conv, axis=(0, 2, 3), keepdims=True)
    var = jnp.mean((conv - mean) ** 2, axis=(0, 2, 3), keepdims=True)
    y = (conv - mean) / jnp.sqrt(var + EPS)
    y = y * gamma[None, :, None, None] + beta[None, :, None, None]
    return jnp.maximum(y, 0.0)


if __name__ == "__main__":
    key = jax.random.PRNGKey(0)
    kx, kw, kg, kb = jax.random.split(key, 4)

    # Shapes implied by the module: x (1, 48, 25, 25), conv weight (64, 48, 5, 5)
    x = jax.random.normal(kx, (1, 48, 25, 25), dtype=jnp.float32)
    w = jax.random.normal(kw, (64, 48, 5, 5), dtype=jnp.float32) * 0.05
    gamma = 1.0 + 0.1 * jax.random.normal(kg, (64,), dtype=jnp.float32)
    beta = 0.1 * jax.random.normal(kb, (64,), dtype=jnp.float32)

    out = jax.block_until_ready(fused_relu_conv_bn_relu(x, w, gamma, beta))
    ref = jax.block_until_ready(_reference(x, w, gamma, beta))

    # bf16 MXU inputs with f32 accumulation: 2e-2 tolerance vs. the f32 reference.
    if not jnp.allclose(out, ref, atol=2e-2, rtol=2e-2):
        max_err = jnp.max(jnp.abs(out - ref))
        raise AssertionError(f"Pallas kernel output does not match reference "
                             f"(max abs err {max_err})")

    print("KERNEL_OK")
</pallas_src>

<mosaic_0001>
module attributes {stable_mosaic.version = 11 : i64} {
  func.func @_fused_kernel(%arg0: memref<928x240xbf16, #tpu.memory_space<vmem>>, %arg1: memref<5x240x128xbf16, #tpu.memory_space<vmem>>, %arg2: memref<1x128xf32, #tpu.memory_space<vmem>>, %arg3: memref<1x128xf32, #tpu.memory_space<vmem>>, %arg4: memref<800x128xf32, #tpu.memory_space<vmem>>, %arg5: memref<928x240xbf16, #tpu.memory_space<vmem>>) attributes {dimension_semantics = [], scalar_prefetch = 0 : i64, scratch_operands = 1 : i64, tpu.core_type = #tpu.core_type<tc>} {
    %c0 = arith.constant 0 : index
    %c0_0 = arith.constant 0 : index
    %0 = vector.load %arg0[%c0, %c0_0] : memref<928x240xbf16, #tpu.memory_space<vmem>>, vector<928x240xbf16>
    %cst = arith.constant 0.000000e+00 : bf16
    %1 = vector.broadcast %cst : bf16 to vector<928x240xbf16>
    %2 = arith.maximumf %0, %1 : vector<928x240xbf16>
    %c0_1 = arith.constant 0 : index
    %c0_2 = arith.constant 0 : index
    %3 = vector.load %arg5[%c0_1, %c0_2] : memref<928x240xbf16, #tpu.memory_space<vmem>>, vector<928x240xbf16>
    tpu.vector_store %arg5[%c0_1, %c0_2], %2 {strides = array<i32>} : memref<928x240xbf16, #tpu.memory_space<vmem>>, vector<928x240xbf16>,
    %4 = tpu.iota {dimensions = array<i32: 0>} : vector<160x128xi32>
    %c32_i32 = arith.constant 32 : i32
    %c0_i32 = arith.constant 0 : i32
    %5 = arith.cmpi eq, %c32_i32, %c0_i32 : i32
    %c1_i32 = arith.constant 1 : i32
    %6 = arith.select %5, %c1_i32, %c32_i32 : i32
    %7 = vector.broadcast %6 : i32 to vector<160x128xi32>
    %8 = arith.remsi %4, %7 : vector<160x128xi32>
    %c0_i32_3 = arith.constant 0 : i32
    %9 = vector.broadcast %c0_i32_3 : i32 to vector<160x128xi32>
    %10 = arith.cmpi ne, %8, %9 : vector<160x128xi32>
    %c0_i32_4 = arith.constant 0 : i32
    %11 = vector.broadcast %c0_i32_4 : i32 to vector<160x128xi32>
    %12 = arith.cmpi slt, %8, %11 : vector<160x128xi32>
    %c0_i32_5 = arith.constant 0 : i32
    %13 = arith.cmpi slt, %6, %c0_i32_5 : i32
    %14 = vector.broadcast %13 : i1 to vector<160x128xi1>
    %15 = vector.broadcast %14 : vector<160x128xi1> to vector<160x128xi1>
    %16 = arith.xori %12, %15 : vector<160x128xi1>
    %17 = arith.andi %16, %10 : vector<160x128xi1>
    %18 = vector.broadcast %6 : i32 to vector<160x128xi32>
    %19 = arith.addi %8, %18 : vector<160x128xi32>
    %20 = arith.select %17, %19, %8 : vector<160x128xi1>, vector<160x128xi32>
    %c25_i32 = arith.constant 25 : i32
    %21 = vector.broadcast %c25_i32 : i32 to vector<160x128xi32>
    %22 = arith.cmpi slt, %20, %21 : vector<160x128xi32>
    %23 = arith.extui %22 : vector<160x128xi1> to vector<160x128xi32>
    %24 = arith.sitofp %23 : vector<160x128xi32> to vector<160x128xf32>
    %cst_6 = arith.constant 0.000000e+00 : f32
    %25 = vector.broadcast %cst_6 : f32 to vector<1x128xf32>
    %cst_7 = arith.constant 0.000000e+00 : f32
    %26 = vector.broadcast %cst_7 : f32 to vector<1x128xf32>
    %cst_8 = arith.constant 0.000000e+00 : f32
    %27 = vector.broadcast %cst_8 : f32 to vector<160x128xf32>
    %c0_9 = arith.constant 0 : index
    %c0_10 = arith.constant 0 : index
    %28 = vector.load %arg5[%c0_9, %c0_10] : memref<928x240xbf16, #tpu.memory_space<vmem>>, vector<160x240xbf16>
    %c0_11 = arith.constant 0 : index
    %c0_12 = arith.constant 0 : index
    %c0_13 = arith.constant 0 : index
    %29 = vector.load %arg1[%c0_11, %c0_12, %c0_13] : memref<5x240x128xbf16, #tpu.memory_space<vmem>>, vector<1x240x128xbf16>
    %30 = vector.shape_cast %29 : vector<1x240x128xbf16> to vector<240x128xbf16>
    %cst_14 = arith.constant dense<0.000000e+00> : vector<160x128xf32>
    %31 = tpu.matmul %28, %30, %cst_14 {dimension_numbers = #tpu.dot_dimension_numbers<[1], [0], [0], [1], [0, 0, 1, 1], [], []>} : vector<160x240xbf16>, vector<240x128xbf16>, vector<160x128xf32> -> vector<160x128xf32>
    %32 = arith.addf %27, %31 : vector<160x128xf32>
    %c32 = arith.constant 32 : index
    %c0_15 = arith.constant 0 : index
    %33 = vector.load %arg5[%c32, %c0_15] : memref<928x240xbf16, #tpu.memory_space<vmem>>, vector<160x240xbf16>
    %c1 = arith.constant 1 : index
    %c0_16 = arith.constant 0 : index
    %c0_17 = arith.constant 0 : index
    %34 = vector.load %arg1[%c1, %c0_16, %c0_17] : memref<5x240x128xbf16, #tpu.memory_space<vmem>>, vector<1x240x128xbf16>
    %35 = vector.shape_cast %34 : vector<1x240x128xbf16> to vector<240x128xbf16>
    %cst_18 = arith.constant dense<0.000000e+00> : vector<160x128xf32>
    %36 = tpu.matmul %33, %35, %cst_18 {dimension_numbers = #tpu.dot_dimension_numbers<[1], [0], [0], [1], [0, 0, 1, 1], [], []>} : vector<160x240xbf16>, vector<240x128xbf16>, vector<160x128xf32> -> vector<160x128xf32>
    %37 = arith.addf %32, %36 : vector<160x128xf32>
    %c64 = arith.constant 64 : index
    %c0_19 = arith.constant 0 : index
    %38 = vector.load %arg5[%c64, %c0_19] : memref<928x240xbf16, #tpu.memory_space<vmem>>, vector<160x240xbf16>
    %c2 = arith.constant 2 : index
    %c0_20 = arith.constant 0 : index
    %c0_21 = arith.constant 0 : index
    %39 = vector.load %arg1[%c2, %c0_20, %c0_21] : memref<5x240x128xbf16, #tpu.memory_space<vmem>>, vector<1x240x128xbf16>
    %40 = vector.shape_cast %39 : vector<1x240x128xbf16> to vector<240x128xbf16>
    %cst_22 = arith.constant dense<0.000000e+00> : vector<160x128xf32>
    %41 = tpu.matmul %38, %40, %cst_22 {dimension_numbers = #tpu.dot_dimension_numbers<[1], [0], [0], [1], [0, 0, 1, 1], [], []>} : vector<160x240xbf16>, vector<240x128xbf16>, vector<160x128xf32> -> vector<160x128xf32>
    %42 = arith.addf %37, %41 : vector<160x128xf32>
    %c96 = arith.constant 96 : index
    %c0_23 = arith.constant 0 : index
    %43 = vector.load %arg5[%c96, %c0_23] : memref<928x240xbf16, #tpu.memory_space<vmem>>, vector<160x240xbf16>
    %c3 = arith.constant 3 : index
    %c0_24 = arith.constant 0 : index
    %c0_25 = arith.constant 0 : index
    %44 = vector.load %arg1[%c3, %c0_24, %c0_25] : memref<5x240x128xbf16, #tpu.memory_space<vmem>>, vector<1x240x128xbf16>
    %45 = vector.shape_cast %44 : vector<1x240x128xbf16> to vector<240x128xbf16>
    %cst_26 = arith.constant dense<0.000000e+00> : vector<160x128xf32>
    %46 = tpu.matmul %43, %45, %cst_26 {dimension_numbers = #tpu.dot_dimension_numbers<[1], [0], [0], [1], [0, 0, 1, 1], [], []>} : vector<160x240xbf16>, vector<240x128xbf16>, vector<160x128xf32> -> vector<160x128xf32>
    %47 = arith.addf %42, %46 : vector<160x128xf32>
    %c128 = arith.constant 128 : index
    %c0_27 = arith.constant 0 : index
    %48 = vector.load %arg5[%c128, %c0_27] : memref<928x240xbf16, #tpu.memory_space<vmem>>, vector<160x240xbf16>
    %c4 = arith.constant 4 : index
    %c0_28 = arith.constant 0 : index
    %c0_29 = arith.constant 0 : index
    %49 = vector.load %arg1[%c4, %c0_28, %c0_29] : memref<5x240x128xbf16, #tpu.memory_space<vmem>>, vector<1x240x128xbf16>
    %50 = vector.shape_cast %49 : vector<1x240x128xbf16> to vector<240x128xbf16>
    %cst_30 = arith.constant dense<0.000000e+00> : vector<160x128xf32>
    %51 = tpu.matmul %48, %50, %cst_30 {dimension_numbers = #tpu.dot_dimension_numbers<[1], [0], [0], [1], [0, 0, 1, 1], [], []>} : vector<160x240xbf16>, vector<240x128xbf16>, vector<160x128xf32> -> vector<160x128xf32>
    %52 = arith.addf %47, %51 : vector<160x128xf32>
    %53 = arith.mulf %52, %24 : vector<160x128xf32>
    %cst_31 = arith.constant dense<0.000000e+00> : vector<128xf32>
    %54 = vector.multi_reduction <add>, %53, %cst_31 [0] : vector<160x128xf32> to vector<128xf32>
    %55 = vector.shape_cast %54 : vector<128xf32> to vector<1x128xf32>
    %56 = arith.addf %25, %55 : vector<1x128xf32>
    %57 = arith.mulf %53, %53 : vector<160x128xf32>
    %cst_32 = arith.constant dense<0.000000e+00> : vector<128xf32>
    %58 = vector.multi_reduction <add>, %57, %cst_32 [0] : vector<160x128xf32> to vector<128xf32>
    %59 = vector.shape_cast %58 : vector<128xf32> to vector<1x128xf32>
    %60 = arith.addf %26, %59 : vector<1x128xf32>
    %c0_33 = arith.constant 0 : index
    %c0_34 = arith.constant 0 : index
    %61 = vector.load %arg4[%c0_33, %c0_34] : memref<800x128xf32, #tpu.memory_space<vmem>>, vector<160x128xf32>
    tpu.vector_store %arg4[%c0_33, %c0_34], %52 {strides = array<i32>} : memref<800x128xf32, #tpu.memory_space<vmem>>, vector<160x128xf32>,
    %cst_35 = arith.constant 0.000000e+00 : f32
    %62 = vector.broadcast %cst_35 : f32 to vector<160x128xf32>
    %c160 = arith.constant 160 : index
    %c0_36 = arith.constant 0 : index
    %63 = vector.load %arg5[%c160, %c0_36] : memref<928x240xbf16, #tpu.memory_space<vmem>>, vector<160x240xbf16>
    %c0_37 = arith.constant 0 : index
    %c0_38 = arith.constant 0 : index
    %c0_39 = arith.constant 0 : index
    %64 = vector.load %arg1[%c0_37, %c0_38, %c0_39] : memref<5x240x128xbf16, #tpu.memory_space<vmem>>, vector<1x240x128xbf16>
    %65 = vector.shape_cast %64 : vector<1x240x128xbf16> to vector<240x128xbf16>
    %cst_40 = arith.constant dense<0.000000e+00> : vector<160x128xf32>
    %66 = tpu.matmul %63, %65, %cst_40 {dimension_numbers = #tpu.dot_dimension_numbers<[1], [0], [0], [1], [0, 0, 1, 1], [], []>} : vector<160x240xbf16>, vector<240x128xbf16>, vector<160x128xf32> -> vector<160x128xf32>
    %67 = arith.addf %62, %66 : vector<160x128xf32>
    %c192 = arith.constant 192 : index
    %c0_41 = arith.constant 0 : index
    %68 = vector.load %arg5[%c192, %c0_41] : memref<928x240xbf16, #tpu.memory_space<vmem>>, vector<160x240xbf16>
    %c1_42 = arith.constant 1 : index
    %c0_43 = arith.constant 0 : index
    %c0_44 = arith.constant 0 : index
    %69 = vector.load %arg1[%c1_42, %c0_43, %c0_44] : memref<5x240x128xbf16, #tpu.memory_space<vmem>>, vector<1x240x128xbf16>
    %70 = vector.shape_cast %69 : vector<1x240x128xbf16> to vector<240x128xbf16>
    %cst_45 = arith.constant dense<0.000000e+00> : vector<160x128xf32>
    %71 = tpu.matmul %68, %70, %cst_45 {dimension_numbers = #tpu.dot_dimension_numbers<[1], [0], [0], [1], [0, 0, 1, 1], [], []>} : vector<160x240xbf16>, vector<240x128xbf16>, vector<160x128xf32> -> vector<160x128xf32>
    %72 = arith.addf %67, %71 : vector<160x128xf32>
    %c224 = arith.constant 224 : index
    %c0_46 = arith.constant 0 : index
    %73 = vector.load %arg5[%c224, %c0_46] : memref<928x240xbf16, #tpu.memory_space<vmem>>, vector<160x240xbf16>
    %c2_47 = arith.constant 2 : index
    %c0_48 = arith.constant 0 : index
    %c0_49 = arith.constant 0 : index
    %74 = vector.load %arg1[%c2_47, %c0_48, %c0_49] : memref<5x240x128xbf16, #tpu.memory_space<vmem>>, vector<1x240x128xbf16>
    %75 = vector.shape_cast %74 : vector<1x240x128xbf16> to vector<240x128xbf16>
    %cst_50 = arith.constant dense<0.000000e+00> : vector<160x128xf32>
    %76 = tpu.matmul %73, %75, %cst_50 {dimension_numbers = #tpu.dot_dimension_numbers<[1], [0], [0], [1], [0, 0, 1, 1], [], []>} : vector<160x240xbf16>, vector<240x128xbf16>, vector<160x128xf32> -> vector<160x128xf32>
    %77 = arith.addf %72, %76 : vector<160x128xf32>
    %c256 = arith.constant 256 : index
    %c0_51 = arith.constant 0 : index
    %78 = vector.load %arg5[%c256, %c0_51] : memref<928x240xbf16, #tpu.memory_space<vmem>>, vector<160x240xbf16>
    %c3_52 = arith.constant 3 : index
    %c0_53 = arith.constant 0 : index
    %c0_54 = arith.constant 0 : index
    %79 = vector.load %arg1[%c3_52, %c0_53, %c0_54] : memref<5x240x128xbf16, #tpu.memory_space<vmem>>, vector<1x240x128xbf16>
    %80 = vector.shape_cast %79 : vector<1x240x128xbf16> to vector<240x128xbf16>
    %cst_55 = arith.constant dense<0.000000e+00> : vector<160x128xf32>
    %81 = tpu.matmul %78, %80, %cst_55 {dimension_numbers = #tpu.dot_dimension_numbers<[1], [0], [0], [1], [0, 0, 1, 1], [], []>} : vector<160x240xbf16>, vector<240x128xbf16>, vector<160x128xf32> -> vector<160x128xf32>
    %82 = arith.addf %77, %81 : vector<160x128xf32>
    %c288 = arith.constant 288 : index
    %c0_56 = arith.constant 0 : index
    %83 = vector.load %arg5[%c288, %c0_56] : memref<928x240xbf16, #tpu.memory_space<vmem>>, vector<160x240xbf16>
    %c4_57 = arith.constant 4 : index
    %c0_58 = arith.constant 0 : index
    %c0_59 = arith.constant 0 : index
    %84 = vector.load %arg1[%c4_57, %c0_58, %c0_59] : memref<5x240x128xbf16, #tpu.memory_space<vmem>>, vector<1x240x128xbf16>
    %85 = vector.shape_cast %84 : vector<1x240x128xbf16> to vector<240x128xbf16>
    %cst_60 = arith.constant dense<0.000000e+00> : vector<160x128xf32>
    %86 = tpu.matmul %83, %85, %cst_60 {dimension_numbers = #tpu.dot_dimension_numbers<[1], [0], [0], [1], [0, 0, 1, 1], [], []>} : vector<160x240xbf16>, vector<240x128xbf16>, vector<160x128xf32> -> vector<160x128xf32>
    %87 = arith.addf %82, %86 : vector<160x128xf32>
    %88 = arith.mulf %87, %24 : vector<160x128xf32>
    %cst_61 = arith.constant dense<0.000000e+00> : vector<128xf32>
    %89 = vector.multi_reduction <add>, %88, %cst_61 [0] : vector<160x128xf32> to vector<128xf32>
    %90 = vector.shape_cast %89 : vector<128xf32> to vector<1x128xf32>
    %91 = arith.addf %56, %90 : vector<1x128xf32>
    %92 = arith.mulf %88, %88 : vector<160x128xf32>
    %cst_62 = arith.constant dense<0.000000e+00> : vector<128xf32>
    %93 = vector.multi_reduction <add>, %92, %cst_62 [0] : vector<160x128xf32> to vector<128xf32>
    %94 = vector.shape_cast %93 : vector<128xf32> to vector<1x128xf32>
    %95 = arith.addf %60, %94 : vector<1x128xf32>
    %c160_63 = arith.constant 160 : index
    %c0_64 = arith.constant 0 : index
    %96 = vector.load %arg4[%c160_63, %c0_64] : memref<800x128xf32, #tpu.memory_space<vmem>>, vector<160x128xf32>
    tpu.vector_store %arg4[%c160_63, %c0_64], %87 {strides = array<i32>} : memref<800x128xf32, #tpu.memory_space<vmem>>, vector<160x128xf32>,
    %cst_65 = arith.constant 0.000000e+00 : f32
    %97 = vector.broadcast %cst_65 : f32 to vector<160x128xf32>
    %c320 = arith.constant 320 : index
    %c0_66 = arith.constant 0 : index
    %98 = vector.load %arg5[%c320, %c0_66] : memref<928x240xbf16, #tpu.memory_space<vmem>>, vector<160x240xbf16>
    %c0_67 = arith.constant 0 : index
    %c0_68 = arith.constant 0 : index
    %c0_69 = arith.constant 0 : index
    %99 = vector.load %arg1[%c0_67, %c0_68, %c0_69] : memref<5x240x128xbf16, #tpu.memory_space<vmem>>, vector<1x240x128xbf16>
    %100 = vector.shape_cast %99 : vector<1x240x128xbf16> to vector<240x128xbf16>
    %cst_70 = arith.constant dense<0.000000e+00> : vector<160x128xf32>
    %101 = tpu.matmul %98, %100, %cst_70 {dimension_numbers = #tpu.dot_dimension_numbers<[1], [0], [0], [1], [0, 0, 1, 1], [], []>} : vector<160x240xbf16>, vector<240x128xbf16>, vector<160x128xf32> -> vector<160x128xf32>
    %102 = arith.addf %97, %101 : vector<160x128xf32>
    %c352 = arith.constant 352 : index
    %c0_71 = arith.constant 0 : index
    %103 = vector.load %arg5[%c352, %c0_71] : memref<928x240xbf16, #tpu.memory_space<vmem>>, vector<160x240xbf16>
    %c1_72 = arith.constant 1 : index
    %c0_73 = arith.constant 0 : index
    %c0_74 = arith.constant 0 : index
    %104 = vector.load %arg1[%c1_72, %c0_73, %c0_74] : memref<5x240x128xbf16, #tpu.memory_space<vmem>>, vector<1x240x128xbf16>
    %105 = vector.shape_cast %104 : vector<1x240x128xbf16> to vector<240x128xbf16>
    %cst_75 = arith.constant dense<0.000000e+00> : vector<160x128xf32>
    %106 = tpu.matmul %103, %105, %cst_75 {dimension_numbers = #tpu.dot_dimension_numbers<[1], [0], [0], [1], [0, 0, 1, 1], [], []>} : vector<160x240xbf16>, vector<240x128xbf16>, vector<160x128xf32> -> vector<160x128xf32>
    %107 = arith.addf %102, %106 : vector<160x128xf32>
    %c384 = arith.constant 384 : index
    %c0_76 = arith.constant 0 : index
    %108 = vector.load %arg5[%c384, %c0_76] : memref<928x240xbf16, #tpu.memory_space<vmem>>, vector<160x240xbf16>
    %c2_77 = arith.constant 2 : index
    %c0_78 = arith.constant 0 : index
    %c0_79 = arith.constant 0 : index
    %109 = vector.load %arg1[%c2_77, %c0_78, %c0_79] : memref<5x240x128xbf16, #tpu.memory_space<vmem>>, vector<1x240x128xbf16>
    %110 = vector.shape_cast %109 : vector<1x240x128xbf16> to vector<240x128xbf16>
    %cst_80 = arith.constant dense<0.000000e+00> : vector<160x128xf32>
    %111 = tpu.matmul %108, %110, %cst_80 {dimension_numbers = #tpu.dot_dimension_numbers<[1], [0], [0], [1], [0, 0, 1, 1], [], []>} : vector<160x240xbf16>, vector<240x128xbf16>, vector<160x128xf32> -> vector<160x128xf32>
    %112 = arith.addf %107, %111 : vector<160x128xf32>
    %c416 = arith.constant 416 : index
    %c0_81 = arith.constant 0 : index
    %113 = vector.load %arg5[%c416, %c0_81] : memref<928x240xbf16, #tpu.memory_space<vmem>>, vector<160x240xbf16>
    %c3_82 = arith.constant 3 : index
    %c0_83 = arith.constant 0 : index
    %c0_84 = arith.constant 0 : index
    %114 = vector.load %arg1[%c3_82, %c0_83, %c0_84] : memref<5x240x128xbf16, #tpu.memory_space<vmem>>, vector<1x240x128xbf16>
    %115 = vector.shape_cast %114 : vector<1x240x128xbf16> to vector<240x128xbf16>
    %cst_85 = arith.constant dense<0.000000e+00> : vector<160x128xf32>
    %116 = tpu.matmul %113, %115, %cst_85 {dimension_numbers = #tpu.dot_dimension_numbers<[1], [0], [0], [1], [0, 0, 1, 1], [], []>} : vector<160x240xbf16>, vector<240x128xbf16>, vector<160x128xf32> -> vector<160x128xf32>
    %117 = arith.addf %112, %116 : vector<160x128xf32>
    %c448 = arith.constant 448 : index
    %c0_86 = arith.constant 0 : index
    %118 = vector.load %arg5[%c448, %c0_86] : memref<928x240xbf16, #tpu.memory_space<vmem>>, vector<160x240xbf16>
    %c4_87 = arith.constant 4 : index
    %c0_88 = arith.constant 0 : index
    %c0_89 = arith.constant 0 : index
    %119 = vector.load %arg1[%c4_87, %c0_88, %c0_89] : memref<5x240x128xbf16, #tpu.memory_space<vmem>>, vector<1x240x128xbf16>
    %120 = vector.shape_cast %119 : vector<1x240x128xbf16> to vector<240x128xbf16>
    %cst_90 = arith.constant dense<0.000000e+00> : vector<160x128xf32>
    %121 = tpu.matmul %118, %120, %cst_90 {dimension_numbers = #tpu.dot_dimension_numbers<[1], [0], [0], [1], [0, 0, 1, 1], [], []>} : vector<160x240xbf16>, vector<240x128xbf16>, vector<160x128xf32> -> vector<160x128xf32>
    %122 = arith.addf %117, %121 : vector<160x128xf32>
    %123 = arith.mulf %122, %24 : vector<160x128xf32>
    %cst_91 = arith.constant dense<0.000000e+00> : vector<128xf32>
    %124 = vector.multi_reduction <add>, %123, %cst_91 [0] : vector<160x128xf32> to vector<128xf32>
    %125 = vector.shape_cast %124 : vector<128xf32> to vector<1x128xf32>
    %126 = arith.addf %91, %125 : vector<1x128xf32>
    %127 = arith.mulf %123, %123 : vector<160x128xf32>
    %cst_92 = arith.constant dense<0.000000e+00> : vector<128xf32>
    %128 = vector.multi_reduction <add>, %127, %cst_92 [0] : vector<160x128xf32> to vector<128xf32>
    %129 = vector.shape_cast %128 : vector<128xf32> to vector<1x128xf32>
    %130 = arith.addf %95, %129 : vector<1x128xf32>
    %c320_93 = arith.constant 320 : index
    %c0_94 = arith.constant 0 : index
    %131 = vector.load %arg4[%c320_93, %c0_94] : memref<800x128xf32, #tpu.memory_space<vmem>>, vector<160x128xf32>
    tpu.vector_store %arg4[%c320_93, %c0_94], %122 {strides = array<i32>} : memref<800x128xf32, #tpu.memory_space<vmem>>, vector<160x128xf32>,
    %cst_95 = arith.constant 0.000000e+00 : f32
    %132 = vector.broadcast %cst_95 : f32 to vector<160x128xf32>
    %c480 = arith.constant 480 : index
    %c0_96 = arith.constant 0 : index
    %133 = vector.load %arg5[%c480, %c0_96] : memref<928x240xbf16, #tpu.memory_space<vmem>>, vector<160x240xbf16>
    %c0_97 = arith.constant 0 : index
    %c0_98 = arith.constant 0 : index
    %c0_99 = arith.constant 0 : index
    %134 = vector.load %arg1[%c0_97, %c0_98, %c0_99] : memref<5x240x128xbf16, #tpu.memory_space<vmem>>, vector<1x240x128xbf16>
    %135 = vector.shape_cast %134 : vector<1x240x128xbf16> to vector<240x128xbf16>
    %cst_100 = arith.constant dense<0.000000e+00> : vector<160x128xf32>
    %136 = tpu.matmul %133, %135, %cst_100 {dimension_numbers = #tpu.dot_dimension_numbers<[1], [0], [0], [1], [0, 0, 1, 1], [], []>} : vector<160x240xbf16>, vector<240x128xbf16>, vector<160x128xf32> -> vector<160x128xf32>
    %137 = arith.addf %132, %136 : vector<160x128xf32>
    %c512 = arith.constant 512 : index
    %c0_101 = arith.constant 0 : index
    %138 = vector.load %arg5[%c512, %c0_101] : memref<928x240xbf16, #tpu.memory_space<vmem>>, vector<160x240xbf16>
    %c1_102 = arith.constant 1 : index
    %c0_103 = arith.constant 0 : index
    %c0_104 = arith.constant 0 : index
    %139 = vector.load %arg1[%c1_102, %c0_103, %c0_104] : memref<5x240x128xbf16, #tpu.memory_space<vmem>>, vector<1x240x128xbf16>
    %140 = vector.shape_cast %139 : vector<1x240x128xbf16> to vector<240x128xbf16>
    %cst_105 = arith.constant dense<0.000000e+00> : vector<160x128xf32>
    %141 = tpu.matmul %138, %140, %cst_105 {dimension_numbers = #tpu.dot_dimension_numbers<[1], [0], [0], [1], [0, 0, 1, 1], [], []>} : vector<160x240xbf16>, vector<240x128xbf16>, vector<160x128xf32> -> vector<160x128xf32>
    %142 = arith.addf %137, %141 : vector<160x128xf32>
    %c544 = arith.constant 544 : index
    %c0_106 = arith.constant 0 : index
    %143 = vector.load %arg5[%c544, %c0_106] : memref<928x240xbf16, #tpu.memory_space<vmem>>, vector<160x240xbf16>
    %c2_107 = arith.constant 2 : index
    %c0_108 = arith.constant 0 : index
    %c0_109 = arith.constant 0 : index
    %144 = vector.load %arg1[%c2_107, %c0_108, %c0_109] : memref<5x240x128xbf16, #tpu.memory_space<vmem>>, vector<1x240x128xbf16>
    %145 = vector.shape_cast %144 : vector<1x240x128xbf16> to vector<240x128xbf16>
    %cst_110 = arith.constant dense<0.000000e+00> : vector<160x128xf32>
    %146 = tpu.matmul %143, %145, %cst_110 {dimension_numbers = #tpu.dot_dimension_numbers<[1], [0], [0], [1], [0, 0, 1, 1], [], []>} : vector<160x240xbf16>, vector<240x128xbf16>, vector<160x128xf32> -> vector<160x128xf32>
    %147 = arith.addf %142, %146 : vector<160x128xf32>
    %c576 = arith.constant 576 : index
    %c0_111 = arith.constant 0 : index
    %148 = vector.load %arg5[%c576, %c0_111] : memref<928x240xbf16, #tpu.memory_space<vmem>>, vector<160x240xbf16>
    %c3_112 = arith.constant 3 : index
    %c0_113 = arith.constant 0 : index
    %c0_114 = arith.constant 0 : index
    %149 = vector.load %arg1[%c3_112, %c0_113, %c0_114] : memref<5x240x128xbf16, #tpu.memory_space<vmem>>, vector<1x240x128xbf16>
    %150 = vector.shape_cast %149 : vector<1x240x128xbf16> to vector<240x128xbf16>
    %cst_115 = arith.constant dense<0.000000e+00> : vector<160x128xf32>
    %151 = tpu.matmul %148, %150, %cst_115 {dimension_numbers = #tpu.dot_dimension_numbers<[1], [0], [0], [1], [0, 0, 1, 1], [], []>} : vector<160x240xbf16>, vector<240x128xbf16>, vector<160x128xf32> -> vector<160x128xf32>
    %152 = arith.addf %147, %151 : vector<160x128xf32>
    %c608 = arith.constant 608 : index
    %c0_116 = arith.constant 0 : index
    %153 = vector.load %arg5[%c608, %c0_116] : memref<928x240xbf16, #tpu.memory_space<vmem>>, vector<160x240xbf16>
    %c4_117 = arith.constant 4 : index
    %c0_118 = arith.constant 0 : index
    %c0_119 = arith.constant 0 : index
    %154 = vector.load %arg1[%c4_117, %c0_118, %c0_119] : memref<5x240x128xbf16, #tpu.memory_space<vmem>>, vector<1x240x128xbf16>
    %155 = vector.shape_cast %154 : vector<1x240x128xbf16> to vector<240x128xbf16>
    %cst_120 = arith.constant dense<0.000000e+00> : vector<160x128xf32>
    %156 = tpu.matmul %153, %155, %cst_120 {dimension_numbers = #tpu.dot_dimension_numbers<[1], [0], [0], [1], [0, 0, 1, 1], [], []>} : vector<160x240xbf16>, vector<240x128xbf16>, vector<160x128xf32> -> vector<160x128xf32>
    %157 = arith.addf %152, %156 : vector<160x128xf32>
    %158 = arith.mulf %157, %24 : vector<160x128xf32>
    %cst_121 = arith.constant dense<0.000000e+00> : vector<128xf32>
    %159 = vector.multi_reduction <add>, %158, %cst_121 [0] : vector<160x128xf32> to vector<128xf32>
    %160 = vector.shape_cast %159 : vector<128xf32> to vector<1x128xf32>
    %161 = arith.addf %126, %160 : vector<1x128xf32>
    %162 = arith.mulf %158, %158 : vector<160x128xf32>
    %cst_122 = arith.constant dense<0.000000e+00> : vector<128xf32>
    %163 = vector.multi_reduction <add>, %162, %cst_122 [0] : vector<160x128xf32> to vector<128xf32>
    %164 = vector.shape_cast %163 : vector<128xf32> to vector<1x128xf32>
    %165 = arith.addf %130, %164 : vector<1x128xf32>
    %c480_123 = arith.constant 480 : index
    %c0_124 = arith.constant 0 : index
    %166 = vector.load %arg4[%c480_123, %c0_124] : memref<800x128xf32, #tpu.memory_space<vmem>>, vector<160x128xf32>
    tpu.vector_store %arg4[%c480_123, %c0_124], %157 {strides = array<i32>} : memref<800x128xf32, #tpu.memory_space<vmem>>, vector<160x128xf32>,
    %cst_125 = arith.constant 0.000000e+00 : f32
    %167 = vector.broadcast %cst_125 : f32 to vector<160x128xf32>
    %c640 = arith.constant 640 : index
    %c0_126 = arith.constant 0 : index
    %168 = vector.load %arg5[%c640, %c0_126] : memref<928x240xbf16, #tpu.memory_space<vmem>>, vector<160x240xbf16>
    %c0_127 = arith.constant 0 : index
    %c0_128 = arith.constant 0 : index
    %c0_129 = arith.constant 0 : index
    %169 = vector.load %arg1[%c0_127, %c0_128, %c0_129] : memref<5x240x128xbf16, #tpu.memory_space<vmem>>, vector<1x240x128xbf16>
    %170 = vector.shape_cast %169 : vector<1x240x128xbf16> to vector<240x128xbf16>
    %cst_130 = arith.constant dense<0.000000e+00> : vector<160x128xf32>
    %171 = tpu.matmul %168, %170, %cst_130 {dimension_numbers = #tpu.dot_dimension_numbers<[1], [0], [0], [1], [0, 0, 1, 1], [], []>} : vector<160x240xbf16>, vector<240x128xbf16>, vector<160x128xf32> -> vector<160x128xf32>
    %172 = arith.addf %167, %171 : vector<160x128xf32>
    %c672 = arith.constant 672 : index
    %c0_131 = arith.constant 0 : index
    %173 = vector.load %arg5[%c672, %c0_131] : memref<928x240xbf16, #tpu.memory_space<vmem>>, vector<160x240xbf16>
    %c1_132 = arith.constant 1 : index
    %c0_133 = arith.constant 0 : index
    %c0_134 = arith.constant 0 : index
    %174 = vector.load %arg1[%c1_132, %c0_133, %c0_134] : memref<5x240x128xbf16, #tpu.memory_space<vmem>>, vector<1x240x128xbf16>
    %175 = vector.shape_cast %174 : vector<1x240x128xbf16> to vector<240x128xbf16>
    %cst_135 = arith.constant dense<0.000000e+00> : vector<160x128xf32>
    %176 = tpu.matmul %173, %175, %cst_135 {dimension_numbers = #tpu.dot_dimension_numbers<[1], [0], [0], [1], [0, 0, 1, 1], [], []>} : vector<160x240xbf16>, vector<240x128xbf16>, vector<160x128xf32> -> vector<160x128xf32>
    %177 = arith.addf %172, %176 : vector<160x128xf32>
    %c704 = arith.constant 704 : index
    %c0_136 = arith.constant 0 : index
    %178 = vector.load %arg5[%c704, %c0_136] : memref<928x240xbf16, #tpu.memory_space<vmem>>, vector<160x240xbf16>
    %c2_137 = arith.constant 2 : index
    %c0_138 = arith.constant 0 : index
    %c0_139 = arith.constant 0 : index
    %179 = vector.load %arg1[%c2_137, %c0_138, %c0_139] : memref<5x240x128xbf16, #tpu.memory_space<vmem>>, vector<1x240x128xbf16>
    %180 = vector.shape_cast %179 : vector<1x240x128xbf16> to vector<240x128xbf16>
    %cst_140 = arith.constant dense<0.000000e+00> : vector<160x128xf32>
    %181 = tpu.matmul %178, %180, %cst_140 {dimension_numbers = #tpu.dot_dimension_numbers<[1], [0], [0], [1], [0, 0, 1, 1], [], []>} : vector<160x240xbf16>, vector<240x128xbf16>, vector<160x128xf32> -> vector<160x128xf32>
    %182 = arith.addf %177, %181 : vector<160x128xf32>
    %c736 = arith.constant 736 : index
    %c0_141 = arith.constant 0 : index
    %183 = vector.load %arg5[%c736, %c0_141] : memref<928x240xbf16, #tpu.memory_space<vmem>>, vector<160x240xbf16>
    %c3_142 = arith.constant 3 : index
    %c0_143 = arith.constant 0 : index
    %c0_144 = arith.constant 0 : index
    %184 = vector.load %arg1[%c3_142, %c0_143, %c0_144] : memref<5x240x128xbf16, #tpu.memory_space<vmem>>, vector<1x240x128xbf16>
    %185 = vector.shape_cast %184 : vector<1x240x128xbf16> to vector<240x128xbf16>
    %cst_145 = arith.constant dense<0.000000e+00> : vector<160x128xf32>
    %186 = tpu.matmul %183, %185, %cst_145 {dimension_numbers = #tpu.dot_dimension_numbers<[1], [0], [0], [1], [0, 0, 1, 1], [], []>} : vector<160x240xbf16>, vector<240x128xbf16>, vector<160x128xf32> -> vector<160x128xf32>
    %187 = arith.addf %182, %186 : vector<160x128xf32>
    %c768 = arith.constant 768 : index
    %c0_146 = arith.constant 0 : index
    %188 = vector.load %arg5[%c768, %c0_146] : memref<928x240xbf16, #tpu.memory_space<vmem>>, vector<160x240xbf16>
    %c4_147 = arith.constant 4 : index
    %c0_148 = arith.constant 0 : index
    %c0_149 = arith.constant 0 : index
    %189 = vector.load %arg1[%c4_147, %c0_148, %c0_149] : memref<5x240x128xbf16, #tpu.memory_space<vmem>>, vector<1x240x128xbf16>
    %190 = vector.shape_cast %189 : vector<1x240x128xbf16> to vector<240x128xbf16>
    %cst_150 = arith.constant dense<0.000000e+00> : vector<160x128xf32>
    %191 = tpu.matmul %188, %190, %cst_150 {dimension_numbers = #tpu.dot_dimension_numbers<[1], [0], [0], [1], [0, 0, 1, 1], [], []>} : vector<160x240xbf16>, vector<240x128xbf16>, vector<160x128xf32> -> vector<160x128xf32>
    %192 = arith.addf %187, %191 : vector<160x128xf32>
    %193 = arith.mulf %192, %24 : vector<160x128xf32>
    %cst_151 = arith.constant dense<0.000000e+00> : vector<128xf32>
    %194 = vector.multi_reduction <add>, %193, %cst_151 [0] : vector<160x128xf32> to vector<128xf32>
    %195 = vector.shape_cast %194 : vector<128xf32> to vector<1x128xf32>
    %196 = arith.addf %161, %195 : vector<1x128xf32>
    %197 = arith.mulf %193, %193 : vector<160x128xf32>
    %cst_152 = arith.constant dense<0.000000e+00> : vector<128xf32>
    %198 = vector.multi_reduction <add>, %197, %cst_152 [0] : vector<160x128xf32> to vector<128xf32>
    %199 = vector.shape_cast %198 : vector<128xf32> to vector<1x128xf32>
    %200 = arith.addf %165, %199 : vector<1x128xf32>
    %c640_153 = arith.constant 640 : index
    %c0_154 = arith.constant 0 : index
    %201 = vector.load %arg4[%c640_153, %c0_154] : memref<800x128xf32, #tpu.memory_space<vmem>>, vector<160x128xf32>
    tpu.vector_store %arg4[%c640_153, %c0_154], %192 {strides = array<i32>} : memref<800x128xf32, #tpu.memory_space<vmem>>, vector<160x128xf32>,
    %cst_155 = arith.constant 1.600000e-03 : f32
    %202 = vector.broadcast %cst_155 : f32 to vector<1x128xf32>
    %203 = arith.mulf %196, %202 : vector<1x128xf32>
    %cst_156 = arith.constant 1.600000e-03 : f32
    %204 = vector.broadcast %cst_156 : f32 to vector<1x128xf32>
    %205 = arith.mulf %200, %204 : vector<1x128xf32>
    %206 = arith.mulf %203, %203 : vector<1x128xf32>
    %207 = arith.subf %205, %206 : vector<1x128xf32>
    %cst_157 = arith.constant 0.000000e+00 : f32
    %208 = vector.broadcast %cst_157 : f32 to vector<1x128xf32>
    %209 = arith.maximumf %207, %208 : vector<1x128xf32>
    %c0_158 = arith.constant 0 : index
    %c0_159 = arith.constant 0 : index
    %210 = vector.load %arg2[%c0_158, %c0_159] : memref<1x128xf32, #tpu.memory_space<vmem>>, vector<1x128xf32>
    %cst_160 = arith.constant 1.000000e-03 : f32
    %211 = vector.broadcast %cst_160 : f32 to vector<1x128xf32>
    %212 = arith.addf %209, %211 : vector<1x128xf32>
    %213 = math.rsqrt %212 : vector<1x128xf32>
    %214 = arith.mulf %210, %213 : vector<1x128xf32>
    %c0_161 = arith.constant 0 : index
    %c0_162 = arith.constant 0 : index
    %215 = vector.load %arg3[%c0_161, %c0_162] : memref<1x128xf32, #tpu.memory_space<vmem>>, vector<1x128xf32>
    %216 = arith.mulf %203, %214 : vector<1x128xf32>
    %217 = arith.subf %215, %216 : vector<1x128xf32>
    %c0_163 = arith.constant 0 : index
    %c0_164 = arith.constant 0 : index
    %218 = vector.load %arg4[%c0_163, %c0_164] : memref<800x128xf32, #tpu.memory_space<vmem>>, vector<800x128xf32>
    %219 = vector.broadcast %214 : vector<1x128xf32> to vector<800x128xf32>
    %220 = arith.mulf %218, %219 : vector<800x128xf32>
    %221 = vector.broadcast %217 : vector<1x128xf32> to vector<800x128xf32>
    %222 = arith.addf %220, %221 : vector<800x128xf32>
    %cst_165 = arith.constant 0.000000e+00 : f32
    %223 = vector.broadcast %cst_165 : f32 to vector<800x128xf32>
    %224 = arith.maximumf %222, %223 : vector<800x128xf32>
    %c0_166 = arith.constant 0 : index
    %c0_167 = arith.constant 0 : index
    %225 = vector.load %arg4[%c0_166, %c0_167] : memref<800x128xf32, #tpu.memory_space<vmem>>, vector<800x128xf32>
    tpu.vector_store %arg4[%c0_166, %c0_167], %224 {strides = array<i32>} : memref<800x128xf32, #tpu.memory_space<vmem>>, vector<800x128xf32>,
    return
  }
}

</mosaic_0001>

<llo_original>
// kernel: tpu_custom_call.1
$region0: #{tpu_custom_call.1}
  #allocation0 [shape = 'u32[]', space=smem, size = 0x4, offset = 0x4, fixed_abs, tag = 'smem constant byte address 0x4 - core index']
  #allocation1 [shape = 'u32[144,128]{1,0:T(1,128)}', space=vmem, size = 0x12000, scoped, tag = 'internal scratch']
  #allocation2 [shape = 'bf16[928,240]{1,0:T(16,128)(2,1)}', space=vmem, size = 0x74000, scoped, tag = 'scratch operand']
  %s0 = inlined_call_operand.hbm [shape: bf16[928,240], index: 0, kind: input, shape index: {}]
  %s1 = inlined_call_operand.hbm [shape: bf16[5,240,128], index: 1, kind: input, shape index: {}]
  %s2 = inlined_call_operand.vmem [shape: f32[1,128], index: 2, kind: input, shape index: {}]
  %s3 = inlined_call_operand.vmem [shape: f32[1,128], index: 3, kind: input, shape index: {}]
  %s4 = inlined_call_operand.hbm [shape: f32[800,128], index: 4, kind: output, shape index: {}]
  %s5 = sld [smem:[#allocation0]]
  $region34: #{tpu_custom_call.1} parent=0
    _
  %s7 = ssub.s32 1, %s5
  %s8 = scalar_select 0, %s7, %s5
  $region1: #{tpu_custom_call.1} parent=0
    #allocation3 [shape = 'u8[475136]{0}', space=vmem, size = 0x74000, scoped, tag = 'input window, operand 0, single buffered']
    #allocation4 [shape = 's32[1]{0}', space=sflag, size = 0x4, scoped, tag = 'scoped memory for tpu_custom_call.1']
    #allocation5 [shape = 's32[1]{0}', space=sflag, size = 0x4, scoped, tag = 'scoped memory for tpu_custom_call.1']
    #allocation6 [shape = 'u8[307200]{0}', space=vmem, size = 0x4b000, scoped, tag = 'input window, operand 1, single buffered']
    #allocation7 [shape = 's32[1]{0}', space=sflag, size = 0x4, scoped, tag = 'scoped memory for tpu_custom_call.1']
    #allocation8 [shape = 'u8[409600]{0}', space=vmem, size = 0x64000, scoped, tag = 'output window, operand 0, single buffered']
    %9 = vsyncpa [#allocation4], 0
    %10 = vsyncpa [#allocation7], 0
    %11 = vsyncpa [#allocation5], 0
    // Predicated region
    $region2: #{tpu_custom_call.1} parent=1 // pred_check
      _
    $region3: #{tpu_custom_call.1} parent=1 // pred_check_branch
      %13 = sbr.rel (0) target = $region5
    $region4: #{tpu_custom_call.1} parent=1 // pred_region
      %s15 = ssub.s32 14848, 14848
      %16 = vsyncadd [#allocation4], %s15
      %s17 = sshll.u32 [#allocation3], 4
      %s18 = int_to_ptr.vmem [resolvable:$true] %s17
      %23 = dma.hbm_to_vmem [thread:$0]  %s0, 14848, %s18, [#allocation4], 128, 128, 8
    $region5: #{tpu_custom_call.1} parent=1 // pred_fallthru
      _
    // Predicated region
    $region6: #{tpu_custom_call.1} parent=1 // pred_check
      _
    $region7: #{tpu_custom_call.1} parent=1 // pred_check_branch
      %25 = sbr.rel (0) target = $region9
    $region8: #{tpu_custom_call.1} parent=1 // pred_region
      %s27 = ssub.s32 9600, 9600
      %28 = vsyncadd [#allocation7], %s27
      %s29 = sshll.u32 [#allocation6], 4
      %s30 = int_to_ptr.vmem [resolvable:$true] %s29
      %35 = dma.hbm_to_vmem [thread:$0]  %s1, 9600, %s30, [#allocation7], 64, 64, 4
    $region9: #{tpu_custom_call.1} parent=1 // pred_fallthru
      _
    // Predicated region
    $region10: #{tpu_custom_call.1} parent=1 // pred_check
      _
    $region11: #{tpu_custom_call.1} parent=1 // pred_check_branch
      %37 = sbr.rel (0) target = $region13
    $region12: #{tpu_custom_call.1} parent=1 // pred_region
      _
    $region13: #{tpu_custom_call.1} parent=1 // pred_fallthru
      _
    // Predicated region
    $region14: #{tpu_custom_call.1} parent=1 // pred_check
      _
    $region15: #{tpu_custom_call.1} parent=1 // pred_check_branch
      %39 = sbr.rel (0) target = $region17
    $region16: #{tpu_custom_call.1} parent=1 // pred_region
      _
    $region17: #{tpu_custom_call.1} parent=1 // pred_fallthru
      _
    // Predicated region
    $region18: #{tpu_custom_call.1} parent=1 // pred_check
      _
    $region19: #{tpu_custom_call.1} parent=1 // pred_check_branch
      %41 = sbr.rel (0) target = $region21
    $region20: #{tpu_custom_call.1} parent=1 // pred_region
      %42 = dma.done [#allocation4], 14848
    $region21: #{tpu_custom_call.1} parent=1 // pred_fallthru
      _
    // Predicated region
    $region22: #{tpu_custom_call.1} parent=1 // pred_check
      _
    $region23: #{tpu_custom_call.1} parent=1 // pred_check_branch
      %44 = sbr.rel (0) target = $region25
    $region24: #{tpu_custom_call.1} parent=1 // pred_region
      %45 = dma.done [#allocation7], 9600
    $region25: #{tpu_custom_call.1} parent=1 // pred_fallthru
      _
    %v47 = vld [vmem:[#allocation3] sm:$0xff]
    %v48 = vld [vmem:[#allocation3 + $0x8] sm:$0xff]
    %v49 = vld [vmem:[#allocation3 + $0x10] sm:$0xff]
    %v50 = vld [vmem:[#allocation3 + $0x18] sm:$0xff]
    %v51 = vld [vmem:[#allocation3 + $0x20] sm:$0xff]
    %v52 = vld [vmem:[#allocation3 + $0x28] sm:$0xff]
    %v53 = vld [vmem:[#allocation3 + $0x30] sm:$0xff]
    %v54 = vld [vmem:[#allocation3 + $0x38] sm:$0xff]
    %v55 = vld [vmem:[#allocation3 + $0x40] sm:$0xff]
    %v56 = vld [vmem:[#allocation3 + $0x48] sm:$0xff]
    %v57 = vld [vmem:[#allocation3 + $0x50] sm:$0xff]
    %v58 = vld [vmem:[#allocation3 + $0x58] sm:$0xff]
    %v59 = vld [vmem:[#allocation3 + $0x60] sm:$0xff]
    %v60 = vld [vmem:[#allocation3 + $0x68] sm:$0xff]
    %v61 = vld [vmem:[#allocation3 + $0x70] sm:$0xff]
    %v62 = vld [vmem:[#allocation3 + $0x78] sm:$0xff]
    %v63 = vld [vmem:[#allocation3 + $0x80] sm:$0xff]
    %v64 = vld [vmem:[#allocation3 + $0x88] sm:$0xff]
    %v65 = vld [vmem:[#allocation3 + $0x90] sm:$0xff]
    %v66 = vld [vmem:[#allocation3 + $0x98] sm:$0xff]
    %v67 = vld [vmem:[#allocation3 + $0xa0] sm:$0xff]
    %v68 = vld [vmem:[#allocation3 + $0xa8] sm:$0xff]
    %v69 = vld [vmem:[#allocation3 + $0xb0] sm:$0xff]
    %v70 = vld [vmem:[#allocation3 + $0xb8] sm:$0xff]
    %v71 = vld [vmem:[#allocation3 + $0xc0] sm:$0xff]
    %v72 = vld [vmem:[#allocation3 + $0xc8] sm:$0xff]
    %v73 = vld [vmem:[#allocation3 + $0xd0] sm:$0xff]
    %v74 = vld [vmem:[#allocation3 + $0xd8] sm:$0xff]
    %v75 = vld [vmem:[#allocation3 + $0xe0] sm:$0xff]
    %v76 = vld [vmem:[#allocation3 + $0xe8] sm:$0xff]
    %v77 = vld [vmem:[#allocation3 + $0xf0] sm:$0xff]
    %v78 = vld [vmem:[#allocation3 + $0xf8] sm:$0xff]
    %v79 = vld [vmem:[#allocation3 + $0x100] sm:$0xff]
    %v80 = vld [vmem:[#allocation3 + $0x108] sm:$0xff]
    %v81 = vld [vmem:[#allocation3 + $0x110] sm:$0xff]
    %v82 = vld [vmem:[#allocation3 + $0x118] sm:$0xff]
    %v83 = vld [vmem:[#allocation3 + $0x120] sm:$0xff]
    %v84 = vld [vmem:[#allocation3 + $0x128] sm:$0xff]
    %v85 = vld [vmem:[#allocation3 + $0x130] sm:$0xff]
    %v86 = vld [vmem:[#allocation3 + $0x138] sm:$0xff]
    %v87 = vld [vmem:[#allocation3 + $0x140] sm:$0xff]
    %v88 = vld [vmem:[#allocation3 + $0x148] sm:$0xff]
    %v89 = vld [vmem:[#allocation3 + $0x150] sm:$0xff]
    %v90 = vld [vmem:[#allocation3 + $0x158] sm:$0xff]
    %v91 = vld [vmem:[#allocation3 + $0x160] sm:$0xff]
    %v92 = vld [vmem:[#allocation3 + $0x168] sm:$0xff]
    %v93 = vld [vmem:[#allocation3 + $0x170] sm:$0xff]
    %v94 = vld [vmem:[#allocation3 + $0x178] sm:$0xff]
    %v95 = vld [vmem:[#allocation3 + $0x180] sm:$0xff]
    %v96 = vld [vmem:[#allocation3 + $0x188] sm:$0xff]
    %v97 = vld [vmem:[#allocation3 + $0x190] sm:$0xff]
    %v98 = vld [vmem:[#allocation3 + $0x198] sm:$0xff]
    %v99 = vld [vmem:[#allocation3 + $0x1a0] sm:$0xff]
    %v100 = vld [vmem:[#allocation3 + $0x1a8] sm:$0xff]
    %v101 = vld [vmem:[#allocation3 + $0x1b0] sm:$0xff]
    %v102 = vld [vmem:[#allocation3 + $0x1b8] sm:$0xff]
    %v103 = vld [vmem:[#allocation3 + $0x1c0] sm:$0xff]
    %v104 = vld [vmem:[#allocation3 + $0x1c8] sm:$0xff]
    %v105 = vld [vmem:[#allocation3 + $0x1d0] sm:$0xff]
    %v106 = vld [vmem:[#allocation3 + $0x1d8] sm:$0xff]
    %v107 = vld [vmem:[#allocation3 + $0x1e0] sm:$0xff]
    %v108 = vld [vmem:[#allocation3 + $0x1e8] sm:$0xff]
    %v109 = vld [vmem:[#allocation3 + $0x1f0] sm:$0xff]
    %v110 = vld [vmem:[#allocation3 + $0x1f8] sm:$0xff]
    %v111 = vld [vmem:[#allocation3 + $0x200] sm:$0xff]
    %v112 = vld [vmem:[#allocation3 + $0x208] sm:$0xff]
    %v113 = vld [vmem:[#allocation3 + $0x210] sm:$0xff]
    %v114 = vld [vmem:[#allocation3 + $0x218] sm:$0xff]
    %v115 = vld [vmem:[#allocation3 + $0x220] sm:$0xff]
    %v116 = vld [vmem:[#allocation3 + $0x228] sm:$0xff]
    %v117 = vld [vmem:[#allocation3 + $0x230] sm:$0xff]
    %v118 = vld [vmem:[#allocation3 + $0x238] sm:$0xff]
    %v119 = vld [vmem:[#allocation3 + $0x240] sm:$0xff]
    %v120 = vld [vmem:[#allocation3 + $0x248] sm:$0xff]
    %v121 = vld [vmem:[#allocation3 + $0x250] sm:$0xff]
    %v122 = vld [vmem:[#allocation3 + $0x258] sm:$0xff]
    %v123 = vld [vmem:[#allocation3 + $0x260] sm:$0xff]
    %v124 = vld [vmem:[#allocation3 + $0x268] sm:$0xff]
    %v125 = vld [vmem:[#allocation3 + $0x270] sm:$0xff]
    %v126 = vld [vmem:[#allocation3 + $0x278] sm:$0xff]
    %v127 = vld [vmem:[#allocation3 + $0x280] sm:$0xff]
    %v128 = vld [vmem:[#allocation3 + $0x288] sm:$0xff]
    %v129 = vld [vmem:[#allocation3 + $0x290] sm:$0xff]
    %v130 = vld [vmem:[#allocation3 + $0x298] sm:$0xff]
    %v131 = vld [vmem:[#allocation3 + $0x2a0] sm:$0xff]
    %v132 = vld [vmem:[#allocation3 + $0x2a8] sm:$0xff]
    %v133 = vld [vmem:[#allocation3 + $0x2b0] sm:$0xff]
    %v134 = vld [vmem:[#allocation3 + $0x2b8] sm:$0xff]
    %v135 = vld [vmem:[#allocation3 + $0x2c0] sm:$0xff]
    %v136 = vld [vmem:[#allocation3 + $0x2c8] sm:$0xff]
    %v137 = vld [vmem:[#allocation3 + $0x2d0] sm:$0xff]
    %v138 = vld [vmem:[#allocation3 + $0x2d8] sm:$0xff]
    %v139 = vld [vmem:[#allocation3 + $0x2e0] sm:$0xff]
    %v140 = vld [vmem:[#allocation3 + $0x2e8] sm:$0xff]
    %v141 = vld [vmem:[#allocation3 + $0x2f0] sm:$0xff]
    %v142 = vld [vmem:[#allocation3 + $0x2f8] sm:$0xff]
    %v143 = vld [vmem:[#allocation3 + $0x300] sm:$0xff]
    %v144 = vld [vmem:[#allocation3 + $0x308] sm:$0xff]
    %v145 = vld [vmem:[#allocation3 + $0x310] sm:$0xff]
    %v146 = vld [vmem:[#allocation3 + $0x318] sm:$0xff]
    %v147 = vld [vmem:[#allocation3 + $0x320] sm:$0xff]
    %v148 = vld [vmem:[#allocation3 + $0x328] sm:$0xff]
    %v149 = vld [vmem:[#allocation3 + $0x330] sm:$0xff]
    %v150 = vld [vmem:[#allocation3 + $0x338] sm:$0xff]
    %v151 = vld [vmem:[#allocation3 + $0x340] sm:$0xff]
    %v152 = vld [vmem:[#allocation3 + $0x348] sm:$0xff]
    %v153 = vld [vmem:[#allocation3 + $0x350] sm:$0xff]
    %v154 = vld [vmem:[#allocation3 + $0x358] sm:$0xff]
    %v155 = vld [vmem:[#allocation3 + $0x360] sm:$0xff]
    %v156 = vld [vmem:[#allocation3 + $0x368] sm:$0xff]
    %v157 = vld [vmem:[#allocation3 + $0x370] sm:$0xff]
    %v158 = vld [vmem:[#allocation3 + $0x378] sm:$0xff]
    %v159 = vld [vmem:[#allocation3 + $0x380] sm:$0xff]
    %v160 = vld [vmem:[#allocation3 + $0x388] sm:$0xff]
    %v161 = vld [vmem:[#allocation3 + $0x390] sm:$0xff]
    %v162 = vld [vmem:[#allocation3 + $0x398] sm:$0xff]
    %v163 = vmax.bf16 %v47, 0
    %v164 = vmax.bf16 %v48, 0
    %v165 = vmax.bf16 %v49, 0
    %v166 = vmax.bf16 %v50, 0
    %v167 = vmax.bf16 %v51, 0
    %v168 = vmax.bf16 %v52, 0
    %v169 = vmax.bf16 %v53, 0
    %v170 = vmax.bf16 %v54, 0
    %v171 = vmax.bf16 %v55, 0
    %v172 = vmax.bf16 %v56, 0
    %v173 = vmax.bf16 %v57, 0
    %v174 = vmax.bf16 %v58, 0
    %v175 = vmax.bf16 %v59, 0
    %v176 = vmax.bf16 %v60, 0
    %v177 = vmax.bf16 %v61, 0
    %v178 = vmax.bf16 %v62, 0
    %v179 = vmax.bf16 %v63, 0
    %v180 = vmax.bf16 %v64, 0
    %v181 = vmax.bf16 %v65, 0
    %v182 = vmax.bf16 %v66, 0
    %v183 = vmax.bf16 %v67, 0
    %v184 = vmax.bf16 %v68, 0
    %v185 = vmax.bf16 %v69, 0
    %v186 = vmax.bf16 %v70, 0
    %v187 = vmax.bf16 %v71, 0
    %v188 = vmax.bf16 %v72, 0
    %v189 = vmax.bf16 %v73, 0
    %v190 = vmax.bf16 %v74, 0
    %v191 = vmax.bf16 %v75, 0
    %v192 = vmax.bf16 %v76, 0
    %v193 = vmax.bf16 %v77, 0
    %v194 = vmax.bf16 %v78, 0
    %v195 = vmax.bf16 %v79, 0
    %v196 = vmax.bf16 %v80, 0
    %v197 = vmax.bf16 %v81, 0
    %v198 = vmax.bf16 %v82, 0
    %v199 = vmax.bf16 %v83, 0
    %v200 = vmax.bf16 %v84, 0
    %v201 = vmax.bf16 %v85, 0
    %v202 = vmax.bf16 %v86, 0
    %v203 = vmax.bf16 %v87, 0
    %v204 = vmax.bf16 %v88, 0
    %v205 = vmax.bf16 %v89, 0
    %v206 = vmax.bf16 %v90, 0
    %v207 = vmax.bf16 %v91, 0
    %v208 = vmax.bf16 %v92, 0
    %v209 = vmax.bf16 %v93, 0
    %v210 = vmax.bf16 %v94, 0
    %v211 = vmax.bf16 %v95, 0
    %v212 = vmax.bf16 %v96, 0
    %v213 = vmax.bf16 %v97, 0
    %v214 = vmax.bf16 %v98, 0
    %v215 = vmax.bf16 %v99, 0
    %v216 = vmax.bf16 %v100, 0
    %v217 = vmax.bf16 %v101, 0
    %v218 = vmax.bf16 %v102, 0
    %v219 = vmax.bf16 %v103, 0
    %v220 = vmax.bf16 %v104, 0
    %v221 = vmax.bf16 %v105, 0
    %v222 = vmax.bf16 %v106, 0
    %v223 = vmax.bf16 %v107, 0
    %v224 = vmax.bf16 %v108, 0
    %v225 = vmax.bf16 %v109, 0
    %v226 = vmax.bf16 %v110, 0
    %v227 = vmax.bf16 %v111, 0
    %v228 = vmax.bf16 %v112, 0
    %v229 = vmax.bf16 %v113, 0
    %v230 = vmax.bf16 %v114, 0
    %v231 = vmax.bf16 %v115, 0
    %v232 = vmax.bf16 %v116, 0
    %v233 = vmax.bf16 %v117, 0
    %v234 = vmax.bf16 %v118, 0
    %v235 = vmax.bf16 %v119, 0
    %v236 = vmax.bf16 %v120, 0
    %v237 = vmax.bf16 %v121, 0
    %v238 = vmax.bf16 %v122, 0
    %v239 = vmax.bf16 %v123, 0
    %v240 = vmax.bf16 %v124, 0
    %v241 = vmax.bf16 %v125, 0
    %v242 = vmax.bf16 %v126, 0
    %v243 = vmax.bf16 %v127, 0
    %v244 = vmax.bf16 %v128, 0
    %v245 = vmax.bf16 %v129, 0
    %v246 = vmax.bf16 %v130, 0
    %v247 = vmax.bf16 %v131, 0
    %v248 = vmax.bf16 %v132, 0
    %v249 = vmax.bf16 %v133, 0
    %v250 = vmax.bf16 %v134, 0
    %v251 = vmax.bf16 %v135, 0
    %v252 = vmax.bf16 %v136, 0
    %v253 = vmax.bf16 %v137, 0
    %v254 = vmax.bf16 %v138, 0
    %v255 = vmax.bf16 %v139, 0
    %v256 = vmax.bf16 %v140, 0
    %v257 = vmax.bf16 %v141, 0
    %v258 = vmax.bf16 %v142, 0
    %v259 = vmax.bf16 %v143, 0
    %v260 = vmax.bf16 %v144, 0
    %v261 = vmax.bf16 %v145, 0
    %v262 = vmax.bf16 %v146, 0
    %v263 = vmax.bf16 %v147, 0
    %v264 = vmax.bf16 %v148, 0
    %v265 = vmax.bf16 %v149, 0
    %v266 = vmax.bf16 %v150, 0
    %v267 = vmax.bf16 %v151, 0
    %v268 = vmax.bf16 %v152, 0
    %v269 = vmax.bf16 %v153, 0
    %v270 = vmax.bf16 %v154, 0
    %v271 = vmax.bf16 %v155, 0
    %v272 = vmax.bf16 %v156, 0
    %v273 = vmax.bf16 %v157, 0
    %v274 = vmax.bf16 %v158, 0
    %v275 = vmax.bf16 %v159, 0
    %v276 = vmax.bf16 %v160, 0
    %v277 = vmax.bf16 %v161, 0
    %v278 = vmax.bf16 %v162, 0
    %v395 = vunpack.c.l.b16 %v163
    %v396 = vunpack.c.h.b16 %v163
    %v397 = vunpack.c.l.b16 %v164
    %v398 = vunpack.c.h.b16 %v164
    %v399 = vunpack.c.l.b16 %v165
    %v400 = vunpack.c.h.b16 %v165
    %v401 = vunpack.c.l.b16 %v166
    %v402 = vunpack.c.h.b16 %v166
    %v403 = vunpack.c.l.b16 %v167
    %v404 = vunpack.c.h.b16 %v167
    %v405 = vunpack.c.l.b16 %v168
    %v406 = vunpack.c.h.b16 %v168
    %v407 = vunpack.c.l.b16 %v169
    %v408 = vunpack.c.h.b16 %v169
    %v409 = vunpack.c.l.b16 %v170
    %v410 = vunpack.c.h.b16 %v170
    %v411 = vunpack.c.l.b16 %v171
    %v412 = vunpack.c.h.b16 %v171
    %v413 = vunpack.c.l.b16 %v172
    %v414 = vunpack.c.h.b16 %v172
    %v415 = vunpack.c.l.b16 %v173
    %v416 = vunpack.c.h.b16 %v173
    %v417 = vunpack.c.l.b16 %v174
    %v418 = vunpack.c.h.b16 %v174
    %v419 = vunpack.c.l.b16 %v175
    %v420 = vunpack.c.h.b16 %v175
    %v421 = vunpack.c.l.b16 %v176
    %v422 = vunpack.c.h.b16 %v176
    %v423 = vunpack.c.l.b16 %v177
    %v424 = vunpack.c.h.b16 %v177
    %v425 = vunpack.c.l.b16 %v178
    %v426 = vunpack.c.h.b16 %v178
    %v427 = vunpack.c.l.b16 %v179
    %v428 = vunpack.c.h.b16 %v179
    %v429 = vunpack.c.l.b16 %v180
    %v430 = vunpack.c.h.b16 %v180
    %v431 = vunpack.c.l.b16 %v181
    %v432 = vunpack.c.h.b16 %v181
    %v433 = vunpack.c.l.b16 %v182
    %v434 = vunpack.c.h.b16 %v182
    %v435 = vunpack.c.l.b16 %v183
    %v436 = vunpack.c.h.b16 %v183
    %v437 = vunpack.c.l.b16 %v184
    %v438 = vunpack.c.h.b16 %v184
    %v439 = vunpack.c.l.b16 %v185
    %v440 = vunpack.c.h.b16 %v185
    %v441 = vunpack.c.l.b16 %v186
    %v442 = vunpack.c.h.b16 %v186
    %v443 = vunpack.c.l.b16 %v187
    %v444 = vunpack.c.h.b16 %v187
    %v445 = vunpack.c.l.b16 %v188
    %v446 = vunpack.c.h.b16 %v188
    %v447 = vunpack.c.l.b16 %v189
    %v448 = vunpack.c.h.b16 %v189
    %v449 = vunpack.c.l.b16 %v190
    %v450 = vunpack.c.h.b16 %v190
    %v451 = vunpack.c.l.b16 %v191
    %v452 = vunpack.c.h.b16 %v191
    %v453 = vunpack.c.l.b16 %v192
    %v454 = vunpack.c.h.b16 %v192
    %v455 = vunpack.c.l.b16 %v193
    %v456 = vunpack.c.h.b16 %v193
    %v457 = vunpack.c.l.b16 %v194
    %v458 = vunpack.c.h.b16 %v194
    %v459 = vunpack.c.l.b16 %v195
    %v460 = vunpack.c.h.b16 %v195
    %v461 = vunpack.c.l.b16 %v196
    %v462 = vunpack.c.h.b16 %v196
    %v463 = vunpack.c.l.b16 %v197
    %v464 = vunpack.c.h.b16 %v197
    %v465 = vunpack.c.l.b16 %v198
    %v466 = vunpack.c.h.b16 %v198
    %v467 = vunpack.c.l.b16 %v199
    %v468 = vunpack.c.h.b16 %v199
    %v469 = vunpack.c.l.b16 %v200
    %v470 = vunpack.c.h.b16 %v200
    %v471 = vunpack.c.l.b16 %v201
    %v472 = vunpack.c.h.b16 %v201
    %v473 = vunpack.c.l.b16 %v202
    %v474 = vunpack.c.h.b16 %v202
    %v475 = vunpack.c.l.b16 %v203
    %v476 = vunpack.c.h.b16 %v203
    %v477 = vunpack.c.l.b16 %v204
    %v478 = vunpack.c.h.b16 %v204
    %v479 = vunpack.c.l.b16 %v205
    %v480 = vunpack.c.h.b16 %v205
    %v481 = vunpack.c.l.b16 %v206
    %v482 = vunpack.c.h.b16 %v206
    %v483 = vunpack.c.l.b16 %v207
    %v484 = vunpack.c.h.b16 %v207
    %v485 = vunpack.c.l.b16 %v208
    %v486 = vunpack.c.h.b16 %v208
    %v487 = vunpack.c.l.b16 %v209
    %v488 = vunpack.c.h.b16 %v209
    %v489 = vunpack.c.l.b16 %v210
    %v490 = vunpack.c.h.b16 %v210
    %v491 = vunpack.c.l.b16 %v211
    %v492 = vunpack.c.h.b16 %v211
    %v493 = vunpack.c.l.b16 %v212
    %v494 = vunpack.c.h.b16 %v212
    %v495 = vunpack.c.l.b16 %v213
    %v496 = vunpack.c.h.b16 %v213
    %v497 = vunpack.c.l.b16 %v214
    %v498 = vunpack.c.h.b16 %v214
    %v499 = vunpack.c.l.b16 %v215
    %v500 = vunpack.c.h.b16 %v215
    %v501 = vunpack.c.l.b16 %v216
    %v502 = vunpack.c.h.b16 %v216
    %v503 = vunpack.c.l.b16 %v217
    %v504 = vunpack.c.h.b16 %v217
    %v505 = vunpack.c.l.b16 %v218
    %v506 = vunpack.c.h.b16 %v218
    %v507 = vunpack.c.l.b16 %v219
    %v508 = vunpack.c.h.b16 %v219
    %v509 = vunpack.c.l.b16 %v220
    %v510 = vunpack.c.h.b16 %v220
    %v511 = vunpack.c.l.b16 %v221
    %v512 = vunpack.c.h.b16 %v221
    %v513 = vunpack.c.l.b16 %v222
    %v514 = vunpack.c.h.b16 %v222
    %v515 = vunpack.c.l.b16 %v223
    %v516 = vunpack.c.h.b16 %v223
    %v517 = vunpack.c.l.b16 %v224
    %v518 = vunpack.c.h.b16 %v224
    %v519 = vunpack.c.l.b16 %v225
    %v520 = vunpack.c.h.b16 %v225
    %v521 = vunpack.c.l.b16 %v226
    %v522 = vunpack.c.h.b16 %v226
    %v523 = vunpack.c.l.b16 %v227
    %v524 = vunpack.c.h.b16 %v227
    %v525 = vunpack.c.l.b16 %v228
    %v526 = vunpack.c.h.b16 %v228
    %v527 = vunpack.c.l.b16 %v229
    %v528 = vunpack.c.h.b16 %v229
    %v529 = vunpack.c.l.b16 %v230
    %v530 = vunpack.c.h.b16 %v230
    %v531 = vunpack.c.l.b16 %v231
    %v532 = vunpack.c.h.b16 %v231
    %v533 = vunpack.c.l.b16 %v232
    %v534 = vunpack.c.h.b16 %v232
    %v535 = vunpack.c.l.b16 %v233
    %v536 = vunpack.c.h.b16 %v233
    %v537 = vunpack.c.l.b16 %v234
    %v538 = vunpack.c.h.b16 %v234
    %v539 = vunpack.c.l.b16 %v235
    %v540 = vunpack.c.h.b16 %v235
    %v541 = vunpack.c.l.b16 %v236
    %v542 = vunpack.c.h.b16 %v236
    %v543 = vunpack.c.l.b16 %v237
    %v544 = vunpack.c.h.b16 %v237
    %v545 = vunpack.c.l.b16 %v238
    %v546 = vunpack.c.h.b16 %v238
    %v547 = vunpack.c.l.b16 %v239
    %v548 = vunpack.c.h.b16 %v239
    %v549 = vunpack.c.l.b16 %v240
    %v550 = vunpack.c.h.b16 %v240
    %v551 = vunpack.c.l.b16 %v241
    %v552 = vunpack.c.h.b16 %v241
    %v553 = vunpack.c.l.b16 %v242
    %v554 = vunpack.c.h.b16 %v242
    %v555 = vunpack.c.l.b16 %v243
    %v556 = vunpack.c.h.b16 %v243
    %v557 = vunpack.c.l.b16 %v244
    %v558 = vunpack.c.h.b16 %v244
    %v559 = vunpack.c.l.b16 %v245
    %v560 = vunpack.c.h.b16 %v245
    %v561 = vunpack.c.l.b16 %v246
    %v562 = vunpack.c.h.b16 %v246
    %v563 = vunpack.c.l.b16 %v247
    %v564 = vunpack.c.h.b16 %v247
    %v565 = vunpack.c.l.b16 %v248
    %v566 = vunpack.c.h.b16 %v248
    %v567 = vunpack.c.l.b16 %v249
    %v568 = vunpack.c.h.b16 %v249
    %v569 = vunpack.c.l.b16 %v250
    %v570 = vunpack.c.h.b16 %v250
    %v571 = vunpack.c.l.b16 %v251
    %v572 = vunpack.c.h.b16 %v251
    %v573 = vunpack.c.l.b16 %v252
    %v574 = vunpack.c.h.b16 %v252
    %v575 = vunpack.c.l.b16 %v253
    %v576 = vunpack.c.h.b16 %v253
    %v577 = vunpack.c.l.b16 %v254
    %v578 = vunpack.c.h.b16 %v254
    %v579 = vunpack.c.l.b16 %v255
    %v580 = vunpack.c.h.b16 %v255
    %v581 = vunpack.c.l.b16 %v256
    %v582 = vunpack.c.h.b16 %v256
    %v583 = vunpack.c.l.b16 %v257
    %v584 = vunpack.c.h.b16 %v257
    %v585 = vunpack.c.l.b16 %v258
    %v586 = vunpack.c.h.b16 %v258
    %v587 = vunpack.c.l.b16 %v259
    %v588 = vunpack.c.h.b16 %v259
    %v589 = vunpack.c.l.b16 %v260
    %v590 = vunpack.c.h.b16 %v260
    %v591 = vunpack.c.l.b16 %v261
    %v592 = vunpack.c.h.b16 %v261
    %v593 = vunpack.c.l.b16 %v262
    %v594 = vunpack.c.h.b16 %v262
    %v595 = vunpack.c.l.b16 %v263
    %v596 = vunpack.c.h.b16 %v263
    %v597 = vunpack.c.l.b16 %v264
    %v598 = vunpack.c.h.b16 %v264
    %v599 = vunpack.c.l.b16 %v265
    %v600 = vunpack.c.h.b16 %v265
    %v601 = vunpack.c.l.b16 %v266
    %v602 = vunpack.c.h.b16 %v266
    %v603 = vunpack.c.l.b16 %v267
    %v604 = vunpack.c.h.b16 %v267
    %v605 = vunpack.c.l.b16 %v268
    %v606 = vunpack.c.h.b16 %v268
    %v607 = vunpack.c.l.b16 %v269
    %v608 = vunpack.c.h.b16 %v269
    %v609 = vunpack.c.l.b16 %v270
    %v610 = vunpack.c.h.b16 %v270
    %v611 = vunpack.c.l.b16 %v271
    %v612 = vunpack.c.h.b16 %v271
    %v613 = vunpack.c.l.b16 %v272
    %v614 = vunpack.c.h.b16 %v272
    %v615 = vunpack.c.l.b16 %v273
    %v616 = vunpack.c.h.b16 %v273
    %v617 = vunpack.c.l.b16 %v274
    %v618 = vunpack.c.h.b16 %v274
    %v619 = vunpack.c.l.b16 %v275
    %v620 = vunpack.c.h.b16 %v275
    %v621 = vunpack.c.l.b16 %v276
    %v622 = vunpack.c.h.b16 %v276
    %v623 = vunpack.c.l.b16 %v277
    %v624 = vunpack.c.h.b16 %v277
    %v625 = vunpack.c.l.b16 %v278
    %v626 = vunpack.c.h.b16 %v278
    %v627 = vpack.c.b16 %v397, %v395
    %v628 = vpack.c.b16 %v398, %v396
    %v629 = vpack.c.b16 %v401, %v399
    %v630 = vpack.c.b16 %v402, %v400
    %v631 = vpack.c.b16 %v405, %v403
    %v632 = vpack.c.b16 %v406, %v404
    %v633 = vpack.c.b16 %v409, %v407
    %v634 = vpack.c.b16 %v410, %v408
    %v635 = vpack.c.b16 %v413, %v411
    %v636 = vpack.c.b16 %v414, %v412
    %v637 = vpack.c.b16 %v417, %v415
    %v638 = vpack.c.b16 %v418, %v416
    %v639 = vpack.c.b16 %v421, %v419
    %v640 = vpack.c.b16 %v422, %v420
    %v641 = vpack.c.b16 %v425, %v423
    %v642 = vpack.c.b16 %v426, %v424
    %v643 = vpack.c.b16 %v429, %v427
    %v644 = vpack.c.b16 %v430, %v428
    %v645 = vpack.c.b16 %v433, %v431
    %v646 = vpack.c.b16 %v434, %v432
    %v647 = vpack.c.b16 %v437, %v435
    %v648 = vpack.c.b16 %v438, %v436
    %v649 = vpack.c.b16 %v441, %v439
    %v650 = vpack.c.b16 %v442, %v440
    %v651 = vpack.c.b16 %v445, %v443
    %v652 = vpack.c.b16 %v446, %v444
    %v653 = vpack.c.b16 %v449, %v447
    %v654 = vpack.c.b16 %v450, %v448
    %v655 = vpack.c.b16 %v453, %v451
    %v656 = vpack.c.b16 %v454, %v452
    %v657 = vpack.c.b16 %v457, %v455
    %v658 = vpack.c.b16 %v458, %v456
    %v659 = vpack.c.b16 %v461, %v459
    %v660 = vpack.c.b16 %v462, %v460
    %v661 = vpack.c.b16 %v465, %v463
    %v662 = vpack.c.b16 %v466, %v464
    %v663 = vpack.c.b16 %v469, %v467
    %v664 = vpack.c.b16 %v470, %v468
    %v665 = vpack.c.b16 %v473, %v471
    %v666 = vpack.c.b16 %v474, %v472
    %v667 = vpack.c.b16 %v477, %v475
    %v668 = vpack.c.b16 %v478, %v476
    %v669 = vpack.c.b16 %v481, %v479
    %v670 = vpack.c.b16 %v482, %v480
    %v671 = vpack.c.b16 %v485, %v483
    %v672 = vpack.c.b16 %v486, %v484
    %v673 = vpack.c.b16 %v489, %v487
    %v674 = vpack.c.b16 %v490, %v488
    %v675 = vpack.c.b16 %v493, %v491
    %v676 = vpack.c.b16 %v494, %v492
    %v677 = vpack.c.b16 %v497, %v495
    %v678 = vpack.c.b16 %v498, %v496
    %v679 = vpack.c.b16 %v501, %v499
    %v680 = vpack.c.b16 %v502, %v500
    %v681 = vpack.c.b16 %v505, %v503
    %v682 = vpack.c.b16 %v506, %v504
    %v683 = vpack.c.b16 %v509, %v507
    %v684 = vpack.c.b16 %v510, %v508
    %v685 = vpack.c.b16 %v513, %v511
    %v686 = vpack.c.b16 %v514, %v512
    %v687 = vpack.c.b16 %v517, %v515
    %v688 = vpack.c.b16 %v518, %v516
    %v689 = vpack.c.b16 %v521, %v519
    %v690 = vpack.c.b16 %v522, %v520
    %v691 = vpack.c.b16 %v525, %v523
    %v692 = vpack.c.b16 %v526, %v524
    %v693 = vpack.c.b16 %v529, %v527
    %v694 = vpack.c.b16 %v530, %v528
    %v695 = vpack.c.b16 %v533, %v531
    %v696 = vpack.c.b16 %v534, %v532
    %v697 = vpack.c.b16 %v537, %v535
    %v698 = vpack.c.b16 %v538, %v536
    %v699 = vpack.c.b16 %v541, %v539
    %v700 = vpack.c.b16 %v542, %v540
    %v701 = vpack.c.b16 %v545, %v543
    %v702 = vpack.c.b16 %v546, %v544
    %v703 = vpack.c.b16 %v549, %v547
    %v704 = vpack.c.b16 %v550, %v548
    %v705 = vpack.c.b16 %v553, %v551
    %v706 = vpack.c.b16 %v554, %v552
    %v707 = vpack.c.b16 %v557, %v555
    %v708 = vpack.c.b16 %v558, %v556
    %v709 = vpack.c.b16 %v561, %v559
    %v710 = vpack.c.b16 %v562, %v560
    %v711 = vpack.c.b16 %v565, %v563
    %v712 = vpack.c.b16 %v566, %v564
    %v713 = vpack.c.b16 %v569, %v567
    %v714 = vpack.c.b16 %v570, %v568
    %v715 = vpack.c.b16 %v573, %v571
    %v716 = vpack.c.b16 %v574, %v572
    %v717 = vpack.c.b16 %v577, %v575
    %v718 = vpack.c.b16 %v578, %v576
    %v719 = vpack.c.b16 %v581, %v579
    %v720 = vpack.c.b16 %v582, %v580
    %v721 = vpack.c.b16 %v585, %v583
    %v722 = vpack.c.b16 %v586, %v584
    %v723 = vpack.c.b16 %v589, %v587
    %v724 = vpack.c.b16 %v590, %v588
    %v725 = vpack.c.b16 %v593, %v591
    %v726 = vpack.c.b16 %v594, %v592
    %v727 = vpack.c.b16 %v597, %v595
    %v728 = vpack.c.b16 %v598, %v596
    %v729 = vpack.c.b16 %v601, %v599
    %v730 = vpack.c.b16 %v602, %v600
    %v731 = vpack.c.b16 %v605, %v603
    %v732 = vpack.c.b16 %v606, %v604
    %v733 = vpack.c.b16 %v609, %v607
    %v734 = vpack.c.b16 %v610, %v608
    %v735 = vpack.c.b16 %v613, %v611
    %v736 = vpack.c.b16 %v614, %v612
    %v737 = vpack.c.b16 %v617, %v615
    %v738 = vpack.c.b16 %v618, %v616
    %v739 = vpack.c.b16 %v621, %v619
    %v740 = vpack.c.b16 %v622, %v620
    %v741 = vpack.c.b16 %v625, %v623
    %v742 = vpack.c.b16 %v626, %v624
    %859 = vst [vmem:[#allocation2] sm:$0xff] %v627
    %vm860 = vcmask 916480
    %861 = vst.msk [vmem:[#allocation2 + $0x8] sm:$0xff] %vm860, %v628
    %862 = vst [vmem:[#allocation2 + $0x10] sm:$0xff] %v629
    %863 = vst.msk [vmem:[#allocation2 + $0x18] sm:$0xff] %vm860, %v630
    %864 = vst [vmem:[#allocation2 + $0x20] sm:$0xff] %v631
    %865 = vst.msk [vmem:[#allocation2 + $0x28] sm:$0xff] %vm860, %v632
    %866 = vst [vmem:[#allocation2 + $0x30] sm:$0xff] %v633
    %867 = vst.msk [vmem:[#allocation2 + $0x38] sm:$0xff] %vm860, %v634
    %868 = vst [vmem:[#allocation2 + $0x40] sm:$0xff] %v635
    %869 = vst.msk [vmem:[#allocation2 + $0x48] sm:$0xff] %vm860, %v636
    %870 = vst [vmem:[#allocation2 + $0x50] sm:$0xff] %v637
    %871 = vst.msk [vmem:[#allocation2 + $0x58] sm:$0xff] %vm860, %v638
    %872 = vst [vmem:[#allocation2 + $0x60] sm:$0xff] %v639
    %873 = vst.msk [vmem:[#allocation2 + $0x68] sm:$0xff] %vm860, %v640
    %874 = vst [vmem:[#allocation2 + $0x70] sm:$0xff] %v641
    %875 = vst.msk [vmem:[#allocation2 + $0x78] sm:$0xff] %vm860, %v642
    %876 = vst [vmem:[#allocation2 + $0x80] sm:$0xff] %v643
    %877 = vst.msk [vmem:[#allocation2 + $0x88] sm:$0xff] %vm860, %v644
    %878 = vst [vmem:[#allocation2 + $0x90] sm:$0xff] %v645
    %879 = vst.msk [vmem:[#allocation2 + $0x98] sm:$0xff] %vm860, %v646
    %880 = vst [vmem:[#allocation2 + $0xa0] sm:$0xff] %v647
    %881 = vst.msk [vmem:[#allocation2 + $0xa8] sm:$0xff] %vm860, %v648
    %882 = vst [vmem:[#allocation2 + $0xb0] sm:$0xff] %v649
    %883 = vst.msk [vmem:[#allocation2 + $0xb8] sm:$0xff] %vm860, %v650
    %884 = vst [vmem:[#allocation2 + $0xc0] sm:$0xff] %v651
    %885 = vst.msk [vmem:[#allocation2 + $0xc8] sm:$0xff] %vm860, %v652
    %886 = vst [vmem:[#allocation2 + $0xd0] sm:$0xff] %v653
    %887 = vst.msk [vmem:[#allocation2 + $0xd8] sm:$0xff] %vm860, %v654
    %888 = vst [vmem:[#allocation2 + $0xe0] sm:$0xff] %v655
    %889 = vst.msk [vmem:[#allocation2 + $0xe8] sm:$0xff] %vm860, %v656
    %890 = vst [vmem:[#allocation2 + $0xf0] sm:$0xff] %v657
    %891 = vst.msk [vmem:[#allocation2 + $0xf8] sm:$0xff] %vm860, %v658
    %892 = vst [vmem:[#allocation2 + $0x100] sm:$0xff] %v659
    %893 = vst.msk [vmem:[#allocation2 + $0x108] sm:$0xff] %vm860, %v660
    %894 = vst [vmem:[#allocation2 + $0x110] sm:$0xff] %v661
    %895 = vst.msk [vmem:[#allocation2 + $0x118] sm:$0xff] %vm860, %v662
    %896 = vst [vmem:[#allocation2 + $0x120] sm:$0xff] %v663
    %897 = vst.msk [vmem:[#allocation2 + $0x128] sm:$0xff] %vm860, %v664
    %898 = vst [vmem:[#allocation2 + $0x130] sm:$0xff] %v665
    %899 = vst.msk [vmem:[#allocation2 + $0x138] sm:$0xff] %vm860, %v666
    %900 = vst [vmem:[#allocation2 + $0x140] sm:$0xff] %v667
    %901 = vst.msk [vmem:[#allocation2 + $0x148] sm:$0xff] %vm860, %v668
    %902 = vst [vmem:[#allocation2 + $0x150] sm:$0xff] %v669
    %903 = vst.msk [vmem:[#allocation2 + $0x158] sm:$0xff] %vm860, %v670
    %904 = vst [vmem:[#allocation2 + $0x160] sm:$0xff] %v671
    %905 = vst.msk [vmem:[#allocation2 + $0x168] sm:$0xff] %vm860, %v672
    %906 = vst [vmem:[#allocation2 + $0x170] sm:$0xff] %v673
    %907 = vst.msk [vmem:[#allocation2 + $0x178] sm:$0xff] %vm860, %v674
    %908 = vst [vmem:[#allocation2 + $0x180] sm:$0xff] %v675
    %909 = vst.msk [vmem:[#allocation2 + $0x188] sm:$0xff] %vm860, %v676
    %910 = vst [vmem:[#allocation2 + $0x190] sm:$0xff] %v677
    %911 = vst.msk [vmem:[#allocation2 + $0x198] sm:$0xff] %vm860, %v678
    %912 = vst [vmem:[#allocation2 + $0x1a0] sm:$0xff] %v679
    %913 = vst.msk [vmem:[#allocation2 + $0x1a8] sm:$0xff] %vm860, %v680
    %914 = vst [vmem:[#allocation2 + $0x1b0] sm:$0xff] %v681
    %915 = vst.msk [vmem:[#allocation2 + $0x1b8] sm:$0xff] %vm860, %v682
    %916 = vst [vmem:[#allocation2 + $0x1c0] sm:$0xff] %v683
    %917 = vst.msk [vmem:[#allocation2 + $0x1c8] sm:$0xff] %vm860, %v684
    %918 = vst [vmem:[#allocation2 + $0x1d0] sm:$0xff] %v685
    %919 = vst.msk [vmem:[#allocation2 + $0x1d8] sm:$0xff] %vm860, %v686
    %920 = vst [vmem:[#allocation2 + $0x1e0] sm:$0xff] %v687
    %921 = vst.msk [vmem:[#allocation2 + $0x1e8] sm:$0xff] %vm860, %v688
    %922 = vst [vmem:[#allocation2 + $0x1f0] sm:$0xff] %v689
    %923 = vst.msk [vmem:[#allocation2 + $0x1f8] sm:$0xff] %vm860, %v690
    %924 = vst [vmem:[#allocation2 + $0x200] sm:$0xff] %v691
    %925 = vst.msk [vmem:[#allocation2 + $0x208] sm:$0xff] %vm860, %v692
    %926 = vst [vmem:[#allocation2 + $0x210] sm:$0xff] %v693
    %927 = vst.msk [vmem:[#allocation2 + $0x218] sm:$0xff] %vm860, %v694
    %928 = vst [vmem:[#allocation2 + $0x220] sm:$0xff] %v695
    %929 = vst.msk [vmem:[#allocation2 + $0x228] sm:$0xff] %vm860, %v696
    %930 = vst [vmem:[#allocation2 + $0x230] sm:$0xff] %v697
    %931 = vst.msk [vmem:[#allocation2 + $0x238] sm:$0xff] %vm860, %v698
    %932 = vst [vmem:[#allocation2 + $0x240] sm:$0xff] %v699
    %933 = vst.msk [vmem:[#allocation2 + $0x248] sm:$0xff] %vm860, %v700
    %934 = vst [vmem:[#allocation2 + $0x250] sm:$0xff] %v701
    %935 = vst.msk [vmem:[#allocation2 + $0x258] sm:$0xff] %vm860, %v702
    %936 = vst [vmem:[#allocation2 + $0x260] sm:$0xff] %v703
    %937 = vst.msk [vmem:[#allocation2 + $0x268] sm:$0xff] %vm860, %v704
    %938 = vst [vmem:[#allocation2 + $0x270] sm:$0xff] %v705
    %939 = vst.msk [vmem:[#allocation2 + $0x278] sm:$0xff] %vm860, %v706
    %940 = vst [vmem:[#allocation2 + $0x280] sm:$0xff] %v707
    %941 = vst.msk [vmem:[#allocation2 + $0x288] sm:$0xff] %vm860, %v708
    %942 = vst [vmem:[#allocation2 + $0x290] sm:$0xff] %v709
    %943 = vst.msk [vmem:[#allocation2 + $0x298] sm:$0xff] %vm860, %v710
    %944 = vst [vmem:[#allocation2 + $0x2a0] sm:$0xff] %v711
    %945 = vst.msk [vmem:[#allocation2 + $0x2a8] sm:$0xff] %vm860, %v712
    %946 = vst [vmem:[#allocation2 + $0x2b0] sm:$0xff] %v713
    %947 = vst.msk [vmem:[#allocation2 + $0x2b8] sm:$0xff] %vm860, %v714
    %948 = vst [vmem:[#allocation2 + $0x2c0] sm:$0xff] %v715
    %949 = vst.msk [vmem:[#allocation2 + $0x2c8] sm:$0xff] %vm860, %v716
    %950 = vst [vmem:[#allocation2 + $0x2d0] sm:$0xff] %v717
    %951 = vst.msk [vmem:[#allocation2 + $0x2d8] sm:$0xff] %vm860, %v718
    %952 = vst [vmem:[#allocation2 + $0x2e0] sm:$0xff] %v719
    %953 = vst.msk [vmem:[#allocation2 + $0x2e8] sm:$0xff] %vm860, %v720
    %954 = vst [vmem:[#allocation2 + $0x2f0] sm:$0xff] %v721
    %955 = vst.msk [vmem:[#allocation2 + $0x2f8] sm:$0xff] %vm860, %v722
    %956 = vst [vmem:[#allocation2 + $0x300] sm:$0xff] %v723
    %957 = vst.msk [vmem:[#allocation2 + $0x308] sm:$0xff] %vm860, %v724
    %958 = vst [vmem:[#allocation2 + $0x310] sm:$0xff] %v725
    %959 = vst.msk [vmem:[#allocation2 + $0x318] sm:$0xff] %vm860, %v726
    %960 = vst [vmem:[#allocation2 + $0x320] sm:$0xff] %v727
    %961 = vst.msk [vmem:[#allocation2 + $0x328] sm:$0xff] %vm860, %v728
    %962 = vst [vmem:[#allocation2 + $0x330] sm:$0xff] %v729
    %963 = vst.msk [vmem:[#allocation2 + $0x338] sm:$0xff] %vm860, %v730
    %964 = vst [vmem:[#allocation2 + $0x340] sm:$0xff] %v731
    %965 = vst.msk [vmem:[#allocation2 + $0x348] sm:$0xff] %vm860, %v732
    %966 = vst [vmem:[#allocation2 + $0x350] sm:$0xff] %v733
    %967 = vst.msk [vmem:[#allocation2 + $0x358] sm:$0xff] %vm860, %v734
    %968 = vst [vmem:[#allocation2 + $0x360] sm:$0xff] %v735
    %969 = vst.msk [vmem:[#allocation2 + $0x368] sm:$0xff] %vm860, %v736
    %970 = vst [vmem:[#allocation2 + $0x370] sm:$0xff] %v737
    %971 = vst.msk [vmem:[#allocation2 + $0x378] sm:$0xff] %vm860, %v738
    %972 = vst [vmem:[#allocation2 + $0x380] sm:$0xff] %v739
    %973 = vst.msk [vmem:[#allocation2 + $0x388] sm:$0xff] %vm860, %v740
    %974 = vst [vmem:[#allocation2 + $0x390] sm:$0xff] %v741
    %975 = vst.msk [vmem:[#allocation2 + $0x398] sm:$0xff] %vm860, %v742
    %v976 = vlaneseq
    %v977 = vshrl.u32 %v976, 7
    %v978 = vadd.s32 %v977, 8
    %v979 = vadd.s32 %v977, 16
    %v980 = vadd.s32 %v977, 24
    %v981 = vadd.s32 %v977, 32
    %v982 = vadd.s32 %v977, 40
    %v983 = vadd.s32 %v977, 48
    %v984 = vadd.s32 %v977, 56
    %v985 = vadd.s32 %v977, 64
    %v986 = vadd.s32 %v977, 72
    %v987 = vadd.s32 %v977, 80
    %v988 = vadd.s32 %v977, 88
    %v989 = vadd.s32 %v977, 96
    %v990 = vadd.s32 %v977, 104
    %v991 = vadd.s32 %v977, 112
    %v992 = vadd.s32 %v977, 120
    %v993 = vadd.s32 %v977, 128
    %v994 = vadd.s32 %v977, 136
    %v995 = vadd.s32 %v977, 144
    %v996 = vadd.s32 %v977, 152
    %vm997 = vcmp.lt.s32.totalorder %v977, 0
    %v998 = vsub.s32 0, %v977
    %v999 = vsel %vm997, %v998, %v977
    %v1000 = vshrl.u32 %v999, 5
    %v1001 = vand.u32 %v999, 31
    %v1002 = vsub.s32 0, %v1001
    %v1003 = vsel %vm997, %v1002, %v1001
    %vm1004 = vcmp.lt.s32.totalorder %v978, 0
    %v1005 = vsub.s32 0, %v978
    %v1006 = vsel %vm1004, %v1005, %v978
    %v1007 = vshrl.u32 %v1006, 5
    %v1008 = vand.u32 %v1006, 31
    %v1009 = vsub.s32 0, %v1008
    %v1010 = vsel %vm1004, %v1009, %v1008
    %vm1011 = vcmp.lt.s32.totalorder %v979, 0
    %v1012 = vsub.s32 0, %v979
    %v1013 = vsel %vm1011, %v1012, %v979
    %v1014 = vshrl.u32 %v1013, 5
    %v1015 = vand.u32 %v1013, 31
    %v1016 = vsub.s32 0, %v1015
    %v1017 = vsel %vm1011, %v1016, %v1015
    %vm1018 = vcmp.lt.s32.totalorder %v980, 0
    %v1019 = vsub.s32 0, %v980
    %v1020 = vsel %vm1018, %v1019, %v980
    %v1021 = vshrl.u32 %v1020, 5
    %v1022 = vand.u32 %v1020, 31
    %v1023 = vsub.s32 0, %v1022
    %v1024 = vsel %vm1018, %v1023, %v1022
    %vm1025 = vcmp.lt.s32.totalorder %v981, 0
    %v1026 = vsub.s32 0, %v981
    %v1027 = vsel %vm1025, %v1026, %v981
    %v1028 = vshrl.u32 %v1027, 5
    %v1029 = vand.u32 %v1027, 31
    %v1030 = vsub.s32 0, %v1029
    %v1031 = vsel %vm1025, %v1030, %v1029
    %vm1032 = vcmp.lt.s32.totalorder %v982, 0
    %v1033 = vsub.s32 0, %v982
    %v1034 = vsel %vm1032, %v1033, %v982
    %v1035 = vshrl.u32 %v1034, 5
    %v1036 = vand.u32 %v1034, 31
    %v1037 = vsub.s32 0, %v1036
    %v1038 = vsel %vm1032, %v1037, %v1036
    %vm1039 = vcmp.lt.s32.totalorder %v983, 0
    %v1040 = vsub.s32 0, %v983
    %v1041 = vsel %vm1039, %v1040, %v983
    %v1042 = vshrl.u32 %v1041, 5
    %v1043 = vand.u32 %v1041, 31
    %v1044 = vsub.s32 0, %v1043
    %v1045 = vsel %vm1039, %v1044, %v1043
    %vm1046 = vcmp.lt.s32.totalorder %v984, 0
    %v1047 = vsub.s32 0, %v984
    %v1048 = vsel %vm1046, %v1047, %v984
    %v1049 = vshrl.u32 %v1048, 5
    %v1050 = vand.u32 %v1048, 31
    %v1051 = vsub.s32 0, %v1050
    %v1052 = vsel %vm1046, %v1051, %v1050
    %vm1053 = vcmp.lt.s32.totalorder %v985, 0
    %v1054 = vsub.s32 0, %v985
    %v1055 = vsel %vm1053, %v1054, %v985
    %v1056 = vshrl.u32 %v1055, 5
    %v1057 = vand.u32 %v1055, 31
    %v1058 = vsub.s32 0, %v1057
    %v1059 = vsel %vm1053, %v1058, %v1057
    %vm1060 = vcmp.lt.s32.totalorder %v986, 0
    %v1061 = vsub.s32 0, %v986
    %v1062 = vsel %vm1060, %v1061, %v986
    %v1063 = vshrl.u32 %v1062, 5
    %v1064 = vand.u32 %v1062, 31
    %v1065 = vsub.s32 0, %v1064
    %v1066 = vsel %vm1060, %v1065, %v1064
    %vm1067 = vcmp.lt.s32.totalorder %v987, 0
    %v1068 = vsub.s32 0, %v987
    %v1069 = vsel %vm1067, %v1068, %v987
    %v1070 = vshrl.u32 %v1069, 5
    %v1071 = vand.u32 %v1069, 31
    %v1072 = vsub.s32 0, %v1071
    %v1073 = vsel %vm1067, %v1072, %v1071
    %vm1074 = vcmp.lt.s32.totalorder %v988, 0
    %v1075 = vsub.s32 0, %v988
    %v1076 = vsel %vm1074, %v1075, %v988
    %v1077 = vshrl.u32 %v1076, 5
    %v1078 = vand.u32 %v1076, 31
    %v1079 = vsub.s32 0, %v1078
    %v1080 = vsel %vm1074, %v1079, %v1078
    %vm1081 = vcmp.lt.s32.totalorder %v989, 0
    %v1082 = vsub.s32 0, %v989
    %v1083 = vsel %vm1081, %v1082, %v989
    %v1084 = vshrl.u32 %v1083, 5
    %v1085 = vand.u32 %v1083, 31
    %v1086 = vsub.s32 0, %v1085
    %v1087 = vsel %vm1081, %v1086, %v1085
    %vm1088 = vcmp.lt.s32.totalorder %v990, 0
    %v1089 = vsub.s32 0, %v990
    %v1090 = vsel %vm1088, %v1089, %v990
    %v1091 = vshrl.u32 %v1090, 5
    %v1092 = vand.u32 %v1090, 31
    %v1093 = vsub.s32 0, %v1092
    %v1094 = vsel %vm1088, %v1093, %v1092
    %vm1095 = vcmp.lt.s32.totalorder %v991, 0
    %v1096 = vsub.s32 0, %v991
    %v1097 = vsel %vm1095, %v1096, %v991
    %v1098 = vshrl.u32 %v1097, 5
    %v1099 = vand.u32 %v1097, 31
    %v1100 = vsub.s32 0, %v1099
    %v1101 = vsel %vm1095, %v1100, %v1099
    %vm1102 = vcmp.lt.s32.totalorder %v992, 0
    %v1103 = vsub.s32 0, %v992
    %v1104 = vsel %vm1102, %v1103, %v992
    %v1105 = vshrl.u32 %v1104, 5
    %v1106 = vand.u32 %v1104, 31
    %v1107 = vsub.s32 0, %v1106
    %v1108 = vsel %vm1102, %v1107, %v1106
    %vm1109 = vcmp.lt.s32.totalorder %v993, 0
    %v1110 = vsub.s32 0, %v993
    %v1111 = vsel %vm1109, %v1110, %v993
    %v1112 = vshrl.u32 %v1111, 5
    %v1113 = vand.u32 %v1111, 31
    %v1114 = vsub.s32 0, %v1113
    %v1115 = vsel %vm1109, %v1114, %v1113
    %vm1116 = vcmp.lt.s32.totalorder %v994, 0
    %v1117 = vsub.s32 0, %v994
    %v1118 = vsel %vm1116, %v1117, %v994
    %v1119 = vshrl.u32 %v1118, 5
    %v1120 = vand.u32 %v1118, 31
    %v1121 = vsub.s32 0, %v1120
    %v1122 = vsel %vm1116, %v1121, %v1120
    %vm1123 = vcmp.lt.s32.totalorder %v995, 0
    %v1124 = vsub.s32 0, %v995
    %v1125 = vsel %vm1123, %v1124, %v995
    %v1126 = vshrl.u32 %v1125, 5
    %v1127 = vand.u32 %v1125, 31
    %v1128 = vsub.s32 0, %v1127
    %v1129 = vsel %vm1123, %v1128, %v1127
    %vm1130 = vcmp.lt.s32.totalorder %v996, 0
    %v1131 = vsub.s32 0, %v996
    %v1132 = vsel %vm1130, %v1131, %v996
    %v1133 = vshrl.u32 %v1132, 5
    %v1134 = vand.u32 %v1132, 31
    %v1135 = vsub.s32 0, %v1134
    %v1136 = vsel %vm1130, %v1135, %v1134
    %vm1137 = vcmp.ne.s32.totalorder %v1003, 0
    %vm1138 = vcmp.ne.s32.totalorder %v1010, 0
    %vm1139 = vcmp.ne.s32.totalorder %v1017, 0
    %vm1140 = vcmp.ne.s32.totalorder %v1024, 0
    %vm1141 = vcmp.ne.s32.totalorder %v1031, 0
    %vm1142 = vcmp.ne.s32.totalorder %v1038, 0
    %vm1143 = vcmp.ne.s32.totalorder %v1045, 0
    %vm1144 = vcmp.ne.s32.totalorder %v1052, 0
    %vm1145 = vcmp.ne.s32.totalorder %v1059, 0
    %vm1146 = vcmp.ne.s32.totalorder %v1066, 0
    %vm1147 = vcmp.ne.s32.totalorder %v1073, 0
    %vm1148 = vcmp.ne.s32.totalorder %v1080, 0
    %vm1149 = vcmp.ne.s32.totalorder %v1087, 0
    %vm1150 = vcmp.ne.s32.totalorder %v1094, 0
    %vm1151 = vcmp.ne.s32.totalorder %v1101, 0
    %vm1152 = vcmp.ne.s32.totalorder %v1108, 0
    %vm1153 = vcmp.ne.s32.totalorder %v1115, 0
    %vm1154 = vcmp.ne.s32.totalorder %v1122, 0
    %vm1155 = vcmp.ne.s32.totalorder %v1129, 0
    %vm1156 = vcmp.ne.s32.totalorder %v1136, 0
    %vm1157 = vcmp.lt.s32.totalorder %v1003, 0
    %vm1158 = vcmp.lt.s32.totalorder %v1010, 0
    %vm1159 = vcmp.lt.s32.totalorder %v1017, 0
    %vm1160 = vcmp.lt.s32.totalorder %v1024, 0
    %vm1161 = vcmp.lt.s32.totalorder %v1031, 0
    %vm1162 = vcmp.lt.s32.totalorder %v1038, 0
    %vm1163 = vcmp.lt.s32.totalorder %v1045, 0
    %vm1164 = vcmp.lt.s32.totalorder %v1052, 0
    %vm1165 = vcmp.lt.s32.totalorder %v1059, 0
    %vm1166 = vcmp.lt.s32.totalorder %v1066, 0
    %vm1167 = vcmp.lt.s32.totalorder %v1073, 0
    %vm1168 = vcmp.lt.s32.totalorder %v1080, 0
    %vm1169 = vcmp.lt.s32.totalorder %v1087, 0
    %vm1170 = vcmp.lt.s32.totalorder %v1094, 0
    %vm1171 = vcmp.lt.s32.totalorder %v1101, 0
    %vm1172 = vcmp.lt.s32.totalorder %v1108, 0
    %vm1173 = vcmp.lt.s32.totalorder %v1115, 0
    %vm1174 = vcmp.lt.s32.totalorder %v1122, 0
    %vm1175 = vcmp.lt.s32.totalorder %v1129, 0
    %vm1176 = vcmp.lt.s32.totalorder %v1136, 0
    %vm1177 = vmand %vm1157, %vm1137
    %vm1178 = vmand %vm1158, %vm1138
    %vm1179 = vmand %vm1159, %vm1139
    %vm1180 = vmand %vm1160, %vm1140
    %vm1181 = vmand %vm1161, %vm1141
    %vm1182 = vmand %vm1162, %vm1142
    %vm1183 = vmand %vm1163, %vm1143
    %vm1184 = vmand %vm1164, %vm1144
    %vm1185 = vmand %vm1165, %vm1145
    %vm1186 = vmand %vm1166, %vm1146
    %vm1187 = vmand %vm1167, %vm1147
    %vm1188 = vmand %vm1168, %vm1148
    %vm1189 = vmand %vm1169, %vm1149
    %vm1190 = vmand %vm1170, %vm1150
    %vm1191 = vmand %vm1171, %vm1151
    %vm1192 = vmand %vm1172, %vm1152
    %vm1193 = vmand %vm1173, %vm1153
    %vm1194 = vmand %vm1174, %vm1154
    %vm1195 = vmand %vm1175, %vm1155
    %vm1196 = vmand %vm1176, %vm1156
    %v1197 = vadd.s32 %v1003, 32
    %v1198 = vadd.s32 %v1010, 32
    %v1199 = vadd.s32 %v1017, 32
    %v1200 = vadd.s32 %v1024, 32
    %v1201 = vadd.s32 %v1031, 32
    %v1202 = vadd.s32 %v1038, 32
    %v1203 = vadd.s32 %v1045, 32
    %v1204 = vadd.s32 %v1052, 32
    %v1205 = vadd.s32 %v1059, 32
    %v1206 = vadd.s32 %v1066, 32
    %v1207 = vadd.s32 %v1073, 32
    %v1208 = vadd.s32 %v1080, 32
    %v1209 = vadd.s32 %v1087, 32
    %v1210 = vadd.s32 %v1094, 32
    %v1211 = vadd.s32 %v1101, 32
    %v1212 = vadd.s32 %v1108, 32
    %v1213 = vadd.s32 %v1115, 32
    %v1214 = vadd.s32 %v1122, 32
    %v1215 = vadd.s32 %v1129, 32
    %v1216 = vadd.s32 %v1136, 32
    %v1217 = vsel %vm1177, %v1197, %v1003
    %v1218 = vsel %vm1178, %v1198, %v1010
    %v1219 = vsel %vm1179, %v1199, %v1017
    %v1220 = vsel %vm1180, %v1200, %v1024
    %v1221 = vsel %vm1181, %v1201, %v1031
    %v1222 = vsel %vm1182, %v1202, %v1038
    %v1223 = vsel %vm1183, %v1203, %v1045
    %v1224 = vsel %vm1184, %v1204, %v1052
    %v1225 = vsel %vm1185, %v1205, %v1059
    %v1226 = vsel %vm1186, %v1206, %v1066
    %v1227 = vsel %vm1187, %v1207, %v1073
    %v1228 = vsel %vm1188, %v1208, %v1080
    %v1229 = vsel %vm1189, %v1209, %v1087
    %v1230 = vsel %vm1190, %v1210, %v1094
    %v1231 = vsel %vm1191, %v1211, %v1101
    %v1232 = vsel %vm1192, %v1212, %v1108
    %v1233 = vsel %vm1193, %v1213, %v1115
    %v1234 = vsel %vm1194, %v1214, %v1122
    %v1235 = vsel %vm1195, %v1215, %v1129
    %v1236 = vsel %vm1196, %v1216, %v1136
    %vm1237 = vcmp.lt.s32.totalorder %v1217, 25
    %vm1238 = vcmp.lt.s32.totalorder %v1218, 25
    %vm1239 = vcmp.lt.s32.totalorder %v1219, 25
    %vm1240 = vcmp.lt.s32.totalorder %v1220, 25
    %vm1241 = vcmp.lt.s32.totalorder %v1221, 25
    %vm1242 = vcmp.lt.s32.totalorder %v1222, 25
    %vm1243 = vcmp.lt.s32.totalorder %v1223, 25
    %vm1244 = vcmp.lt.s32.totalorder %v1224, 25
    %vm1245 = vcmp.lt.s32.totalorder %v1225, 25
    %vm1246 = vcmp.lt.s32.totalorder %v1226, 25
    %vm1247 = vcmp.lt.s32.totalorder %v1227, 25
    %vm1248 = vcmp.lt.s32.totalorder %v1228, 25
    %vm1249 = vcmp.lt.s32.totalorder %v1229, 25
    %vm1250 = vcmp.lt.s32.totalorder %v1230, 25
    %vm1251 = vcmp.lt.s32.totalorder %v1231, 25
    %vm1252 = vcmp.lt.s32.totalorder %v1232, 25
    %vm1253 = vcmp.lt.s32.totalorder %v1233, 25
    %vm1254 = vcmp.lt.s32.totalorder %v1234, 25
    %vm1255 = vcmp.lt.s32.totalorder %v1235, 25
    %vm1256 = vcmp.lt.s32.totalorder %v1236, 25
    %v1257 = vsel %vm1237, 1, 0
    %v1258 = vsel %vm1238, 1, 0
    %v1259 = vsel %vm1239, 1, 0
    %v1260 = vsel %vm1240, 1, 0
    %v1261 = vsel %vm1241, 1, 0
    %v1262 = vsel %vm1242, 1, 0
    %v1263 = vsel %vm1243, 1, 0
    %v1264 = vsel %vm1244, 1, 0
    %v1265 = vsel %vm1245, 1, 0
    %v1266 = vsel %vm1246, 1, 0
    %v1267 = vsel %vm1247, 1, 0
    %v1268 = vsel %vm1248, 1, 0
    %v1269 = vsel %vm1249, 1, 0
    %v1270 = vsel %vm1250, 1, 0
    %v1271 = vsel %vm1251, 1, 0
    %v1272 = vsel %vm1252, 1, 0
    %v1273 = vsel %vm1253, 1, 0
    %v1274 = vsel %vm1254, 1, 0
    %v1275 = vsel %vm1255, 1, 0
    %v1276 = vsel %vm1256, 1, 0
    %v1277 = vcvt.s32.f32 %v1257
    %v1278 = vcvt.s32.f32 %v1258
    %v1279 = vcvt.s32.f32 %v1259
    %v1280 = vcvt.s32.f32 %v1260
    %v1281 = vcvt.s32.f32 %v1261
    %v1282 = vcvt.s32.f32 %v1262
    %v1283 = vcvt.s32.f32 %v1263
    %v1284 = vcvt.s32.f32 %v1264
    %v1285 = vcvt.s32.f32 %v1265
    %v1286 = vcvt.s32.f32 %v1266
    %v1287 = vcvt.s32.f32 %v1267
    %v1288 = vcvt.s32.f32 %v1268
    %v1289 = vcvt.s32.f32 %v1269
    %v1290 = vcvt.s32.f32 %v1270
    %v1291 = vcvt.s32.f32 %v1271
    %v1292 = vcvt.s32.f32 %v1272
    %v1293 = vcvt.s32.f32 %v1273
    %v1294 = vcvt.s32.f32 %v1274
    %v1295 = vcvt.s32.f32 %v1275
    %v1296 = vcvt.s32.f32 %v1276
    %v1297 = vld [vmem:[#allocation2] sm:$0xff]
    %v1298 = vld [vmem:[#allocation2 + $0x8] sm:$0xff]
    %v1299 = vld [vmem:[#allocation2 + $0x10] sm:$0xff]
    %v1300 = vld [vmem:[#allocation2 + $0x18] sm:$0xff]
    %v1301 = vld [vmem:[#allocation2 + $0x20] sm:$0xff]
    %v1302 = vld [vmem:[#allocation2 + $0x28] sm:$0xff]
    %v1303 = vld [vmem:[#allocation2 + $0x30] sm:$0xff]
    %v1304 = vld [vmem:[#allocation2 + $0x38] sm:$0xff]
    %v1305 = vld [vmem:[#allocation2 + $0x40] sm:$0xff]
    %v1306 = vld [vmem:[#allocation2 + $0x48] sm:$0xff]
    %v1307 = vld [vmem:[#allocation2 + $0x50] sm:$0xff]
    %v1308 = vld [vmem:[#allocation2 + $0x58] sm:$0xff]
    %v1309 = vld [vmem:[#allocation2 + $0x60] sm:$0xff]
    %v1310 = vld [vmem:[#allocation2 + $0x68] sm:$0xff]
    %v1311 = vld [vmem:[#allocation2 + $0x70] sm:$0xff]
    %v1312 = vld [vmem:[#allocation2 + $0x78] sm:$0xff]
    %v1313 = vld [vmem:[#allocation2 + $0x80] sm:$0xff]
    %v1314 = vld [vmem:[#allocation2 + $0x88] sm:$0xff]
    %v1315 = vld [vmem:[#allocation2 + $0x90] sm:$0xff]
    %v1316 = vld [vmem:[#allocation2 + $0x98] sm:$0xff]
    %v1317 = vld [vmem:[#allocation6] sm:$0xf]
    %v1318 = vld [vmem:[#allocation6 + $0x4] sm:$0xf]
    %v1319 = vld [vmem:[#allocation6 + $0x8] sm:$0xf]
    %v1320 = vld [vmem:[#allocation6 + $0xc] sm:$0xf]
    %v1321 = vld [vmem:[#allocation6 + $0x10] sm:$0xf]
    %v1322 = vld [vmem:[#allocation6 + $0x14] sm:$0xf]
    %v1323 = vld [vmem:[#allocation6 + $0x18] sm:$0xf]
    %v1324 = vld [vmem:[#allocation6 + $0x1c] sm:$0xf]
    %v1325 = vld [vmem:[#allocation6 + $0x20] sm:$0xf]
    %v1326 = vld [vmem:[#allocation6 + $0x24] sm:$0xf]
    %v1327 = vld [vmem:[#allocation6 + $0x28] sm:$0xf]
    %v1328 = vld [vmem:[#allocation6 + $0x2c] sm:$0xf]
    %v1329 = vld [vmem:[#allocation6 + $0x30] sm:$0xf]
    %v1330 = vld [vmem:[#allocation6 + $0x34] sm:$0xf]
    %v1331 = vld [vmem:[#allocation6 + $0x38] sm:$0xf]
    %v1332 = vld [vmem:[#allocation6 + $0x3c] sm:$0xf]
    %v1333 = vld [vmem:[#allocation6 + $0x40] sm:$0xf]
    %v1334 = vld [vmem:[#allocation6 + $0x44] sm:$0xf]
    %v1335 = vld [vmem:[#allocation6 + $0x48] sm:$0xf]
    %v1336 = vld [vmem:[#allocation6 + $0x4c] sm:$0xf]
    %v1337 = vld [vmem:[#allocation6 + $0x50] sm:$0xf]
    %v1338 = vld [vmem:[#allocation6 + $0x54] sm:$0xf]
    %v1339 = vld [vmem:[#allocation6 + $0x58] sm:$0xf]
    %v1340 = vld [vmem:[#allocation6 + $0x5c] sm:$0xf]
    %v1341 = vld [vmem:[#allocation6 + $0x60] sm:$0xf]
    %v1342 = vld [vmem:[#allocation6 + $0x64] sm:$0xf]
    %v1343 = vld [vmem:[#allocation6 + $0x68] sm:$0xf]
    %v1344 = vld [vmem:[#allocation6 + $0x6c] sm:$0xf]
    %v1345 = vld [vmem:[#allocation6 + $0x70] sm:$0xf]
    %v1346 = vld [vmem:[#allocation6 + $0x74] sm:$0xf]
    %v1347 = vld [vmem:[#allocation2 + $0xa0] sm:$0xff]
    %v1348 = vld [vmem:[#allocation2 + $0xa8] sm:$0xff]
    %v1349 = vld [vmem:[#allocation2 + $0xb0] sm:$0xff]
    %v1350 = vld [vmem:[#allocation2 + $0xb8] sm:$0xff]
    %s1351 = scalar_lea.vmem [#allocation6], 120
    %v1352 = vld [vmem:[%s1351] sm:$0xf]
    %v1353 = vld [vmem:[%s1351 + $0x4] sm:$0xf]
    %v1354 = vld [vmem:[%s1351 + $0x8] sm:$0xf]
    %v1355 = vld [vmem:[%s1351 + $0xc] sm:$0xf]
    %v1356 = vld [vmem:[%s1351 + $0x10] sm:$0xf]
    %v1357 = vld [vmem:[%s1351 + $0x14] sm:$0xf]
    %v1358 = vld [vmem:[%s1351 + $0x18] sm:$0xf]
    %v1359 = vld [vmem:[%s1351 + $0x1c] sm:$0xf]
    %v1360 = vld [vmem:[%s1351 + $0x20] sm:$0xf]
    %v1361 = vld [vmem:[%s1351 + $0x24] sm:$0xf]
    %v1362 = vld [vmem:[%s1351 + $0x28] sm:$0xf]
    %v1363 = vld [vmem:[%s1351 + $0x2c] sm:$0xf]
    %v1364 = vld [vmem:[%s1351 + $0x30] sm:$0xf]
    %v1365 = vld [vmem:[%s1351 + $0x34] sm:$0xf]
    %v1366 = vld [vmem:[%s1351 + $0x38] sm:$0xf]
    %v1367 = vld [vmem:[%s1351 + $0x3c] sm:$0xf]
    %v1368 = vld [vmem:[%s1351 + $0x40] sm:$0xf]
    %v1369 = vld [vmem:[%s1351 + $0x44] sm:$0xf]
    %v1370 = vld [vmem:[%s1351 + $0x48] sm:$0xf]
    %v1371 = vld [vmem:[%s1351 + $0x4c] sm:$0xf]
    %v1372 = vld [vmem:[%s1351 + $0x50] sm:$0xf]
    %v1373 = vld [vmem:[%s1351 + $0x54] sm:$0xf]
    %v1374 = vld [vmem:[%s1351 + $0x58] sm:$0xf]
    %v1375 = vld [vmem:[%s1351 + $0x5c] sm:$0xf]
    %v1376 = vld [vmem:[%s1351 + $0x60] sm:$0xf]
    %v1377 = vld [vmem:[%s1351 + $0x64] sm:$0xf]
    %v1378 = vld [vmem:[%s1351 + $0x68] sm:$0xf]
    %v1379 = vld [vmem:[%s1351 + $0x6c] sm:$0xf]
    %v1380 = vld [vmem:[%s1351 + $0x70] sm:$0xf]
    %v1381 = vld [vmem:[%s1351 + $0x74] sm:$0xf]
    %v1412 = vunpack.c.l.b16 %v1352
    %v1413 = vunpack.c.l.b16 %v1353
    %v1414 = vunpack.c.l.b16 %v1354
    %v1415 = vunpack.c.l.b16 %v1355
    %v1416 = vunpack.c.l.b16 %v1356
    %v1417 = vunpack.c.l.b16 %v1357
    %v1418 = vunpack.c.l.b16 %v1358
    %v1419 = vunpack.c.l.b16 %v1359
    %v1420 = vunpack.c.l.b16 %v1360
    %v1421 = vunpack.c.l.b16 %v1361
    %v1422 = vunpack.c.l.b16 %v1362
    %v1423 = vunpack.c.l.b16 %v1363
    %v1424 = vunpack.c.l.b16 %v1364
    %v1425 = vunpack.c.l.b16 %v1365
    %v1426 = vunpack.c.l.b16 %v1366
    %v1427 = vunpack.c.l.b16 %v1367
    %v1428 = vunpack.c.l.b16 %v1368
    %v1429 = vunpack.c.l.b16 %v1369
    %v1430 = vunpack.c.l.b16 %v1370
    %v1431 = vunpack.c.l.b16 %v1371
    %v1432 = vunpack.c.l.b16 %v1372
    %v1433 = vunpack.c.l.b16 %v1373
    %v1434 = vunpack.c.l.b16 %v1374
    %v1435 = vunpack.c.l.b16 %v1375
    %v1436 = vunpack.c.l.b16 %v1376
    %v1437 = vunpack.c.l.b16 %v1377
    %v1438 = vunpack.c.l.b16 %v1378
    %v1439 = vunpack.c.l.b16 %v1379
    %v1440 = vunpack.c.l.b16 %v1380
    %v1441 = vunpack.c.l.b16 %v1381
    %v1442 = vpack.c.b16 %v1413, %v1412
    %v1443 = vpack.c.b16 %v1415, %v1414
    %v1444 = vpack.c.b16 %v1417, %v1416
    %v1445 = vpack.c.b16 %v1419, %v1418
    %v1446 = vpack.c.b16 %v1421, %v1420
    %v1447 = vpack.c.b16 %v1423, %v1422
    %v1448 = vpack.c.b16 %v1425, %v1424
    %v1449 = vpack.c.b16 %v1427, %v1426
    %v1450 = vpack.c.b16 %v1429, %v1428
    %v1451 = vpack.c.b16 %v1431, %v1430
    %v1452 = vpack.c.b16 %v1433, %v1432
    %v1453 = vpack.c.b16 %v1435, %v1434
    %v1454 = vpack.c.b16 %v1437, %v1436
    %v1455 = vpack.c.b16 %v1439, %v1438
    %v1456 = vpack.c.b16 %v1441, %v1440
    %v1473 = vsel %vm860, %v1302, 0
    %v1476 = vsel %vm860, %v1304, 0
    %v1479 = vsel %vm860, %v1306, 0
    %v1482 = vsel %vm860, %v1308, 0
    %v1485 = vsel %vm860, %v1310, 0
    %v1488 = vsel %vm860, %v1312, 0
    %v1491 = vsel %vm860, %v1314, 0
    %v1494 = vsel %vm860, %v1316, 0
    %v1497 = vsel %vm860, %v1348, 0
    %v1500 = vsel %vm860, %v1350, 0
    %1502 = vmatprep.subr.bf16.mxu0 0
    %1503 = vmatpush1.bf16.msra.mxu0 %v1442
    %1504 = vmatprep.subr.bf16.mxu0 0
    %1505 = vmatpush1.bf16.msra.mxu0 %v1443
    %1506 = vmatprep.subr.bf16.mxu0 0
    %1507 = vmatpush1.bf16.msra.mxu0 %v1444
    %1508 = vmatprep.subr.bf16.mxu0 0
    %1509 = vmatpush1.bf16.msra.mxu0 %v1445
    %1510 = vmatprep.subr.bf16.mxu0 0
    %1511 = vmatpush1.bf16.msra.mxu0 %v1446
    %1512 = vmatprep.subr.bf16.mxu0 0
    %1513 = vmatpush1.bf16.msra.mxu0 %v1447
    %1514 = vmatprep.subr.bf16.mxu0 0
    %1515 = vmatpush1.bf16.msra.mxu0 %v1448
    %1516 = vmatprep.subr.bf16.mxu0 0
    %1517 = vmatpush1.bf16.msra.mxu0 %v1449
    %1518 = vmatprep.subr.bf16.mxu0 0
    %1519 = vmatpush1.bf16.msra.mxu0 %v1450
    %1520 = vmatprep.subr.bf16.mxu0 0
    %1521 = vmatpush1.bf16.msra.mxu0 %v1451
    %1522 = vmatprep.subr.bf16.mxu0 0
    %1523 = vmatpush1.bf16.msra.mxu0 %v1452
    %1524 = vmatprep.subr.bf16.mxu0 0
    %1525 = vmatpush1.bf16.msra.mxu0 %v1453
    %1526 = vmatprep.subr.bf16.mxu0 0
    %1527 = vmatpush1.bf16.msra.mxu0 %v1454
    %1528 = vmatprep.subr.bf16.mxu0 0
    %1529 = vmatpush1.bf16.msra.mxu0 %v1455
    %1530 = vmatprep.subr.bf16.mxu0 0
    %1531 = vmatpush1.bf16.msra.mxu0 %v1456
    %1532 = vmatprep.subr.bf16.mxu0 0
    %1533 = vmatpush1.bf16.msra.mxu0 0
    %1534 = vmatprep.mubr.bf16.mxu0 %v1473
    %1535 = vmatmul.mubr.bf16.gmra.mrb[0].mxu0 %v1301
    %v1536 = vpop.f32.mrb[0].mxu0
    %v1537 = vadd.f32 0.0, %v1536
    %v1538 = vpop.f32.mrb[0].mxu0
    %v1539 = vpop.f32.mrb[0].mxu0
    %v1540 = vadd.f32 0.0, %v1539
    %v1541 = vpop.f32.mrb[0].mxu0
    %1542 = vmatprep.mubr.bf16.mxu0 %v1476
    %1543 = vmatmul.mubr.bf16.gmra.mrb[0].mxu0 %v1303
    %v1544 = vpop.f32.mrb[0].mxu0
    %v1545 = vadd.f32 0.0, %v1544
    %v1546 = vpop.f32.mrb[0].mxu0
    %v1547 = vpop.f32.mrb[0].mxu0
    %v1548 = vadd.f32 0.0, %v1547
    %v1549 = vpop.f32.mrb[0].mxu0
    %1550 = vmatprep.mubr.bf16.mxu0 %v1479
    %1551 = vmatmul.mubr.bf16.gmra.mrb[0].mxu0 %v1305
    %v1552 = vpop.f32.mrb[0].mxu0
    %v1553 = vadd.f32 0.0, %v1552
    %v1554 = vpop.f32.mrb[0].mxu0
    %v1555 = vpop.f32.mrb[0].mxu0
    %v1556 = vadd.f32 0.0, %v1555
    %v1557 = vpop.f32.mrb[0].mxu0
    %1558 = vmatprep.mubr.bf16.mxu0 %v1482
    %1559 = vmatmul.mubr.bf16.gmra.mrb[0].mxu0 %v1307
    %v1560 = vpop.f32.mrb[0].mxu0
    %v1561 = vadd.f32 0.0, %v1560
    %v1562 = vpop.f32.mrb[0].mxu0
    %v1563 = vpop.f32.mrb[0].mxu0
    %v1564 = vadd.f32 0.0, %v1563
    %v1565 = vpop.f32.mrb[0].mxu0
    %1566 = vmatprep.mubr.bf16.mxu0 %v1485
    %1567 = vmatmul.mubr.bf16.gmra.mrb[0].mxu0 %v1309
    %v1568 = vpop.f32.mrb[0].mxu0
    %v1569 = vadd.f32 0.0, %v1568
    %v1570 = vpop.f32.mrb[0].mxu0
    %v1571 = vpop.f32.mrb[0].mxu0
    %v1572 = vadd.f32 0.0, %v1571
    %v1573 = vpop.f32.mrb[0].mxu0
    %1574 = vmatprep.mubr.bf16.mxu0 %v1488
    %1575 = vmatmul.mubr.bf16.gmra.mrb[0].mxu0 %v1311
    %v1576 = vpop.f32.mrb[0].mxu0
    %v1577 = vadd.f32 0.0, %v1576
    %v1578 = vpop.f32.mrb[0].mxu0
    %v1579 = vpop.f32.mrb[0].mxu0
    %v1580 = vadd.f32 0.0, %v1579
    %v1581 = vpop.f32.mrb[0].mxu0
    %1582 = vmatprep.mubr.bf16.mxu0 %v1491
    %1583 = vmatmul.mubr.bf16.gmra.mrb[0].mxu0 %v1313
    %v1584 = vpop.f32.mrb[0].mxu0
    %v1585 = vadd.f32 0.0, %v1584
    %v1586 = vpop.f32.mrb[0].mxu0
    %v1587 = vpop.f32.mrb[0].mxu0
    %v1588 = vadd.f32 0.0, %v1587
    %v1589 = vpop.f32.mrb[0].mxu0
    %1590 = vmatprep.mubr.bf16.mxu0 %v1494
    %1591 = vmatmul.mubr.bf16.gmra.mrb[0].mxu0 %v1315
    %v1592 = vpop.f32.mrb[0].mxu0
    %v1593 = vadd.f32 0.0, %v1592
    %v1594 = vpop.f32.mrb[0].mxu0
    %v1595 = vpop.f32.mrb[0].mxu0
    %v1596 = vadd.f32 0.0, %v1595
    %v1597 = vpop.f32.mrb[0].mxu0
    %1598 = vmatprep.mubr.bf16.mxu0 %v1497
    %1599 = vmatmul.mubr.bf16.gmra.mrb[0].mxu0 %v1347
    %v1600 = vpop.f32.mrb[0].mxu0
    %v1601 = vadd.f32 0.0, %v1600
    %v1602 = vpop.f32.mrb[0].mxu0
    %v1603 = vpop.f32.mrb[0].mxu0
    %v1604 = vadd.f32 0.0, %v1603
    %v1605 = vpop.f32.mrb[0].mxu0
    %1606 = vmatprep.mubr.bf16.mxu0 %v1500
    %1607 = vmatmul.mubr.bf16.gmra.mrb[0].mxu0 %v1349
    %v1608 = vpop.f32.mrb[0].mxu0
    %v1609 = vadd.f32 0.0, %v1608
    %v1610 = vpop.f32.mrb[0].mxu0
    %v1611 = vpop.f32.mrb[0].mxu0
    %v1612 = vadd.f32 0.0, %v1611
    %v1613 = vpop.f32.mrb[0].mxu0
    %1614 = vdwg.mxu0
    %v1645 = vunpack.c.l.b16 %v1317
    %v1646 = vunpack.c.l.b16 %v1318
    %v1647 = vunpack.c.l.b16 %v1319
    %v1648 = vunpack.c.l.b16 %v1320
    %v1649 = vunpack.c.l.b16 %v1321
    %v1650 = vunpack.c.l.b16 %v1322
    %v1651 = vunpack.c.l.b16 %v1323
    %v1652 = vunpack.c.l.b16 %v1324
    %v1653 = vunpack.c.l.b16 %v1325
    %v1654 = vunpack.c.l.b16 %v1326
    %v1655 = vunpack.c.l.b16 %v1327
    %v1656 = vunpack.c.l.b16 %v1328
    %v1657 = vunpack.c.l.b16 %v1329
    %v1658 = vunpack.c.l.b16 %v1330
    %v1659 = vunpack.c.l.b16 %v1331
    %v1660 = vunpack.c.l.b16 %v1332
    %v1661 = vunpack.c.l.b16 %v1333
    %v1662 = vunpack.c.l.b16 %v1334
    %v1663 = vunpack.c.l.b16 %v1335
    %v1664 = vunpack.c.l.b16 %v1336
    %v1665 = vunpack.c.l.b16 %v1337
    %v1666 = vunpack.c.l.b16 %v1338
    %v1667 = vunpack.c.l.b16 %v1339
    %v1668 = vunpack.c.l.b16 %v1340
    %v1669 = vunpack.c.l.b16 %v1341
    %v1670 = vunpack.c.l.b16 %v1342
    %v1671 = vunpack.c.l.b16 %v1343
    %v1672 = vunpack.c.l.b16 %v1344
    %v1673 = vunpack.c.l.b16 %v1345
    %v1674 = vunpack.c.l.b16 %v1346
    %v1675 = vpack.c.b16 %v1646, %v1645
    %v1676 = vpack.c.b16 %v1648, %v1647
    %v1677 = vpack.c.b16 %v1650, %v1649
    %v1678 = vpack.c.b16 %v1652, %v1651
    %v1679 = vpack.c.b16 %v1654, %v1653
    %v1680 = vpack.c.b16 %v1656, %v1655
    %v1681 = vpack.c.b16 %v1658, %v1657
    %v1682 = vpack.c.b16 %v1660, %v1659
    %v1683 = vpack.c.b16 %v1662, %v1661
    %v1684 = vpack.c.b16 %v1664, %v1663
    %v1685 = vpack.c.b16 %v1666, %v1665
    %v1686 = vpack.c.b16 %v1668, %v1667
    %v1687 = vpack.c.b16 %v1670, %v1669
    %v1688 = vpack.c.b16 %v1672, %v1671
    %v1689 = vpack.c.b16 %v1674, %v1673
    %v1706 = vsel %vm860, %v1298, 0
    %v1709 = vsel %vm860, %v1300, 0
    %1711 = vmatprep.subr.bf16.mxu0 0
    %1712 = vmatpush1.bf16.msra.mxu0 %v1675
    %1713 = vmatprep.subr.bf16.mxu0 0
    %1714 = vmatpush1.bf16.msra.mxu0 %v1676
    %1715 = vmatprep.subr.bf16.mxu0 0
    %1716 = vmatpush1.bf16.msra.mxu0 %v1677
    %1717 = vmatprep.subr.bf16.mxu0 0
    %1718 = vmatpush1.bf16.msra.mxu0 %v1678
    %1719 = vmatprep.subr.bf16.mxu0 0
    %1720 = vmatpush1.bf16.msra.mxu0 %v1679
    %1721 = vmatprep.subr.bf16.mxu0 0
    %1722 = vmatpush1.bf16.msra.mxu0 %v1680
    %1723 = vmatprep.subr.bf16.mxu0 0
    %1724 = vmatpush1.bf16.msra.mxu0 %v1681
    %1725 = vmatprep.subr.bf16.mxu0 0
    %1726 = vmatpush1.bf16.msra.mxu0 %v1682
    %1727 = vmatprep.subr.bf16.mxu0 0
    %1728 = vmatpush1.bf16.msra.mxu0 %v1683
    %1729 = vmatprep.subr.bf16.mxu0 0
    %1730 = vmatpush1.bf16.msra.mxu0 %v1684
    %1731 = vmatprep.subr.bf16.mxu0 0
    %1732 = vmatpush1.bf16.msra.mxu0 %v1685
    %1733 = vmatprep.subr.bf16.mxu0 0
    %1734 = vmatpush1.bf16.msra.mxu0 %v1686
    %1735 = vmatprep.subr.bf16.mxu0 0
    %1736 = vmatpush1.bf16.msra.mxu0 %v1687
    %1737 = vmatprep.subr.bf16.mxu0 0
    %1738 = vmatpush1.bf16.msra.mxu0 %v1688
    %1739 = vmatprep.subr.bf16.mxu0 0
    %1740 = vmatpush1.bf16.msra.mxu0 %v1689
    %1741 = vmatprep.subr.bf16.mxu0 0
    %1742 = vmatpush1.bf16.msra.mxu0 0
    %1743 = vmatprep.mubr.bf16.mxu0 %v1706
    %1744 = vmatmul.mubr.bf16.gmra.mrb[0].mxu0 %v1297
    %v1745 = vpop.f32.mrb[0].mxu0
    %v1746 = vadd.f32 %v1537, %v1745
    %v1747 = vpop.f32.mrb[0].mxu0
    %v1748 = vpop.f32.mrb[0].mxu0
    %v1749 = vadd.f32 %v1540, %v1748
    %v1750 = vpop.f32.mrb[0].mxu0
    %1751 = vmatprep.mubr.bf16.mxu0 %v1709
    %1752 = vmatmul.mubr.bf16.gmra.mrb[0].mxu0 %v1299
    %v1753 = vpop.f32.mrb[0].mxu0
    %v1754 = vadd.f32 %v1545, %v1753
    %v1755 = vpop.f32.mrb[0].mxu0
    %v1756 = vpop.f32.mrb[0].mxu0
    %v1757 = vadd.f32 %v1548, %v1756
    %v1758 = vpop.f32.mrb[0].mxu0
    %1759 = vmatprep.mubr.bf16.mxu0 %v1473
    %1760 = vmatmul.mubr.bf16.gmra.mrb[0].mxu0 %v1301
    %v1761 = vpop.f32.mrb[0].mxu0
    %v1762 = vadd.f32 %v1553, %v1761
    %v1763 = vpop.f32.mrb[0].mxu0
    %v1764 = vpop.f32.mrb[0].mxu0
    %v1765 = vadd.f32 %v1556, %v1764
    %v1766 = vpop.f32.mrb[0].mxu0
    %1767 = vmatprep.mubr.bf16.mxu0 %v1476
    %1768 = vmatmul.mubr.bf16.gmra.mrb[0].mxu0 %v1303
    %v1769 = vpop.f32.mrb[0].mxu0
    %v1770 = vadd.f32 %v1561, %v1769
    %v1771 = vpop.f32.mrb[0].mxu0
    %v1772 = vpop.f32.mrb[0].mxu0
    %v1773 = vadd.f32 %v1564, %v1772
    %v1774 = vpop.f32.mrb[0].mxu0
    %1775 = vmatprep.mubr.bf16.mxu0 %v1479
    %1776 = vmatmul.mubr.bf16.gmra.mrb[0].mxu0 %v1305
    %v1777 = vpop.f32.mrb[0].mxu0
    %v1778 = vadd.f32 %v1569, %v1777
    %v1779 = vpop.f32.mrb[0].mxu0
    %v1780 = vpop.f32.mrb[0].mxu0
    %v1781 = vadd.f32 %v1572, %v1780
    %v1782 = vpop.f32.mrb[0].mxu0
    %1783 = vmatprep.mubr.bf16.mxu0 %v1482
    %1784 = vmatmul.mubr.bf16.gmra.mrb[0].mxu0 %v1307
    %v1785 = vpop.f32.mrb[0].mxu0
    %v1786 = vadd.f32 %v1577, %v1785
    %v1787 = vpop.f32.mrb[0].mxu0
    %v1788 = vpop.f32.mrb[0].mxu0
    %v1789 = vadd.f32 %v1580, %v1788
    %v1790 = vpop.f32.mrb[0].mxu0
    %1791 = vmatprep.mubr.bf16.mxu0 %v1485
    %1792 = vmatmul.mubr.bf16.gmra.mrb[0].mxu0 %v1309
    %v1793 = vpop.f32.mrb[0].mxu0
    %v1794 = vadd.f32 %v1585, %v1793
    %v1795 = vpop.f32.mrb[0].mxu0
    %v1796 = vpop.f32.mrb[0].mxu0
    %v1797 = vadd.f32 %v1588, %v1796
    %v1798 = vpop.f32.mrb[0].mxu0
    %1799 = vmatprep.mubr.bf16.mxu0 %v1488
    %1800 = vmatmul.mubr.bf16.gmra.mrb[0].mxu0 %v1311
    %v1801 = vpop.f32.mrb[0].mxu0
    %v1802 = vadd.f32 %v1593, %v1801
    %v1803 = vpop.f32.mrb[0].mxu0
    %v1804 = vpop.f32.mrb[0].mxu0
    %v1805 = vadd.f32 %v1596, %v1804
    %v1806 = vpop.f32.mrb[0].mxu0
    %1807 = vmatprep.mubr.bf16.mxu0 %v1491
    %1808 = vmatmul.mubr.bf16.gmra.mrb[0].mxu0 %v1313
    %v1809 = vpop.f32.mrb[0].mxu0
    %v1810 = vadd.f32 %v1601, %v1809
    %v1811 = vpop.f32.mrb[0].mxu0
    %v1812 = vpop.f32.mrb[0].mxu0
    %v1813 = vadd.f32 %v1604, %v1812
    %v1814 = vpop.f32.mrb[0].mxu0
    %1815 = vmatprep.mubr.bf16.mxu0 %v1494
    %1816 = vmatmul.mubr.bf16.gmra.mrb[0].mxu0 %v1315
    %v1817 = vpop.f32.mrb[0].mxu0
    %v1818 = vadd.f32 %v1609, %v1817
    %v1819 = vpop.f32.mrb[0].mxu0
    %v1820 = vpop.f32.mrb[0].mxu0
    %v1821 = vadd.f32 %v1612, %v1820
    %v1822 = vpop.f32.mrb[0].mxu0
    %1823 = vdwg.mxu0
    %v1824 = vld [vmem:[#allocation2 + $0x40] sm:$0xff]
    %v1825 = vld [vmem:[#allocation2 + $0x48] sm:$0xff]
    %v1826 = vld [vmem:[#allocation2 + $0x50] sm:$0xff]
    %v1827 = vld [vmem:[#allocation2 + $0x58] sm:$0xff]
    %v1828 = vld [vmem:[#allocation2 + $0x60] sm:$0xff]
    %v1829 = vld [vmem:[#allocation2 + $0x68] sm:$0xff]
    %v1830 = vld [vmem:[#allocation2 + $0x70] sm:$0xff]
    %v1831 = vld [vmem:[#allocation2 + $0x78] sm:$0xff]
    %v1832 = vld [vmem:[#allocation2 + $0x80] sm:$0xff]
    %v1833 = vld [vmem:[#allocation2 + $0x88] sm:$0xff]
    %v1834 = vld [vmem:[#allocation2 + $0x90] sm:$0xff]
    %v1835 = vld [vmem:[#allocation2 + $0x98] sm:$0xff]
    %v1836 = vld [vmem:[#allocation2 + $0xa0] sm:$0xff]
    %v1837 = vld [vmem:[#allocation2 + $0xa8] sm:$0xff]
    %v1838 = vld [vmem:[#allocation2 + $0xb0] sm:$0xff]
    %v1839 = vld [vmem:[#allocation2 + $0xb8] sm:$0xff]
    %v1840 = vld [vmem:[#allocation2 + $0xc0] sm:$0xff]
    %v1841 = vld [vmem:[#allocation2 + $0xc8] sm:$0xff]
    %v1842 = vld [vmem:[#allocation2 + $0xd0] sm:$0xff]
    %v1843 = vld [vmem:[#allocation2 + $0xd8] sm:$0xff]
    %s1844 = scalar_lea.vmem [#allocation6], 240
    %v1845 = vld [vmem:[%s1844] sm:$0xf]
    %v1846 = vld [vmem:[%s1844 + $0x4] sm:$0xf]
    %v1847 = vld [vmem:[%s1844 + $0x8] sm:$0xf]
    %v1848 = vld [vmem:[%s1844 + $0xc] sm:$0xf]
    %v1849 = vld [vmem:[%s1844 + $0x10] sm:$0xf]
    %v1850 = vld [vmem:[%s1844 + $0x14] sm:$0xf]
    %v1851 = vld [vmem:[%s1844 + $0x18] sm:$0xf]
    %v1852 = vld [vmem:[%s1844 + $0x1c] sm:$0xf]
    %v1853 = vld [vmem:[%s1844 + $0x20] sm:$0xf]
    %v1854 = vld [vmem:[%s1844 + $0x24] sm:$0xf]
    %v1855 = vld [vmem:[%s1844 + $0x28] sm:$0xf]
    %v1856 = vld [vmem:[%s1844 + $0x2c] sm:$0xf]
    %v1857 = vld [vmem:[%s1844 + $0x30] sm:$0xf]
    %v1858 = vld [vmem:[%s1844 + $0x34] sm:$0xf]
    %v1859 = vld [vmem:[%s1844 + $0x38] sm:$0xf]
    %v1860 = vld [vmem:[%s1844 + $0x3c] sm:$0xf]
    %v1861 = vld [vmem:[%s1844 + $0x40] sm:$0xf]
    %v1862 = vld [vmem:[%s1844 + $0x44] sm:$0xf]
    %v1863 = vld [vmem:[%s1844 + $0x48] sm:$0xf]
    %v1864 = vld [vmem:[%s1844 + $0x4c] sm:$0xf]
    %v1865 = vld [vmem:[%s1844 + $0x50] sm:$0xf]
    %v1866 = vld [vmem:[%s1844 + $0x54] sm:$0xf]
    %v1867 = vld [vmem:[%s1844 + $0x58] sm:$0xf]
    %v1868 = vld [vmem:[%s1844 + $0x5c] sm:$0xf]
    %v1869 = vld [vmem:[%s1844 + $0x60] sm:$0xf]
    %v1870 = vld [vmem:[%s1844 + $0x64] sm:$0xf]
    %v1871 = vld [vmem:[%s1844 + $0x68] sm:$0xf]
    %v1872 = vld [vmem:[%s1844 + $0x6c] sm:$0xf]
    %v1873 = vld [vmem:[%s1844 + $0x70] sm:$0xf]
    %v1874 = vld [vmem:[%s1844 + $0x74] sm:$0xf]
    %v1905 = vunpack.c.l.b16 %v1845
    %v1906 = vunpack.c.l.b16 %v1846
    %v1907 = vunpack.c.l.b16 %v1847
    %v1908 = vunpack.c.l.b16 %v1848
    %v1909 = vunpack.c.l.b16 %v1849
    %v1910 = vunpack.c.l.b16 %v1850
    %v1911 = vunpack.c.l.b16 %v1851
    %v1912 = vunpack.c.l.b16 %v1852
    %v1913 = vunpack.c.l.b16 %v1853
    %v1914 = vunpack.c.l.b16 %v1854
    %v1915 = vunpack.c.l.b16 %v1855
    %v1916 = vunpack.c.l.b16 %v1856
    %v1917 = vunpack.c.l.b16 %v1857
    %v1918 = vunpack.c.l.b16 %v1858
    %v1919 = vunpack.c.l.b16 %v1859
    %v1920 = vunpack.c.l.b16 %v1860
    %v1921 = vunpack.c.l.b16 %v1861
    %v1922 = vunpack.c.l.b16 %v1862
    %v1923 = vunpack.c.l.b16 %v1863
    %v1924 = vunpack.c.l.b16 %v1864
    %v1925 = vunpack.c.l.b16 %v1865
    %v1926 = vunpack.c.l.b16 %v1866
    %v1927 = vunpack.c.l.b16 %v1867
    %v1928 = vunpack.c.l.b16 %v1868
    %v1929 = vunpack.c.l.b16 %v1869
    %v1930 = vunpack.c.l.b16 %v1870
    %v1931 = vunpack.c.l.b16 %v1871
    %v1932 = vunpack.c.l.b16 %v1872
    %v1933 = vunpack.c.l.b16 %v1873
    %v1934 = vunpack.c.l.b16 %v1874
    %v1935 = vpack.c.b16 %v1906, %v1905
    %v1936 = vpack.c.b16 %v1908, %v1907
    %v1937 = vpack.c.b16 %v1910, %v1909
    %v1938 = vpack.c.b16 %v1912, %v1911
    %v1939 = vpack.c.b16 %v1914, %v1913
    %v1940 = vpack.c.b16 %v1916, %v1915
    %v1941 = vpack.c.b16 %v1918, %v1917
    %v1942 = vpack.c.b16 %v1920, %v1919
    %v1943 = vpack.c.b16 %v1922, %v1921
    %v1944 = vpack.c.b16 %v1924, %v1923
    %v1945 = vpack.c.b16 %v1926, %v1925
    %v1946 = vpack.c.b16 %v1928, %v1927
    %v1947 = vpack.c.b16 %v1930, %v1929
    %v1948 = vpack.c.b16 %v1932, %v1931
    %v1949 = vpack.c.b16 %v1934, %v1933
    %v1966 = vsel %vm860, %v1825, 0
    %v1969 = vsel %vm860, %v1827, 0
    %v1972 = vsel %vm860, %v1829, 0
    %v1975 = vsel %vm860, %v1831, 0
    %v1978 = vsel %vm860, %v1833, 0
    %v1981 = vsel %vm860, %v1835, 0
    %v1984 = vsel %vm860, %v1837, 0
    %v1987 = vsel %vm860, %v1839, 0
    %v1990 = vsel %vm860, %v1841, 0
    %v1993 = vsel %vm860, %v1843, 0
    %1995 = vmatprep.subr.bf16.mxu0 0
    %1996 = vmatpush1.bf16.msra.mxu0 %v1935
    %1997 = vmatprep.subr.bf16.mxu0 0
    %1998 = vmatpush1.bf16.msra.mxu0 %v1936
    %1999 = vmatprep.subr.bf16.mxu0 0
    %2000 = vmatpush1.bf16.msra.mxu0 %v1937
    %2001 = vmatprep.subr.bf16.mxu0 0
    %2002 = vmatpush1.bf16.msra.mxu0 %v1938
    %2003 = vmatprep.subr.bf16.mxu0 0
    %2004 = vmatpush1.bf16.msra.mxu0 %v1939
    %2005 = vmatprep.subr.bf16.mxu0 0
    %2006 = vmatpush1.bf16.msra.mxu0 %v1940
    %2007 = vmatprep.subr.bf16.mxu0 0
    %2008 = vmatpush1.bf16.msra.mxu0 %v1941
    %2009 = vmatprep.subr.bf16.mxu0 0
    %2010 = vmatpush1.bf16.msra.mxu0 %v1942
    %2011 = vmatprep.subr.bf16.mxu0 0
    %2012 = vmatpush1.bf16.msra.mxu0 %v1943
    %2013 = vmatprep.subr.bf16.mxu0 0
    %2014 = vmatpush1.bf16.msra.mxu0 %v1944
    %2015 = vmatprep.subr.bf16.mxu0 0
    %2016 = vmatpush1.bf16.msra.mxu0 %v1945
    %2017 = vmatprep.subr.bf16.mxu0 0
    %2018 = vmatpush1.bf16.msra.mxu0 %v1946
    %2019 = vmatprep.subr.bf16.mxu0 0
    %2020 = vmatpush1.bf16.msra.mxu0 %v1947
    %2021 = vmatprep.subr.bf16.mxu0 0
    %2022 = vmatpush1.bf16.msra.mxu0 %v1948
    %2023 = vmatprep.subr.bf16.mxu0 0
    %2024 = vmatpush1.bf16.msra.mxu0 %v1949
    %2025 = vmatprep.subr.bf16.mxu0 0
    %2026 = vmatpush1.bf16.msra.mxu0 0
    %2027 = vmatprep.mubr.bf16.mxu0 %v1966
    %2028 = vmatmul.mubr.bf16.gmra.mrb[0].mxu0 %v1824
    %v2029 = vpop.f32.mrb[0].mxu0
    %v2030 = vadd.f32 0.0, %v2029
    %v2031 = vpop.f32.mrb[0].mxu0
    %v2032 = vpop.f32.mrb[0].mxu0
    %v2033 = vadd.f32 0.0, %v2032
    %v2034 = vpop.f32.mrb[0].mxu0
    %2035 = vmatprep.mubr.bf16.mxu0 %v1969
    %2036 = vmatmul.mubr.bf16.gmra.mrb[0].mxu0 %v1826
    %v2037 = vpop.f32.mrb[0].mxu0
    %v2038 = vadd.f32 0.0, %v2037
    %v2039 = vpop.f32.mrb[0].mxu0
    %v2040 = vpop.f32.mrb[0].mxu0
    %v2041 = vadd.f32 0.0, %v2040
    %v2042 = vpop.f32.mrb[0].mxu0
    %2043 = vmatprep.mubr.bf16.mxu0 %v1972
    %2044 = vmatmul.mubr.bf16.gmra.mrb[0].mxu0 %v1828
    %v2045 = vpop.f32.mrb[0].mxu0
    %v2046 = vadd.f32 0.0, %v2045
    %v2047 = vpop.f32.mrb[0].mxu0
    %v2048 = vpop.f32.mrb[0].mxu0
    %v2049 = vadd.f32 0.0, %v2048
    %v2050 = vpop.f32.mrb[0].mxu0
    %2051 = vmatprep.mubr.bf16.mxu0 %v1975
    %2052 = vmatmul.mubr.bf16.gmra.mrb[0].mxu0 %v1830
    %v2053 = vpop.f32.mrb[0].mxu0
    %v2054 = vadd.f32 0.0, %v2053
    %v2055 = vpop.f32.mrb[0].mxu0
    %v2056 = vpop.f32.mrb[0].mxu0
    %v2057 = vadd.f32 0.0, %v2056
    %v2058 = vpop.f32.mrb[0].mxu0
    %2059 = vmatprep.mubr.bf16.mxu0 %v1978
    %2060 = vmatmul.mubr.bf16.gmra.mrb[0].mxu0 %v1832
    %v2061 = vpop.f32.mrb[0].mxu0
    %v2062 = vadd.f32 0.0, %v2061
    %v2063 = vpop.f32.mrb[0].mxu0
    %v2064 = vpop.f32.mrb[0].mxu0
    %v2065 = vadd.f32 0.0, %v2064
    %v2066 = vpop.f32.mrb[0].mxu0
    %2067 = vmatprep.mubr.bf16.mxu0 %v1981
    %2068 = vmatmul.mubr.bf16.gmra.mrb[0].mxu0 %v1834
    %v2069 = vpop.f32.mrb[0].mxu0
    %v2070 = vadd.f32 0.0, %v2069
    %v2071 = vpop.f32.mrb[0].mxu0
    %v2072 = vpop.f32.mrb[0].mxu0
    %v2073 = vadd.f32 0.0, %v2072
    %v2074 = vpop.f32.mrb[0].mxu0
    %2075 = vmatprep.mubr.bf16.mxu0 %v1984
    %2076 = vmatmul.mubr.bf16.gmra.mrb[0].mxu0 %v1836
    %v2077 = vpop.f32.mrb[0].mxu0
    %v2078 = vadd.f32 0.0, %v2077
    %v2079 = vpop.f32.mrb[0].mxu0
    %v2080 = vpop.f32.mrb[0].mxu0
    %v2081 = vadd.f32 0.0, %v2080
    %v2082 = vpop.f32.mrb[0].mxu0
    %2083 = vmatprep.mubr.bf16.mxu0 %v1987
    %2084 = vmatmul.mubr.bf16.gmra.mrb[0].mxu0 %v1838
    %v2085 = vpop.f32.mrb[0].mxu0
    %v2086 = vadd.f32 0.0, %v2085
    %v2087 = vpop.f32.mrb[0].mxu0
    %v2088 = vpop.f32.mrb[0].mxu0
    %v2089 = vadd.f32 0.0, %v2088
    %v2090 = vpop.f32.mrb[0].mxu0
    %2091 = vmatprep.mubr.bf16.mxu0 %v1990
    %2092 = vmatmul.mubr.bf16.gmra.mrb[0].mxu0 %v1840
    %v2093 = vpop.f32.mrb[0].mxu0
    %v2094 = vadd.f32 0.0, %v2093
    %v2095 = vpop.f32.mrb[0].mxu0
    %v2096 = vpop.f32.mrb[0].mxu0
    %v2097 = vadd.f32 0.0, %v2096
    %v2098 = vpop.f32.mrb[0].mxu0
    %2099 = vmatprep.mubr.bf16.mxu0 %v1993
    %2100 = vmatmul.mubr.bf16.gmra.mrb[0].mxu0 %v1842
    %v2101 = vpop.f32.mrb[0].mxu0
    %v2102 = vadd.f32 0.0, %v2101
    %v2103 = vpop.f32.mrb[0].mxu0
    %v2104 = vpop.f32.mrb[0].mxu0
    %v2105 = vadd.f32 0.0, %v2104
    %v2106 = vpop.f32.mrb[0].mxu0
    %2107 = vdwg.mxu0
    %v2108 = vadd.f32 %v1746, %v2030
    %v2109 = vadd.f32 %v1749, %v2033
    %v2110 = vadd.f32 %v1754, %v2038
    %v2111 = vadd.f32 %v1757, %v2041
    %v2112 = vadd.f32 %v1762, %v2046
    %v2113 = vadd.f32 %v1765, %v2049
    %v2114 = vadd.f32 %v1770, %v2054
    %v2115 = vadd.f32 %v1773, %v2057
    %v2116 = vadd.f32 %v1778, %v2062
    %v2117 = vadd.f32 %v1781, %v2065
    %v2118 = vadd.f32 %v1786, %v2070
    %v2119 = vadd.f32 %v1789, %v2073
    %v2120 = vadd.f32 %v1794, %v2078
    %v2121 = vadd.f32 %v1797, %v2081
    %v2122 = vadd.f32 %v1802, %v2086
    %v2123 = vadd.f32 %v1805, %v2089
    %v2124 = vadd.f32 %v1810, %v2094
    %v2125 = vadd.f32 %v1813, %v2097
    %v2126 = vadd.f32 %v1818, %v2102
    %v2127 = vadd.f32 %v1821, %v2105
    %v2128 = vld [vmem:[#allocation2 + $0x60] sm:$0xff]
    %v2129 = vld [vmem:[#allocation2 + $0x68] sm:$0xff]
    %v2130 = vld [vmem:[#allocation2 + $0x70] sm:$0xff]
    %v2131 = vld [vmem:[#allocation2 + $0x78] sm:$0xff]
    %v2132 = vld [vmem:[#allocation2 + $0x80] sm:$0xff]
    %v2133 = vld [vmem:[#allocation2 + $0x88] sm:$0xff]
    %v2134 = vld [vmem:[#allocation2 + $0x90] sm:$0xff]
    %v2135 = vld [vmem:[#allocation2 + $0x98] sm:$0xff]
    %v2136 = vld [vmem:[#allocation2 + $0xa0] sm:$0xff]
    %v2137 = vld [vmem:[#allocation2 + $0xa8] sm:$0xff]
    %v2138 = vld [vmem:[#allocation2 + $0xb0] sm:$0xff]
    %v2139 = vld [vmem:[#allocation2 + $0xb8] sm:$0xff]
    %v2140 = vld [vmem:[#allocation2 + $0xc0] sm:$0xff]
    %v2141 = vld [vmem:[#allocation2 + $0xc8] sm:$0xff]
    %v2142 = vld [vmem:[#allocation2 + $0xd0] sm:$0xff]
    %v2143 = vld [vmem:[#allocation2 + $0xd8] sm:$0xff]
    %v2144 = vld [vmem:[#allocation2 + $0xe0] sm:$0xff]
    %v2145 = vld [vmem:[#allocation2 + $0xe8] sm:$0xff]
    %v2146 = vld [vmem:[#allocation2 + $0xf0] sm:$0xff]
    %v2147 = vld [vmem:[#allocation2 + $0xf8] sm:$0xff]
    %s2148 = scalar_lea.vmem [#allocation6], 360
    %v2149 = vld [vmem:[%s2148] sm:$0xf]
    %v2150 = vld [vmem:[%s2148 + $0x4] sm:$0xf]
    %v2151 = vld [vmem:[%s2148 + $0x8] sm:$0xf]
    %v2152 = vld [vmem:[%s2148 + $0xc] sm:$0xf]
    %v2153 = vld [vmem:[%s2148 + $0x10] sm:$0xf]
    %v2154 = vld [vmem:[%s2148 + $0x14] sm:$0xf]
    %v2155 = vld [vmem:[%s2148 + $0x18] sm:$0xf]
    %v2156 = vld [vmem:[%s2148 + $0x1c] sm:$0xf]
    %v2157 = vld [vmem:[%s2148 + $0x20] sm:$0xf]
    %v2158 = vld [vmem:[%s2148 + $0x24] sm:$0xf]
    %v2159 = vld [vmem:[%s2148 + $0x28] sm:$0xf]
    %v2160 = vld [vmem:[%s2148 + $0x2c] sm:$0xf]
    %v2161 = vld [vmem:[%s2148 + $0x30] sm:$0xf]
    %v2162 = vld [vmem:[%s2148 + $0x34] sm:$0xf]
    %v2163 = vld [vmem:[%s2148 + $0x38] sm:$0xf]
    %v2164 = vld [vmem:[%s2148 + $0x3c] sm:$0xf]
    %v2165 = vld [vmem:[%s2148 + $0x40] sm:$0xf]
    %v2166 = vld [vmem:[%s2148 + $0x44] sm:$0xf]
    %v2167 = vld [vmem:[%s2148 + $0x48] sm:$0xf]
    %v2168 = vld [vmem:[%s2148 + $0x4c] sm:$0xf]
    %v2169 = vld [vmem:[%s2148 + $0x50] sm:$0xf]
    %v2170 = vld [vmem:[%s2148 + $0x54] sm:$0xf]
    %v2171 = vld [vmem:[%s2148 + $0x58] sm:$0xf]
    %v2172 = vld [vmem:[%s2148 + $0x5c] sm:$0xf]
    %v2173 = vld [vmem:[%s2148 + $0x60] sm:$0xf]
    %v2174 = vld [vmem:[%s2148 + $0x64] sm:$0xf]
    %v2175 = vld [vmem:[%s2148 + $0x68] sm:$0xf]
    %v2176 = vld [vmem:[%s2148 + $0x6c] sm:$0xf]
    %v2177 = vld [vmem:[%s2148 + $0x70] sm:$0xf]
    %v2178 = vld [vmem:[%s2148 + $0x74] sm:$0xf]
    %v2209 = vunpack.c.l.b16 %v2149
    %v2210 = vunpack.c.l.b16 %v2150
    %v2211 = vunpack.c.l.b16 %v2151
    %v2212 = vunpack.c.l.b16 %v2152
    %v2213 = vunpack.c.l.b16 %v2153
    %v2214 = vunpack.c.l.b16 %v2154
    %v2215 = vunpack.c.l.b16 %v2155
    %v2216 = vunpack.c.l.b16 %v2156
    %v2217 = vunpack.c.l.b16 %v2157
    %v2218 = vunpack.c.l.b16 %v2158
    %v2219 = vunpack.c.l.b16 %v2159
    %v2220 = vunpack.c.l.b16 %v2160
    %v2221 = vunpack.c.l.b16 %v2161
    %v2222 = vunpack.c.l.b16 %v2162
    %v2223 = vunpack.c.l.b16 %v2163
    %v2224 = vunpack.c.l.b16 %v2164
    %v2225 = vunpack.c.l.b16 %v2165
    %v2226 = vunpack.c.l.b16 %v2166
    %v2227 = vunpack.c.l.b16 %v2167
    %v2228 = vunpack.c.l.b16 %v2168
    %v2229 = vunpack.c.l.b16 %v2169
    %v2230 = vunpack.c.l.b16 %v2170
    %v2231 = vunpack.c.l.b16 %v2171
    %v2232 = vunpack.c.l.b16 %v2172
    %v2233 = vunpack.c.l.b16 %v2173
    %v2234 = vunpack.c.l.b16 %v2174
    %v2235 = vunpack.c.l.b16 %v2175
    %v2236 = vunpack.c.l.b16 %v2176
    %v2237 = vunpack.c.l.b16 %v2177
    %v2238 = vunpack.c.l.b16 %v2178
    %v2239 = vpack.c.b16 %v2210, %v2209
    %v2240 = vpack.c.b16 %v2212, %v2211
    %v2241 = vpack.c.b16 %v2214, %v2213
    %v2242 = vpack.c.b16 %v2216, %v2215
    %v2243 = vpack.c.b16 %v2218, %v2217
    %v2244 = vpack.c.b16 %v2220, %v2219
    %v2245 = vpack.c.b16 %v2222, %v2221
    %v2246 = vpack.c.b16 %v2224, %v2223
    %v2247 = vpack.c.b16 %v2226, %v2225
    %v2248 = vpack.c.b16 %v2228, %v2227
    %v2249 = vpack.c.b16 %v2230, %v2229
    %v2250 = vpack.c.b16 %v2232, %v2231
    %v2251 = vpack.c.b16 %v2234, %v2233
    %v2252 = vpack.c.b16 %v2236, %v2235
    %v2253 = vpack.c.b16 %v2238, %v2237
    %v2270 = vsel %vm860, %v2129, 0
    %v2273 = vsel %vm860, %v2131, 0
    %v2276 = vsel %vm860, %v2133, 0
    %v2279 = vsel %vm860, %v2135, 0
    %v2282 = vsel %vm860, %v2137, 0
    %v2285 = vsel %vm860, %v2139, 0
    %v2288 = vsel %vm860, %v2141, 0
    %v2291 = vsel %vm860, %v2143, 0
    %v2294 = vsel %vm860, %v2145, 0
    %v2297 = vsel %vm860, %v2147, 0
    %2299 = vmatprep.subr.bf16.mxu0 0
    %2300 = vmatpush1.bf16.msra.mxu0 %v2239
    %2301 = vmatprep.subr.bf16.mxu0 0
    %2302 = vmatpush1.bf16.msra.mxu0 %v2240
    %2303 = vmatprep.subr.bf16.mxu0 0
    %2304 = vmatpush1.bf16.msra.mxu0 %v2241
    %2305 = vmatprep.subr.bf16.mxu0 0
    %2306 = vmatpush1.bf16.msra.mxu0 %v2242
    %2307 = vmatprep.subr.bf16.mxu0 0
    %2308 = vmatpush1.bf16.msra.mxu0 %v2243
    %2309 = vmatprep.subr.bf16.mxu0 0
    %2310 = vmatpush1.bf16.msra.mxu0 %v2244
    %2311 = vmatprep.subr.bf16.mxu0 0
    %2312 = vmatpush1.bf16.msra.mxu0 %v2245
    %2313 = vmatprep.subr.bf16.mxu0 0
    %2314 = vmatpush1.bf16.msra.mxu0 %v2246
    %2315 = vmatprep.subr.bf16.mxu0 0
    %2316 = vmatpush1.bf16.msra.mxu0 %v2247
    %2317 = vmatprep.subr.bf16.mxu0 0
    %2318 = vmatpush1.bf16.msra.mxu0 %v2248
    %2319 = vmatprep.subr.bf16.mxu0 0
    %2320 = vmatpush1.bf16.msra.mxu0 %v2249
    %2321 = vmatprep.subr.bf16.mxu0 0
    %2322 = vmatpush1.bf16.msra.mxu0 %v2250
    %2323 = vmatprep.subr.bf16.mxu0 0
    %2324 = vmatpush1.bf16.msra.mxu0 %v2251
    %2325 = vmatprep.subr.bf16.mxu0 0
    %2326 = vmatpush1.bf16.msra.mxu0 %v2252
    %2327 = vmatprep.subr.bf16.mxu0 0
    %2328 = vmatpush1.bf16.msra.mxu0 %v2253
    %2329 = vmatprep.subr.bf16.mxu0 0
    %2330 = vmatpush1.bf16.msra.mxu0 0
    %2331 = vmatprep.mubr.bf16.mxu0 %v2270
    %2332 = vmatmul.mubr.bf16.gmra.mrb[0].mxu0 %v2128
    %v2333 = vpop.f32.mrb[0].mxu0
    %v2334 = vadd.f32 0.0, %v2333
    %v2335 = vpop.f32.mrb[0].mxu0
    %v2336 = vpop.f32.mrb[0].mxu0
    %v2337 = vadd.f32 0.0, %v2336
    %v2338 = vpop.f32.mrb[0].mxu0
    %2339 = vmatprep.mubr.bf16.mxu0 %v2273
    %2340 = vmatmul.mubr.bf16.gmra.mrb[0].mxu0 %v2130
    %v2341 = vpop.f32.mrb[0].mxu0
    %v2342 = vadd.f32 0.0, %v2341
    %v2343 = vpop.f32.mrb[0].mxu0
    %v2344 = vpop.f32.mrb[0].mxu0
    %v2345 = vadd.f32 0.0, %v2344
    %v2346 = vpop.f32.mrb[0].mxu0
    %2347 = vmatprep.mubr.bf16.mxu0 %v2276
    %2348 = vmatmul.mubr.bf16.gmra.mrb[0].mxu0 %v2132
    %v2349 = vpop.f32.mrb[0].mxu0
    %v2350 = vadd.f32 0.0, %v2349
    %v2351 = vpop.f32.mrb[0].mxu0
    %v2352 = vpop.f32.mrb[0].mxu0
    %v2353 = vadd.f32 0.0, %v2352
    %v2354 = vpop.f32.mrb[0].mxu0
    %2355 = vmatprep.mubr.bf16.mxu0 %v2279
    %2356 = vmatmul.mubr.bf16.gmra.mrb[0].mxu0 %v2134
    %v2357 = vpop.f32.mrb[0].mxu0
    %v2358 = vadd.f32 0.0, %v2357
    %v2359 = vpop.f32.mrb[0].mxu0
    %v2360 = vpop.f32.mrb[0].mxu0
    %v2361 = vadd.f32 0.0, %v2360
    %v2362 = vpop.f32.mrb[0].mxu0
    %2363 = vmatprep.mubr.bf16.mxu0 %v2282
    %2364 = vmatmul.mubr.bf16.gmra.mrb[0].mxu0 %v2136
    %v2365 = vpop.f32.mrb[0].mxu0
    %v2366 = vadd.f32 0.0, %v2365
    %v2367 = vpop.f32.mrb[0].mxu0
    %v2368 = vpop.f32.mrb[0].mxu0
    %v2369 = vadd.f32 0.0, %v2368
    %v2370 = vpop.f32.mrb[0].mxu0
    %2371 = vmatprep.mubr.bf16.mxu0 %v2285
    %2372 = vmatmul.mubr.bf16.gmra.mrb[0].mxu0 %v2138
    %v2373 = vpop.f32.mrb[0].mxu0
    %v2374 = vadd.f32 0.0, %v2373
    %v2375 = vpop.f32.mrb[0].mxu0
    %v2376 = vpop.f32.mrb[0].mxu0
    %v2377 = vadd.f32 0.0, %v2376
    %v2378 = vpop.f32.mrb[0].mxu0
    %2379 = vmatprep.mubr.bf16.mxu0 %v2288
    %2380 = vmatmul.mubr.bf16.gmra.mrb[0].mxu0 %v2140
    %v2381 = vpop.f32.mrb[0].mxu0
    %v2382 = vadd.f32 0.0, %v2381
    %v2383 = vpop.f32.mrb[0].mxu0
    %v2384 = vpop.f32.mrb[0].mxu0
    %v2385 = vadd.f32 0.0, %v2384
    %v2386 = vpop.f32.mrb[0].mxu0
    %2387 = vmatprep.mubr.bf16.mxu0 %v2291
    %2388 = vmatmul.mubr.bf16.gmra.mrb[0].mxu0 %v2142
    %v2389 = vpop.f32.mrb[0].mxu0
    %v2390 = vadd.f32 0.0, %v2389
    %v2391 = vpop.f32.mrb[0].mxu0
    %v2392 = vpop.f32.mrb[0].mxu0
    %v2393 = vadd.f32 0.0, %v2392
    %v2394 = vpop.f32.mrb[0].mxu0
    %2395 = vmatprep.mubr.bf16.mxu0 %v2294
    %2396 = vmatmul.mubr.bf16.gmra.mrb[0].mxu0 %v2144
    %v2397 = vpop.f32.mrb[0].mxu0
    %v2398 = vadd.f32 0.0, %v2397
    %v2399 = vpop.f32.mrb[0].mxu0
    %v2400 = vpop.f32.mrb[0].mxu0
    %v2401 = vadd.f32 0.0, %v2400
    %v2402 = vpop.f32.mrb[0].mxu0
    %2403 = vmatprep.mubr.bf16.mxu0 %v2297
    %2404 = vmatmul.mubr.bf16.gmra.mrb[0].mxu0 %v2146
    %v2405 = vpop.f32.mrb[0].mxu0
    %v2406 = vadd.f32 0.0, %v2405
    %v2407 = vpop.f32.mrb[0].mxu0
    %v2408 = vpop.f32.mrb[0].mxu0
    %v2409 = vadd.f32 0.0, %v2408
    %v2410 = vpop.f32.mrb[0].mxu0
    %2411 = vdwg.mxu0
    %v2412 = vadd.f32 %v2108, %v2334
    %v2413 = vadd.f32 %v2109, %v2337
    %v2414 = vadd.f32 %v2110, %v2342
    %v2415 = vadd.f32 %v2111, %v2345
    %v2416 = vadd.f32 %v2112, %v2350
    %v2417 = vadd.f32 %v2113, %v2353
    %v2418 = vadd.f32 %v2114, %v2358
    %v2419 = vadd.f32 %v2115, %v2361
    %v2420 = vadd.f32 %v2116, %v2366
    %v2421 = vadd.f32 %v2117, %v2369
    %v2422 = vadd.f32 %v2118, %v2374
    %v2423 = vadd.f32 %v2119, %v2377
    %v2424 = vadd.f32 %v2120, %v2382
    %v2425 = vadd.f32 %v2121, %v2385
    %v2426 = vadd.f32 %v2122, %v2390
    %v2427 = vadd.f32 %v2123, %v2393
    %v2428 = vadd.f32 %v2124, %v2398
    %v2429 = vadd.f32 %v2125, %v2401
    %v2430 = vadd.f32 %v2126, %v2406
    %v2431 = vadd.f32 %v2127, %v2409
    %v2432 = vld [vmem:[#allocation2 + $0x80] sm:$0xff]
    %v2433 = vld [vmem:[#allocation2 + $0x88] sm:$0xff]
    %v2434 = vld [vmem:[#allocation2 + $0x90] sm:$0xff]
    %v2435 = vld [vmem:[#allocation2 + $0x98] sm:$0xff]
    %v2436 = vld [vmem:[#allocation2 + $0xa0] sm:$0xff]
    %v2437 = vld [vmem:[#allocation2 + $0xa8] sm:$0xff]
    %v2438 = vld [vmem:[#allocation2 + $0xb0] sm:$0xff]
    %v2439 = vld [vmem:[#allocation2 + $0xb8] sm:$0xff]
    %v2440 = vld [vmem:[#allocation2 + $0xc0] sm:$0xff]
    %v2441 = vld [vmem:[#allocation2 + $0xc8] sm:$0xff]
    %v2442 = vld [vmem:[#allocation2 + $0xd0] sm:$0xff]
    %v2443 = vld [vmem:[#allocation2 + $0xd8] sm:$0xff]
    %v2444 = vld [vmem:[#allocation2 + $0xe0] sm:$0xff]
    %v2445 = vld [vmem:[#allocation2 + $0xe8] sm:$0xff]
    %v2446 = vld [vmem:[#allocation2 + $0xf0] sm:$0xff]
    %v2447 = vld [vmem:[#allocation2 + $0xf8] sm:$0xff]
    %v2448 = vld [vmem:[#allocation2 + $0x100] sm:$0xff]
    %v2449 = vld [vmem:[#allocation2 + $0x108] sm:$0xff]
    %v2450 = vld [vmem:[#allocation2 + $0x110] sm:$0xff]
    %v2451 = vld [vmem:[#allocation2 + $0x118] sm:$0xff]
    %s2452 = scalar_lea.vmem [#allocation6], 480
    %v2453 = vld [vmem:[%s2452] sm:$0xf]
    %v2454 = vld [vmem:[%s2452 + $0x4] sm:$0xf]
    %v2455 = vld [vmem:[%s2452 + $0x8] sm:$0xf]
    %v2456 = vld [vmem:[%s2452 + $0xc] sm:$0xf]
    %v2457 = vld [vmem:[%s2452 + $0x10] sm:$0xf]
    %v2458 = vld [vmem:[%s2452 + $0x14] sm:$0xf]
    %v2459 = vld [vmem:[%s2452 + $0x18] sm:$0xf]
    %v2460 = vld [vmem:[%s2452 + $0x1c] sm:$0xf]
    %v2461 = vld [vmem:[%s2452 + $0x20] sm:$0xf]
    %v2462 = vld [vmem:[%s2452 + $0x24] sm:$0xf]
    %v2463 = vld [vmem:[%s2452 + $0x28] sm:$0xf]
    %v2464 = vld [vmem:[%s2452 + $0x2c] sm:$0xf]
    %v2465 = vld [vmem:[%s2452 + $0x30] sm:$0xf]
    %v2466 = vld [vmem:[%s2452 + $0x34] sm:$0xf]
    %v2467 = vld [vmem:[%s2452 + $0x38] sm:$0xf]
    %v2468 = vld [vmem:[%s2452 + $0x3c] sm:$0xf]
    %v2469 = vld [vmem:[%s2452 + $0x40] sm:$0xf]
    %v2470 = vld [vmem:[%s2452 + $0x44] sm:$0xf]
    %v2471 = vld [vmem:[%s2452 + $0x48] sm:$0xf]
    %v2472 = vld [vmem:[%s2452 + $0x4c] sm:$0xf]
    %v2473 = vld [vmem:[%s2452 + $0x50] sm:$0xf]
    %v2474 = vld [vmem:[%s2452 + $0x54] sm:$0xf]
    %v2475 = vld [vmem:[%s2452 + $0x58] sm:$0xf]
    %v2476 = vld [vmem:[%s2452 + $0x5c] sm:$0xf]
    %v2477 = vld [vmem:[%s2452 + $0x60] sm:$0xf]
    %v2478 = vld [vmem:[%s2452 + $0x64] sm:$0xf]
    %v2479 = vld [vmem:[%s2452 + $0x68] sm:$0xf]
    %v2480 = vld [vmem:[%s2452 + $0x6c] sm:$0xf]
    %v2481 = vld [vmem:[%s2452 + $0x70] sm:$0xf]
    %v2482 = vld [vmem:[%s2452 + $0x74] sm:$0xf]
    %v2513 = vunpack.c.l.b16 %v2453
    %v2514 = vunpack.c.l.b16 %v2454
    %v2515 = vunpack.c.l.b16 %v2455
    %v2516 = vunpack.c.l.b16 %v2456
    %v2517 = vunpack.c.l.b16 %v2457
    %v2518 = vunpack.c.l.b16 %v2458
    %v2519 = vunpack.c.l.b16 %v2459
    %v2520 = vunpack.c.l.b16 %v2460
    %v2521 = vunpack.c.l.b16 %v2461
    %v2522 = vunpack.c.l.b16 %v2462
    %v2523 = vunpack.c.l.b16 %v2463
    %v2524 = vunpack.c.l.b16 %v2464
    %v2525 = vunpack.c.l.b16 %v2465
    %v2526 = vunpack.c.l.b16 %v2466
    %v2527 = vunpack.c.l.b16 %v2467
    %v2528 = vunpack.c.l.b16 %v2468
    %v2529 = vunpack.c.l.b16 %v2469
    %v2530 = vunpack.c.l.b16 %v2470
    %v2531 = vunpack.c.l.b16 %v2471
    %v2532 = vunpack.c.l.b16 %v2472
    %v2533 = vunpack.c.l.b16 %v2473
    %v2534 = vunpack.c.l.b16 %v2474
    %v2535 = vunpack.c.l.b16 %v2475
    %v2536 = vunpack.c.l.b16 %v2476
    %v2537 = vunpack.c.l.b16 %v2477
    %v2538 = vunpack.c.l.b16 %v2478
    %v2539 = vunpack.c.l.b16 %v2479
    %v2540 = vunpack.c.l.b16 %v2480
    %v2541 = vunpack.c.l.b16 %v2481
    %v2542 = vunpack.c.l.b16 %v2482
    %v2543 = vpack.c.b16 %v2514, %v2513
    %v2544 = vpack.c.b16 %v2516, %v2515
    %v2545 = vpack.c.b16 %v2518, %v2517
    %v2546 = vpack.c.b16 %v2520, %v2519
    %v2547 = vpack.c.b16 %v2522, %v2521
    %v2548 = vpack.c.b16 %v2524, %v2523
    %v2549 = vpack.c.b16 %v2526, %v2525
    %v2550 = vpack.c.b16 %v2528, %v2527
    %v2551 = vpack.c.b16 %v2530, %v2529
    %v2552 = vpack.c.b16 %v2532, %v2531
    %v2553 = vpack.c.b16 %v2534, %v2533
    %v2554 = vpack.c.b16 %v2536, %v2535
    %v2555 = vpack.c.b16 %v2538, %v2537
    %v2556 = vpack.c.b16 %v2540, %v2539
    %v2557 = vpack.c.b16 %v2542, %v2541
    %v2574 = vsel %vm860, %v2433, 0
    %v2577 = vsel %vm860, %v2435, 0
    %v2580 = vsel %vm860, %v2437, 0
    %v2583 = vsel %vm860, %v2439, 0
    %v2586 = vsel %vm860, %v2441, 0
    %v2589 = vsel %vm860, %v2443, 0
    %v2592 = vsel %vm860, %v2445, 0
    %v2595 = vsel %vm860, %v2447, 0
    %v2598 = vsel %vm860, %v2449, 0
    %v2601 = vsel %vm860, %v2451, 0
    %2603 = vmatprep.subr.bf16.mxu0 0
    %2604 = vmatpush1.bf16.msra.mxu0 %v2543
    %2605 = vmatprep.subr.bf16.mxu0 0
    %2606 = vmatpush1.bf16.msra.mxu0 %v2544
    %2607 = vmatprep.subr.bf16.mxu0 0
    %2608 = vmatpush1.bf16.msra.mxu0 %v2545
    %2609 = vmatprep.subr.bf16.mxu0 0
    %2610 = vmatpush1.bf16.msra.mxu0 %v2546
    %2611 = vmatprep.subr.bf16.mxu0 0
    %2612 = vmatpush1.bf16.msra.mxu0 %v2547
    %2613 = vmatprep.subr.bf16.mxu0 0
    %2614 = vmatpush1.bf16.msra.mxu0 %v2548
    %2615 = vmatprep.subr.bf16.mxu0 0
    %2616 = vmatpush1.bf16.msra.mxu0 %v2549
    %2617 = vmatprep.subr.bf16.mxu0 0
    %2618 = vmatpush1.bf16.msra.mxu0 %v2550
    %2619 = vmatprep.subr.bf16.mxu0 0
    %2620 = vmatpush1.bf16.msra.mxu0 %v2551
    %2621 = vmatprep.subr.bf16.mxu0 0
    %2622 = vmatpush1.bf16.msra.mxu0 %v2552
    %2623 = vmatprep.subr.bf16.mxu0 0
    %2624 = vmatpush1.bf16.msra.mxu0 %v2553
    %2625 = vmatprep.subr.bf16.mxu0 0
    %2626 = vmatpush1.bf16.msra.mxu0 %v2554
    %2627 = vmatprep.subr.bf16.mxu0 0
    %2628 = vmatpush1.bf16.msra.mxu0 %v2555
    %2629 = vmatprep.subr.bf16.mxu0 0
    %2630 = vmatpush1.bf16.msra.mxu0 %v2556
    %2631 = vmatprep.subr.bf16.mxu0 0
    %2632 = vmatpush1.bf16.msra.mxu0 %v2557
    %2633 = vmatprep.subr.bf16.mxu0 0
    %2634 = vmatpush1.bf16.msra.mxu0 0
    %2635 = vmatprep.mubr.bf16.mxu0 %v2574
    %2636 = vmatmul.mubr.bf16.gmra.mrb[0].mxu0 %v2432
    %v2637 = vpop.f32.mrb[0].mxu0
    %v2638 = vadd.f32 0.0, %v2637
    %v2639 = vpop.f32.mrb[0].mxu0
    %v2640 = vpop.f32.mrb[0].mxu0
    %v2641 = vadd.f32 0.0, %v2640
    %v2642 = vpop.f32.mrb[0].mxu0
    %2643 = vmatprep.mubr.bf16.mxu0 %v2577
    %2644 = vmatmul.mubr.bf16.gmra.mrb[0].mxu0 %v2434
    %v2645 = vpop.f32.mrb[0].mxu0
    %v2646 = vadd.f32 0.0, %v2645
    %v2647 = vpop.f32.mrb[0].mxu0
    %v2648 = vpop.f32.mrb[0].mxu0
    %v2649 = vadd.f32 0.0, %v2648
    %v2650 = vpop.f32.mrb[0].mxu0
    %2651 = vmatprep.mubr.bf16.mxu0 %v2580
    %2652 = vmatmul.mubr.bf16.gmra.mrb[0].mxu0 %v2436
    %v2653 = vpop.f32.mrb[0].mxu0
    %v2654 = vadd.f32 0.0, %v2653
    %v2655 = vpop.f32.mrb[0].mxu0
    %v2656 = vpop.f32.mrb[0].mxu0
    %v2657 = vadd.f32 0.0, %v2656
    %v2658 = vpop.f32.mrb[0].mxu0
    %2659 = vmatprep.mubr.bf16.mxu0 %v2583
    %2660 = vmatmul.mubr.bf16.gmra.mrb[0].mxu0 %v2438
    %v2661 = vpop.f32.mrb[0].mxu0
    %v2662 = vadd.f32 0.0, %v2661
    %v2663 = vpop.f32.mrb[0].mxu0
    %v2664 = vpop.f32.mrb[0].mxu0
    %v2665 = vadd.f32 0.0, %v2664
    %v2666 = vpop.f32.mrb[0].mxu0
    %2667 = vmatprep.mubr.bf16.mxu0 %v2586
    %2668 = vmatmul.mubr.bf16.gmra.mrb[0].mxu0 %v2440
    %v2669 = vpop.f32.mrb[0].mxu0
    %v2670 = vadd.f32 0.0, %v2669
    %v2671 = vpop.f32.mrb[0].mxu0
    %v2672 = vpop.f32.mrb[0].mxu0
    %v2673 = vadd.f32 0.0, %v2672
    %v2674 = vpop.f32.mrb[0].mxu0
    %2675 = vmatprep.mubr.bf16.mxu0 %v2589
    %2676 = vmatmul.mubr.bf16.gmra.mrb[0].mxu0 %v2442
    %v2677 = vpop.f32.mrb[0].mxu0
    %v2678 = vadd.f32 0.0, %v2677
    %v2679 = vpop.f32.mrb[0].mxu0
    %v2680 = vpop.f32.mrb[0].mxu0
    %v2681 = vadd.f32 0.0, %v2680
    %v2682 = vpop.f32.mrb[0].mxu0
    %2683 = vmatprep.mubr.bf16.mxu0 %v2592
    %2684 = vmatmul.mubr.bf16.gmra.mrb[0].mxu0 %v2444
    %v2685 = vpop.f32.mrb[0].mxu0
    %v2686 = vadd.f32 0.0, %v2685
    %v2687 = vpop.f32.mrb[0].mxu0
    %v2688 = vpop.f32.mrb[0].mxu0
    %v2689 = vadd.f32 0.0, %v2688
    %v2690 = vpop.f32.mrb[0].mxu0
    %2691 = vmatprep.mubr.bf16.mxu0 %v2595
    %2692 = vmatmul.mubr.bf16.gmra.mrb[0].mxu0 %v2446
    %v2693 = vpop.f32.mrb[0].mxu0
    %v2694 = vadd.f32 0.0, %v2693
    %v2695 = vpop.f32.mrb[0].mxu0
    %v2696 = vpop.f32.mrb[0].mxu0
    %v2697 = vadd.f32 0.0, %v2696
    %v2698 = vpop.f32.mrb[0].mxu0
    %2699 = vmatprep.mubr.bf16.mxu0 %v2598
    %2700 = vmatmul.mubr.bf16.gmra.mrb[0].mxu0 %v2448
    %v2701 = vpop.f32.mrb[0].mxu0
    %v2702 = vadd.f32 0.0, %v2701
    %v2703 = vpop.f32.mrb[0].mxu0
    %v2704 = vpop.f32.mrb[0].mxu0
    %v2705 = vadd.f32 0.0, %v2704
    %v2706 = vpop.f32.mrb[0].mxu0
    %2707 = vmatprep.mubr.bf16.mxu0 %v2601
    %2708 = vmatmul.mubr.bf16.gmra.mrb[0].mxu0 %v2450
    %v2709 = vpop.f32.mrb[0].mxu0
    %v2710 = vadd.f32 0.0, %v2709
    %v2711 = vpop.f32.mrb[0].mxu0
    %v2712 = vpop.f32.mrb[0].mxu0
    %v2713 = vadd.f32 0.0, %v2712
    %v2714 = vpop.f32.mrb[0].mxu0
    %2715 = vdwg.mxu0
    %v2716 = vadd.f32 %v2412, %v2638
    %v2717 = vadd.f32 %v2413, %v2641
    %v2718 = vadd.f32 %v2414, %v2646
    %v2719 = vadd.f32 %v2415, %v2649
    %v2720 = vadd.f32 %v2416, %v2654
    %v2721 = vadd.f32 %v2417, %v2657
    %v2722 = vadd.f32 %v2418, %v2662
    %v2723 = vadd.f32 %v2419, %v2665
    %v2724 = vadd.f32 %v2420, %v2670
    %v2725 = vadd.f32 %v2421, %v2673
    %v2726 = vadd.f32 %v2422, %v2678
    %v2727 = vadd.f32 %v2423, %v2681
    %v2728 = vadd.f32 %v2424, %v2686
    %v2729 = vadd.f32 %v2425, %v2689
    %v2730 = vadd.f32 %v2426, %v2694
    %v2731 = vadd.f32 %v2427, %v2697
    %v2732 = vadd.f32 %v2428, %v2702
    %v2733 = vadd.f32 %v2429, %v2705
    %v2734 = vadd.f32 %v2430, %v2710
    %v2735 = vadd.f32 %v2431, %v2713
    %v2736 = vmul.f32 %v2716, %v1277
    %v2737 = vmul.f32 %v2717, %v1278
    %v2738 = vmul.f32 %v2718, %v1279
    %v2739 = vmul.f32 %v2719, %v1280
    %v2740 = vmul.f32 %v2720, %v1281
    %v2741 = vmul.f32 %v2721, %v1282
    %v2742 = vmul.f32 %v2722, %v1283
    %v2743 = vmul.f32 %v2723, %v1284
    %v2744 = vmul.f32 %v2724, %v1285
    %v2745 = vmul.f32 %v2725, %v1286
    %v2746 = vmul.f32 %v2726, %v1287
    %v2747 = vmul.f32 %v2727, %v1288
    %v2748 = vmul.f32 %v2728, %v1289
    %v2749 = vmul.f32 %v2729, %v1290
    %v2750 = vmul.f32 %v2730, %v1291
    %v2751 = vmul.f32 %v2731, %v1292
    %v2752 = vmul.f32 %v2732, %v1293
    %v2753 = vmul.f32 %v2733, %v1294
    %v2754 = vmul.f32 %v2734, %v1295
    %v2755 = vmul.f32 %v2735, %v1296
    %v2756 = vadd.f32 %v2736, %v2737
    %v2757 = vadd.f32 %v2756, %v2738
    %v2758 = vadd.f32 %v2757, %v2739
    %v2759 = vadd.f32 %v2758, %v2740
    %v2760 = vadd.f32 %v2759, %v2741
    %v2761 = vadd.f32 %v2760, %v2742
    %v2762 = vadd.f32 %v2761, %v2743
    %v2763 = vadd.f32 %v2762, %v2744
    %v2764 = vadd.f32 %v2763, %v2745
    %v2765 = vadd.f32 %v2764, %v2746
    %v2766 = vadd.f32 %v2765, %v2747
    %v2767 = vadd.f32 %v2766, %v2748
    %v2768 = vadd.f32 %v2767, %v2749
    %v2769 = vadd.f32 %v2768, %v2750
    %v2770 = vadd.f32 %v2769, %v2751
    %v2771 = vadd.f32 %v2770, %v2752
    %v2772 = vadd.f32 %v2771, %v2753
    %v2773 = vadd.f32 %v2772, %v2754
    %v2774 = vadd.f32 %v2773, %v2755
    %v2775 = vrot.slane %v2774, 4
    %v2776 = vadd.f32 %v2774, %v2775
    %v2777 = vrot.slane %v2776, 2
    %v2778 = vadd.f32 %v2776, %v2777
    %v2779 = vrot.slane %v2778, 1
    %v2780 = vadd.f32 %v2778, %v2779
    %v2781 = vadd.f32 %v2780, 0.0
    %v2782 = vmul.f32 %v2736, %v2736
    %v2783 = vmul.f32 %v2737, %v2737
    %v2784 = vmul.f32 %v2738, %v2738
    %v2785 = vmul.f32 %v2739, %v2739
    %v2786 = vmul.f32 %v2740, %v2740
    %v2787 = vmul.f32 %v2741, %v2741
    %v2788 = vmul.f32 %v2742, %v2742
    %v2789 = vmul.f32 %v2743, %v2743
    %v2790 = vmul.f32 %v2744, %v2744
    %v2791 = vmul.f32 %v2745, %v2745
    %v2792 = vmul.f32 %v2746, %v2746
    %v2793 = vmul.f32 %v2747, %v2747
    %v2794 = vmul.f32 %v2748, %v2748
    %v2795 = vmul.f32 %v2749, %v2749
    %v2796 = vmul.f32 %v2750, %v2750
    %v2797 = vmul.f32 %v2751, %v2751
    %v2798 = vmul.f32 %v2752, %v2752
    %v2799 = vmul.f32 %v2753, %v2753
    %v2800 = vmul.f32 %v2754, %v2754
    %v2801 = vmul.f32 %v2755, %v2755
    %v2802 = vadd.f32 %v2782, %v2783
    %v2803 = vadd.f32 %v2802, %v2784
    %v2804 = vadd.f32 %v2803, %v2785
    %v2805 = vadd.f32 %v2804, %v2786
    %v2806 = vadd.f32 %v2805, %v2787
    %v2807 = vadd.f32 %v2806, %v2788
    %v2808 = vadd.f32 %v2807, %v2789
    %v2809 = vadd.f32 %v2808, %v2790
    %v2810 = vadd.f32 %v2809, %v2791
    %v2811 = vadd.f32 %v2810, %v2792
    %v2812 = vadd.f32 %v2811, %v2793
    %v2813 = vadd.f32 %v2812, %v2794
    %v2814 = vadd.f32 %v2813, %v2795
    %v2815 = vadd.f32 %v2814, %v2796
    %v2816 = vadd.f32 %v2815, %v2797
    %v2817 = vadd.f32 %v2816, %v2798
    %v2818 = vadd.f32 %v2817, %v2799
    %v2819 = vadd.f32 %v2818, %v2800
    %v2820 = vadd.f32 %v2819, %v2801
    %v2821 = vrot.slane %v2820, 4
    %v2822 = vadd.f32 %v2820, %v2821
    %v2823 = vrot.slane %v2822, 2
    %v2824 = vadd.f32 %v2822, %v2823
    %v2825 = vrot.slane %v2824, 1
    %v2826 = vadd.f32 %v2824, %v2825
    %v2827 = vadd.f32 %v2826, 0.0
    %2828 = vst [vmem:[#allocation8] sm:$0xff] %v2716
    %2829 = vst [vmem:[#allocation8 + $0x8] sm:$0xff] %v2717
    %2830 = vst [vmem:[#allocation8 + $0x10] sm:$0xff] %v2718
    %2831 = vst [vmem:[#allocation8 + $0x18] sm:$0xff] %v2719
    %2832 = vst [vmem:[#allocation8 + $0x20] sm:$0xff] %v2720
    %2833 = vst [vmem:[#allocation8 + $0x28] sm:$0xff] %v2721
    %2834 = vst [vmem:[#allocation8 + $0x30] sm:$0xff] %v2722
    %2835 = vst [vmem:[#allocation8 + $0x38] sm:$0xff] %v2723
    %2836 = vst [vmem:[#allocation8 + $0x40] sm:$0xff] %v2724
    %2837 = vst [vmem:[#allocation8 + $0x48] sm:$0xff] %v2725
    %2838 = vst [vmem:[#allocation8 + $0x50] sm:$0xff] %v2726
    %2839 = vst [vmem:[#allocation8 + $0x58] sm:$0xff] %v2727
    %2840 = vst [vmem:[#allocation8 + $0x60] sm:$0xff] %v2728
    %2841 = vst [vmem:[#allocation8 + $0x68] sm:$0xff] %v2729
    %2842 = vst [vmem:[#allocation8 + $0x70] sm:$0xff] %v2730
    %2843 = vst [vmem:[#allocation8 + $0x78] sm:$0xff] %v2731
    %2844 = vst [vmem:[#allocation8 + $0x80] sm:$0xff] %v2732
    %2845 = vst [vmem:[#allocation8 + $0x88] sm:$0xff] %v2733
    %2846 = vst [vmem:[#allocation8 + $0x90] sm:$0xff] %v2734
    %2847 = vst [vmem:[#allocation8 + $0x98] sm:$0xff] %v2735
    %v2848 = vld [vmem:[#allocation2 + $0xa0] sm:$0xff]
    %v2849 = vld [vmem:[#allocation2 + $0xa8] sm:$0xff]
    %v2850 = vld [vmem:[#allocation2 + $0xb0] sm:$0xff]
    %v2851 = vld [vmem:[#allocation2 + $0xb8] sm:$0xff]
    %v2852 = vld [vmem:[#allocation2 + $0xc0] sm:$0xff]
    %v2853 = vld [vmem:[#allocation2 + $0xc8] sm:$0xff]
    %v2854 = vld [vmem:[#allocation2 + $0xd0] sm:$0xff]
    %v2855 = vld [vmem:[#allocation2 + $0xd8] sm:$0xff]
    %v2856 = vld [vmem:[#allocation2 + $0xe0] sm:$0xff]
    %v2857 = vld [vmem:[#allocation2 + $0xe8] sm:$0xff]
    %v2858 = vld [vmem:[#allocation2 + $0xf0] sm:$0xff]
    %v2859 = vld [vmem:[#allocation2 + $0xf8] sm:$0xff]
    %v2860 = vld [vmem:[#allocation2 + $0x100] sm:$0xff]
    %v2861 = vld [vmem:[#allocation2 + $0x108] sm:$0xff]
    %v2862 = vld [vmem:[#allocation2 + $0x110] sm:$0xff]
    %v2863 = vld [vmem:[#allocation2 + $0x118] sm:$0xff]
    %v2864 = vld [vmem:[#allocation2 + $0x120] sm:$0xff]
    %v2865 = vld [vmem:[#allocation2 + $0x128] sm:$0xff]
    %v2866 = vld [vmem:[#allocation2 + $0x130] sm:$0xff]
    %v2867 = vld [vmem:[#allocation2 + $0x138] sm:$0xff]
    %v2868 = vld [vmem:[#allocation6] sm:$0xf]
    %v2869 = vld [vmem:[#allocation6 + $0x4] sm:$0xf]
    %v2870 = vld [vmem:[#allocation6 + $0x8] sm:$0xf]
    %v2871 = vld [vmem:[#allocation6 + $0xc] sm:$0xf]
    %v2872 = vld [vmem:[#allocation6 + $0x10] sm:$0xf]
    %v2873 = vld [vmem:[#allocation6 + $0x14] sm:$0xf]
    %v2874 = vld [vmem:[#allocation6 + $0x18] sm:$0xf]
    %v2875 = vld [vmem:[#allocation6 + $0x1c] sm:$0xf]
    %v2876 = vld [vmem:[#allocation6 + $0x20] sm:$0xf]
    %v2877 = vld [vmem:[#allocation6 + $0x24] sm:$0xf]
    %v2878 = vld [vmem:[#allocation6 + $0x28] sm:$0xf]
    %v2879 = vld [vmem:[#allocation6 + $0x2c] sm:$0xf]
    %v2880 = vld [vmem:[#allocation6 + $0x30] sm:$0xf]
    %v2881 = vld [vmem:[#allocation6 + $0x34] sm:$0xf]
    %v2882 = vld [vmem:[#allocation6 + $0x38] sm:$0xf]
    %v2883 = vld [vmem:[#allocation6 + $0x3c] sm:$0xf]
    %v2884 = vld [vmem:[#allocation6 + $0x40] sm:$0xf]
    %v2885 = vld [vmem:[#allocation6 + $0x44] sm:$0xf]
    %v2886 = vld [vmem:[#allocation6 + $0x48] sm:$0xf]
    %v2887 = vld [vmem:[#allocation6 + $0x4c] sm:$0xf]
    %v2888 = vld [vmem:[#allocation6 + $0x50] sm:$0xf]
    %v2889 = vld [vmem:[#allocation6 + $0x54] sm:$0xf]
    %v2890 = vld [vmem:[#allocation6 + $0x58] sm:$0xf]
    %v2891 = vld [vmem:[#allocation6 + $0x5c] sm:$0xf]
    %v2892 = vld [vmem:[#allocation6 + $0x60] sm:$0xf]
    %v2893 = vld [vmem:[#allocation6 + $0x64] sm:$0xf]
    %v2894 = vld [vmem:[#allocation6 + $0x68] sm:$0xf]
    %v2895 = vld [vmem:[#allocation6 + $0x6c] sm:$0xf]
    %v2896 = vld [vmem:[#allocation6 + $0x70] sm:$0xf]
    %v2897 = vld [vmem:[#allocation6 + $0x74] sm:$0xf]
    %v2898 = vld [vmem:[#allocation2 + $0x140] sm:$0xff]
    %v2899 = vld [vmem:[#allocation2 + $0x148] sm:$0xff]
    %v2900 = vld [vmem:[#allocation2 + $0x150] sm:$0xff]
    %v2901 = vld [vmem:[#allocation2 + $0x158] sm:$0xff]
    %v2902 = vld [vmem:[%s1351] sm:$0xf]
    %v2903 = vld [vmem:[%s1351 + $0x4] sm:$0xf]
    %v2904 = vld [vmem:[%s1351 + $0x8] sm:$0xf]
    %v2905 = vld [vmem:[%s1351 + $0xc] sm:$0xf]
    %v2906 = vld [vmem:[%s1351 + $0x10] sm:$0xf]
    %v2907 = vld [vmem:[%s1351 + $0x14] sm:$0xf]
    %v2908 = vld [vmem:[%s1351 + $0x18] sm:$0xf]
    %v2909 = vld [vmem:[%s1351 + $0x1c] sm:$0xf]
    %v2910 = vld [vmem:[%s1351 + $0x20] sm:$0xf]
    %v2911 = vld [vmem:[%s1351 + $0x24] sm:$0xf]
    %v2912 = vld [vmem:[%s1351 + $0x28] sm:$0xf]
    %v2913 = vld [vmem:[%s1351 + $0x2c] sm:$0xf]
    %v2914 = vld [vmem:[%s1351 + $0x30] sm:$0xf]
    %v2915 = vld [vmem:[%s1351 + $0x34] sm:$0xf]
    %v2916 = vld [vmem:[%s1351 + $0x38] sm:$0xf]
    %v2917 = vld [vmem:[%s1351 + $0x3c] sm:$0xf]
    %v2918 = vld [vmem:[%s1351 + $0x40] sm:$0xf]
    %v2919 = vld [vmem:[%s1351 + $0x44] sm:$0xf]
    %v2920 = vld [vmem:[%s1351 + $0x48] sm:$0xf]
    %v2921 = vld [vmem:[%s1351 + $0x4c] sm:$0xf]
    %v2922 = vld [vmem:[%s1351 + $0x50] sm:$0xf]
    %v2923 = vld [vmem:[%s1351 + $0x54] sm:$0xf]
    %v2924 = vld [vmem:[%s1351 + $0x58] sm:$0xf]
    %v2925 = vld [vmem:[%s1351 + $0x5c] sm:$0xf]
    %v2926 = vld [vmem:[%s1351 + $0x60] sm:$0xf]
    %v2927 = vld [vmem:[%s1351 + $0x64] sm:$0xf]
    %v2928 = vld [vmem:[%s1351 + $0x68] sm:$0xf]
    %v2929 = vld [vmem:[%s1351 + $0x6c] sm:$0xf]
    %v2930 = vld [vmem:[%s1351 + $0x70] sm:$0xf]
    %v2931 = vld [vmem:[%s1351 + $0x74] sm:$0xf]
    %v2962 = vunpack.c.l.b16 %v2902
    %v2963 = vunpack.c.l.b16 %v2903
    %v2964 = vunpack.c.l.b16 %v2904
    %v2965 = vunpack.c.l.b16 %v2905
    %v2966 = vunpack.c.l.b16 %v2906
    %v2967 = vunpack.c.l.b16 %v2907
    %v2968 = vunpack.c.l.b16 %v2908
    %v2969 = vunpack.c.l.b16 %v2909
    %v2970 = vunpack.c.l.b16 %v2910
    %v2971 = vunpack.c.l.b16 %v2911
    %v2972 = vunpack.c.l.b16 %v2912
    %v2973 = vunpack.c.l.b16 %v2913
    %v2974 = vunpack.c.l.b16 %v2914
    %v2975 = vunpack.c.l.b16 %v2915
    %v2976 = vunpack.c.l.b16 %v2916
    %v2977 = vunpack.c.l.b16 %v2917
    %v2978 = vunpack.c.l.b16 %v2918
    %v2979 = vunpack.c.l.b16 %v2919
    %v2980 = vunpack.c.l.b16 %v2920
    %v2981 = vunpack.c.l.b16 %v2921
    %v2982 = vunpack.c.l.b16 %v2922
    %v2983 = vunpack.c.l.b16 %v2923
    %v2984 = vunpack.c.l.b16 %v2924
    %v2985 = vunpack.c.l.b16 %v2925
    %v2986 = vunpack.c.l.b16 %v2926
    %v2987 = vunpack.c.l.b16 %v2927
    %v2988 = vunpack.c.l.b16 %v2928
    %v2989 = vunpack.c.l.b16 %v2929
    %v2990 = vunpack.c.l.b16 %v2930
    %v2991 = vunpack.c.l.b16 %v2931
    %v2992 = vpack.c.b16 %v2963, %v2962
    %v2993 = vpack.c.b16 %v2965, %v2964
    %v2994 = vpack.c.b16 %v2967, %v2966
    %v2995 = vpack.c.b16 %v2969, %v2968
    %v2996 = vpack.c.b16 %v2971, %v2970
    %v2997 = vpack.c.b16 %v2973, %v2972
    %v2998 = vpack.c.b16 %v2975, %v2974
    %v2999 = vpack.c.b16 %v2977, %v2976
    %v3000 = vpack.c.b16 %v2979, %v2978
    %v3001 = vpack.c.b16 %v2981, %v2980
    %v3002 = vpack.c.b16 %v2983, %v2982
    %v3003 = vpack.c.b16 %v2985, %v2984
    %v3004 = vpack.c.b16 %v2987, %v2986
    %v3005 = vpack.c.b16 %v2989, %v2988
    %v3006 = vpack.c.b16 %v2991, %v2990
    %v3023 = vsel %vm860, %v2853, 0
    %v3026 = vsel %vm860, %v2855, 0
    %v3029 = vsel %vm860, %v2857, 0
    %v3032 = vsel %vm860, %v2859, 0
    %v3035 = vsel %vm860, %v2861, 0
    %v3038 = vsel %vm860, %v2863, 0
    %v3041 = vsel %vm860, %v2865, 0
    %v3044 = vsel %vm860, %v2867, 0
    %v3047 = vsel %vm860, %v2899, 0
    %v3050 = vsel %vm860, %v2901, 0
    %3052 = vmatprep.subr.bf16.mxu0 0
    %3053 = vmatpush1.bf16.msra.mxu0 %v2992
    %3054 = vmatprep.subr.bf16.mxu0 0
    %3055 = vmatpush1.bf16.msra.mxu0 %v2993
    %3056 = vmatprep.subr.bf16.mxu0 0
    %3057 = vmatpush1.bf16.msra.mxu0 %v2994
    %3058 = vmatprep.subr.bf16.mxu0 0
    %3059 = vmatpush1.bf16.msra.mxu0 %v2995
    %3060 = vmatprep.subr.bf16.mxu0 0
    %3061 = vmatpush1.bf16.msra.mxu0 %v2996
    %3062 = vmatprep.subr.bf16.mxu0 0
    %3063 = vmatpush1.bf16.msra.mxu0 %v2997
    %3064 = vmatprep.subr.bf16.mxu0 0
    %3065 = vmatpush1.bf16.msra.mxu0 %v2998
    %3066 = vmatprep.subr.bf16.mxu0 0
    %3067 = vmatpush1.bf16.msra.mxu0 %v2999
    %3068 = vmatprep.subr.bf16.mxu0 0
    %3069 = vmatpush1.bf16.msra.mxu0 %v3000
    %3070 = vmatprep.subr.bf16.mxu0 0
    %3071 = vmatpush1.bf16.msra.mxu0 %v3001
    %3072 = vmatprep.subr.bf16.mxu0 0
    %3073 = vmatpush1.bf16.msra.mxu0 %v3002
    %3074 = vmatprep.subr.bf16.mxu0 0
    %3075 = vmatpush1.bf16.msra.mxu0 %v3003
    %3076 = vmatprep.subr.bf16.mxu0 0
    %3077 = vmatpush1.bf16.msra.mxu0 %v3004
    %3078 = vmatprep.subr.bf16.mxu0 0
    %3079 = vmatpush1.bf16.msra.mxu0 %v3005
    %3080 = vmatprep.subr.bf16.mxu0 0
    %3081 = vmatpush1.bf16.msra.mxu0 %v3006
    %3082 = vmatprep.subr.bf16.mxu0 0
    %3083 = vmatpush1.bf16.msra.mxu0 0
    %3084 = vmatprep.mubr.bf16.mxu0 %v3023
    %3085 = vmatmul.mubr.bf16.gmra.mrb[0].mxu0 %v2852
    %v3086 = vpop.f32.mrb[0].mxu0
    %v3087 = vadd.f32 0.0, %v3086
    %v3088 = vpop.f32.mrb[0].mxu0
    %v3089 = vpop.f32.mrb[0].mxu0
    %v3090 = vadd.f32 0.0, %v3089
    %v3091 = vpop.f32.mrb[0].mxu0
    %3092 = vmatprep.mubr.bf16.mxu0 %v3026
    %3093 = vmatmul.mubr.bf16.gmra.mrb[0].mxu0 %v2854
    %v3094 = vpop.f32.mrb[0].mxu0
    %v3095 = vadd.f32 0.0, %v3094
    %v3096 = vpop.f32.mrb[0].mxu0
    %v3097 = vpop.f32.mrb[0].mxu0
    %v3098 = vadd.f32 0.0, %v3097
    %v3099 = vpop.f32.mrb[0].mxu0
    %3100 = vmatprep.mubr.bf16.mxu0 %v3029
    %3101 = vmatmul.mubr.bf16.gmra.mrb[0].mxu0 %v2856
    %v3102 = vpop.f32.mrb[0].mxu0
    %v3103 = vadd.f32 0.0, %v3102
    %v3104 = vpop.f32.mrb[0].mxu0
    %v3105 = vpop.f32.mrb[0].mxu0
    %v3106 = vadd.f32 0.0, %v3105
    %v3107 = vpop.f32.mrb[0].mxu0
    %3108 = vmatprep.mubr.bf16.mxu0 %v3032
    %3109 = vmatmul.mubr.bf16.gmra.mrb[0].mxu0 %v2858
    %v3110 = vpop.f32.mrb[0].mxu0
    %v3111 = vadd.f32 0.0, %v3110
    %v3112 = vpop.f32.mrb[0].mxu0
    %v3113 = vpop.f32.mrb[0].mxu0
    %v3114 = vadd.f32 0.0, %v3113
    %v3115 = vpop.f32.mrb[0].mxu0
    %3116 = vmatprep.mubr.bf16.mxu0 %v3035
    %3117 = vmatmul.mubr.bf16.gmra.mrb[0].mxu0 %v2860
    %v3118 = vpop.f32.mrb[0].mxu0
    %v3119 = vadd.f32 0.0, %v3118
    %v3120 = vpop.f32.mrb[0].mxu0
    %v3121 = vpop.f32.mrb[0].mxu0
    %v3122 = vadd.f32 0.0, %v3121
    %v3123 = vpop.f32.mrb[0].mxu0
    %3124 = vmatprep.mubr.bf16.mxu0 %v3038
    %3125 = vmatmul.mubr.bf16.gmra.mrb[0].mxu0 %v2862
    %v3126 = vpop.f32.mrb[0].mxu0
    %v3127 = vadd.f32 0.0, %v3126
    %v3128 = vpop.f32.mrb[0].mxu0
    %v3129 = vpop.f32.mrb[0].mxu0
    %v3130 = vadd.f32 0.0, %v3129
    %v3131 = vpop.f32.mrb[0].mxu0
    %3132 = vmatprep.mubr.bf16.mxu0 %v3041
    %3133 = vmatmul.mubr.bf16.gmra.mrb[0].mxu0 %v2864
    %v3134 = vpop.f32.mrb[0].mxu0
    %v3135 = vadd.f32 0.0, %v3134
    %v3136 = vpop.f32.mrb[0].mxu0
    %v3137 = vpop.f32.mrb[0].mxu0
    %v3138 = vadd.f32 0.0, %v3137
    %v3139 = vpop.f32.mrb[0].mxu0
    %3140 = vmatprep.mubr.bf16.mxu0 %v3044
    %3141 = vmatmul.mubr.bf16.gmra.mrb[0].mxu0 %v2866
    %v3142 = vpop.f32.mrb[0].mxu0
    %v3143 = vadd.f32 0.0, %v3142
    %v3144 = vpop.f32.mrb[0].mxu0
    %v3145 = vpop.f32.mrb[0].mxu0
    %v3146 = vadd.f32 0.0, %v3145
    %v3147 = vpop.f32.mrb[0].mxu0
    %3148 = vmatprep.mubr.bf16.mxu0 %v3047
    %3149 = vmatmul.mubr.bf16.gmra.mrb[0].mxu0 %v2898
    %v3150 = vpop.f32.mrb[0].mxu0
    %v3151 = vadd.f32 0.0, %v3150
    %v3152 = vpop.f32.mrb[0].mxu0
    %v3153 = vpop.f32.mrb[0].mxu0
    %v3154 = vadd.f32 0.0, %v3153
    %v3155 = vpop.f32.mrb[0].mxu0
    %3156 = vmatprep.mubr.bf16.mxu0 %v3050
    %3157 = vmatmul.mubr.bf16.gmra.mrb[0].mxu0 %v2900
    %v3158 = vpop.f32.mrb[0].mxu0
    %v3159 = vadd.f32 0.0, %v3158
    %v3160 = vpop.f32.mrb[0].mxu0
    %v3161 = vpop.f32.mrb[0].mxu0
    %v3162 = vadd.f32 0.0, %v3161
    %v3163 = vpop.f32.mrb[0].mxu0
    %3164 = vdwg.mxu0
    %v3195 = vunpack.c.l.b16 %v2868
    %v3196 = vunpack.c.l.b16 %v2869
    %v3197 = vunpack.c.l.b16 %v2870
    %v3198 = vunpack.c.l.b16 %v2871
    %v3199 = vunpack.c.l.b16 %v2872
    %v3200 = vunpack.c.l.b16 %v2873
    %v3201 = vunpack.c.l.b16 %v2874
    %v3202 = vunpack.c.l.b16 %v2875
    %v3203 = vunpack.c.l.b16 %v2876
    %v3204 = vunpack.c.l.b16 %v2877
    %v3205 = vunpack.c.l.b16 %v2878
    %v3206 = vunpack.c.l.b16 %v2879
    %v3207 = vunpack.c.l.b16 %v2880
    %v3208 = vunpack.c.l.b16 %v2881
    %v3209 = vunpack.c.l.b16 %v2882
    %v3210 = vunpack.c.l.b16 %v2883
    %v3211 = vunpack.c.l.b16 %v2884
    %v3212 = vunpack.c.l.b16 %v2885
    %v3213 = vunpack.c.l.b16 %v2886
    %v3214 = vunpack.c.l.b16 %v2887
    %v3215 = vunpack.c.l.b16 %v2888
    %v3216 = vunpack.c.l.b16 %v2889
    %v3217 = vunpack.c.l.b16 %v2890
    %v3218 = vunpack.c.l.b16 %v2891
    %v3219 = vunpack.c.l.b16 %v2892
    %v3220 = vunpack.c.l.b16 %v2893
    %v3221 = vunpack.c.l.b16 %v2894
    %v3222 = vunpack.c.l.b16 %v2895
    %v3223 = vunpack.c.l.b16 %v2896
    %v3224 = vunpack.c.l.b16 %v2897
    %v3225 = vpack.c.b16 %v3196, %v3195
    %v3226 = vpack.c.b16 %v3198, %v3197
    %v3227 = vpack.c.b16 %v3200, %v3199
    %v3228 = vpack.c.b16 %v3202, %v3201
    %v3229 = vpack.c.b16 %v3204, %v3203
    %v3230 = vpack.c.b16 %v3206, %v3205
    %v3231 = vpack.c.b16 %v3208, %v3207
    %v3232 = vpack.c.b16 %v3210, %v3209
    %v3233 = vpack.c.b16 %v3212, %v3211
    %v3234 = vpack.c.b16 %v3214, %v3213
    %v3235 = vpack.c.b16 %v3216, %v3215
    %v3236 = vpack.c.b16 %v3218, %v3217
    %v3237 = vpack.c.b16 %v3220, %v3219
    %v3238 = vpack.c.b16 %v3222, %v3221
    %v3239 = vpack.c.b16 %v3224, %v3223
    %v3256 = vsel %vm860, %v2849, 0
    %v3259 = vsel %vm860, %v2851, 0
    %3261 = vmatprep.subr.bf16.mxu0 0
    %3262 = vmatpush1.bf16.msra.mxu0 %v3225
    %3263 = vmatprep.subr.bf16.mxu0 0
    %3264 = vmatpush1.bf16.msra.mxu0 %v3226
    %3265 = vmatprep.subr.bf16.mxu0 0
    %3266 = vmatpush1.bf16.msra.mxu0 %v3227
    %3267 = vmatprep.subr.bf16.mxu0 0
    %3268 = vmatpush1.bf16.msra.mxu0 %v3228
    %3269 = vmatprep.subr.bf16.mxu0 0
    %3270 = vmatpush1.bf16.msra.mxu0 %v3229
    %3271 = vmatprep.subr.bf16.mxu0 0
    %3272 = vmatpush1.bf16.msra.mxu0 %v3230
    %3273 = vmatprep.subr.bf16.mxu0 0
    %3274 = vmatpush1.bf16.msra.mxu0 %v3231
    %3275 = vmatprep.subr.bf16.mxu0 0
    %3276 = vmatpush1.bf16.msra.mxu0 %v3232
    %3277 = vmatprep.subr.bf16.mxu0 0
    %3278 = vmatpush1.bf16.msra.mxu0 %v3233
    %3279 = vmatprep.subr.bf16.mxu0 0
    %3280 = vmatpush1.bf16.msra.mxu0 %v3234
    %3281 = vmatprep.subr.bf16.mxu0 0
    %3282 = vmatpush1.bf16.msra.mxu0 %v3235
    %3283 = vmatprep.subr.bf16.mxu0 0
    %3284 = vmatpush1.bf16.msra.mxu0 %v3236
    %3285 = vmatprep.subr.bf16.mxu0 0
    %3286 = vmatpush1.bf16.msra.mxu0 %v3237
    %3287 = vmatprep.subr.bf16.mxu0 0
    %3288 = vmatpush1.bf16.msra.mxu0 %v3238
    %3289 = vmatprep.subr.bf16.mxu0 0
    %3290 = vmatpush1.bf16.msra.mxu0 %v3239
    %3291 = vmatprep.subr.bf16.mxu0 0
    %3292 = vmatpush1.bf16.msra.mxu0 0
    %3293 = vmatprep.mubr.bf16.mxu0 %v3256
    %3294 = vmatmul.mubr.bf16.gmra.mrb[0].mxu0 %v2848
    %v3295 = vpop.f32.mrb[0].mxu0
    %v3296 = vadd.f32 %v3087, %v3295
    %v3297 = vpop.f32.mrb[0].mxu0
    %v3298 = vpop.f32.mrb[0].mxu0
    %v3299 = vadd.f32 %v3090, %v3298
    %v3300 = vpop.f32.mrb[0].mxu0
    %3301 = vmatprep.mubr.bf16.mxu0 %v3259
    %3302 = vmatmul.mubr.bf16.gmra.mrb[0].mxu0 %v2850
    %v3303 = vpop.f32.mrb[0].mxu0
    %v3304 = vadd.f32 %v3095, %v3303
    %v3305 = vpop.f32.mrb[0].mxu0
    %v3306 = vpop.f32.mrb[0].mxu0
    %v3307 = vadd.f32 %v3098, %v3306
    %v3308 = vpop.f32.mrb[0].mxu0
    %3309 = vmatprep.mubr.bf16.mxu0 %v3023
    %3310 = vmatmul.mubr.bf16.gmra.mrb[0].mxu0 %v2852
    %v3311 = vpop.f32.mrb[0].mxu0
    %v3312 = vadd.f32 %v3103, %v3311
    %v3313 = vpop.f32.mrb[0].mxu0
    %v3314 = vpop.f32.mrb[0].mxu0
    %v3315 = vadd.f32 %v3106, %v3314
    %v3316 = vpop.f32.mrb[0].mxu0
    %3317 = vmatprep.mubr.bf16.mxu0 %v3026
    %3318 = vmatmul.mubr.bf16.gmra.mrb[0].mxu0 %v2854
    %v3319 = vpop.f32.mrb[0].mxu0
    %v3320 = vadd.f32 %v3111, %v3319
    %v3321 = vpop.f32.mrb[0].mxu0
    %v3322 = vpop.f32.mrb[0].mxu0
    %v3323 = vadd.f32 %v3114, %v3322
    %v3324 = vpop.f32.mrb[0].mxu0
    %3325 = vmatprep.mubr.bf16.mxu0 %v3029
    %3326 = vmatmul.mubr.bf16.gmra.mrb[0].mxu0 %v2856
    %v3327 = vpop.f32.mrb[0].mxu0
    %v3328 = vadd.f32 %v3119, %v3327
    %v3329 = vpop.f32.mrb[0].mxu0
    %v3330 = vpop.f32.mrb[0].mxu0
    %v3331 = vadd.f32 %v3122, %v3330
    %v3332 = vpop.f32.mrb[0].mxu0
    %3333 = vmatprep.mubr.bf16.mxu0 %v3032
    %3334 = vmatmul.mubr.bf16.gmra.mrb[0].mxu0 %v2858
    %v3335 = vpop.f32.mrb[0].mxu0
    %v3336 = vadd.f32 %v3127, %v3335
    %v3337 = vpop.f32.mrb[0].mxu0
    %v3338 = vpop.f32.mrb[0].mxu0
    %v3339 = vadd.f32 %v3130, %v3338
    %v3340 = vpop.f32.mrb[0].mxu0
    %3341 = vmatprep.mubr.bf16.mxu0 %v3035
    %3342 = vmatmul.mubr.bf16.gmra.mrb[0].mxu0 %v2860
    %v3343 = vpop.f32.mrb[0].mxu0
    %v3344 = vadd.f32 %v3135, %v3343
    %v3345 = vpop.f32.mrb[0].mxu0
    %v3346 = vpop.f32.mrb[0].mxu0
    %v3347 = vadd.f32 %v3138, %v3346
    %v3348 = vpop.f32.mrb[0].mxu0
    %3349 = vmatprep.mubr.bf16.mxu0 %v3038
    %3350 = vmatmul.mubr.bf16.gmra.mrb[0].mxu0 %v2862
    %v3351 = vpop.f32.mrb[0].mxu0
    %v3352 = vadd.f32 %v3143, %v3351
    %v3353 = vpop.f32.mrb[0].mxu0
    %v3354 = vpop.f32.mrb[0].mxu0
    %v3355 = vadd.f32 %v3146, %v3354
    %v3356 = vpop.f32.mrb[0].mxu0
    %3357 = vmatprep.mubr.bf16.mxu0 %v3041
    %3358 = vmatmul.mubr.bf16.gmra.mrb[0].mxu0 %v2864
    %v3359 = vpop.f32.mrb[0].mxu0
    %v3360 = vadd.f32 %v3151, %v3359
    %v3361 = vpop.f32.mrb[0].mxu0
    %v3362 = vpop.f32.mrb[0].mxu0
    %v3363 = vadd.f32 %v3154, %v3362
    %v3364 = vpop.f32.mrb[0].mxu0
    %3365 = vmatprep.mubr.bf16.mxu0 %v3044
    %3366 = vmatmul.mubr.bf16.gmra.mrb[0].mxu0 %v2866
    %v3367 = vpop.f32.mrb[0].mxu0
    %v3368 = vadd.f32 %v3159, %v3367
    %v3369 = vpop.f32.mrb[0].mxu0
    %v3370 = vpop.f32.mrb[0].mxu0
    %v3371 = vadd.f32 %v3162, %v3370
    %v3372 = vpop.f32.mrb[0].mxu0
    %3373 = vdwg.mxu0
    %v3374 = vld [vmem:[#allocation2 + $0xe0] sm:$0xff]
    %v3375 = vld [vmem:[#allocation2 + $0xe8] sm:$0xff]
    %v3376 = vld [vmem:[#allocation2 + $0xf0] sm:$0xff]
    %v3377 = vld [vmem:[#allocation2 + $0xf8] sm:$0xff]
    %v3378 = vld [vmem:[#allocation2 + $0x100] sm:$0xff]
    %v3379 = vld [vmem:[#allocation2 + $0x108] sm:$0xff]
    %v3380 = vld [vmem:[#allocation2 + $0x110] sm:$0xff]
    %v3381 = vld [vmem:[#allocation2 + $0x118] sm:$0xff]
    %v3382 = vld [vmem:[#allocation2 + $0x120] sm:$0xff]
    %v3383 = vld [vmem:[#allocation2 + $0x128] sm:$0xff]
    %v3384 = vld [vmem:[#allocation2 + $0x130] sm:$0xff]
    %v3385 = vld [vmem:[#allocation2 + $0x138] sm:$0xff]
    %v3386 = vld [vmem:[#allocation2 + $0x140] sm:$0xff]
    %v3387 = vld [vmem:[#allocation2 + $0x148] sm:$0xff]
    %v3388 = vld [vmem:[#allocation2 + $0x150] sm:$0xff]
    %v3389 = vld [vmem:[#allocation2 + $0x158] sm:$0xff]
    %v3390 = vld [vmem:[#allocation2 + $0x160] sm:$0xff]
    %v3391 = vld [vmem:[#allocation2 + $0x168] sm:$0xff]
    %v3392 = vld [vmem:[#allocation2 + $0x170] sm:$0xff]
    %v3393 = vld [vmem:[#allocation2 + $0x178] sm:$0xff]
    %v3394 = vld [vmem:[%s1844] sm:$0xf]
    %v3395 = vld [vmem:[%s1844 + $0x4] sm:$0xf]
    %v3396 = vld [vmem:[%s1844 + $0x8] sm:$0xf]
    %v3397 = vld [vmem:[%s1844 + $0xc] sm:$0xf]
    %v3398 = vld [vmem:[%s1844 + $0x10] sm:$0xf]
    %v3399 = vld [vmem:[%s1844 + $0x14] sm:$0xf]
    %v3400 = vld [vmem:[%s1844 + $0x18] sm:$0xf]
    %v3401 = vld [vmem:[%s1844 + $0x1c] sm:$0xf]
    %v3402 = vld [vmem:[%s1844 + $0x20] sm:$0xf]
    %v3403 = vld [vmem:[%s1844 + $0x24] sm:$0xf]
    %v3404 = vld [vmem:[%s1844 + $0x28] sm:$0xf]
    %v3405 = vld [vmem:[%s1844 + $0x2c] sm:$0xf]
    %v3406 = vld [vmem:[%s1844 + $0x30] sm:$0xf]
    %v3407 = vld [vmem:[%s1844 + $0x34] sm:$0xf]
    %v3408 = vld [vmem:[%s1844 + $0x38] sm:$0xf]
    %v3409 = vld [vmem:[%s1844 + $0x3c] sm:$0xf]
    %v3410 = vld [vmem:[%s1844 + $0x40] sm:$0xf]
    %v3411 = vld [vmem:[%s1844 + $0x44] sm:$0xf]
    %v3412 = vld [vmem:[%s1844 + $0x48] sm:$0xf]
    %v3413 = vld [vmem:[%s1844 + $0x4c] sm:$0xf]
    %v3414 = vld [vmem:[%s1844 + $0x50] sm:$0xf]
    %v3415 = vld [vmem:[%s1844 + $0x54] sm:$0xf]
    %v3416 = vld [vmem:[%s1844 + $0x58] sm:$0xf]
    %v3417 = vld [vmem:[%s1844 + $0x5c] sm:$0xf]
    %v3418 = vld [vmem:[%s1844 + $0x60] sm:$0xf]
    %v3419 = vld [vmem:[%s1844 + $0x64] sm:$0xf]
    %v3420 = vld [vmem:[%s1844 + $0x68] sm:$0xf]
    %v3421 = vld [vmem:[%s1844 + $0x6c] sm:$0xf]
    %v3422 = vld [vmem:[%s1844 + $0x70] sm:$0xf]
    %v3423 = vld [vmem:[%s1844 + $0x74] sm:$0xf]
    %v3454 = vunpack.c.l.b16 %v3394
    %v3455 = vunpack.c.l.b16 %v3395
    %v3456 = vunpack.c.l.b16 %v3396
    %v3457 = vunpack.c.l.b16 %v3397
    %v3458 = vunpack.c.l.b16 %v3398
    %v3459 = vunpack.c.l.b16 %v3399
    %v3460 = vunpack.c.l.b16 %v3400
    %v3461 = vunpack.c.l.b16 %v3401
    %v3462 = vunpack.c.l.b16 %v3402
    %v3463 = vunpack.c.l.b16 %v3403
    %v3464 = vunpack.c.l.b16 %v3404
    %v3465 = vunpack.c.l.b16 %v3405
    %v3466 = vunpack.c.l.b16 %v3406
    %v3467 = vunpack.c.l.b16 %v3407
    %v3468 = vunpack.c.l.b16 %v3408
    %v3469 = vunpack.c.l.b16 %v3409
    %v3470 = vunpack.c.l.b16 %v3410
    %v3471 = vunpack.c.l.b16 %v3411
    %v3472 = vunpack.c.l.b16 %v3412
    %v3473 = vunpack.c.l.b16 %v3413
    %v3474 = vunpack.c.l.b16 %v3414
    %v3475 = vunpack.c.l.b16 %v3415
    %v3476 = vunpack.c.l.b16 %v3416
    %v3477 = vunpack.c.l.b16 %v3417
    %v3478 = vunpack.c.l.b16 %v3418
    %v3479 = vunpack.c.l.b16 %v3419
    %v3480 = vunpack.c.l.b16 %v3420
    %v3481 = vunpack.c.l.b16 %v3421
    %v3482 = vunpack.c.l.b16 %v3422
    %v3483 = vunpack.c.l.b16 %v3423
    %v3484 = vpack.c.b16 %v3455, %v3454
    %v3485 = vpack.c.b16 %v3457, %v3456
    %v3486 = vpack.c.b16 %v3459, %v3458
    %v3487 = vpack.c.b16 %v3461, %v3460
    %v3488 = vpack.c.b16 %v3463, %v3462
    %v3489 = vpack.c.b16 %v3465, %v3464
    %v3490 = vpack.c.b16 %v3467, %v3466
    %v3491 = vpack.c.b16 %v3469, %v3468
    %v3492 = vpack.c.b16 %v3471, %v3470
    %v3493 = vpack.c.b16 %v3473, %v3472
    %v3494 = vpack.c.b16 %v3475, %v3474
    %v3495 = vpack.c.b16 %v3477, %v3476
    %v3496 = vpack.c.b16 %v3479, %v3478
    %v3497 = vpack.c.b16 %v3481, %v3480
    %v3498 = vpack.c.b16 %v3483, %v3482
    %v3515 = vsel %vm860, %v3375, 0
    %v3518 = vsel %vm860, %v3377, 0
    %v3521 = vsel %vm860, %v3379, 0
    %v3524 = vsel %vm860, %v3381, 0
    %v3527 = vsel %vm860, %v3383, 0
    %v3530 = vsel %vm860, %v3385, 0
    %v3533 = vsel %vm860, %v3387, 0
    %v3536 = vsel %vm860, %v3389, 0
    %v3539 = vsel %vm860, %v3391, 0
    %v3542 = vsel %vm860, %v3393, 0
    %3544 = vmatprep.subr.bf16.mxu0 0
    %3545 = vmatpush1.bf16.msra.mxu0 %v3484
    %3546 = vmatprep.subr.bf16.mxu0 0
    %3547 = vmatpush1.bf16.msra.mxu0 %v3485
    %3548 = vmatprep.subr.bf16.mxu0 0
    %3549 = vmatpush1.bf16.msra.mxu0 %v3486
    %3550 = vmatprep.subr.bf16.mxu0 0
    %3551 = vmatpush1.bf16.msra.mxu0 %v3487
    %3552 = vmatprep.subr.bf16.mxu0 0
    %3553 = vmatpush1.bf16.msra.mxu0 %v3488
    %3554 = vmatprep.subr.bf16.mxu0 0
    %3555 = vmatpush1.bf16.msra.mxu0 %v3489
    %3556 = vmatprep.subr.bf16.mxu0 0
    %3557 = vmatpush1.bf16.msra.mxu0 %v3490
    %3558 = vmatprep.subr.bf16.mxu0 0
    %3559 = vmatpush1.bf16.msra.mxu0 %v3491
    %3560 = vmatprep.subr.bf16.mxu0 0
    %3561 = vmatpush1.bf16.msra.mxu0 %v3492
    %3562 = vmatprep.subr.bf16.mxu0 0
    %3563 = vmatpush1.bf16.msra.mxu0 %v3493
    %3564 = vmatprep.subr.bf16.mxu0 0
    %3565 = vmatpush1.bf16.msra.mxu0 %v3494
    %3566 = vmatprep.subr.bf16.mxu0 0
    %3567 = vmatpush1.bf16.msra.mxu0 %v3495
    %3568 = vmatprep.subr.bf16.mxu0 0
    %3569 = vmatpush1.bf16.msra.mxu0 %v3496
    %3570 = vmatprep.subr.bf16.mxu0 0
    %3571 = vmatpush1.bf16.msra.mxu0 %v3497
    %3572 = vmatprep.subr.bf16.mxu0 0
    %3573 = vmatpush1.bf16.msra.mxu0 %v3498
    %3574 = vmatprep.subr.bf16.mxu0 0
    %3575 = vmatpush1.bf16.msra.mxu0 0
    %3576 = vmatprep.mubr.bf16.mxu0 %v3515
    %3577 = vmatmul.mubr.bf16.gmra.mrb[0].mxu0 %v3374
    %v3578 = vpop.f32.mrb[0].mxu0
    %v3579 = vadd.f32 0.0, %v3578
    %v3580 = vpop.f32.mrb[0].mxu0
    %v3581 = vpop.f32.mrb[0].mxu0
    %v3582 = vadd.f32 0.0, %v3581
    %v3583 = vpop.f32.mrb[0].mxu0
    %3584 = vmatprep.mubr.bf16.mxu0 %v3518
    %3585 = vmatmul.mubr.bf16.gmra.mrb[0].mxu0 %v3376
    %v3586 = vpop.f32.mrb[0].mxu0
    %v3587 = vadd.f32 0.0, %v3586
    %v3588 = vpop.f32.mrb[0].mxu0
    %v3589 = vpop.f32.mrb[0].mxu0
    %v3590 = vadd.f32 0.0, %v3589
    %v3591 = vpop.f32.mrb[0].mxu0
    %3592 = vmatprep.mubr.bf16.mxu0 %v3521
    %3593 = vmatmul.mubr.bf16.gmra.mrb[0].mxu0 %v3378
    %v3594 = vpop.f32.mrb[0].mxu0
    %v3595 = vadd.f32 0.0, %v3594
    %v3596 = vpop.f32.mrb[0].mxu0
    %v3597 = vpop.f32.mrb[0].mxu0
    %v3598 = vadd.f32 0.0, %v3597
    %v3599 = vpop.f32.mrb[0].mxu0
    %3600 = vmatprep.mubr.bf16.mxu0 %v3524
    %3601 = vmatmul.mubr.bf16.gmra.mrb[0].mxu0 %v3380
    %v3602 = vpop.f32.mrb[0].mxu0
    %v3603 = vadd.f32 0.0, %v3602
    %v3604 = vpop.f32.mrb[0].mxu0
    %v3605 = vpop.f32.mrb[0].mxu0
    %v3606 = vadd.f32 0.0, %v3605
    %v3607 = vpop.f32.mrb[0].mxu0
    %3608 = vmatprep.mubr.bf16.mxu0 %v3527
    %3609 = vmatmul.mubr.bf16.gmra.mrb[0].mxu0 %v3382
    %v3610 = vpop.f32.mrb[0].mxu0
    %v3611 = vadd.f32 0.0, %v3610
    %v3612 = vpop.f32.mrb[0].mxu0
    %v3613 = vpop.f32.mrb[0].mxu0
    %v3614 = vadd.f32 0.0, %v3613
    %v3615 = vpop.f32.mrb[0].mxu0
    %3616 = vmatprep.mubr.bf16.mxu0 %v3530
    %3617 = vmatmul.mubr.bf16.gmra.mrb[0].mxu0 %v3384
    %v3618 = vpop.f32.mrb[0].mxu0
    %v3619 = vadd.f32 0.0, %v3618
    %v3620 = vpop.f32.mrb[0].mxu0
    %v3621 = vpop.f32.mrb[0].mxu0
    %v3622 = vadd.f32 0.0, %v3621
    %v3623 = vpop.f32.mrb[0].mxu0
    %3624 = vmatprep.mubr.bf16.mxu0 %v3533
    %3625 = vmatmul.mubr.bf16.gmra.mrb[0].mxu0 %v3386
    %v3626 = vpop.f32.mrb[0].mxu0
    %v3627 = vadd.f32 0.0, %v3626
    %v3628 = vpop.f32.mrb[0].mxu0
    %v3629 = vpop.f32.mrb[0].mxu0
    %v3630 = vadd.f32 0.0, %v3629
    %v3631 = vpop.f32.mrb[0].mxu0
    %3632 = vmatprep.mubr.bf16.mxu0 %v3536
    %3633 = vmatmul.mubr.bf16.gmra.mrb[0].mxu0 %v3388
    %v3634 = vpop.f32.mrb[0].mxu0
    %v3635 = vadd.f32 0.0, %v3634
    %v3636 = vpop.f32.mrb[0].mxu0
    %v3637 = vpop.f32.mrb[0].mxu0
    %v3638 = vadd.f32 0.0, %v3637
    %v3639 = vpop.f32.mrb[0].mxu0
    %3640 = vmatprep.mubr.bf16.mxu0 %v3539
    %3641 = vmatmul.mubr.bf16.gmra.mrb[0].mxu0 %v3390
    %v3642 = vpop.f32.mrb[0].mxu0
    %v3643 = vadd.f32 0.0, %v3642
    %v3644 = vpop.f32.mrb[0].mxu0
    %v3645 = vpop.f32.mrb[0].mxu0
    %v3646 = vadd.f32 0.0, %v3645
    %v3647 = vpop.f32.mrb[0].mxu0
    %3648 = vmatprep.mubr.bf16.mxu0 %v3542
    %3649 = vmatmul.mubr.bf16.gmra.mrb[0].mxu0 %v3392
    %v3650 = vpop.f32.mrb[0].mxu0
    %v3651 = vadd.f32 0.0, %v3650
    %v3652 = vpop.f32.mrb[0].mxu0
    %v3653 = vpop.f32.mrb[0].mxu0
    %v3654 = vadd.f32 0.0, %v3653
    %v3655 = vpop.f32.mrb[0].mxu0
    %3656 = vdwg.mxu0
    %v3657 = vadd.f32 %v3296, %v3579
    %v3658 = vadd.f32 %v3299, %v3582
    %v3659 = vadd.f32 %v3304, %v3587
    %v3660 = vadd.f32 %v3307, %v3590
    %v3661 = vadd.f32 %v3312, %v3595
    %v3662 = vadd.f32 %v3315, %v3598
    %v3663 = vadd.f32 %v3320, %v3603
    %v3664 = vadd.f32 %v3323, %v3606
    %v3665 = vadd.f32 %v3328, %v3611
    %v3666 = vadd.f32 %v3331, %v3614
    %v3667 = vadd.f32 %v3336, %v3619
    %v3668 = vadd.f32 %v3339, %v3622
    %v3669 = vadd.f32 %v3344, %v3627
    %v3670 = vadd.f32 %v3347, %v3630
    %v3671 = vadd.f32 %v3352, %v3635
    %v3672 = vadd.f32 %v3355, %v3638
    %v3673 = vadd.f32 %v3360, %v3643
    %v3674 = vadd.f32 %v3363, %v3646
    %v3675 = vadd.f32 %v3368, %v3651
    %v3676 = vadd.f32 %v3371, %v3654
    %v3677 = vld [vmem:[#allocation2 + $0x100] sm:$0xff]
    %v3678 = vld [vmem:[#allocation2 + $0x108] sm:$0xff]
    %v3679 = vld [vmem:[#allocation2 + $0x110] sm:$0xff]
    %v3680 = vld [vmem:[#allocation2 + $0x118] sm:$0xff]
    %v3681 = vld [vmem:[#allocation2 + $0x120] sm:$0xff]
    %v3682 = vld [vmem:[#allocation2 + $0x128] sm:$0xff]
    %v3683 = vld [vmem:[#allocation2 + $0x130] sm:$0xff]
    %v3684 = vld [vmem:[#allocation2 + $0x138] sm:$0xff]
    %v3685 = vld [vmem:[#allocation2 + $0x140] sm:$0xff]
    %v3686 = vld [vmem:[#allocation2 + $0x148] sm:$0xff]
    %v3687 = vld [vmem:[#allocation2 + $0x150] sm:$0xff]
    %v3688 = vld [vmem:[#allocation2 + $0x158] sm:$0xff]
    %v3689 = vld [vmem:[#allocation2 + $0x160] sm:$0xff]
    %v3690 = vld [vmem:[#allocation2 + $0x168] sm:$0xff]
    %v3691 = vld [vmem:[#allocation2 + $0x170] sm:$0xff]
    %v3692 = vld [vmem:[#allocation2 + $0x178] sm:$0xff]
    %v3693 = vld [vmem:[#allocation2 + $0x180] sm:$0xff]
    %v3694 = vld [vmem:[#allocation2 + $0x188] sm:$0xff]
    %v3695 = vld [vmem:[#allocation2 + $0x190] sm:$0xff]
    %v3696 = vld [vmem:[#allocation2 + $0x198] sm:$0xff]
    %v3697 = vld [vmem:[%s2148] sm:$0xf]
    %v3698 = vld [vmem:[%s2148 + $0x4] sm:$0xf]
    %v3699 = vld [vmem:[%s2148 + $0x8] sm:$0xf]
    %v3700 = vld [vmem:[%s2148 + $0xc] sm:$0xf]
    %v3701 = vld [vmem:[%s2148 + $0x10] sm:$0xf]
    %v3702 = vld [vmem:[%s2148 + $0x14] sm:$0xf]
    %v3703 = vld [vmem:[%s2148 + $0x18] sm:$0xf]
    %v3704 = vld [vmem:[%s2148 + $0x1c] sm:$0xf]
    %v3705 = vld [vmem:[%s2148 + $0x20] sm:$0xf]
    %v3706 = vld [vmem:[%s2148 + $0x24] sm:$0xf]
    %v3707 = vld [vmem:[%s2148 + $0x28] sm:$0xf]
    %v3708 = vld [vmem:[%s2148 + $0x2c] sm:$0xf]
    %v3709 = vld [vmem:[%s2148 + $0x30] sm:$0xf]
    %v3710 = vld [vmem:[%s2148 + $0x34] sm:$0xf]
    %v3711 = vld [vmem:[%s2148 + $0x38] sm:$0xf]
    %v3712 = vld [vmem:[%s2148 + $0x3c] sm:$0xf]
    %v3713 = vld [vmem:[%s2148 + $0x40] sm:$0xf]
    %v3714 = vld [vmem:[%s2148 + $0x44] sm:$0xf]
    %v3715 = vld [vmem:[%s2148 + $0x48] sm:$0xf]
    %v3716 = vld [vmem:[%s2148 + $0x4c] sm:$0xf]
    %v3717 = vld [vmem:[%s2148 + $0x50] sm:$0xf]
    %v3718 = vld [vmem:[%s2148 + $0x54] sm:$0xf]
    %v3719 = vld [vmem:[%s2148 + $0x58] sm:$0xf]
    %v3720 = vld [vmem:[%s2148 + $0x5c] sm:$0xf]
    %v3721 = vld [vmem:[%s2148 + $0x60] sm:$0xf]
    %v3722 = vld [vmem:[%s2148 + $0x64] sm:$0xf]
    %v3723 = vld [vmem:[%s2148 + $0x68] sm:$0xf]
    %v3724 = vld [vmem:[%s2148 + $0x6c] sm:$0xf]
    %v3725 = vld [vmem:[%s2148 + $0x70] sm:$0xf]
    %v3726 = vld [vmem:[%s2148 + $0x74] sm:$0xf]
    %v3757 = vunpack.c.l.b16 %v3697
    %v3758 = vunpack.c.l.b16 %v3698
    %v3759 = vunpack.c.l.b16 %v3699
    %v3760 = vunpack.c.l.b16 %v3700
    %v3761 = vunpack.c.l.b16 %v3701
    %v3762 = vunpack.c.l.b16 %v3702
    %v3763 = vunpack.c.l.b16 %v3703
    %v3764 = vunpack.c.l.b16 %v3704
    %v3765 = vunpack.c.l.b16 %v3705
    %v3766 = vunpack.c.l.b16 %v3706
    %v3767 = vunpack.c.l.b16 %v3707
    %v3768 = vunpack.c.l.b16 %v3708
    %v3769 = vunpack.c.l.b16 %v3709
    %v3770 = vunpack.c.l.b16 %v3710
    %v3771 = vunpack.c.l.b16 %v3711
    %v3772 = vunpack.c.l.b16 %v3712
    %v3773 = vunpack.c.l.b16 %v3713
    %v3774 = vunpack.c.l.b16 %v3714
    %v3775 = vunpack.c.l.b16 %v3715
    %v3776 = vunpack.c.l.b16 %v3716
    %v3777 = vunpack.c.l.b16 %v3717
    %v3778 = vunpack.c.l.b16 %v3718
    %v3779 = vunpack.c.l.b16 %v3719
    %v3780 = vunpack.c.l.b16 %v3720
    %v3781 = vunpack.c.l.b16 %v3721
    %v3782 = vunpack.c.l.b16 %v3722
    %v3783 = vunpack.c.l.b16 %v3723
    %v3784 = vunpack.c.l.b16 %v3724
    %v3785 = vunpack.c.l.b16 %v3725
    %v3786 = vunpack.c.l.b16 %v3726
    %v3787 = vpack.c.b16 %v3758, %v3757
    %v3788 = vpack.c.b16 %v3760, %v3759
    %v3789 = vpack.c.b16 %v3762, %v3761
    %v3790 = vpack.c.b16 %v3764, %v3763
    %v3791 = vpack.c.b16 %v3766, %v3765
    %v3792 = vpack.c.b16 %v3768, %v3767
    %v3793 = vpack.c.b16 %v3770, %v3769
    %v3794 = vpack.c.b16 %v3772, %v3771
    %v3795 = vpack.c.b16 %v3774, %v3773
    %v3796 = vpack.c.b16 %v3776, %v3775
    %v3797 = vpack.c.b16 %v3778, %v3777
    %v3798 = vpack.c.b16 %v3780, %v3779
    %v3799 = vpack.c.b16 %v3782, %v3781
    %v3800 = vpack.c.b16 %v3784, %v3783
    %v3801 = vpack.c.b16 %v3786, %v3785
    %v3818 = vsel %vm860, %v3678, 0
    %v3821 = vsel %vm860, %v3680, 0
    %v3824 = vsel %vm860, %v3682, 0
    %v3827 = vsel %vm860, %v3684, 0
    %v3830 = vsel %vm860, %v3686, 0
    %v3833 = vsel %vm860, %v3688, 0
    %v3836 = vsel %vm860, %v3690, 0
    %v3839 = vsel %vm860, %v3692, 0
    %v3842 = vsel %vm860, %v3694, 0
    %v3845 = vsel %vm860, %v3696, 0
    %3847 = vmatprep.subr.bf16.mxu0 0
    %3848 = vmatpush1.bf16.msra.mxu0 %v3787
    %3849 = vmatprep.subr.bf16.mxu0 0
    %3850 = vmatpush1.bf16.msra.mxu0 %v3788
    %3851 = vmatprep.subr.bf16.mxu0 0
    %3852 = vmatpush1.bf16.msra.mxu0 %v3789
    %3853 = vmatprep.subr.bf16.mxu0 0
    %3854 = vmatpush1.bf16.msra.mxu0 %v3790
    %3855 = vmatprep.subr.bf16.mxu0 0
    %3856 = vmatpush1.bf16.msra.mxu0 %v3791
    %3857 = vmatprep.subr.bf16.mxu0 0
    %3858 = vmatpush1.bf16.msra.mxu0 %v3792
    %3859 = vmatprep.subr.bf16.mxu0 0
    %3860 = vmatpush1.bf16.msra.mxu0 %v3793
    %3861 = vmatprep.subr.bf16.mxu0 0
    %3862 = vmatpush1.bf16.msra.mxu0 %v3794
    %3863 = vmatprep.subr.bf16.mxu0 0
    %3864 = vmatpush1.bf16.msra.mxu0 %v3795
    %3865 = vmatprep.subr.bf16.mxu0 0
    %3866 = vmatpush1.bf16.msra.mxu0 %v3796
    %3867 = vmatprep.subr.bf16.mxu0 0
    %3868 = vmatpush1.bf16.msra.mxu0 %v3797
    %3869 = vmatprep.subr.bf16.mxu0 0
    %3870 = vmatpush1.bf16.msra.mxu0 %v3798
    %3871 = vmatprep.subr.bf16.mxu0 0
    %3872 = vmatpush1.bf16.msra.mxu0 %v3799
    %3873 = vmatprep.subr.bf16.mxu0 0
    %3874 = vmatpush1.bf16.msra.mxu0 %v3800
    %3875 = vmatprep.subr.bf16.mxu0 0
    %3876 = vmatpush1.bf16.msra.mxu0 %v3801
    %3877 = vmatprep.subr.bf16.mxu0 0
    %3878 = vmatpush1.bf16.msra.mxu0 0
    %3879 = vmatprep.mubr.bf16.mxu0 %v3818
    %3880 = vmatmul.mubr.bf16.gmra.mrb[0].mxu0 %v3677
    %v3881 = vpop.f32.mrb[0].mxu0
    %v3882 = vadd.f32 0.0, %v3881
    %v3883 = vpop.f32.mrb[0].mxu0
    %v3884 = vpop.f32.mrb[0].mxu0
    %v3885 = vadd.f32 0.0, %v3884
    %v3886 = vpop.f32.mrb[0].mxu0
    %3887 = vmatprep.mubr.bf16.mxu0 %v3821
    %3888 = vmatmul.mubr.bf16.gmra.mrb[0].mxu0 %v3679
    %v3889 = vpop.f32.mrb[0].mxu0
    %v3890 = vadd.f32 0.0, %v3889
    %v3891 = vpop.f32.mrb[0].mxu0
    %v3892 = vpop.f32.mrb[0].mxu0
    %v3893 = vadd.f32 0.0, %v3892
    %v3894 = vpop.f32.mrb[0].mxu0
    %3895 = vmatprep.mubr.bf16.mxu0 %v3824
    %3896 = vmatmul.mubr.bf16.gmra.mrb[0].mxu0 %v3681
    %v3897 = vpop.f32.mrb[0].mxu0
    %v3898 = vadd.f32 0.0, %v3897
    %v3899 = vpop.f32.mrb[0].mxu0
    %v3900 = vpop.f32.mrb[0].mxu0
    %v3901 = vadd.f32 0.0, %v3900
    %v3902 = vpop.f32.mrb[0].mxu0
    %3903 = vmatprep.mubr.bf16.mxu0 %v3827
    %3904 = vmatmul.mubr.bf16.gmra.mrb[0].mxu0 %v3683
    %v3905 = vpop.f32.mrb[0].mxu0
    %v3906 = vadd.f32 0.0, %v3905
    %v3907 = vpop.f32.mrb[0].mxu0
    %v3908 = vpop.f32.mrb[0].mxu0
    %v3909 = vadd.f32 0.0, %v3908
    %v3910 = vpop.f32.mrb[0].mxu0
    %3911 = vmatprep.mubr.bf16.mxu0 %v3830
    %3912 = vmatmul.mubr.bf16.gmra.mrb[0].mxu0 %v3685
    %v3913 = vpop.f32.mrb[0].mxu0
    %v3914 = vadd.f32 0.0, %v3913
    %v3915 = vpop.f32.mrb[0].mxu0
    %v3916 = vpop.f32.mrb[0].mxu0
    %v3917 = vadd.f32 0.0, %v3916
    %v3918 = vpop.f32.mrb[0].mxu0
    %3919 = vmatprep.mubr.bf16.mxu0 %v3833
    %3920 = vmatmul.mubr.bf16.gmra.mrb[0].mxu0 %v3687
    %v3921 = vpop.f32.mrb[0].mxu0
    %v3922 = vadd.f32 0.0, %v3921
    %v3923 = vpop.f32.mrb[0].mxu0
    %v3924 = vpop.f32.mrb[0].mxu0
    %v3925 = vadd.f32 0.0, %v3924
    %v3926 = vpop.f32.mrb[0].mxu0
    %3927 = vmatprep.mubr.bf16.mxu0 %v3836
    %3928 = vmatmul.mubr.bf16.gmra.mrb[0].mxu0 %v3689
    %v3929 = vpop.f32.mrb[0].mxu0
    %v3930 = vadd.f32 0.0, %v3929
    %v3931 = vpop.f32.mrb[0].mxu0
    %v3932 = vpop.f32.mrb[0].mxu0
    %v3933 = vadd.f32 0.0, %v3932
    %v3934 = vpop.f32.mrb[0].mxu0
    %3935 = vmatprep.mubr.bf16.mxu0 %v3839
    %3936 = vmatmul.mubr.bf16.gmra.mrb[0].mxu0 %v3691
    %v3937 = vpop.f32.mrb[0].mxu0
    %v3938 = vadd.f32 0.0, %v3937
    %v3939 = vpop.f32.mrb[0].mxu0
    %v3940 = vpop.f32.mrb[0].mxu0
    %v3941 = vadd.f32 0.0, %v3940
    %v3942 = vpop.f32.mrb[0].mxu0
    %3943 = vmatprep.mubr.bf16.mxu0 %v3842
    %3944 = vmatmul.mubr.bf16.gmra.mrb[0].mxu0 %v3693
    %v3945 = vpop.f32.mrb[0].mxu0
    %v3946 = vadd.f32 0.0, %v3945
    %v3947 = vpop.f32.mrb[0].mxu0
    %v3948 = vpop.f32.mrb[0].mxu0
    %v3949 = vadd.f32 0.0, %v3948
    %v3950 = vpop.f32.mrb[0].mxu0
    %3951 = vmatprep.mubr.bf16.mxu0 %v3845
    %3952 = vmatmul.mubr.bf16.gmra.mrb[0].mxu0 %v3695
    %v3953 = vpop.f32.mrb[0].mxu0
    %v3954 = vadd.f32 0.0, %v3953
    %v3955 = vpop.f32.mrb[0].mxu0
    %v3956 = vpop.f32.mrb[0].mxu0
    %v3957 = vadd.f32 0.0, %v3956
    %v3958 = vpop.f32.mrb[0].mxu0
    %3959 = vdwg.mxu0
    %v3960 = vadd.f32 %v3657, %v3882
    %v3961 = vadd.f32 %v3658, %v3885
    %v3962 = vadd.f32 %v3659, %v3890
    %v3963 = vadd.f32 %v3660, %v3893
    %v3964 = vadd.f32 %v3661, %v3898
    %v3965 = vadd.f32 %v3662, %v3901
    %v3966 = vadd.f32 %v3663, %v3906
    %v3967 = vadd.f32 %v3664, %v3909
    %v3968 = vadd.f32 %v3665, %v3914
    %v3969 = vadd.f32 %v3666, %v3917
    %v3970 = vadd.f32 %v3667, %v3922
    %v3971 = vadd.f32 %v3668, %v3925
    %v3972 = vadd.f32 %v3669, %v3930
    %v3973 = vadd.f32 %v3670, %v3933
    %v3974 = vadd.f32 %v3671, %v3938
    %v3975 = vadd.f32 %v3672, %v3941
    %v3976 = vadd.f32 %v3673, %v3946
    %v3977 = vadd.f32 %v3674, %v3949
    %v3978 = vadd.f32 %v3675, %v3954
    %v3979 = vadd.f32 %v3676, %v3957
    %v3980 = vld [vmem:[#allocation2 + $0x120] sm:$0xff]
    %v3981 = vld [vmem:[#allocation2 + $0x128] sm:$0xff]
    %v3982 = vld [vmem:[#allocation2 + $0x130] sm:$0xff]
    %v3983 = vld [vmem:[#allocation2 + $0x138] sm:$0xff]
    %v3984 = vld [vmem:[#allocation2 + $0x140] sm:$0xff]
    %v3985 = vld [vmem:[#allocation2 + $0x148] sm:$0xff]
    %v3986 = vld [vmem:[#allocation2 + $0x150] sm:$0xff]
    %v3987 = vld [vmem:[#allocation2 + $0x158] sm:$0xff]
    %v3988 = vld [vmem:[#allocation2 + $0x160] sm:$0xff]
    %v3989 = vld [vmem:[#allocation2 + $0x168] sm:$0xff]
    %v3990 = vld [vmem:[#allocation2 + $0x170] sm:$0xff]
    %v3991 = vld [vmem:[#allocation2 + $0x178] sm:$0xff]
    %v3992 = vld [vmem:[#allocation2 + $0x180] sm:$0xff]
    %v3993 = vld [vmem:[#allocation2 + $0x188] sm:$0xff]
    %v3994 = vld [vmem:[#allocation2 + $0x190] sm:$0xff]
    %v3995 = vld [vmem:[#allocation2 + $0x198] sm:$0xff]
    %v3996 = vld [vmem:[#allocation2 + $0x1a0] sm:$0xff]
    %v3997 = vld [vmem:[#allocation2 + $0x1a8] sm:$0xff]
    %v3998 = vld [vmem:[#allocation2 + $0x1b0] sm:$0xff]
    %v3999 = vld [vmem:[#allocation2 + $0x1b8] sm:$0xff]
    %v4000 = vld [vmem:[%s2452] sm:$0xf]
    %v4001 = vld [vmem:[%s2452 + $0x4] sm:$0xf]
    %v4002 = vld [vmem:[%s2452 + $0x8] sm:$0xf]
    %v4003 = vld [vmem:[%s2452 + $0xc] sm:$0xf]
    %v4004 = vld [vmem:[%s2452 + $0x10] sm:$0xf]
    %v4005 = vld [vmem:[%s2452 + $0x14] sm:$0xf]
    %v4006 = vld [vmem:[%s2452 + $0x18] sm:$0xf]
    %v4007 = vld [vmem:[%s2452 + $0x1c] sm:$0xf]
    %v4008 = vld [vmem:[%s2452 + $0x20] sm:$0xf]
    %v4009 = vld [vmem:[%s2452 + $0x24] sm:$0xf]
    %v4010 = vld [vmem:[%s2452 + $0x28] sm:$0xf]
    %v4011 = vld [vmem:[%s2452 + $0x2c] sm:$0xf]
    %v4012 = vld [vmem:[%s2452 + $0x30] sm:$0xf]
    %v4013 = vld [vmem:[%s2452 + $0x34] sm:$0xf]
    %v4014 = vld [vmem:[%s2452 + $0x38] sm:$0xf]
    %v4015 = vld [vmem:[%s2452 + $0x3c] sm:$0xf]
    %v4016 = vld [vmem:[%s2452 + $0x40] sm:$0xf]
    %v4017 = vld [vmem:[%s2452 + $0x44] sm:$0xf]
    %v4018 = vld [vmem:[%s2452 + $0x48] sm:$0xf]
    %v4019 = vld [vmem:[%s2452 + $0x4c] sm:$0xf]
    %v4020 = vld [vmem:[%s2452 + $0x50] sm:$0xf]
    %v4021 = vld [vmem:[%s2452 + $0x54] sm:$0xf]
    %v4022 = vld [vmem:[%s2452 + $0x58] sm:$0xf]
    %v4023 = vld [vmem:[%s2452 + $0x5c] sm:$0xf]
    %v4024 = vld [vmem:[%s2452 + $0x60] sm:$0xf]
    %v4025 = vld [vmem:[%s2452 + $0x64] sm:$0xf]
    %v4026 = vld [vmem:[%s2452 + $0x68] sm:$0xf]
    %v4027 = vld [vmem:[%s2452 + $0x6c] sm:$0xf]
    %v4028 = vld [vmem:[%s2452 + $0x70] sm:$0xf]
    %v4029 = vld [vmem:[%s2452 + $0x74] sm:$0xf]
    %v4060 = vunpack.c.l.b16 %v4000
    %v4061 = vunpack.c.l.b16 %v4001
    %v4062 = vunpack.c.l.b16 %v4002
    %v4063 = vunpack.c.l.b16 %v4003
    %v4064 = vunpack.c.l.b16 %v4004
    %v4065 = vunpack.c.l.b16 %v4005
    %v4066 = vunpack.c.l.b16 %v4006
    %v4067 = vunpack.c.l.b16 %v4007
    %v4068 = vunpack.c.l.b16 %v4008
    %v4069 = vunpack.c.l.b16 %v4009
    %v4070 = vunpack.c.l.b16 %v4010
    %v4071 = vunpack.c.l.b16 %v4011
    %v4072 = vunpack.c.l.b16 %v4012
    %v4073 = vunpack.c.l.b16 %v4013
    %v4074 = vunpack.c.l.b16 %v4014
    %v4075 = vunpack.c.l.b16 %v4015
    %v4076 = vunpack.c.l.b16 %v4016
    %v4077 = vunpack.c.l.b16 %v4017
    %v4078 = vunpack.c.l.b16 %v4018
    %v4079 = vunpack.c.l.b16 %v4019
    %v4080 = vunpack.c.l.b16 %v4020
    %v4081 = vunpack.c.l.b16 %v4021
    %v4082 = vunpack.c.l.b16 %v4022
    %v4083 = vunpack.c.l.b16 %v4023
    %v4084 = vunpack.c.l.b16 %v4024
    %v4085 = vunpack.c.l.b16 %v4025
    %v4086 = vunpack.c.l.b16 %v4026
    %v4087 = vunpack.c.l.b16 %v4027
    %v4088 = vunpack.c.l.b16 %v4028
    %v4089 = vunpack.c.l.b16 %v4029
    %v4090 = vpack.c.b16 %v4061, %v4060
    %v4091 = vpack.c.b16 %v4063, %v4062
    %v4092 = vpack.c.b16 %v4065, %v4064
    %v4093 = vpack.c.b16 %v4067, %v4066
    %v4094 = vpack.c.b16 %v4069, %v4068
    %v4095 = vpack.c.b16 %v4071, %v4070
    %v4096 = vpack.c.b16 %v4073, %v4072
    %v4097 = vpack.c.b16 %v4075, %v4074
    %v4098 = vpack.c.b16 %v4077, %v4076
    %v4099 = vpack.c.b16 %v4079, %v4078
    %v4100 = vpack.c.b16 %v4081, %v4080
    %v4101 = vpack.c.b16 %v4083, %v4082
    %v4102 = vpack.c.b16 %v4085, %v4084
    %v4103 = vpack.c.b16 %v4087, %v4086
    %v4104 = vpack.c.b16 %v4089, %v4088
    %v4121 = vsel %vm860, %v3981, 0
    %v4124 = vsel %vm860, %v3983, 0
    %v4127 = vsel %vm860, %v3985, 0
    %v4130 = vsel %vm860, %v3987, 0
    %v4133 = vsel %vm860, %v3989, 0
    %v4136 = vsel %vm860, %v3991, 0
    %v4139 = vsel %vm860, %v3993, 0
    %v4142 = vsel %vm860, %v3995, 0
    %v4145 = vsel %vm860, %v3997, 0
    %v4148 = vsel %vm860, %v3999, 0
    %4150 = vmatprep.subr.bf16.mxu0 0
    %4151 = vmatpush1.bf16.msra.mxu0 %v4090
    %4152 = vmatprep.subr.bf16.mxu0 0
    %4153 = vmatpush1.bf16.msra.mxu0 %v4091
    %4154 = vmatprep.subr.bf16.mxu0 0
    %4155 = vmatpush1.bf16.msra.mxu0 %v4092
    %4156 = vmatprep.subr.bf16.mxu0 0
    %4157 = vmatpush1.bf16.msra.mxu0 %v4093
    %4158 = vmatprep.subr.bf16.mxu0 0
    %4159 = vmatpush1.bf16.msra.mxu0 %v4094
    %4160 = vmatprep.subr.bf16.mxu0 0
    %4161 = vmatpush1.bf16.msra.mxu0 %v4095
    %4162 = vmatprep.subr.bf16.mxu0 0
    %4163 = vmatpush1.bf16.msra.mxu0 %v4096
    %4164 = vmatprep.subr.bf16.mxu0 0
    %4165 = vmatpush1.bf16.msra.mxu0 %v4097
    %4166 = vmatprep.subr.bf16.mxu0 0
    %4167 = vmatpush1.bf16.msra.mxu0 %v4098
    %4168 = vmatprep.subr.bf16.mxu0 0
    %4169 = vmatpush1.bf16.msra.mxu0 %v4099
    %4170 = vmatprep.subr.bf16.mxu0 0
    %4171 = vmatpush1.bf16.msra.mxu0 %v4100
    %4172 = vmatprep.subr.bf16.mxu0 0
    %4173 = vmatpush1.bf16.msra.mxu0 %v4101
    %4174 = vmatprep.subr.bf16.mxu0 0
    %4175 = vmatpush1.bf16.msra.mxu0 %v4102
    %4176 = vmatprep.subr.bf16.mxu0 0
    %4177 = vmatpush1.bf16.msra.mxu0 %v4103
    %4178 = vmatprep.subr.bf16.mxu0 0
    %4179 = vmatpush1.bf16.msra.mxu0 %v4104
    %4180 = vmatprep.subr.bf16.mxu0 0
    %4181 = vmatpush1.bf16.msra.mxu0 0
    %4182 = vmatprep.mubr.bf16.mxu0 %v4121
    %4183 = vmatmul.mubr.bf16.gmra.mrb[0].mxu0 %v3980
    %v4184 = vpop.f32.mrb[0].mxu0
    %v4185 = vadd.f32 0.0, %v4184
    %v4186 = vpop.f32.mrb[0].mxu0
    %v4187 = vpop.f32.mrb[0].mxu0
    %v4188 = vadd.f32 0.0, %v4187
    %v4189 = vpop.f32.mrb[0].mxu0
    %4190 = vmatprep.mubr.bf16.mxu0 %v4124
    %4191 = vmatmul.mubr.bf16.gmra.mrb[0].mxu0 %v3982
    %v4192 = vpop.f32.mrb[0].mxu0
    %v4193 = vadd.f32 0.0, %v4192
    %v4194 = vpop.f32.mrb[0].mxu0
    %v4195 = vpop.f32.mrb[0].mxu0
    %v4196 = vadd.f32 0.0, %v4195
    %v4197 = vpop.f32.mrb[0].mxu0
    %4198 = vmatprep.mubr.bf16.mxu0 %v4127
    %4199 = vmatmul.mubr.bf16.gmra.mrb[0].mxu0 %v3984
    %v4200 = vpop.f32.mrb[0].mxu0
    %v4201 = vadd.f32 0.0, %v4200
    %v4202 = vpop.f32.mrb[0].mxu0
    %v4203 = vpop.f32.mrb[0].mxu0
    %v4204 = vadd.f32 0.0, %v4203
    %v4205 = vpop.f32.mrb[0].mxu0
    %4206 = vmatprep.mubr.bf16.mxu0 %v4130
    %4207 = vmatmul.mubr.bf16.gmra.mrb[0].mxu0 %v3986
    %v4208 = vpop.f32.mrb[0].mxu0
    %v4209 = vadd.f32 0.0, %v4208
    %v4210 = vpop.f32.mrb[0].mxu0
    %v4211 = vpop.f32.mrb[0].mxu0
    %v4212 = vadd.f32 0.0, %v4211
    %v4213 = vpop.f32.mrb[0].mxu0
    %4214 = vmatprep.mubr.bf16.mxu0 %v4133
    %4215 = vmatmul.mubr.bf16.gmra.mrb[0].mxu0 %v3988
    %v4216 = vpop.f32.mrb[0].mxu0
    %v4217 = vadd.f32 0.0, %v4216
    %v4218 = vpop.f32.mrb[0].mxu0
    %v4219 = vpop.f32.mrb[0].mxu0
    %v4220 = vadd.f32 0.0, %v4219
    %v4221 = vpop.f32.mrb[0].mxu0
    %4222 = vmatprep.mubr.bf16.mxu0 %v4136
    %4223 = vmatmul.mubr.bf16.gmra.mrb[0].mxu0 %v3990
    %v4224 = vpop.f32.mrb[0].mxu0
    %v4225 = vadd.f32 0.0, %v4224
    %v4226 = vpop.f32.mrb[0].mxu0
    %v4227 = vpop.f32.mrb[0].mxu0
    %v4228 = vadd.f32 0.0, %v4227
    %v4229 = vpop.f32.mrb[0].mxu0
    %4230 = vmatprep.mubr.bf16.mxu0 %v4139
    %4231 = vmatmul.mubr.bf16.gmra.mrb[0].mxu0 %v3992
    %v4232 = vpop.f32.mrb[0].mxu0
    %v4233 = vadd.f32 0.0, %v4232
    %v4234 = vpop.f32.mrb[0].mxu0
    %v4235 = vpop.f32.mrb[0].mxu0
    %v4236 = vadd.f32 0.0, %v4235
    %v4237 = vpop.f32.mrb[0].mxu0
    %4238 = vmatprep.mubr.bf16.mxu0 %v4142
    %4239 = vmatmul.mubr.bf16.gmra.mrb[0].mxu0 %v3994
    %v4240 = vpop.f32.mrb[0].mxu0
    %v4241 = vadd.f32 0.0, %v4240
    %v4242 = vpop.f32.mrb[0].mxu0
    %v4243 = vpop.f32.mrb[0].mxu0
    %v4244 = vadd.f32 0.0, %v4243
    %v4245 = vpop.f32.mrb[0].mxu0
    %4246 = vmatprep.mubr.bf16.mxu0 %v4145
    %4247 = vmatmul.mubr.bf16.gmra.mrb[0].mxu0 %v3996
    %v4248 = vpop.f32.mrb[0].mxu0
    %v4249 = vadd.f32 0.0, %v4248
    %v4250 = vpop.f32.mrb[0].mxu0
    %v4251 = vpop.f32.mrb[0].mxu0
    %v4252 = vadd.f32 0.0, %v4251
    %v4253 = vpop.f32.mrb[0].mxu0
    %4254 = vmatprep.mubr.bf16.mxu0 %v4148
    %4255 = vmatmul.mubr.bf16.gmra.mrb[0].mxu0 %v3998
    %v4256 = vpop.f32.mrb[0].mxu0
    %v4257 = vadd.f32 0.0, %v4256
    %v4258 = vpop.f32.mrb[0].mxu0
    %v4259 = vpop.f32.mrb[0].mxu0
    %v4260 = vadd.f32 0.0, %v4259
    %v4261 = vpop.f32.mrb[0].mxu0
    %4262 = vdwg.mxu0
    %v4263 = vadd.f32 %v3960, %v4185
    %v4264 = vadd.f32 %v3961, %v4188
    %v4265 = vadd.f32 %v3962, %v4193
    %v4266 = vadd.f32 %v3963, %v4196
    %v4267 = vadd.f32 %v3964, %v4201
    %v4268 = vadd.f32 %v3965, %v4204
    %v4269 = vadd.f32 %v3966, %v4209
    %v4270 = vadd.f32 %v3967, %v4212
    %v4271 = vadd.f32 %v3968, %v4217
    %v4272 = vadd.f32 %v3969, %v4220
    %v4273 = vadd.f32 %v3970, %v4225
    %v4274 = vadd.f32 %v3971, %v4228
    %v4275 = vadd.f32 %v3972, %v4233
    %v4276 = vadd.f32 %v3973, %v4236
    %v4277 = vadd.f32 %v3974, %v4241
    %v4278 = vadd.f32 %v3975, %v4244
    %v4279 = vadd.f32 %v3976, %v4249
    %v4280 = vadd.f32 %v3977, %v4252
    %v4281 = vadd.f32 %v3978, %v4257
    %v4282 = vadd.f32 %v3979, %v4260
    %v4283 = vmul.f32 %v4263, %v1277
    %v4284 = vmul.f32 %v4264, %v1278
    %v4285 = vmul.f32 %v4265, %v1279
    %v4286 = vmul.f32 %v4266, %v1280
    %v4287 = vmul.f32 %v4267, %v1281
    %v4288 = vmul.f32 %v4268, %v1282
    %v4289 = vmul.f32 %v4269, %v1283
    %v4290 = vmul.f32 %v4270, %v1284
    %v4291 = vmul.f32 %v4271, %v1285
    %v4292 = vmul.f32 %v4272, %v1286
    %v4293 = vmul.f32 %v4273, %v1287
    %v4294 = vmul.f32 %v4274, %v1288
    %v4295 = vmul.f32 %v4275, %v1289
    %v4296 = vmul.f32 %v4276, %v1290
    %v4297 = vmul.f32 %v4277, %v1291
    %v4298 = vmul.f32 %v4278, %v1292
    %v4299 = vmul.f32 %v4279, %v1293
    %v4300 = vmul.f32 %v4280, %v1294
    %v4301 = vmul.f32 %v4281, %v1295
    %v4302 = vmul.f32 %v4282, %v1296
    %v4303 = vadd.f32 %v4283, %v4284
    %v4304 = vadd.f32 %v4303, %v4285
    %v4305 = vadd.f32 %v4304, %v4286
    %v4306 = vadd.f32 %v4305, %v4287
    %v4307 = vadd.f32 %v4306, %v4288
    %v4308 = vadd.f32 %v4307, %v4289
    %v4309 = vadd.f32 %v4308, %v4290
    %v4310 = vadd.f32 %v4309, %v4291
    %v4311 = vadd.f32 %v4310, %v4292
    %v4312 = vadd.f32 %v4311, %v4293
    %v4313 = vadd.f32 %v4312, %v4294
    %v4314 = vadd.f32 %v4313, %v4295
    %v4315 = vadd.f32 %v4314, %v4296
    %v4316 = vadd.f32 %v4315, %v4297
    %v4317 = vadd.f32 %v4316, %v4298
    %v4318 = vadd.f32 %v4317, %v4299
    %v4319 = vadd.f32 %v4318, %v4300
    %v4320 = vadd.f32 %v4319, %v4301
    %v4321 = vadd.f32 %v4320, %v4302
    %v4322 = vrot.slane %v4321, 4
    %v4323 = vadd.f32 %v4321, %v4322
    %v4324 = vrot.slane %v4323, 2
    %v4325 = vadd.f32 %v4323, %v4324
    %v4326 = vrot.slane %v4325, 1
    %v4327 = vadd.f32 %v4325, %v4326
    %v4328 = vadd.f32 %v2781, %v4327
    %v4329 = vmul.f32 %v4283, %v4283
    %v4330 = vmul.f32 %v4284, %v4284
    %v4331 = vmul.f32 %v4285, %v4285
    %v4332 = vmul.f32 %v4286, %v4286
    %v4333 = vmul.f32 %v4287, %v4287
    %v4334 = vmul.f32 %v4288, %v4288
    %v4335 = vmul.f32 %v4289, %v4289
    %v4336 = vmul.f32 %v4290, %v4290
    %v4337 = vmul.f32 %v4291, %v4291
    %v4338 = vmul.f32 %v4292, %v4292
    %v4339 = vmul.f32 %v4293, %v4293
    %v4340 = vmul.f32 %v4294, %v4294
    %v4341 = vmul.f32 %v4295, %v4295
    %v4342 = vmul.f32 %v4296, %v4296
    %v4343 = vmul.f32 %v4297, %v4297
    %v4344 = vmul.f32 %v4298, %v4298
    %v4345 = vmul.f32 %v4299, %v4299
    %v4346 = vmul.f32 %v4300, %v4300
    %v4347 = vmul.f32 %v4301, %v4301
    %v4348 = vmul.f32 %v4302, %v4302
    %v4349 = vadd.f32 %v4329, %v4330
    %v4350 = vadd.f32 %v4349, %v4331
    %v4351 = vadd.f32 %v4350, %v4332
    %v4352 = vadd.f32 %v4351, %v4333
    %v4353 = vadd.f32 %v4352, %v4334
    %v4354 = vadd.f32 %v4353, %v4335
    %v4355 = vadd.f32 %v4354, %v4336
    %v4356 = vadd.f32 %v4355, %v4337
    %v4357 = vadd.f32 %v4356, %v4338
    %v4358 = vadd.f32 %v4357, %v4339
    %v4359 = vadd.f32 %v4358, %v4340
    %v4360 = vadd.f32 %v4359, %v4341
    %v4361 = vadd.f32 %v4360, %v4342
    %v4362 = vadd.f32 %v4361, %v4343
    %v4363 = vadd.f32 %v4362, %v4344
    %v4364 = vadd.f32 %v4363, %v4345
    %v4365 = vadd.f32 %v4364, %v4346
    %v4366 = vadd.f32 %v4365, %v4347
    %v4367 = vadd.f32 %v4366, %v4348
    %v4368 = vrot.slane %v4367, 4
    %v4369 = vadd.f32 %v4367, %v4368
    %v4370 = vrot.slane %v4369, 2
    %v4371 = vadd.f32 %v4369, %v4370
    %v4372 = vrot.slane %v4371, 1
    %v4373 = vadd.f32 %v4371, %v4372
    %v4374 = vadd.f32 %v2827, %v4373
    %4375 = vst [vmem:[#allocation8 + $0xa0] sm:$0xff] %v4263
    %4376 = vst [vmem:[#allocation8 + $0xa8] sm:$0xff] %v4264
    %4377 = vst [vmem:[#allocation8 + $0xb0] sm:$0xff] %v4265
    %4378 = vst [vmem:[#allocation8 + $0xb8] sm:$0xff] %v4266
    %4379 = vst [vmem:[#allocation8 + $0xc0] sm:$0xff] %v4267
    %4380 = vst [vmem:[#allocation8 + $0xc8] sm:$0xff] %v4268
    %4381 = vst [vmem:[#allocation8 + $0xd0] sm:$0xff] %v4269
    %4382 = vst [vmem:[#allocation8 + $0xd8] sm:$0xff] %v4270
    %4383 = vst [vmem:[#allocation8 + $0xe0] sm:$0xff] %v4271
    %4384 = vst [vmem:[#allocation8 + $0xe8] sm:$0xff] %v4272
    %4385 = vst [vmem:[#allocation8 + $0xf0] sm:$0xff] %v4273
    %4386 = vst [vmem:[#allocation8 + $0xf8] sm:$0xff] %v4274
    %4387 = vst [vmem:[#allocation8 + $0x100] sm:$0xff] %v4275
    %4388 = vst [vmem:[#allocation8 + $0x108] sm:$0xff] %v4276
    %4389 = vst [vmem:[#allocation8 + $0x110] sm:$0xff] %v4277
    %4390 = vst [vmem:[#allocation8 + $0x118] sm:$0xff] %v4278
    %4391 = vst [vmem:[#allocation8 + $0x120] sm:$0xff] %v4279
    %4392 = vst [vmem:[#allocation8 + $0x128] sm:$0xff] %v4280
    %4393 = vst [vmem:[#allocation8 + $0x130] sm:$0xff] %v4281
    %4394 = vst [vmem:[#allocation8 + $0x138] sm:$0xff] %v4282
    %v4395 = vld [vmem:[#allocation2 + $0x140] sm:$0xff]
    %v4396 = vld [vmem:[#allocation2 + $0x148] sm:$0xff]
    %v4397 = vld [vmem:[#allocation2 + $0x150] sm:$0xff]
    %v4398 = vld [vmem:[#allocation2 + $0x158] sm:$0xff]
    %v4399 = vld [vmem:[#allocation2 + $0x160] sm:$0xff]
    %v4400 = vld [vmem:[#allocation2 + $0x168] sm:$0xff]
    %v4401 = vld [vmem:[#allocation2 + $0x170] sm:$0xff]
    %v4402 = vld [vmem:[#allocation2 + $0x178] sm:$0xff]
    %v4403 = vld [vmem:[#allocation2 + $0x180] sm:$0xff]
    %v4404 = vld [vmem:[#allocation2 + $0x188] sm:$0xff]
    %v4405 = vld [vmem:[#allocation2 + $0x190] sm:$0xff]
    %v4406 = vld [vmem:[#allocation2 + $0x198] sm:$0xff]
    %v4407 = vld [vmem:[#allocation2 + $0x1a0] sm:$0xff]
    %v4408 = vld [vmem:[#allocation2 + $0x1a8] sm:$0xff]
    %v4409 = vld [vmem:[#allocation2 + $0x1b0] sm:$0xff]
    %v4410 = vld [vmem:[#allocation2 + $0x1b8] sm:$0xff]
    %v4411 = vld [vmem:[#allocation2 + $0x1c0] sm:$0xff]
    %v4412 = vld [vmem:[#allocation2 + $0x1c8] sm:$0xff]
    %v4413 = vld [vmem:[#allocation2 + $0x1d0] sm:$0xff]
    %v4414 = vld [vmem:[#allocation2 + $0x1d8] sm:$0xff]
    %v4415 = vld [vmem:[#allocation6] sm:$0xf]
    %v4416 = vld [vmem:[#allocation6 + $0x4] sm:$0xf]
    %v4417 = vld [vmem:[#allocation6 + $0x8] sm:$0xf]
    %v4418 = vld [vmem:[#allocation6 + $0xc] sm:$0xf]
    %v4419 = vld [vmem:[#allocation6 + $0x10] sm:$0xf]
    %v4420 = vld [vmem:[#allocation6 + $0x14] sm:$0xf]
    %v4421 = vld [vmem:[#allocation6 + $0x18] sm:$0xf]
    %v4422 = vld [vmem:[#allocation6 + $0x1c] sm:$0xf]
    %v4423 = vld [vmem:[#allocation6 + $0x20] sm:$0xf]
    %v4424 = vld [vmem:[#allocation6 + $0x24] sm:$0xf]
    %v4425 = vld [vmem:[#allocation6 + $0x28] sm:$0xf]
    %v4426 = vld [vmem:[#allocation6 + $0x2c] sm:$0xf]
    %v4427 = vld [vmem:[#allocation6 + $0x30] sm:$0xf]
    %v4428 = vld [vmem:[#allocation6 + $0x34] sm:$0xf]
    %v4429 = vld [vmem:[#allocation6 + $0x38] sm:$0xf]
    %v4430 = vld [vmem:[#allocation6 + $0x3c] sm:$0xf]
    %v4431 = vld [vmem:[#allocation6 + $0x40] sm:$0xf]
    %v4432 = vld [vmem:[#allocation6 + $0x44] sm:$0xf]
    %v4433 = vld [vmem:[#allocation6 + $0x48] sm:$0xf]
    %v4434 = vld [vmem:[#allocation6 + $0x4c] sm:$0xf]
    %v4435 = vld [vmem:[#allocation6 + $0x50] sm:$0xf]
    %v4436 = vld [vmem:[#allocation6 + $0x54] sm:$0xf]
    %v4437 = vld [vmem:[#allocation6 + $0x58] sm:$0xf]
    %v4438 = vld [vmem:[#allocation6 + $0x5c] sm:$0xf]
    %v4439 = vld [vmem:[#allocation6 + $0x60] sm:$0xf]
    %v4440 = vld [vmem:[#allocation6 + $0x64] sm:$0xf]
    %v4441 = vld [vmem:[#allocation6 + $0x68] sm:$0xf]
    %v4442 = vld [vmem:[#allocation6 + $0x6c] sm:$0xf]
    %v4443 = vld [vmem:[#allocation6 + $0x70] sm:$0xf]
    %v4444 = vld [vmem:[#allocation6 + $0x74] sm:$0xf]
    %v4445 = vld [vmem:[#allocation2 + $0x1e0] sm:$0xff]
    %v4446 = vld [vmem:[#allocation2 + $0x1e8] sm:$0xff]
    %v4447 = vld [vmem:[#allocation2 + $0x1f0] sm:$0xff]
    %v4448 = vld [vmem:[#allocation2 + $0x1f8] sm:$0xff]
    %v4449 = vld [vmem:[%s1351] sm:$0xf]
    %v4450 = vld [vmem:[%s1351 + $0x4] sm:$0xf]
    %v4451 = vld [vmem:[%s1351 + $0x8] sm:$0xf]
    %v4452 = vld [vmem:[%s1351 + $0xc] sm:$0xf]
    %v4453 = vld [vmem:[%s1351 + $0x10] sm:$0xf]
    %v4454 = vld [vmem:[%s1351 + $0x14] sm:$0xf]
    %v4455 = vld [vmem:[%s1351 + $0x18] sm:$0xf]
    %v4456 = vld [vmem:[%s1351 + $0x1c] sm:$0xf]
    %v4457 = vld [vmem:[%s1351 + $0x20] sm:$0xf]
    %v4458 = vld [vmem:[%s1351 + $0x24] sm:$0xf]
    %v4459 = vld [vmem:[%s1351 + $0x28] sm:$0xf]
    %v4460 = vld [vmem:[%s1351 + $0x2c] sm:$0xf]
    %v4461 = vld [vmem:[%s1351 + $0x30] sm:$0xf]
    %v4462 = vld [vmem:[%s1351 + $0x34] sm:$0xf]
    %v4463 = vld [vmem:[%s1351 + $0x38] sm:$0xf]
    %v4464 = vld [vmem:[%s1351 + $0x3c] sm:$0xf]
    %v4465 = vld [vmem:[%s1351 + $0x40] sm:$0xf]
    %v4466 = vld [vmem:[%s1351 + $0x44] sm:$0xf]
    %v4467 = vld [vmem:[%s1351 + $0x48] sm:$0xf]
    %v4468 = vld [vmem:[%s1351 + $0x4c] sm:$0xf]
    %v4469 = vld [vmem:[%s1351 + $0x50] sm:$0xf]
    %v4470 = vld [vmem:[%s1351 + $0x54] sm:$0xf]
    %v4471 = vld [vmem:[%s1351 + $0x58] sm:$0xf]
    %v4472 = vld [vmem:[%s1351 + $0x5c] sm:$0xf]
    %v4473 = vld [vmem:[%s1351 + $0x60] sm:$0xf]
    %v4474 = vld [vmem:[%s1351 + $0x64] sm:$0xf]
    %v4475 = vld [vmem:[%s1351 + $0x68] sm:$0xf]
    %v4476 = vld [vmem:[%s1351 + $0x6c] sm:$0xf]
    %v4477 = vld [vmem:[%s1351 + $0x70] sm:$0xf]
    %v4478 = vld [vmem:[%s1351 + $0x74] sm:$0xf]
    %v4509 = vunpack.c.l.b16 %v4449
    %v4510 = vunpack.c.l.b16 %v4450
    %v4511 = vunpack.c.l.b16 %v4451
    %v4512 = vunpack.c.l.b16 %v4452
    %v4513 = vunpack.c.l.b16 %v4453
    %v4514 = vunpack.c.l.b16 %v4454
    %v4515 = vunpack.c.l.b16 %v4455
    %v4516 = vunpack.c.l.b16 %v4456
    %v4517 = vunpack.c.l.b16 %v4457
    %v4518 = vunpack.c.l.b16 %v4458
    %v4519 = vunpack.c.l.b16 %v4459
    %v4520 = vunpack.c.l.b16 %v4460
    %v4521 = vunpack.c.l.b16 %v4461
    %v4522 = vunpack.c.l.b16 %v4462
    %v4523 = vunpack.c.l.b16 %v4463
    %v4524 = vunpack.c.l.b16 %v4464
    %v4525 = vunpack.c.l.b16 %v4465
    %v4526 = vunpack.c.l.b16 %v4466
    %v4527 = vunpack.c.l.b16 %v4467
    %v4528 = vunpack.c.l.b16 %v4468
    %v4529 = vunpack.c.l.b16 %v4469
    %v4530 = vunpack.c.l.b16 %v4470
    %v4531 = vunpack.c.l.b16 %v4471
    %v4532 = vunpack.c.l.b16 %v4472
    %v4533 = vunpack.c.l.b16 %v4473
    %v4534 = vunpack.c.l.b16 %v4474
    %v4535 = vunpack.c.l.b16 %v4475
    %v4536 = vunpack.c.l.b16 %v4476
    %v4537 = vunpack.c.l.b16 %v4477
    %v4538 = vunpack.c.l.b16 %v4478
    %v4539 = vpack.c.b16 %v4510, %v4509
    %v4540 = vpack.c.b16 %v4512, %v4511
    %v4541 = vpack.c.b16 %v4514, %v4513
    %v4542 = vpack.c.b16 %v4516, %v4515
    %v4543 = vpack.c.b16 %v4518, %v4517
    %v4544 = vpack.c.b16 %v4520, %v4519
    %v4545 = vpack.c.b16 %v4522, %v4521
    %v4546 = vpack.c.b16 %v4524, %v4523
    %v4547 = vpack.c.b16 %v4526, %v4525
    %v4548 = vpack.c.b16 %v4528, %v4527
    %v4549 = vpack.c.b16 %v4530, %v4529
    %v4550 = vpack.c.b16 %v4532, %v4531
    %v4551 = vpack.c.b16 %v4534, %v4533
    %v4552 = vpack.c.b16 %v4536, %v4535
    %v4553 = vpack.c.b16 %v4538, %v4537
    %v4570 = vsel %vm860, %v4400, 0
    %v4573 = vsel %vm860, %v4402, 0
    %v4576 = vsel %vm860, %v4404, 0
    %v4579 = vsel %vm860, %v4406, 0
    %v4582 = vsel %vm860, %v4408, 0
    %v4585 = vsel %vm860, %v4410, 0
    %v4588 = vsel %vm860, %v4412, 0
    %v4591 = vsel %vm860, %v4414, 0
    %v4594 = vsel %vm860, %v4446, 0
    %v4597 = vsel %vm860, %v4448, 0
    %4599 = vmatprep.subr.bf16.mxu0 0
    %4600 = vmatpush1.bf16.msra.mxu0 %v4539
    %4601 = vmatprep.subr.bf16.mxu0 0
    %4602 = vmatpush1.bf16.msra.mxu0 %v4540
    %4603 = vmatprep.subr.bf16.mxu0 0
    %4604 = vmatpush1.bf16.msra.mxu0 %v4541
    %4605 = vmatprep.subr.bf16.mxu0 0
    %4606 = vmatpush1.bf16.msra.mxu0 %v4542
    %4607 = vmatprep.subr.bf16.mxu0 0
    %4608 = vmatpush1.bf16.msra.mxu0 %v4543
    %4609 = vmatprep.subr.bf16.mxu0 0
    %4610 = vmatpush1.bf16.msra.mxu0 %v4544
    %4611 = vmatprep.subr.bf16.mxu0 0
    %4612 = vmatpush1.bf16.msra.mxu0 %v4545
    %4613 = vmatprep.subr.bf16.mxu0 0
    %4614 = vmatpush1.bf16.msra.mxu0 %v4546
    %4615 = vmatprep.subr.bf16.mxu0 0
    %4616 = vmatpush1.bf16.msra.mxu0 %v4547
    %4617 = vmatprep.subr.bf16.mxu0 0
    %4618 = vmatpush1.bf16.msra.mxu0 %v4548
    %4619 = vmatprep.subr.bf16.mxu0 0
    %4620 = vmatpush1.bf16.msra.mxu0 %v4549
    %4621 = vmatprep.subr.bf16.mxu0 0
    %4622 = vmatpush1.bf16.msra.mxu0 %v4550
    %4623 = vmatprep.subr.bf16.mxu0 0
    %4624 = vmatpush1.bf16.msra.mxu0 %v4551
    %4625 = vmatprep.subr.bf16.mxu0 0
    %4626 = vmatpush1.bf16.msra.mxu0 %v4552
    %4627 = vmatprep.subr.bf16.mxu0 0
    %4628 = vmatpush1.bf16.msra.mxu0 %v4553
    %4629 = vmatprep.subr.bf16.mxu0 0
    %4630 = vmatpush1.bf16.msra.mxu0 0
    %4631 = vmatprep.mubr.bf16.mxu0 %v4570
    %4632 = vmatmul.mubr.bf16.gmra.mrb[0].mxu0 %v4399
    %v4633 = vpop.f32.mrb[0].mxu0
    %v4634 = vadd.f32 0.0, %v4633
    %v4635 = vpop.f32.mrb[0].mxu0
    %v4636 = vpop.f32.mrb[0].mxu0
    %v4637 = vadd.f32 0.0, %v4636
    %v4638 = vpop.f32.mrb[0].mxu0
    %4639 = vmatprep.mubr.bf16.mxu0 %v4573
    %4640 = vmatmul.mubr.bf16.gmra.mrb[0].mxu0 %v4401
    %v4641 = vpop.f32.mrb[0].mxu0
    %v4642 = vadd.f32 0.0, %v4641
    %v4643 = vpop.f32.mrb[0].mxu0
    %v4644 = vpop.f32.mrb[0].mxu0
    %v4645 = vadd.f32 0.0, %v4644
    %v4646 = vpop.f32.mrb[0].mxu0
    %4647 = vmatprep.mubr.bf16.mxu0 %v4576
    %4648 = vmatmul.mubr.bf16.gmra.mrb[0].mxu0 %v4403
    %v4649 = vpop.f32.mrb[0].mxu0
    %v4650 = vadd.f32 0.0, %v4649
    %v4651 = vpop.f32.mrb[0].mxu0
    %v4652 = vpop.f32.mrb[0].mxu0
    %v4653 = vadd.f32 0.0, %v4652
    %v4654 = vpop.f32.mrb[0].mxu0
    %4655 = vmatprep.mubr.bf16.mxu0 %v4579
    %4656 = vmatmul.mubr.bf16.gmra.mrb[0].mxu0 %v4405
    %v4657 = vpop.f32.mrb[0].mxu0
    %v4658 = vadd.f32 0.0, %v4657
    %v4659 = vpop.f32.mrb[0].mxu0
    %v4660 = vpop.f32.mrb[0].mxu0
    %v4661 = vadd.f32 0.0, %v4660
    %v4662 = vpop.f32.mrb[0].mxu0
    %4663 = vmatprep.mubr.bf16.mxu0 %v4582
    %4664 = vmatmul.mubr.bf16.gmra.mrb[0].mxu0 %v4407
    %v4665 = vpop.f32.mrb[0].mxu0
    %v4666 = vadd.f32 0.0, %v4665
    %v4667 = vpop.f32.mrb[0].mxu0
    %v4668 = vpop.f32.mrb[0].mxu0
    %v4669 = vadd.f32 0.0, %v4668
    %v4670 = vpop.f32.mrb[0].mxu0
    %4671 = vmatprep.mubr.bf16.mxu0 %v4585
    %4672 = vmatmul.mubr.bf16.gmra.mrb[0].mxu0 %v4409
    %v4673 = vpop.f32.mrb[0].mxu0
    %v4674 = vadd.f32 0.0, %v4673
    %v4675 = vpop.f32.mrb[0].mxu0
    %v4676 = vpop.f32.mrb[0].mxu0
    %v4677 = vadd.f32 0.0, %v4676
    %v4678 = vpop.f32.mrb[0].mxu0
    %4679 = vmatprep.mubr.bf16.mxu0 %v4588
    %4680 = vmatmul.mubr.bf16.gmra.mrb[0].mxu0 %v4411
    %v4681 = vpop.f32.mrb[0].mxu0
    %v4682 = vadd.f32 0.0, %v4681
    %v4683 = vpop.f32.mrb[0].mxu0
    %v4684 = vpop.f32.mrb[0].mxu0
    %v4685 = vadd.f32 0.0, %v4684
    %v4686 = vpop.f32.mrb[0].mxu0
    %4687 = vmatprep.mubr.bf16.mxu0 %v4591
    %4688 = vmatmul.mubr.bf16.gmra.mrb[0].mxu0 %v4413
    %v4689 = vpop.f32.mrb[0].mxu0
    %v4690 = vadd.f32 0.0, %v4689
    %v4691 = vpop.f32.mrb[0].mxu0
    %v4692 = vpop.f32.mrb[0].mxu0
    %v4693 = vadd.f32 0.0, %v4692
    %v4694 = vpop.f32.mrb[0].mxu0
    %4695 = vmatprep.mubr.bf16.mxu0 %v4594
    %4696 = vmatmul.mubr.bf16.gmra.mrb[0].mxu0 %v4445
    %v4697 = vpop.f32.mrb[0].mxu0
    %v4698 = vadd.f32 0.0, %v4697
    %v4699 = vpop.f32.mrb[0].mxu0
    %v4700 = vpop.f32.mrb[0].mxu0
    %v4701 = vadd.f32 0.0, %v4700
    %v4702 = vpop.f32.mrb[0].mxu0
    %4703 = vmatprep.mubr.bf16.mxu0 %v4597
    %4704 = vmatmul.mubr.bf16.gmra.mrb[0].mxu0 %v4447
    %v4705 = vpop.f32.mrb[0].mxu0
    %v4706 = vadd.f32 0.0, %v4705
    %v4707 = vpop.f32.mrb[0].mxu0
    %v4708 = vpop.f32.mrb[0].mxu0
    %v4709 = vadd.f32 0.0, %v4708
    %v4710 = vpop.f32.mrb[0].mxu0
    %4711 = vdwg.mxu0
    %v4742 = vunpack.c.l.b16 %v4415
    %v4743 = vunpack.c.l.b16 %v4416
    %v4744 = vunpack.c.l.b16 %v4417
    %v4745 = vunpack.c.l.b16 %v4418
    %v4746 = vunpack.c.l.b16 %v4419
    %v4747 = vunpack.c.l.b16 %v4420
    %v4748 = vunpack.c.l.b16 %v4421
    %v4749 = vunpack.c.l.b16 %v4422
    %v4750 = vunpack.c.l.b16 %v4423
    %v4751 = vunpack.c.l.b16 %v4424
    %v4752 = vunpack.c.l.b16 %v4425
    %v4753 = vunpack.c.l.b16 %v4426
    %v4754 = vunpack.c.l.b16 %v4427
    %v4755 = vunpack.c.l.b16 %v4428
    %v4756 = vunpack.c.l.b16 %v4429
    %v4757 = vunpack.c.l.b16 %v4430
    %v4758 = vunpack.c.l.b16 %v4431
    %v4759 = vunpack.c.l.b16 %v4432
    %v4760 = vunpack.c.l.b16 %v4433
    %v4761 = vunpack.c.l.b16 %v4434
    %v4762 = vunpack.c.l.b16 %v4435
    %v4763 = vunpack.c.l.b16 %v4436
    %v4764 = vunpack.c.l.b16 %v4437
    %v4765 = vunpack.c.l.b16 %v4438
    %v4766 = vunpack.c.l.b16 %v4439
    %v4767 = vunpack.c.l.b16 %v4440
    %v4768 = vunpack.c.l.b16 %v4441
    %v4769 = vunpack.c.l.b16 %v4442
    %v4770 = vunpack.c.l.b16 %v4443
    %v4771 = vunpack.c.l.b16 %v4444
    %v4772 = vpack.c.b16 %v4743, %v4742
    %v4773 = vpack.c.b16 %v4745, %v4744
    %v4774 = vpack.c.b16 %v4747, %v4746
    %v4775 = vpack.c.b16 %v4749, %v4748
    %v4776 = vpack.c.b16 %v4751, %v4750
    %v4777 = vpack.c.b16 %v4753, %v4752
    %v4778 = vpack.c.b16 %v4755, %v4754
    %v4779 = vpack.c.b16 %v4757, %v4756
    %v4780 = vpack.c.b16 %v4759, %v4758
    %v4781 = vpack.c.b16 %v4761, %v4760
    %v4782 = vpack.c.b16 %v4763, %v4762
    %v4783 = vpack.c.b16 %v4765, %v4764
    %v4784 = vpack.c.b16 %v4767, %v4766
    %v4785 = vpack.c.b16 %v4769, %v4768
    %v4786 = vpack.c.b16 %v4771, %v4770
    %v4803 = vsel %vm860, %v4396, 0
    %v4806 = vsel %vm860, %v4398, 0
    %4808 = vmatprep.subr.bf16.mxu0 0
    %4809 = vmatpush1.bf16.msra.mxu0 %v4772
    %4810 = vmatprep.subr.bf16.mxu0 0
    %4811 = vmatpush1.bf16.msra.mxu0 %v4773
    %4812 = vmatprep.subr.bf16.mxu0 0
    %4813 = vmatpush1.bf16.msra.mxu0 %v4774
    %4814 = vmatprep.subr.bf16.mxu0 0
    %4815 = vmatpush1.bf16.msra.mxu0 %v4775
    %4816 = vmatprep.subr.bf16.mxu0 0
    %4817 = vmatpush1.bf16.msra.mxu0 %v4776
    %4818 = vmatprep.subr.bf16.mxu0 0
    %4819 = vmatpush1.bf16.msra.mxu0 %v4777
    %4820 = vmatprep.subr.bf16.mxu0 0
    %4821 = vmatpush1.bf16.msra.mxu0 %v4778
    %4822 = vmatprep.subr.bf16.mxu0 0
    %4823 = vmatpush1.bf16.msra.mxu0 %v4779
    %4824 = vmatprep.subr.bf16.mxu0 0
    %4825 = vmatpush1.bf16.msra.mxu0 %v4780
    %4826 = vmatprep.subr.bf16.mxu0 0
    %4827 = vmatpush1.bf16.msra.mxu0 %v4781
    %4828 = vmatprep.subr.bf16.mxu0 0
    %4829 = vmatpush1.bf16.msra.mxu0 %v4782
    %4830 = vmatprep.subr.bf16.mxu0 0
    %4831 = vmatpush1.bf16.msra.mxu0 %v4783
    %4832 = vmatprep.subr.bf16.mxu0 0
    %4833 = vmatpush1.bf16.msra.mxu0 %v4784
    %4834 = vmatprep.subr.bf16.mxu0 0
    %4835 = vmatpush1.bf16.msra.mxu0 %v4785
    %4836 = vmatprep.subr.bf16.mxu0 0
    %4837 = vmatpush1.bf16.msra.mxu0 %v4786
    %4838 = vmatprep.subr.bf16.mxu0 0
    %4839 = vmatpush1.bf16.msra.mxu0 0
    %4840 = vmatprep.mubr.bf16.mxu0 %v4803
    %4841 = vmatmul.mubr.bf16.gmra.mrb[0].mxu0 %v4395
    %v4842 = vpop.f32.mrb[0].mxu0
    %v4843 = vadd.f32 %v4634, %v4842
    %v4844 = vpop.f32.mrb[0].mxu0
    %v4845 = vpop.f32.mrb[0].mxu0
    %v4846 = vadd.f32 %v4637, %v4845
    %v4847 = vpop.f32.mrb[0].mxu0
    %4848 = vmatprep.mubr.bf16.mxu0 %v4806
    %4849 = vmatmul.mubr.bf16.gmra.mrb[0].mxu0 %v4397
    %v4850 = vpop.f32.mrb[0].mxu0
    %v4851 = vadd.f32 %v4642, %v4850
    %v4852 = vpop.f32.mrb[0].mxu0
    %v4853 = vpop.f32.mrb[0].mxu0
    %v4854 = vadd.f32 %v4645, %v4853
    %v4855 = vpop.f32.mrb[0].mxu0
    %4856 = vmatprep.mubr.bf16.mxu0 %v4570
    %4857 = vmatmul.mubr.bf16.gmra.mrb[0].mxu0 %v4399
    %v4858 = vpop.f32.mrb[0].mxu0
    %v4859 = vadd.f32 %v4650, %v4858
    %v4860 = vpop.f32.mrb[0].mxu0
    %v4861 = vpop.f32.mrb[0].mxu0
    %v4862 = vadd.f32 %v4653, %v4861
    %v4863 = vpop.f32.mrb[0].mxu0
    %4864 = vmatprep.mubr.bf16.mxu0 %v4573
    %4865 = vmatmul.mubr.bf16.gmra.mrb[0].mxu0 %v4401
    %v4866 = vpop.f32.mrb[0].mxu0
    %v4867 = vadd.f32 %v4658, %v4866
    %v4868 = vpop.f32.mrb[0].mxu0
    %v4869 = vpop.f32.mrb[0].mxu0
    %v4870 = vadd.f32 %v4661, %v4869
    %v4871 = vpop.f32.mrb[0].mxu0
    %4872 = vmatprep.mubr.bf16.mxu0 %v4576
    %4873 = vmatmul.mubr.bf16.gmra.mrb[0].mxu0 %v4403
    %v4874 = vpop.f32.mrb[0].mxu0
    %v4875 = vadd.f32 %v4666, %v4874
    %v4876 = vpop.f32.mrb[0].mxu0
    %v4877 = vpop.f32.mrb[0].mxu0
    %v4878 = vadd.f32 %v4669, %v4877
    %v4879 = vpop.f32.mrb[0].mxu0
    %4880 = vmatprep.mubr.bf16.mxu0 %v4579
    %4881 = vmatmul.mubr.bf16.gmra.mrb[0].mxu0 %v4405
    %v4882 = vpop.f32.mrb[0].mxu0
    %v4883 = vadd.f32 %v4674, %v4882
    %v4884 = vpop.f32.mrb[0].mxu0
    %v4885 = vpop.f32.mrb[0].mxu0
    %v4886 = vadd.f32 %v4677, %v4885
    %v4887 = vpop.f32.mrb[0].mxu0
    %4888 = vmatprep.mubr.bf16.mxu0 %v4582
    %4889 = vmatmul.mubr.bf16.gmra.mrb[0].mxu0 %v4407
    %v4890 = vpop.f32.mrb[0].mxu0
    %v4891 = vadd.f32 %v4682, %v4890
    %v4892 = vpop.f32.mrb[0].mxu0
    %v4893 = vpop.f32.mrb[0].mxu0
    %v4894 = vadd.f32 %v4685, %v4893
    %v4895 = vpop.f32.mrb[0].mxu0
    %4896 = vmatprep.mubr.bf16.mxu0 %v4585
    %4897 = vmatmul.mubr.bf16.gmra.mrb[0].mxu0 %v4409
    %v4898 = vpop.f32.mrb[0].mxu0
    %v4899 = vadd.f32 %v4690, %v4898
    %v4900 = vpop.f32.mrb[0].mxu0
    %v4901 = vpop.f32.mrb[0].mxu0
    %v4902 = vadd.f32 %v4693, %v4901
    %v4903 = vpop.f32.mrb[0].mxu0
    %4904 = vmatprep.mubr.bf16.mxu0 %v4588
    %4905 = vmatmul.mubr.bf16.gmra.mrb[0].mxu0 %v4411
    %v4906 = vpop.f32.mrb[0].mxu0
    %v4907 = vadd.f32 %v4698, %v4906
    %v4908 = vpop.f32.mrb[0].mxu0
    %v4909 = vpop.f32.mrb[0].mxu0
    %v4910 = vadd.f32 %v4701, %v4909
    %v4911 = vpop.f32.mrb[0].mxu0
    %4912 = vmatprep.mubr.bf16.mxu0 %v4591
    %4913 = vmatmul.mubr.bf16.gmra.mrb[0].mxu0 %v4413
    %v4914 = vpop.f32.mrb[0].mxu0
    %v4915 = vadd.f32 %v4706, %v4914
    %v4916 = vpop.f32.mrb[0].mxu0
    %v4917 = vpop.f32.mrb[0].mxu0
    %v4918 = vadd.f32 %v4709, %v4917
    %v4919 = vpop.f32.mrb[0].mxu0
    %4920 = vdwg.mxu0
    %v4921 = vld [vmem:[#allocation2 + $0x180] sm:$0xff]
    %v4922 = vld [vmem:[#allocation2 + $0x188] sm:$0xff]
    %v4923 = vld [vmem:[#allocation2 + $0x190] sm:$0xff]
    %v4924 = vld [vmem:[#allocation2 + $0x198] sm:$0xff]
    %v4925 = vld [vmem:[#allocation2 + $0x1a0] sm:$0xff]
    %v4926 = vld [vmem:[#allocation2 + $0x1a8] sm:$0xff]
    %v4927 = vld [vmem:[#allocation2 + $0x1b0] sm:$0xff]
    %v4928 = vld [vmem:[#allocation2 + $0x1b8] sm:$0xff]
    %v4929 = vld [vmem:[#allocation2 + $0x1c0] sm:$0xff]
    %v4930 = vld [vmem:[#allocation2 + $0x1c8] sm:$0xff]
    %v4931 = vld [vmem:[#allocation2 + $0x1d0] sm:$0xff]
    %v4932 = vld [vmem:[#allocation2 + $0x1d8] sm:$0xff]
    %v4933 = vld [vmem:[#allocation2 + $0x1e0] sm:$0xff]
    %v4934 = vld [vmem:[#allocation2 + $0x1e8] sm:$0xff]
    %v4935 = vld [vmem:[#allocation2 + $0x1f0] sm:$0xff]
    %v4936 = vld [vmem:[#allocation2 + $0x1f8] sm:$0xff]
    %v4937 = vld [vmem:[#allocation2 + $0x200] sm:$0xff]
    %v4938 = vld [vmem:[#allocation2 + $0x208] sm:$0xff]
    %v4939 = vld [vmem:[#allocation2 + $0x210] sm:$0xff]
    %v4940 = vld [vmem:[#allocation2 + $0x218] sm:$0xff]
    %v4941 = vld [vmem:[%s1844] sm:$0xf]
    %v4942 = vld [vmem:[%s1844 + $0x4] sm:$0xf]
    %v4943 = vld [vmem:[%s1844 + $0x8] sm:$0xf]
    %v4944 = vld [vmem:[%s1844 + $0xc] sm:$0xf]
    %v4945 = vld [vmem:[%s1844 + $0x10] sm:$0xf]
    %v4946 = vld [vmem:[%s1844 + $0x14] sm:$0xf]
    %v4947 = vld [vmem:[%s1844 + $0x18] sm:$0xf]
    %v4948 = vld [vmem:[%s1844 + $0x1c] sm:$0xf]
    %v4949 = vld [vmem:[%s1844 + $0x20] sm:$0xf]
    %v4950 = vld [vmem:[%s1844 + $0x24] sm:$0xf]
    %v4951 = vld [vmem:[%s1844 + $0x28] sm:$0xf]
    %v4952 = vld [vmem:[%s1844 + $0x2c] sm:$0xf]
    %v4953 = vld [vmem:[%s1844 + $0x30] sm:$0xf]
    %v4954 = vld [vmem:[%s1844 + $0x34] sm:$0xf]
    %v4955 = vld [vmem:[%s1844 + $0x38] sm:$0xf]
    %v4956 = vld [vmem:[%s1844 + $0x3c] sm:$0xf]
    %v4957 = vld [vmem:[%s1844 + $0x40] sm:$0xf]
    %v4958 = vld [vmem:[%s1844 + $0x44] sm:$0xf]
    %v4959 = vld [vmem:[%s1844 + $0x48] sm:$0xf]
    %v4960 = vld [vmem:[%s1844 + $0x4c] sm:$0xf]
    %v4961 = vld [vmem:[%s1844 + $0x50] sm:$0xf]
    %v4962 = vld [vmem:[%s1844 + $0x54] sm:$0xf]
    %v4963 = vld [vmem:[%s1844 + $0x58] sm:$0xf]
    %v4964 = vld [vmem:[%s1844 + $0x5c] sm:$0xf]
    %v4965 = vld [vmem:[%s1844 + $0x60] sm:$0xf]
    %v4966 = vld [vmem:[%s1844 + $0x64] sm:$0xf]
    %v4967 = vld [vmem:[%s1844 + $0x68] sm:$0xf]
    %v4968 = vld [vmem:[%s1844 + $0x6c] sm:$0xf]
    %v4969 = vld [vmem:[%s1844 + $0x70] sm:$0xf]
    %v4970 = vld [vmem:[%s1844 + $0x74] sm:$0xf]
    %v5001 = vunpack.c.l.b16 %v4941
    %v5002 = vunpack.c.l.b16 %v4942
    %v5003 = vunpack.c.l.b16 %v4943
    %v5004 = vunpack.c.l.b16 %v4944
    %v5005 = vunpack.c.l.b16 %v4945
    %v5006 = vunpack.c.l.b16 %v4946
    %v5007 = vunpack.c.l.b16 %v4947
    %v5008 = vunpack.c.l.b16 %v4948
    %v5009 = vunpack.c.l.b16 %v4949
    %v5010 = vunpack.c.l.b16 %v4950
    %v5011 = vunpack.c.l.b16 %v4951
    %v5012 = vunpack.c.l.b16 %v4952
    %v5013 = vunpack.c.l.b16 %v4953
    %v5014 = vunpack.c.l.b16 %v4954
    %v5015 = vunpack.c.l.b16 %v4955
    %v5016 = vunpack.c.l.b16 %v4956
    %v5017 = vunpack.c.l.b16 %v4957
    %v5018 = vunpack.c.l.b16 %v4958
    %v5019 = vunpack.c.l.b16 %v4959
    %v5020 = vunpack.c.l.b16 %v4960
    %v5021 = vunpack.c.l.b16 %v4961
    %v5022 = vunpack.c.l.b16 %v4962
    %v5023 = vunpack.c.l.b16 %v4963
    %v5024 = vunpack.c.l.b16 %v4964
    %v5025 = vunpack.c.l.b16 %v4965
    %v5026 = vunpack.c.l.b16 %v4966
    %v5027 = vunpack.c.l.b16 %v4967
    %v5028 = vunpack.c.l.b16 %v4968
    %v5029 = vunpack.c.l.b16 %v4969
    %v5030 = vunpack.c.l.b16 %v4970
    %v5031 = vpack.c.b16 %v5002, %v5001
    %v5032 = vpack.c.b16 %v5004, %v5003
    %v5033 = vpack.c.b16 %v5006, %v5005
    %v5034 = vpack.c.b16 %v5008, %v5007
    %v5035 = vpack.c.b16 %v5010, %v5009
    %v5036 = vpack.c.b16 %v5012, %v5011
    %v5037 = vpack.c.b16 %v5014, %v5013
    %v5038 = vpack.c.b16 %v5016, %v5015
    %v5039 = vpack.c.b16 %v5018, %v5017
    %v5040 = vpack.c.b16 %v5020, %v5019
    %v5041 = vpack.c.b16 %v5022, %v5021
    %v5042 = vpack.c.b16 %v5024, %v5023
    %v5043 = vpack.c.b16 %v5026, %v5025
    %v5044 = vpack.c.b16 %v5028, %v5027
    %v5045 = vpack.c.b16 %v5030, %v5029
    %v5062 = vsel %vm860, %v4922, 0
    %v5065 = vsel %vm860, %v4924, 0
    %v5068 = vsel %vm860, %v4926, 0
    %v5071 = vsel %vm860, %v4928, 0
    %v5074 = vsel %vm860, %v4930, 0
    %v5077 = vsel %vm860, %v4932, 0
    %v5080 = vsel %vm860, %v4934, 0
    %v5083 = vsel %vm860, %v4936, 0
    %v5086 = vsel %vm860, %v4938, 0
    %v5089 = vsel %vm860, %v4940, 0
    %5091 = vmatprep.subr.bf16.mxu0 0
    %5092 = vmatpush1.bf16.msra.mxu0 %v5031
    %5093 = vmatprep.subr.bf16.mxu0 0
    %5094 = vmatpush1.bf16.msra.mxu0 %v5032
    %5095 = vmatprep.subr.bf16.mxu0 0
    %5096 = vmatpush1.bf16.msra.mxu0 %v5033
    %5097 = vmatprep.subr.bf16.mxu0 0
    %5098 = vmatpush1.bf16.msra.mxu0 %v5034
    %5099 = vmatprep.subr.bf16.mxu0 0
    %5100 = vmatpush1.bf16.msra.mxu0 %v5035
    %5101 = vmatprep.subr.bf16.mxu0 0
    %5102 = vmatpush1.bf16.msra.mxu0 %v5036
    %5103 = vmatprep.subr.bf16.mxu0 0
    %5104 = vmatpush1.bf16.msra.mxu0 %v5037
    %5105 = vmatprep.subr.bf16.mxu0 0
    %5106 = vmatpush1.bf16.msra.mxu0 %v5038
    %5107 = vmatprep.subr.bf16.mxu0 0
    %5108 = vmatpush1.bf16.msra.mxu0 %v5039
    %5109 = vmatprep.subr.bf16.mxu0 0
    %5110 = vmatpush1.bf16.msra.mxu0 %v5040
    %5111 = vmatprep.subr.bf16.mxu0 0
    %5112 = vmatpush1.bf16.msra.mxu0 %v5041
    %5113 = vmatprep.subr.bf16.mxu0 0
    %5114 = vmatpush1.bf16.msra.mxu0 %v5042
    %5115 = vmatprep.subr.bf16.mxu0 0
    %5116 = vmatpush1.bf16.msra.mxu0 %v5043
    %5117 = vmatprep.subr.bf16.mxu0 0
    %5118 = vmatpush1.bf16.msra.mxu0 %v5044
    %5119 = vmatprep.subr.bf16.mxu0 0
    %5120 = vmatpush1.bf16.msra.mxu0 %v5045
    %5121 = vmatprep.subr.bf16.mxu0 0
    %5122 = vmatpush1.bf16.msra.mxu0 0
    %5123 = vmatprep.mubr.bf16.mxu0 %v5062
    %5124 = vmatmul.mubr.bf16.gmra.mrb[0].mxu0 %v4921
    %v5125 = vpop.f32.mrb[0].mxu0
    %v5126 = vadd.f32 0.0, %v5125
    %v5127 = vpop.f32.mrb[0].mxu0
    %v5128 = vpop.f32.mrb[0].mxu0
    %v5129 = vadd.f32 0.0, %v5128
    %v5130 = vpop.f32.mrb[0].mxu0
    %5131 = vmatprep.mubr.bf16.mxu0 %v5065
    %5132 = vmatmul.mubr.bf16.gmra.mrb[0].mxu0 %v4923
    %v5133 = vpop.f32.mrb[0].mxu0
    %v5134 = vadd.f32 0.0, %v5133
    %v5135 = vpop.f32.mrb[0].mxu0
    %v5136 = vpop.f32.mrb[0].mxu0
    %v5137 = vadd.f32 0.0, %v5136
    %v5138 = vpop.f32.mrb[0].mxu0
    %5139 = vmatprep.mubr.bf16.mxu0 %v5068
    %5140 = vmatmul.mubr.bf16.gmra.mrb[0].mxu0 %v4925
    %v5141 = vpop.f32.mrb[0].mxu0
    %v5142 = vadd.f32 0.0, %v5141
    %v5143 = vpop.f32.mrb[0].mxu0
    %v5144 = vpop.f32.mrb[0].mxu0
    %v5145 = vadd.f32 0.0, %v5144
    %v5146 = vpop.f32.mrb[0].mxu0
    %5147 = vmatprep.mubr.bf16.mxu0 %v5071
    %5148 = vmatmul.mubr.bf16.gmra.mrb[0].mxu0 %v4927
    %v5149 = vpop.f32.mrb[0].mxu0
    %v5150 = vadd.f32 0.0, %v5149
    %v5151 = vpop.f32.mrb[0].mxu0
    %v5152 = vpop.f32.mrb[0].mxu0
    %v5153 = vadd.f32 0.0, %v5152
    %v5154 = vpop.f32.mrb[0].mxu0
    %5155 = vmatprep.mubr.bf16.mxu0 %v5074
    %5156 = vmatmul.mubr.bf16.gmra.mrb[0].mxu0 %v4929
    %v5157 = vpop.f32.mrb[0].mxu0
    %v5158 = vadd.f32 0.0, %v5157
    %v5159 = vpop.f32.mrb[0].mxu0
    %v5160 = vpop.f32.mrb[0].mxu0
    %v5161 = vadd.f32 0.0, %v5160
    %v5162 = vpop.f32.mrb[0].mxu0
    %5163 = vmatprep.mubr.bf16.mxu0 %v5077
    %5164 = vmatmul.mubr.bf16.gmra.mrb[0].mxu0 %v4931
    %v5165 = vpop.f32.mrb[0].mxu0
    %v5166 = vadd.f32 0.0, %v5165
    %v5167 = vpop.f32.mrb[0].mxu0
    %v5168 = vpop.f32.mrb[0].mxu0
    %v5169 = vadd.f32 0.0, %v5168
    %v5170 = vpop.f32.mrb[0].mxu0
    %5171 = vmatprep.mubr.bf16.mxu0 %v5080
    %5172 = vmatmul.mubr.bf16.gmra.mrb[0].mxu0 %v4933
    %v5173 = vpop.f32.mrb[0].mxu0
    %v5174 = vadd.f32 0.0, %v5173
    %v5175 = vpop.f32.mrb[0].mxu0
    %v5176 = vpop.f32.mrb[0].mxu0
    %v5177 = vadd.f32 0.0, %v5176
    %v5178 = vpop.f32.mrb[0].mxu0
    %5179 = vmatprep.mubr.bf16.mxu0 %v5083
    %5180 = vmatmul.mubr.bf16.gmra.mrb[0].mxu0 %v4935
    %v5181 = vpop.f32.mrb[0].mxu0
    %v5182 = vadd.f32 0.0, %v5181
    %v5183 = vpop.f32.mrb[0].mxu0
    %v5184 = vpop.f32.mrb[0].mxu0
    %v5185 = vadd.f32 0.0, %v5184
    %v5186 = vpop.f32.mrb[0].mxu0
    %5187 = vmatprep.mubr.bf16.mxu0 %v5086
    %5188 = vmatmul.mubr.bf16.gmra.mrb[0].mxu0 %v4937
    %v5189 = vpop.f32.mrb[0].mxu0
    %v5190 = vadd.f32 0.0, %v5189
    %v5191 = vpop.f32.mrb[0].mxu0
    %v5192 = vpop.f32.mrb[0].mxu0
    %v5193 = vadd.f32 0.0, %v5192
    %v5194 = vpop.f32.mrb[0].mxu0
    %5195 = vmatprep.mubr.bf16.mxu0 %v5089
    %5196 = vmatmul.mubr.bf16.gmra.mrb[0].mxu0 %v4939
    %v5197 = vpop.f32.mrb[0].mxu0
    %v5198 = vadd.f32 0.0, %v5197
    %v5199 = vpop.f32.mrb[0].mxu0
    %v5200 = vpop.f32.mrb[0].mxu0
    %v5201 = vadd.f32 0.0, %v5200
    %v5202 = vpop.f32.mrb[0].mxu0
    %5203 = vdwg.mxu0
    %v5204 = vadd.f32 %v4843, %v5126
    %v5205 = vadd.f32 %v4846, %v5129
    %v5206 = vadd.f32 %v4851, %v5134
    %v5207 = vadd.f32 %v4854, %v5137
    %v5208 = vadd.f32 %v4859, %v5142
    %v5209 = vadd.f32 %v4862, %v5145
    %v5210 = vadd.f32 %v4867, %v5150
    %v5211 = vadd.f32 %v4870, %v5153
    %v5212 = vadd.f32 %v4875, %v5158
    %v5213 = vadd.f32 %v4878, %v5161
    %v5214 = vadd.f32 %v4883, %v5166
    %v5215 = vadd.f32 %v4886, %v5169
    %v5216 = vadd.f32 %v4891, %v5174
    %v5217 = vadd.f32 %v4894, %v5177
    %v5218 = vadd.f32 %v4899, %v5182
    %v5219 = vadd.f32 %v4902, %v5185
    %v5220 = vadd.f32 %v4907, %v5190
    %v5221 = vadd.f32 %v4910, %v5193
    %v5222 = vadd.f32 %v4915, %v5198
    %v5223 = vadd.f32 %v4918, %v5201
    %v5224 = vld [vmem:[#allocation2 + $0x1a0] sm:$0xff]
    %v5225 = vld [vmem:[#allocation2 + $0x1a8] sm:$0xff]
    %v5226 = vld [vmem:[#allocation2 + $0x1b0] sm:$0xff]
    %v5227 = vld [vmem:[#allocation2 + $0x1b8] sm:$0xff]
    %v5228 = vld [vmem:[#allocation2 + $0x1c0] sm:$0xff]
    %v5229 = vld [vmem:[#allocation2 + $0x1c8] sm:$0xff]
    %v5230 = vld [vmem:[#allocation2 + $0x1d0] sm:$0xff]
    %v5231 = vld [vmem:[#allocation2 + $0x1d8] sm:$0xff]
    %v5232 = vld [vmem:[#allocation2 + $0x1e0] sm:$0xff]
    %v5233 = vld [vmem:[#allocation2 + $0x1e8] sm:$0xff]
    %v5234 = vld [vmem:[#allocation2 + $0x1f0] sm:$0xff]
    %v5235 = vld [vmem:[#allocation2 + $0x1f8] sm:$0xff]
    %v5236 = vld [vmem:[#allocation2 + $0x200] sm:$0xff]
    %v5237 = vld [vmem:[#allocation2 + $0x208] sm:$0xff]
    %v5238 = vld [vmem:[#allocation2 + $0x210] sm:$0xff]
    %v5239 = vld [vmem:[#allocation2 + $0x218] sm:$0xff]
    %v5240 = vld [vmem:[#allocation2 + $0x220] sm:$0xff]
    %v5241 = vld [vmem:[#allocation2 + $0x228] sm:$0xff]
    %v5242 = vld [vmem:[#allocation2 + $0x230] sm:$0xff]
    %v5243 = vld [vmem:[#allocation2 + $0x238] sm:$0xff]
    %v5244 = vld [vmem:[%s2148] sm:$0xf]
    %v5245 = vld [vmem:[%s2148 + $0x4] sm:$0xf]
    %v5246 = vld [vmem:[%s2148 + $0x8] sm:$0xf]
    %v5247 = vld [vmem:[%s2148 + $0xc] sm:$0xf]
    %v5248 = vld [vmem:[%s2148 + $0x10] sm:$0xf]
    %v5249 = vld [vmem:[%s2148 + $0x14] sm:$0xf]
    %v5250 = vld [vmem:[%s2148 + $0x18] sm:$0xf]
    %v5251 = vld [vmem:[%s2148 + $0x1c] sm:$0xf]
    %v5252 = vld [vmem:[%s2148 + $0x20] sm:$0xf]
    %v5253 = vld [vmem:[%s2148 + $0x24] sm:$0xf]
    %v5254 = vld [vmem:[%s2148 + $0x28] sm:$0xf]
    %v5255 = vld [vmem:[%s2148 + $0x2c] sm:$0xf]
    %v5256 = vld [vmem:[%s2148 + $0x30] sm:$0xf]
    %v5257 = vld [vmem:[%s2148 + $0x34] sm:$0xf]
    %v5258 = vld [vmem:[%s2148 + $0x38] sm:$0xf]
    %v5259 = vld [vmem:[%s2148 + $0x3c] sm:$0xf]
    %v5260 = vld [vmem:[%s2148 + $0x40] sm:$0xf]
    %v5261 = vld [vmem:[%s2148 + $0x44] sm:$0xf]
    %v5262 = vld [vmem:[%s2148 + $0x48] sm:$0xf]
    %v5263 = vld [vmem:[%s2148 + $0x4c] sm:$0xf]
    %v5264 = vld [vmem:[%s2148 + $0x50] sm:$0xf]
    %v5265 = vld [vmem:[%s2148 + $0x54] sm:$0xf]
    %v5266 = vld [vmem:[%s2148 + $0x58] sm:$0xf]
    %v5267 = vld [vmem:[%s2148 + $0x5c] sm:$0xf]
    %v5268 = vld [vmem:[%s2148 + $0x60] sm:$0xf]
    %v5269 = vld [vmem:[%s2148 + $0x64] sm:$0xf]
    %v5270 = vld [vmem:[%s2148 + $0x68] sm:$0xf]
    %v5271 = vld [vmem:[%s2148 + $0x6c] sm:$0xf]
    %v5272 = vld [vmem:[%s2148 + $0x70] sm:$0xf]
    %v5273 = vld [vmem:[%s2148 + $0x74] sm:$0xf]
    %v5304 = vunpack.c.l.b16 %v5244
    %v5305 = vunpack.c.l.b16 %v5245
    %v5306 = vunpack.c.l.b16 %v5246
    %v5307 = vunpack.c.l.b16 %v5247
    %v5308 = vunpack.c.l.b16 %v5248
    %v5309 = vunpack.c.l.b16 %v5249
    %v5310 = vunpack.c.l.b16 %v5250
    %v5311 = vunpack.c.l.b16 %v5251
    %v5312 = vunpack.c.l.b16 %v5252
    %v5313 = vunpack.c.l.b16 %v5253
    %v5314 = vunpack.c.l.b16 %v5254
    %v5315 = vunpack.c.l.b16 %v5255
    %v5316 = vunpack.c.l.b16 %v5256
    %v5317 = vunpack.c.l.b16 %v5257
    %v5318 = vunpack.c.l.b16 %v5258
    %v5319 = vunpack.c.l.b16 %v5259
    %v5320 = vunpack.c.l.b16 %v5260
    %v5321 = vunpack.c.l.b16 %v5261
    %v5322 = vunpack.c.l.b16 %v5262
    %v5323 = vunpack.c.l.b16 %v5263
    %v5324 = vunpack.c.l.b16 %v5264
    %v5325 = vunpack.c.l.b16 %v5265
    %v5326 = vunpack.c.l.b16 %v5266
    %v5327 = vunpack.c.l.b16 %v5267
    %v5328 = vunpack.c.l.b16 %v5268
    %v5329 = vunpack.c.l.b16 %v5269
    %v5330 = vunpack.c.l.b16 %v5270
    %v5331 = vunpack.c.l.b16 %v5271
    %v5332 = vunpack.c.l.b16 %v5272
    %v5333 = vunpack.c.l.b16 %v5273
    %v5334 = vpack.c.b16 %v5305, %v5304
    %v5335 = vpack.c.b16 %v5307, %v5306
    %v5336 = vpack.c.b16 %v5309, %v5308
    %v5337 = vpack.c.b16 %v5311, %v5310
    %v5338 = vpack.c.b16 %v5313, %v5312
    %v5339 = vpack.c.b16 %v5315, %v5314
    %v5340 = vpack.c.b16 %v5317, %v5316
    %v5341 = vpack.c.b16 %v5319, %v5318
    %v5342 = vpack.c.b16 %v5321, %v5320
    %v5343 = vpack.c.b16 %v5323, %v5322
    %v5344 = vpack.c.b16 %v5325, %v5324
    %v5345 = vpack.c.b16 %v5327, %v5326
    %v5346 = vpack.c.b16 %v5329, %v5328
    %v5347 = vpack.c.b16 %v5331, %v5330
    %v5348 = vpack.c.b16 %v5333, %v5332
    %v5365 = vsel %vm860, %v5225, 0
    %v5368 = vsel %vm860, %v5227, 0
    %v5371 = vsel %vm860, %v5229, 0
    %v5374 = vsel %vm860, %v5231, 0
    %v5377 = vsel %vm860, %v5233, 0
    %v5380 = vsel %vm860, %v5235, 0
    %v5383 = vsel %vm860, %v5237, 0
    %v5386 = vsel %vm860, %v5239, 0
    %v5389 = vsel %vm860, %v5241, 0
    %v5392 = vsel %vm860, %v5243, 0
    %5394 = vmatprep.subr.bf16.mxu0 0
    %5395 = vmatpush1.bf16.msra.mxu0 %v5334
    %5396 = vmatprep.subr.bf16.mxu0 0
    %5397 = vmatpush1.bf16.msra.mxu0 %v5335
    %5398 = vmatprep.subr.bf16.mxu0 0
    %5399 = vmatpush1.bf16.msra.mxu0 %v5336
    %5400 = vmatprep.subr.bf16.mxu0 0
    %5401 = vmatpush1.bf16.msra.mxu0 %v5337
    %5402 = vmatprep.subr.bf16.mxu0 0
    %5403 = vmatpush1.bf16.msra.mxu0 %v5338
    %5404 = vmatprep.subr.bf16.mxu0 0
    %5405 = vmatpush1.bf16.msra.mxu0 %v5339
    %5406 = vmatprep.subr.bf16.mxu0 0
    %5407 = vmatpush1.bf16.msra.mxu0 %v5340
    %5408 = vmatprep.subr.bf16.mxu0 0
    %5409 = vmatpush1.bf16.msra.mxu0 %v5341
    %5410 = vmatprep.subr.bf16.mxu0 0
    %5411 = vmatpush1.bf16.msra.mxu0 %v5342
    %5412 = vmatprep.subr.bf16.mxu0 0
    %5413 = vmatpush1.bf16.msra.mxu0 %v5343
    %5414 = vmatprep.subr.bf16.mxu0 0
    %5415 = vmatpush1.bf16.msra.mxu0 %v5344
    %5416 = vmatprep.subr.bf16.mxu0 0
    %5417 = vmatpush1.bf16.msra.mxu0 %v5345
    %5418 = vmatprep.subr.bf16.mxu0 0
    %5419 = vmatpush1.bf16.msra.mxu0 %v5346
    %5420 = vmatprep.subr.bf16.mxu0 0
    %5421 = vmatpush1.bf16.msra.mxu0 %v5347
    %5422 = vmatprep.subr.bf16.mxu0 0
    %5423 = vmatpush1.bf16.msra.mxu0 %v5348
    %5424 = vmatprep.subr.bf16.mxu0 0
    %5425 = vmatpush1.bf16.msra.mxu0 0
    %5426 = vmatprep.mubr.bf16.mxu0 %v5365
    %5427 = vmatmul.mubr.bf16.gmra.mrb[0].mxu0 %v5224
    %v5428 = vpop.f32.mrb[0].mxu0
    %v5429 = vadd.f32 0.0, %v5428
    %v5430 = vpop.f32.mrb[0].mxu0
    %v5431 = vpop.f32.mrb[0].mxu0
    %v5432 = vadd.f32 0.0, %v5431
    %v5433 = vpop.f32.mrb[0].mxu0
    %5434 = vmatprep.mubr.bf16.mxu0 %v5368
    %5435 = vmatmul.mubr.bf16.gmra.mrb[0].mxu0 %v5226
    %v5436 = vpop.f32.mrb[0].mxu0
    %v5437 = vadd.f32 0.0, %v5436
    %v5438 = vpop.f32.mrb[0].mxu0
    %v5439 = vpop.f32.mrb[0].mxu0
    %v5440 = vadd.f32 0.0, %v5439
    %v5441 = vpop.f32.mrb[0].mxu0
    %5442 = vmatprep.mubr.bf16.mxu0 %v5371
    %5443 = vmatmul.mubr.bf16.gmra.mrb[0].mxu0 %v5228
    %v5444 = vpop.f32.mrb[0].mxu0
    %v5445 = vadd.f32 0.0, %v5444
    %v5446 = vpop.f32.mrb[0].mxu0
    %v5447 = vpop.f32.mrb[0].mxu0
    %v5448 = vadd.f32 0.0, %v5447
    %v5449 = vpop.f32.mrb[0].mxu0
    %5450 = vmatprep.mubr.bf16.mxu0 %v5374
    %5451 = vmatmul.mubr.bf16.gmra.mrb[0].mxu0 %v5230
    %v5452 = vpop.f32.mrb[0].mxu0
    %v5453 = vadd.f32 0.0, %v5452
    %v5454 = vpop.f32.mrb[0].mxu0
    %v5455 = vpop.f32.mrb[0].mxu0
    %v5456 = vadd.f32 0.0, %v5455
    %v5457 = vpop.f32.mrb[0].mxu0
    %5458 = vmatprep.mubr.bf16.mxu0 %v5377
    %5459 = vmatmul.mubr.bf16.gmra.mrb[0].mxu0 %v5232
    %v5460 = vpop.f32.mrb[0].mxu0
    %v5461 = vadd.f32 0.0, %v5460
    %v5462 = vpop.f32.mrb[0].mxu0
    %v5463 = vpop.f32.mrb[0].mxu0
    %v5464 = vadd.f32 0.0, %v5463
    %v5465 = vpop.f32.mrb[0].mxu0
    %5466 = vmatprep.mubr.bf16.mxu0 %v5380
    %5467 = vmatmul.mubr.bf16.gmra.mrb[0].mxu0 %v5234
    %v5468 = vpop.f32.mrb[0].mxu0
    %v5469 = vadd.f32 0.0, %v5468
    %v5470 = vpop.f32.mrb[0].mxu0
    %v5471 = vpop.f32.mrb[0].mxu0
    %v5472 = vadd.f32 0.0, %v5471
    %v5473 = vpop.f32.mrb[0].mxu0
    %5474 = vmatprep.mubr.bf16.mxu0 %v5383
    %5475 = vmatmul.mubr.bf16.gmra.mrb[0].mxu0 %v5236
    %v5476 = vpop.f32.mrb[0].mxu0
    %v5477 = vadd.f32 0.0, %v5476
    %v5478 = vpop.f32.mrb[0].mxu0
    %v5479 = vpop.f32.mrb[0].mxu0
    %v5480 = vadd.f32 0.0, %v5479
    %v5481 = vpop.f32.mrb[0].mxu0
    %5482 = vmatprep.mubr.bf16.mxu0 %v5386
    %5483 = vmatmul.mubr.bf16.gmra.mrb[0].mxu0 %v5238
    %v5484 = vpop.f32.mrb[0].mxu0
    %v5485 = vadd.f32 0.0, %v5484
    %v5486 = vpop.f32.mrb[0].mxu0
    %v5487 = vpop.f32.mrb[0].mxu0
    %v5488 = vadd.f32 0.0, %v5487
    %v5489 = vpop.f32.mrb[0].mxu0
    %5490 = vmatprep.mubr.bf16.mxu0 %v5389
    %5491 = vmatmul.mubr.bf16.gmra.mrb[0].mxu0 %v5240
    %v5492 = vpop.f32.mrb[0].mxu0
    %v5493 = vadd.f32 0.0, %v5492
    %v5494 = vpop.f32.mrb[0].mxu0
    %v5495 = vpop.f32.mrb[0].mxu0
    %v5496 = vadd.f32 0.0, %v5495
    %v5497 = vpop.f32.mrb[0].mxu0
    %5498 = vmatprep.mubr.bf16.mxu0 %v5392
    %5499 = vmatmul.mubr.bf16.gmra.mrb[0].mxu0 %v5242
    %v5500 = vpop.f32.mrb[0].mxu0
    %v5501 = vadd.f32 0.0, %v5500
    %v5502 = vpop.f32.mrb[0].mxu0
    %v5503 = vpop.f32.mrb[0].mxu0
    %v5504 = vadd.f32 0.0, %v5503
    %v5505 = vpop.f32.mrb[0].mxu0
    %5506 = vdwg.mxu0
    %v5507 = vadd.f32 %v5204, %v5429
    %v5508 = vadd.f32 %v5205, %v5432
    %v5509 = vadd.f32 %v5206, %v5437
    %v5510 = vadd.f32 %v5207, %v5440
    %v5511 = vadd.f32 %v5208, %v5445
    %v5512 = vadd.f32 %v5209, %v5448
    %v5513 = vadd.f32 %v5210, %v5453
    %v5514 = vadd.f32 %v5211, %v5456
    %v5515 = vadd.f32 %v5212, %v5461
    %v5516 = vadd.f32 %v5213, %v5464
    %v5517 = vadd.f32 %v5214, %v5469
    %v5518 = vadd.f32 %v5215, %v5472
    %v5519 = vadd.f32 %v5216, %v5477
    %v5520 = vadd.f32 %v5217, %v5480
    %v5521 = vadd.f32 %v5218, %v5485
    %v5522 = vadd.f32 %v5219, %v5488
    %v5523 = vadd.f32 %v5220, %v5493
    %v5524 = vadd.f32 %v5221, %v5496
    %v5525 = vadd.f32 %v5222, %v5501
    %v5526 = vadd.f32 %v5223, %v5504
    %v5527 = vld [vmem:[#allocation2 + $0x1c0] sm:$0xff]
    %v5528 = vld [vmem:[#allocation2 + $0x1c8] sm:$0xff]
    %v5529 = vld [vmem:[#allocation2 + $0x1d0] sm:$0xff]
    %v5530 = vld [vmem:[#allocation2 + $0x1d8] sm:$0xff]
    %v5531 = vld [vmem:[#allocation2 + $0x1e0] sm:$0xff]
    %v5532 = vld [vmem:[#allocation2 + $0x1e8] sm:$0xff]
    %v5533 = vld [vmem:[#allocation2 + $0x1f0] sm:$0xff]
    %v5534 = vld [vmem:[#allocation2 + $0x1f8] sm:$0xff]
    %v5535 = vld [vmem:[#allocation2 + $0x200] sm:$0xff]
    %v5536 = vld [vmem:[#allocation2 + $0x208] sm:$0xff]
    %v5537 = vld [vmem:[#allocation2 + $0x210] sm:$0xff]
    %v5538 = vld [vmem:[#allocation2 + $0x218] sm:$0xff]
    %v5539 = vld [vmem:[#allocation2 + $0x220] sm:$0xff]
    %v5540 = vld [vmem:[#allocation2 + $0x228] sm:$0xff]
    %v5541 = vld [vmem:[#allocation2 + $0x230] sm:$0xff]
    %v5542 = vld [vmem:[#allocation2 + $0x238] sm:$0xff]
    %v5543 = vld [vmem:[#allocation2 + $0x240] sm:$0xff]
    %v5544 = vld [vmem:[#allocation2 + $0x248] sm:$0xff]
    %v5545 = vld [vmem:[#allocation2 + $0x250] sm:$0xff]
    %v5546 = vld [vmem:[#allocation2 + $0x258] sm:$0xff]
    %v5547 = vld [vmem:[%s2452] sm:$0xf]
    %v5548 = vld [vmem:[%s2452 + $0x4] sm:$0xf]
    %v5549 = vld [vmem:[%s2452 + $0x8] sm:$0xf]
    %v5550 = vld [vmem:[%s2452 + $0xc] sm:$0xf]
    %v5551 = vld [vmem:[%s2452 + $0x10] sm:$0xf]
    %v5552 = vld [vmem:[%s2452 + $0x14] sm:$0xf]
    %v5553 = vld [vmem:[%s2452 + $0x18] sm:$0xf]
    %v5554 = vld [vmem:[%s2452 + $0x1c] sm:$0xf]
    %v5555 = vld [vmem:[%s2452 + $0x20] sm:$0xf]
    %v5556 = vld [vmem:[%s2452 + $0x24] sm:$0xf]
    %v5557 = vld [vmem:[%s2452 + $0x28] sm:$0xf]
    %v5558 = vld [vmem:[%s2452 + $0x2c] sm:$0xf]
    %v5559 = vld [vmem:[%s2452 + $0x30] sm:$0xf]
    %v5560 = vld [vmem:[%s2452 + $0x34] sm:$0xf]
    %v5561 = vld [vmem:[%s2452 + $0x38] sm:$0xf]
    %v5562 = vld [vmem:[%s2452 + $0x3c] sm:$0xf]
    %v5563 = vld [vmem:[%s2452 + $0x40] sm:$0xf]
    %v5564 = vld [vmem:[%s2452 + $0x44] sm:$0xf]
    %v5565 = vld [vmem:[%s2452 + $0x48] sm:$0xf]
    %v5566 = vld [vmem:[%s2452 + $0x4c] sm:$0xf]
    %v5567 = vld [vmem:[%s2452 + $0x50] sm:$0xf]
    %v5568 = vld [vmem:[%s2452 + $0x54] sm:$0xf]
    %v5569 = vld [vmem:[%s2452 + $0x58] sm:$0xf]
    %v5570 = vld [vmem:[%s2452 + $0x5c] sm:$0xf]
    %v5571 = vld [vmem:[%s2452 + $0x60] sm:$0xf]
    %v5572 = vld [vmem:[%s2452 + $0x64] sm:$0xf]
    %v5573 = vld [vmem:[%s2452 + $0x68] sm:$0xf]
    %v5574 = vld [vmem:[%s2452 + $0x6c] sm:$0xf]
    %v5575 = vld [vmem:[%s2452 + $0x70] sm:$0xf]
    %v5576 = vld [vmem:[%s2452 + $0x74] sm:$0xf]
    %v5607 = vunpack.c.l.b16 %v5547
    %v5608 = vunpack.c.l.b16 %v5548
    %v5609 = vunpack.c.l.b16 %v5549
    %v5610 = vunpack.c.l.b16 %v5550
    %v5611 = vunpack.c.l.b16 %v5551
    %v5612 = vunpack.c.l.b16 %v5552
    %v5613 = vunpack.c.l.b16 %v5553
    %v5614 = vunpack.c.l.b16 %v5554
    %v5615 = vunpack.c.l.b16 %v5555
    %v5616 = vunpack.c.l.b16 %v5556
    %v5617 = vunpack.c.l.b16 %v5557
    %v5618 = vunpack.c.l.b16 %v5558
    %v5619 = vunpack.c.l.b16 %v5559
    %v5620 = vunpack.c.l.b16 %v5560
    %v5621 = vunpack.c.l.b16 %v5561
    %v5622 = vunpack.c.l.b16 %v5562
    %v5623 = vunpack.c.l.b16 %v5563
    %v5624 = vunpack.c.l.b16 %v5564
    %v5625 = vunpack.c.l.b16 %v5565
    %v5626 = vunpack.c.l.b16 %v5566
    %v5627 = vunpack.c.l.b16 %v5567
    %v5628 = vunpack.c.l.b16 %v5568
    %v5629 = vunpack.c.l.b16 %v5569
    %v5630 = vunpack.c.l.b16 %v5570
    %v5631 = vunpack.c.l.b16 %v5571
    %v5632 = vunpack.c.l.b16 %v5572
    %v5633 = vunpack.c.l.b16 %v5573
    %v5634 = vunpack.c.l.b16 %v5574
    %v5635 = vunpack.c.l.b16 %v5575
    %v5636 = vunpack.c.l.b16 %v5576
    %v5637 = vpack.c.b16 %v5608, %v5607
    %v5638 = vpack.c.b16 %v5610, %v5609
    %v5639 = vpack.c.b16 %v5612, %v5611
    %v5640 = vpack.c.b16 %v5614, %v5613
    %v5641 = vpack.c.b16 %v5616, %v5615
    %v5642 = vpack.c.b16 %v5618, %v5617
    %v5643 = vpack.c.b16 %v5620, %v5619
    %v5644 = vpack.c.b16 %v5622, %v5621
    %v5645 = vpack.c.b16 %v5624, %v5623
    %v5646 = vpack.c.b16 %v5626, %v5625
    %v5647 = vpack.c.b16 %v5628, %v5627
    %v5648 = vpack.c.b16 %v5630, %v5629
    %v5649 = vpack.c.b16 %v5632, %v5631
    %v5650 = vpack.c.b16 %v5634, %v5633
    %v5651 = vpack.c.b16 %v5636, %v5635
    %v5668 = vsel %vm860, %v5528, 0
    %v5671 = vsel %vm860, %v5530, 0
    %v5674 = vsel %vm860, %v5532, 0
    %v5677 = vsel %vm860, %v5534, 0
    %v5680 = vsel %vm860, %v5536, 0
    %v5683 = vsel %vm860, %v5538, 0
    %v5686 = vsel %vm860, %v5540, 0
    %v5689 = vsel %vm860, %v5542, 0
    %v5692 = vsel %vm860, %v5544, 0
    %v5695 = vsel %vm860, %v5546, 0
    %5697 = vmatprep.subr.bf16.mxu0 0
    %5698 = vmatpush1.bf16.msra.mxu0 %v5637
    %5699 = vmatprep.subr.bf16.mxu0 0
    %5700 = vmatpush1.bf16.msra.mxu0 %v5638
    %5701 = vmatprep.subr.bf16.mxu0 0
    %5702 = vmatpush1.bf16.msra.mxu0 %v5639
    %5703 = vmatprep.subr.bf16.mxu0 0
    %5704 = vmatpush1.bf16.msra.mxu0 %v5640
    %5705 = vmatprep.subr.bf16.mxu0 0
    %5706 = vmatpush1.bf16.msra.mxu0 %v5641
    %5707 = vmatprep.subr.bf16.mxu0 0
    %5708 = vmatpush1.bf16.msra.mxu0 %v5642
    %5709 = vmatprep.subr.bf16.mxu0 0
    %5710 = vmatpush1.bf16.msra.mxu0 %v5643
    %5711 = vmatprep.subr.bf16.mxu0 0
    %5712 = vmatpush1.bf16.msra.mxu0 %v5644
    %5713 = vmatprep.subr.bf16.mxu0 0
    %5714 = vmatpush1.bf16.msra.mxu0 %v5645
    %5715 = vmatprep.subr.bf16.mxu0 0
    %5716 = vmatpush1.bf16.msra.mxu0 %v5646
    %5717 = vmatprep.subr.bf16.mxu0 0
    %5718 = vmatpush1.bf16.msra.mxu0 %v5647
    %5719 = vmatprep.subr.bf16.mxu0 0
    %5720 = vmatpush1.bf16.msra.mxu0 %v5648
    %5721 = vmatprep.subr.bf16.mxu0 0
    %5722 = vmatpush1.bf16.msra.mxu0 %v5649
    %5723 = vmatprep.subr.bf16.mxu0 0
    %5724 = vmatpush1.bf16.msra.mxu0 %v5650
    %5725 = vmatprep.subr.bf16.mxu0 0
    %5726 = vmatpush1.bf16.msra.mxu0 %v5651
    %5727 = vmatprep.subr.bf16.mxu0 0
    %5728 = vmatpush1.bf16.msra.mxu0 0
    %5729 = vmatprep.mubr.bf16.mxu0 %v5668
    %5730 = vmatmul.mubr.bf16.gmra.mrb[0].mxu0 %v5527
    %v5731 = vpop.f32.mrb[0].mxu0
    %v5732 = vadd.f32 0.0, %v5731
    %v5733 = vpop.f32.mrb[0].mxu0
    %v5734 = vpop.f32.mrb[0].mxu0
    %v5735 = vadd.f32 0.0, %v5734
    %v5736 = vpop.f32.mrb[0].mxu0
    %5737 = vmatprep.mubr.bf16.mxu0 %v5671
    %5738 = vmatmul.mubr.bf16.gmra.mrb[0].mxu0 %v5529
    %v5739 = vpop.f32.mrb[0].mxu0
    %v5740 = vadd.f32 0.0, %v5739
    %v5741 = vpop.f32.mrb[0].mxu0
    %v5742 = vpop.f32.mrb[0].mxu0
    %v5743 = vadd.f32 0.0, %v5742
    %v5744 = vpop.f32.mrb[0].mxu0
    %5745 = vmatprep.mubr.bf16.mxu0 %v5674
    %5746 = vmatmul.mubr.bf16.gmra.mrb[0].mxu0 %v5531
    %v5747 = vpop.f32.mrb[0].mxu0
    %v5748 = vadd.f32 0.0, %v5747
    %v5749 = vpop.f32.mrb[0].mxu0
    %v5750 = vpop.f32.mrb[0].mxu0
    %v5751 = vadd.f32 0.0, %v5750
    %v5752 = vpop.f32.mrb[0].mxu0
    %5753 = vmatprep.mubr.bf16.mxu0 %v5677
    %5754 = vmatmul.mubr.bf16.gmra.mrb[0].mxu0 %v5533
    %v5755 = vpop.f32.mrb[0].mxu0
    %v5756 = vadd.f32 0.0, %v5755
    %v5757 = vpop.f32.mrb[0].mxu0
    %v5758 = vpop.f32.mrb[0].mxu0
    %v5759 = vadd.f32 0.0, %v5758
    %v5760 = vpop.f32.mrb[0].mxu0
    %5761 = vmatprep.mubr.bf16.mxu0 %v5680
    %5762 = vmatmul.mubr.bf16.gmra.mrb[0].mxu0 %v5535
    %v5763 = vpop.f32.mrb[0].mxu0
    %v5764 = vadd.f32 0.0, %v5763
    %v5765 = vpop.f32.mrb[0].mxu0
    %v5766 = vpop.f32.mrb[0].mxu0
    %v5767 = vadd.f32 0.0, %v5766
    %v5768 = vpop.f32.mrb[0].mxu0
    %5769 = vmatprep.mubr.bf16.mxu0 %v5683
    %5770 = vmatmul.mubr.bf16.gmra.mrb[0].mxu0 %v5537
    %v5771 = vpop.f32.mrb[0].mxu0
    %v5772 = vadd.f32 0.0, %v5771
    %v5773 = vpop.f32.mrb[0].mxu0
    %v5774 = vpop.f32.mrb[0].mxu0
    %v5775 = vadd.f32 0.0, %v5774
    %v5776 = vpop.f32.mrb[0].mxu0
    %5777 = vmatprep.mubr.bf16.mxu0 %v5686
    %5778 = vmatmul.mubr.bf16.gmra.mrb[0].mxu0 %v5539
    %v5779 = vpop.f32.mrb[0].mxu0
    %v5780 = vadd.f32 0.0, %v5779
    %v5781 = vpop.f32.mrb[0].mxu0
    %v5782 = vpop.f32.mrb[0].mxu0
    %v5783 = vadd.f32 0.0, %v5782
    %v5784 = vpop.f32.mrb[0].mxu0
    %5785 = vmatprep.mubr.bf16.mxu0 %v5689
    %5786 = vmatmul.mubr.bf16.gmra.mrb[0].mxu0 %v5541
    %v5787 = vpop.f32.mrb[0].mxu0
    %v5788 = vadd.f32 0.0, %v5787
    %v5789 = vpop.f32.mrb[0].mxu0
    %v5790 = vpop.f32.mrb[0].mxu0
    %v5791 = vadd.f32 0.0, %v5790
    %v5792 = vpop.f32.mrb[0].mxu0
    %5793 = vmatprep.mubr.bf16.mxu0 %v5692
    %5794 = vmatmul.mubr.bf16.gmra.mrb[0].mxu0 %v5543
    %v5795 = vpop.f32.mrb[0].mxu0
    %v5796 = vadd.f32 0.0, %v5795
    %v5797 = vpop.f32.mrb[0].mxu0
    %v5798 = vpop.f32.mrb[0].mxu0
    %v5799 = vadd.f32 0.0, %v5798
    %v5800 = vpop.f32.mrb[0].mxu0
    %5801 = vmatprep.mubr.bf16.mxu0 %v5695
    %5802 = vmatmul.mubr.bf16.gmra.mrb[0].mxu0 %v5545
    %v5803 = vpop.f32.mrb[0].mxu0
    %v5804 = vadd.f32 0.0, %v5803
    %v5805 = vpop.f32.mrb[0].mxu0
    %v5806 = vpop.f32.mrb[0].mxu0
    %v5807 = vadd.f32 0.0, %v5806
    %v5808 = vpop.f32.mrb[0].mxu0
    %5809 = vdwg.mxu0
    %v5810 = vadd.f32 %v5507, %v5732
    %v5811 = vadd.f32 %v5508, %v5735
    %v5812 = vadd.f32 %v5509, %v5740
    %v5813 = vadd.f32 %v5510, %v5743
    %v5814 = vadd.f32 %v5511, %v5748
    %v5815 = vadd.f32 %v5512, %v5751
    %v5816 = vadd.f32 %v5513, %v5756
    %v5817 = vadd.f32 %v5514, %v5759
    %v5818 = vadd.f32 %v5515, %v5764
    %v5819 = vadd.f32 %v5516, %v5767
    %v5820 = vadd.f32 %v5517, %v5772
    %v5821 = vadd.f32 %v5518, %v5775
    %v5822 = vadd.f32 %v5519, %v5780
    %v5823 = vadd.f32 %v5520, %v5783
    %v5824 = vadd.f32 %v5521, %v5788
    %v5825 = vadd.f32 %v5522, %v5791
    %v5826 = vadd.f32 %v5523, %v5796
    %v5827 = vadd.f32 %v5524, %v5799
    %v5828 = vadd.f32 %v5525, %v5804
    %v5829 = vadd.f32 %v5526, %v5807
    %v5830 = vmul.f32 %v5810, %v1277
    %v5831 = vmul.f32 %v5811, %v1278
    %v5832 = vmul.f32 %v5812, %v1279
    %v5833 = vmul.f32 %v5813, %v1280
    %v5834 = vmul.f32 %v5814, %v1281
    %v5835 = vmul.f32 %v5815, %v1282
    %v5836 = vmul.f32 %v5816, %v1283
    %v5837 = vmul.f32 %v5817, %v1284
    %v5838 = vmul.f32 %v5818, %v1285
    %v5839 = vmul.f32 %v5819, %v1286
    %v5840 = vmul.f32 %v5820, %v1287
    %v5841 = vmul.f32 %v5821, %v1288
    %v5842 = vmul.f32 %v5822, %v1289
    %v5843 = vmul.f32 %v5823, %v1290
    %v5844 = vmul.f32 %v5824, %v1291
    %v5845 = vmul.f32 %v5825, %v1292
    %v5846 = vmul.f32 %v5826, %v1293
    %v5847 = vmul.f32 %v5827, %v1294
    %v5848 = vmul.f32 %v5828, %v1295
    %v5849 = vmul.f32 %v5829, %v1296
    %v5850 = vadd.f32 %v5830, %v5831
    %v5851 = vadd.f32 %v5850, %v5832
    %v5852 = vadd.f32 %v5851, %v5833
    %v5853 = vadd.f32 %v5852, %v5834
    %v5854 = vadd.f32 %v5853, %v5835
    %v5855 = vadd.f32 %v5854, %v5836
    %v5856 = vadd.f32 %v5855, %v5837
    %v5857 = vadd.f32 %v5856, %v5838
    %v5858 = vadd.f32 %v5857, %v5839
    %v5859 = vadd.f32 %v5858, %v5840
    %v5860 = vadd.f32 %v5859, %v5841
    %v5861 = vadd.f32 %v5860, %v5842
    %v5862 = vadd.f32 %v5861, %v5843
    %v5863 = vadd.f32 %v5862, %v5844
    %v5864 = vadd.f32 %v5863, %v5845
    %v5865 = vadd.f32 %v5864, %v5846
    %v5866 = vadd.f32 %v5865, %v5847
    %v5867 = vadd.f32 %v5866, %v5848
    %v5868 = vadd.f32 %v5867, %v5849
    %v5869 = vrot.slane %v5868, 4
    %v5870 = vadd.f32 %v5868, %v5869
    %v5871 = vrot.slane %v5870, 2
    %v5872 = vadd.f32 %v5870, %v5871
    %v5873 = vrot.slane %v5872, 1
    %v5874 = vadd.f32 %v5872, %v5873
    %v5875 = vadd.f32 %v4328, %v5874
    %v5876 = vmul.f32 %v5830, %v5830
    %v5877 = vmul.f32 %v5831, %v5831
    %v5878 = vmul.f32 %v5832, %v5832
    %v5879 = vmul.f32 %v5833, %v5833
    %v5880 = vmul.f32 %v5834, %v5834
    %v5881 = vmul.f32 %v5835, %v5835
    %v5882 = vmul.f32 %v5836, %v5836
    %v5883 = vmul.f32 %v5837, %v5837
    %v5884 = vmul.f32 %v5838, %v5838
    %v5885 = vmul.f32 %v5839, %v5839
    %v5886 = vmul.f32 %v5840, %v5840
    %v5887 = vmul.f32 %v5841, %v5841
    %v5888 = vmul.f32 %v5842, %v5842
    %v5889 = vmul.f32 %v5843, %v5843
    %v5890 = vmul.f32 %v5844, %v5844
    %v5891 = vmul.f32 %v5845, %v5845
    %v5892 = vmul.f32 %v5846, %v5846
    %v5893 = vmul.f32 %v5847, %v5847
    %v5894 = vmul.f32 %v5848, %v5848
    %v5895 = vmul.f32 %v5849, %v5849
    %v5896 = vadd.f32 %v5876, %v5877
    %v5897 = vadd.f32 %v5896, %v5878
    %v5898 = vadd.f32 %v5897, %v5879
    %v5899 = vadd.f32 %v5898, %v5880
    %v5900 = vadd.f32 %v5899, %v5881
    %v5901 = vadd.f32 %v5900, %v5882
    %v5902 = vadd.f32 %v5901, %v5883
    %v5903 = vadd.f32 %v5902, %v5884
    %v5904 = vadd.f32 %v5903, %v5885
    %v5905 = vadd.f32 %v5904, %v5886
    %v5906 = vadd.f32 %v5905, %v5887
    %v5907 = vadd.f32 %v5906, %v5888
    %v5908 = vadd.f32 %v5907, %v5889
    %v5909 = vadd.f32 %v5908, %v5890
    %v5910 = vadd.f32 %v5909, %v5891
    %v5911 = vadd.f32 %v5910, %v5892
    %v5912 = vadd.f32 %v5911, %v5893
    %v5913 = vadd.f32 %v5912, %v5894
    %v5914 = vadd.f32 %v5913, %v5895
    %v5915 = vrot.slane %v5914, 4
    %v5916 = vadd.f32 %v5914, %v5915
    %v5917 = vrot.slane %v5916, 2
    %v5918 = vadd.f32 %v5916, %v5917
    %v5919 = vrot.slane %v5918, 1
    %v5920 = vadd.f32 %v5918, %v5919
    %v5921 = vadd.f32 %v4374, %v5920
    %5922 = vst [vmem:[#allocation8 + $0x140] sm:$0xff] %v5810
    %5923 = vst [vmem:[#allocation8 + $0x148] sm:$0xff] %v5811
    %5924 = vst [vmem:[#allocation8 + $0x150] sm:$0xff] %v5812
    %5925 = vst [vmem:[#allocation8 + $0x158] sm:$0xff] %v5813
    %5926 = vst [vmem:[#allocation8 + $0x160] sm:$0xff] %v5814
    %5927 = vst [vmem:[#allocation8 + $0x168] sm:$0xff] %v5815
    %5928 = vst [vmem:[#allocation8 + $0x170] sm:$0xff] %v5816
    %5929 = vst [vmem:[#allocation8 + $0x178] sm:$0xff] %v5817
    %5930 = vst [vmem:[#allocation8 + $0x180] sm:$0xff] %v5818
    %5931 = vst [vmem:[#allocation8 + $0x188] sm:$0xff] %v5819
    %5932 = vst [vmem:[#allocation8 + $0x190] sm:$0xff] %v5820
    %5933 = vst [vmem:[#allocation8 + $0x198] sm:$0xff] %v5821
    %5934 = vst [vmem:[#allocation8 + $0x1a0] sm:$0xff] %v5822
    %5935 = vst [vmem:[#allocation8 + $0x1a8] sm:$0xff] %v5823
    %5936 = vst [vmem:[#allocation8 + $0x1b0] sm:$0xff] %v5824
    %5937 = vst [vmem:[#allocation8 + $0x1b8] sm:$0xff] %v5825
    %5938 = vst [vmem:[#allocation8 + $0x1c0] sm:$0xff] %v5826
    %5939 = vst [vmem:[#allocation8 + $0x1c8] sm:$0xff] %v5827
    %5940 = vst [vmem:[#allocation8 + $0x1d0] sm:$0xff] %v5828
    %5941 = vst [vmem:[#allocation8 + $0x1d8] sm:$0xff] %v5829
    %v5942 = vld [vmem:[#allocation2 + $0x1e0] sm:$0xff]
    %v5943 = vld [vmem:[#allocation2 + $0x1e8] sm:$0xff]
    %v5944 = vld [vmem:[#allocation2 + $0x1f0] sm:$0xff]
    %v5945 = vld [vmem:[#allocation2 + $0x1f8] sm:$0xff]
    %v5946 = vld [vmem:[#allocation2 + $0x200] sm:$0xff]
    %v5947 = vld [vmem:[#allocation2 + $0x208] sm:$0xff]
    %v5948 = vld [vmem:[#allocation2 + $0x210] sm:$0xff]
    %v5949 = vld [vmem:[#allocation2 + $0x218] sm:$0xff]
    %v5950 = vld [vmem:[#allocation2 + $0x220] sm:$0xff]
    %v5951 = vld [vmem:[#allocation2 + $0x228] sm:$0xff]
    %v5952 = vld [vmem:[#allocation2 + $0x230] sm:$0xff]
    %v5953 = vld [vmem:[#allocation2 + $0x238] sm:$0xff]
    %v5954 = vld [vmem:[#allocation2 + $0x240] sm:$0xff]
    %v5955 = vld [vmem:[#allocation2 + $0x248] sm:$0xff]
    %v5956 = vld [vmem:[#allocation2 + $0x250] sm:$0xff]
    %v5957 = vld [vmem:[#allocation2 + $0x258] sm:$0xff]
    %v5958 = vld [vmem:[#allocation2 + $0x260] sm:$0xff]
    %v5959 = vld [vmem:[#allocation2 + $0x268] sm:$0xff]
    %v5960 = vld [vmem:[#allocation2 + $0x270] sm:$0xff]
    %v5961 = vld [vmem:[#allocation2 + $0x278] sm:$0xff]
    %v5962 = vld [vmem:[#allocation6] sm:$0xf]
    %v5963 = vld [vmem:[#allocation6 + $0x4] sm:$0xf]
    %v5964 = vld [vmem:[#allocation6 + $0x8] sm:$0xf]
    %v5965 = vld [vmem:[#allocation6 + $0xc] sm:$0xf]
    %v5966 = vld [vmem:[#allocation6 + $0x10] sm:$0xf]
    %v5967 = vld [vmem:[#allocation6 + $0x14] sm:$0xf]
    %v5968 = vld [vmem:[#allocation6 + $0x18] sm:$0xf]
    %v5969 = vld [vmem:[#allocation6 + $0x1c] sm:$0xf]
    %v5970 = vld [vmem:[#allocation6 + $0x20] sm:$0xf]
    %v5971 = vld [vmem:[#allocation6 + $0x24] sm:$0xf]
    %v5972 = vld [vmem:[#allocation6 + $0x28] sm:$0xf]
    %v5973 = vld [vmem:[#allocation6 + $0x2c] sm:$0xf]
    %v5974 = vld [vmem:[#allocation6 + $0x30] sm:$0xf]
    %v5975 = vld [vmem:[#allocation6 + $0x34] sm:$0xf]
    %v5976 = vld [vmem:[#allocation6 + $0x38] sm:$0xf]
    %v5977 = vld [vmem:[#allocation6 + $0x3c] sm:$0xf]
    %v5978 = vld [vmem:[#allocation6 + $0x40] sm:$0xf]
    %v5979 = vld [vmem:[#allocation6 + $0x44] sm:$0xf]
    %v5980 = vld [vmem:[#allocation6 + $0x48] sm:$0xf]
    %v5981 = vld [vmem:[#allocation6 + $0x4c] sm:$0xf]
    %v5982 = vld [vmem:[#allocation6 + $0x50] sm:$0xf]
    %v5983 = vld [vmem:[#allocation6 + $0x54] sm:$0xf]
    %v5984 = vld [vmem:[#allocation6 + $0x58] sm:$0xf]
    %v5985 = vld [vmem:[#allocation6 + $0x5c] sm:$0xf]
    %v5986 = vld [vmem:[#allocation6 + $0x60] sm:$0xf]
    %v5987 = vld [vmem:[#allocation6 + $0x64] sm:$0xf]
    %v5988 = vld [vmem:[#allocation6 + $0x68] sm:$0xf]
    %v5989 = vld [vmem:[#allocation6 + $0x6c] sm:$0xf]
    %v5990 = vld [vmem:[#allocation6 + $0x70] sm:$0xf]
    %v5991 = vld [vmem:[#allocation6 + $0x74] sm:$0xf]
    %v5992 = vld [vmem:[#allocation2 + $0x280] sm:$0xff]
    %v5993 = vld [vmem:[#allocation2 + $0x288] sm:$0xff]
    %v5994 = vld [vmem:[#allocation2 + $0x290] sm:$0xff]
    %v5995 = vld [vmem:[#allocation2 + $0x298] sm:$0xff]
    %v5996 = vld [vmem:[%s1351] sm:$0xf]
    %v5997 = vld [vmem:[%s1351 + $0x4] sm:$0xf]
    %v5998 = vld [vmem:[%s1351 + $0x8] sm:$0xf]
    %v5999 = vld [vmem:[%s1351 + $0xc] sm:$0xf]
    %v6000 = vld [vmem:[%s1351 + $0x10] sm:$0xf]
    %v6001 = vld [vmem:[%s1351 + $0x14] sm:$0xf]
    %v6002 = vld [vmem:[%s1351 + $0x18] sm:$0xf]
    %v6003 = vld [vmem:[%s1351 + $0x1c] sm:$0xf]
    %v6004 = vld [vmem:[%s1351 + $0x20] sm:$0xf]
    %v6005 = vld [vmem:[%s1351 + $0x24] sm:$0xf]
    %v6006 = vld [vmem:[%s1351 + $0x28] sm:$0xf]
    %v6007 = vld [vmem:[%s1351 + $0x2c] sm:$0xf]
    %v6008 = vld [vmem:[%s1351 + $0x30] sm:$0xf]
    %v6009 = vld [vmem:[%s1351 + $0x34] sm:$0xf]
    %v6010 = vld [vmem:[%s1351 + $0x38] sm:$0xf]
    %v6011 = vld [vmem:[%s1351 + $0x3c] sm:$0xf]
    %v6012 = vld [vmem:[%s1351 + $0x40] sm:$0xf]
    %v6013 = vld [vmem:[%s1351 + $0x44] sm:$0xf]
    %v6014 = vld [vmem:[%s1351 + $0x48] sm:$0xf]
    %v6015 = vld [vmem:[%s1351 + $0x4c] sm:$0xf]
    %v6016 = vld [vmem:[%s1351 + $0x50] sm:$0xf]
    %v6017 = vld [vmem:[%s1351 + $0x54] sm:$0xf]
    %v6018 = vld [vmem:[%s1351 + $0x58] sm:$0xf]
    %v6019 = vld [vmem:[%s1351 + $0x5c] sm:$0xf]
    %v6020 = vld [vmem:[%s1351 + $0x60] sm:$0xf]
    %v6021 = vld [vmem:[%s1351 + $0x64] sm:$0xf]
    %v6022 = vld [vmem:[%s1351 + $0x68] sm:$0xf]
    %v6023 = vld [vmem:[%s1351 + $0x6c] sm:$0xf]
    %v6024 = vld [vmem:[%s1351 + $0x70] sm:$0xf]
    %v6025 = vld [vmem:[%s1351 + $0x74] sm:$0xf]
    %v6056 = vunpack.c.l.b16 %v5996
    %v6057 = vunpack.c.l.b16 %v5997
    %v6058 = vunpack.c.l.b16 %v5998
    %v6059 = vunpack.c.l.b16 %v5999
    %v6060 = vunpack.c.l.b16 %v6000
    %v6061 = vunpack.c.l.b16 %v6001
    %v6062 = vunpack.c.l.b16 %v6002
    %v6063 = vunpack.c.l.b16 %v6003
    %v6064 = vunpack.c.l.b16 %v6004
    %v6065 = vunpack.c.l.b16 %v6005
    %v6066 = vunpack.c.l.b16 %v6006
    %v6067 = vunpack.c.l.b16 %v6007
    %v6068 = vunpack.c.l.b16 %v6008
    %v6069 = vunpack.c.l.b16 %v6009
    %v6070 = vunpack.c.l.b16 %v6010
    %v6071 = vunpack.c.l.b16 %v6011
    %v6072 = vunpack.c.l.b16 %v6012
    %v6073 = vunpack.c.l.b16 %v6013
    %v6074 = vunpack.c.l.b16 %v6014
    %v6075 = vunpack.c.l.b16 %v6015
    %v6076 = vunpack.c.l.b16 %v6016
    %v6077 = vunpack.c.l.b16 %v6017
    %v6078 = vunpack.c.l.b16 %v6018
    %v6079 = vunpack.c.l.b16 %v6019
    %v6080 = vunpack.c.l.b16 %v6020
    %v6081 = vunpack.c.l.b16 %v6021
    %v6082 = vunpack.c.l.b16 %v6022
    %v6083 = vunpack.c.l.b16 %v6023
    %v6084 = vunpack.c.l.b16 %v6024
    %v6085 = vunpack.c.l.b16 %v6025
    %v6086 = vpack.c.b16 %v6057, %v6056
    %v6087 = vpack.c.b16 %v6059, %v6058
    %v6088 = vpack.c.b16 %v6061, %v6060
    %v6089 = vpack.c.b16 %v6063, %v6062
    %v6090 = vpack.c.b16 %v6065, %v6064
    %v6091 = vpack.c.b16 %v6067, %v6066
    %v6092 = vpack.c.b16 %v6069, %v6068
    %v6093 = vpack.c.b16 %v6071, %v6070
    %v6094 = vpack.c.b16 %v6073, %v6072
    %v6095 = vpack.c.b16 %v6075, %v6074
    %v6096 = vpack.c.b16 %v6077, %v6076
    %v6097 = vpack.c.b16 %v6079, %v6078
    %v6098 = vpack.c.b16 %v6081, %v6080
    %v6099 = vpack.c.b16 %v6083, %v6082
    %v6100 = vpack.c.b16 %v6085, %v6084
    %v6117 = vsel %vm860, %v5947, 0
    %v6120 = vsel %vm860, %v5949, 0
    %v6123 = vsel %vm860, %v5951, 0
    %v6126 = vsel %vm860, %v5953, 0
    %v6129 = vsel %vm860, %v5955, 0
    %v6132 = vsel %vm860, %v5957, 0
    %v6135 = vsel %vm860, %v5959, 0
    %v6138 = vsel %vm860, %v5961, 0
    %v6141 = vsel %vm860, %v5993, 0
    %v6144 = vsel %vm860, %v5995, 0
    %6146 = vmatprep.subr.bf16.mxu0 0
    %6147 = vmatpush1.bf16.msra.mxu0 %v6086
    %6148 = vmatprep.subr.bf16.mxu0 0
    %6149 = vmatpush1.bf16.msra.mxu0 %v6087
    %6150 = vmatprep.subr.bf16.mxu0 0
    %6151 = vmatpush1.bf16.msra.mxu0 %v6088
    %6152 = vmatprep.subr.bf16.mxu0 0
    %6153 = vmatpush1.bf16.msra.mxu0 %v6089
    %6154 = vmatprep.subr.bf16.mxu0 0
    %6155 = vmatpush1.bf16.msra.mxu0 %v6090
    %6156 = vmatprep.subr.bf16.mxu0 0
    %6157 = vmatpush1.bf16.msra.mxu0 %v6091
    %6158 = vmatprep.subr.bf16.mxu0 0
    %6159 = vmatpush1.bf16.msra.mxu0 %v6092
    %6160 = vmatprep.subr.bf16.mxu0 0
    %6161 = vmatpush1.bf16.msra.mxu0 %v6093
    %6162 = vmatprep.subr.bf16.mxu0 0
    %6163 = vmatpush1.bf16.msra.mxu0 %v6094
    %6164 = vmatprep.subr.bf16.mxu0 0
    %6165 = vmatpush1.bf16.msra.mxu0 %v6095
    %6166 = vmatprep.subr.bf16.mxu0 0
    %6167 = vmatpush1.bf16.msra.mxu0 %v6096
    %6168 = vmatprep.subr.bf16.mxu0 0
    %6169 = vmatpush1.bf16.msra.mxu0 %v6097
    %6170 = vmatprep.subr.bf16.mxu0 0
    %6171 = vmatpush1.bf16.msra.mxu0 %v6098
    %6172 = vmatprep.subr.bf16.mxu0 0
    %6173 = vmatpush1.bf16.msra.mxu0 %v6099
    %6174 = vmatprep.subr.bf16.mxu0 0
    %6175 = vmatpush1.bf16.msra.mxu0 %v6100
    %6176 = vmatprep.subr.bf16.mxu0 0
    %6177 = vmatpush1.bf16.msra.mxu0 0
    %6178 = vmatprep.mubr.bf16.mxu0 %v6117
    %6179 = vmatmul.mubr.bf16.gmra.mrb[0].mxu0 %v5946
    %v6180 = vpop.f32.mrb[0].mxu0
    %v6181 = vadd.f32 0.0, %v6180
    %v6182 = vpop.f32.mrb[0].mxu0
    %v6183 = vpop.f32.mrb[0].mxu0
    %v6184 = vadd.f32 0.0, %v6183
    %v6185 = vpop.f32.mrb[0].mxu0
    %6186 = vmatprep.mubr.bf16.mxu0 %v6120
    %6187 = vmatmul.mubr.bf16.gmra.mrb[0].mxu0 %v5948
    %v6188 = vpop.f32.mrb[0].mxu0
    %v6189 = vadd.f32 0.0, %v6188
    %v6190 = vpop.f32.mrb[0].mxu0
    %v6191 = vpop.f32.mrb[0].mxu0
    %v6192 = vadd.f32 0.0, %v6191
    %v6193 = vpop.f32.mrb[0].mxu0
    %6194 = vmatprep.mubr.bf16.mxu0 %v6123
    %6195 = vmatmul.mubr.bf16.gmra.mrb[0].mxu0 %v5950
    %v6196 = vpop.f32.mrb[0].mxu0
    %v6197 = vadd.f32 0.0, %v6196
    %v6198 = vpop.f32.mrb[0].mxu0
    %v6199 = vpop.f32.mrb[0].mxu0
    %v6200 = vadd.f32 0.0, %v6199
    %v6201 = vpop.f32.mrb[0].mxu0
    %6202 = vmatprep.mubr.bf16.mxu0 %v6126
    %6203 = vmatmul.mubr.bf16.gmra.mrb[0].mxu0 %v5952
    %v6204 = vpop.f32.mrb[0].mxu0
    %v6205 = vadd.f32 0.0, %v6204
    %v6206 = vpop.f32.mrb[0].mxu0
    %v6207 = vpop.f32.mrb[0].mxu0
    %v6208 = vadd.f32 0.0, %v6207
    %v6209 = vpop.f32.mrb[0].mxu0
    %6210 = vmatprep.mubr.bf16.mxu0 %v6129
    %6211 = vmatmul.mubr.bf16.gmra.mrb[0].mxu0 %v5954
    %v6212 = vpop.f32.mrb[0].mxu0
    %v6213 = vadd.f32 0.0, %v6212
    %v6214 = vpop.f32.mrb[0].mxu0
    %v6215 = vpop.f32.mrb[0].mxu0
    %v6216 = vadd.f32 0.0, %v6215
    %v6217 = vpop.f32.mrb[0].mxu0
    %6218 = vmatprep.mubr.bf16.mxu0 %v6132
    %6219 = vmatmul.mubr.bf16.gmra.mrb[0].mxu0 %v5956
    %v6220 = vpop.f32.mrb[0].mxu0
    %v6221 = vadd.f32 0.0, %v6220
    %v6222 = vpop.f32.mrb[0].mxu0
    %v6223 = vpop.f32.mrb[0].mxu0
    %v6224 = vadd.f32 0.0, %v6223
    %v6225 = vpop.f32.mrb[0].mxu0
    %6226 = vmatprep.mubr.bf16.mxu0 %v6135
    %6227 = vmatmul.mubr.bf16.gmra.mrb[0].mxu0 %v5958
    %v6228 = vpop.f32.mrb[0].mxu0
    %v6229 = vadd.f32 0.0, %v6228
    %v6230 = vpop.f32.mrb[0].mxu0
    %v6231 = vpop.f32.mrb[0].mxu0
    %v6232 = vadd.f32 0.0, %v6231
    %v6233 = vpop.f32.mrb[0].mxu0
    %6234 = vmatprep.mubr.bf16.mxu0 %v6138
    %6235 = vmatmul.mubr.bf16.gmra.mrb[0].mxu0 %v5960
    %v6236 = vpop.f32.mrb[0].mxu0
    %v6237 = vadd.f32 0.0, %v6236
    %v6238 = vpop.f32.mrb[0].mxu0
    %v6239 = vpop.f32.mrb[0].mxu0
    %v6240 = vadd.f32 0.0, %v6239
    %v6241 = vpop.f32.mrb[0].mxu0
    %6242 = vmatprep.mubr.bf16.mxu0 %v6141
    %6243 = vmatmul.mubr.bf16.gmra.mrb[0].mxu0 %v5992
    %v6244 = vpop.f32.mrb[0].mxu0
    %v6245 = vadd.f32 0.0, %v6244
    %v6246 = vpop.f32.mrb[0].mxu0
    %v6247 = vpop.f32.mrb[0].mxu0
    %v6248 = vadd.f32 0.0, %v6247
    %v6249 = vpop.f32.mrb[0].mxu0
    %6250 = vmatprep.mubr.bf16.mxu0 %v6144
    %6251 = vmatmul.mubr.bf16.gmra.mrb[0].mxu0 %v5994
    %v6252 = vpop.f32.mrb[0].mxu0
    %v6253 = vadd.f32 0.0, %v6252
    %v6254 = vpop.f32.mrb[0].mxu0
    %v6255 = vpop.f32.mrb[0].mxu0
    %v6256 = vadd.f32 0.0, %v6255
    %v6257 = vpop.f32.mrb[0].mxu0
    %6258 = vdwg.mxu0
    %v6289 = vunpack.c.l.b16 %v5962
    %v6290 = vunpack.c.l.b16 %v5963
    %v6291 = vunpack.c.l.b16 %v5964
    %v6292 = vunpack.c.l.b16 %v5965
    %v6293 = vunpack.c.l.b16 %v5966
    %v6294 = vunpack.c.l.b16 %v5967
    %v6295 = vunpack.c.l.b16 %v5968
    %v6296 = vunpack.c.l.b16 %v5969
    %v6297 = vunpack.c.l.b16 %v5970
    %v6298 = vunpack.c.l.b16 %v5971
    %v6299 = vunpack.c.l.b16 %v5972
    %v6300 = vunpack.c.l.b16 %v5973
    %v6301 = vunpack.c.l.b16 %v5974
    %v6302 = vunpack.c.l.b16 %v5975
    %v6303 = vunpack.c.l.b16 %v5976
    %v6304 = vunpack.c.l.b16 %v5977
    %v6305 = vunpack.c.l.b16 %v5978
    %v6306 = vunpack.c.l.b16 %v5979
    %v6307 = vunpack.c.l.b16 %v5980
    %v6308 = vunpack.c.l.b16 %v5981
    %v6309 = vunpack.c.l.b16 %v5982
    %v6310 = vunpack.c.l.b16 %v5983
    %v6311 = vunpack.c.l.b16 %v5984
    %v6312 = vunpack.c.l.b16 %v5985
    %v6313 = vunpack.c.l.b16 %v5986
    %v6314 = vunpack.c.l.b16 %v5987
    %v6315 = vunpack.c.l.b16 %v5988
    %v6316 = vunpack.c.l.b16 %v5989
    %v6317 = vunpack.c.l.b16 %v5990
    %v6318 = vunpack.c.l.b16 %v5991
    %v6319 = vpack.c.b16 %v6290, %v6289
    %v6320 = vpack.c.b16 %v6292, %v6291
    %v6321 = vpack.c.b16 %v6294, %v6293
    %v6322 = vpack.c.b16 %v6296, %v6295
    %v6323 = vpack.c.b16 %v6298, %v6297
    %v6324 = vpack.c.b16 %v6300, %v6299
    %v6325 = vpack.c.b16 %v6302, %v6301
    %v6326 = vpack.c.b16 %v6304, %v6303
    %v6327 = vpack.c.b16 %v6306, %v6305
    %v6328 = vpack.c.b16 %v6308, %v6307
    %v6329 = vpack.c.b16 %v6310, %v6309
    %v6330 = vpack.c.b16 %v6312, %v6311
    %v6331 = vpack.c.b16 %v6314, %v6313
    %v6332 = vpack.c.b16 %v6316, %v6315
    %v6333 = vpack.c.b16 %v6318, %v6317
    %v6350 = vsel %vm860, %v5943, 0
    %v6353 = vsel %vm860, %v5945, 0
    %6355 = vmatprep.subr.bf16.mxu0 0
    %6356 = vmatpush1.bf16.msra.mxu0 %v6319
    %6357 = vmatprep.subr.bf16.mxu0 0
    %6358 = vmatpush1.bf16.msra.mxu0 %v6320
    %6359 = vmatprep.subr.bf16.mxu0 0
    %6360 = vmatpush1.bf16.msra.mxu0 %v6321
    %6361 = vmatprep.subr.bf16.mxu0 0
    %6362 = vmatpush1.bf16.msra.mxu0 %v6322
    %6363 = vmatprep.subr.bf16.mxu0 0
    %6364 = vmatpush1.bf16.msra.mxu0 %v6323
    %6365 = vmatprep.subr.bf16.mxu0 0
    %6366 = vmatpush1.bf16.msra.mxu0 %v6324
    %6367 = vmatprep.subr.bf16.mxu0 0
    %6368 = vmatpush1.bf16.msra.mxu0 %v6325
    %6369 = vmatprep.subr.bf16.mxu0 0
    %6370 = vmatpush1.bf16.msra.mxu0 %v6326
    %6371 = vmatprep.subr.bf16.mxu0 0
    %6372 = vmatpush1.bf16.msra.mxu0 %v6327
    %6373 = vmatprep.subr.bf16.mxu0 0
    %6374 = vmatpush1.bf16.msra.mxu0 %v6328
    %6375 = vmatprep.subr.bf16.mxu0 0
    %6376 = vmatpush1.bf16.msra.mxu0 %v6329
    %6377 = vmatprep.subr.bf16.mxu0 0
    %6378 = vmatpush1.bf16.msra.mxu0 %v6330
    %6379 = vmatprep.subr.bf16.mxu0 0
    %6380 = vmatpush1.bf16.msra.mxu0 %v6331
    %6381 = vmatprep.subr.bf16.mxu0 0
    %6382 = vmatpush1.bf16.msra.mxu0 %v6332
    %6383 = vmatprep.subr.bf16.mxu0 0
    %6384 = vmatpush1.bf16.msra.mxu0 %v6333
    %6385 = vmatprep.subr.bf16.mxu0 0
    %6386 = vmatpush1.bf16.msra.mxu0 0
    %6387 = vmatprep.mubr.bf16.mxu0 %v6350
    %6388 = vmatmul.mubr.bf16.gmra.mrb[0].mxu0 %v5942
    %v6389 = vpop.f32.mrb[0].mxu0
    %v6390 = vadd.f32 %v6181, %v6389
    %v6391 = vpop.f32.mrb[0].mxu0
    %v6392 = vpop.f32.mrb[0].mxu0
    %v6393 = vadd.f32 %v6184, %v6392
    %v6394 = vpop.f32.mrb[0].mxu0
    %6395 = vmatprep.mubr.bf16.mxu0 %v6353
    %6396 = vmatmul.mubr.bf16.gmra.mrb[0].mxu0 %v5944
    %v6397 = vpop.f32.mrb[0].mxu0
    %v6398 = vadd.f32 %v6189, %v6397
    %v6399 = vpop.f32.mrb[0].mxu0
    %v6400 = vpop.f32.mrb[0].mxu0
    %v6401 = vadd.f32 %v6192, %v6400
    %v6402 = vpop.f32.mrb[0].mxu0
    %6403 = vmatprep.mubr.bf16.mxu0 %v6117
    %6404 = vmatmul.mubr.bf16.gmra.mrb[0].mxu0 %v5946
    %v6405 = vpop.f32.mrb[0].mxu0
    %v6406 = vadd.f32 %v6197, %v6405
    %v6407 = vpop.f32.mrb[0].mxu0
    %v6408 = vpop.f32.mrb[0].mxu0
    %v6409 = vadd.f32 %v6200, %v6408
    %v6410 = vpop.f32.mrb[0].mxu0
    %6411 = vmatprep.mubr.bf16.mxu0 %v6120
    %6412 = vmatmul.mubr.bf16.gmra.mrb[0].mxu0 %v5948
    %v6413 = vpop.f32.mrb[0].mxu0
    %v6414 = vadd.f32 %v6205, %v6413
    %v6415 = vpop.f32.mrb[0].mxu0
    %v6416 = vpop.f32.mrb[0].mxu0
    %v6417 = vadd.f32 %v6208, %v6416
    %v6418 = vpop.f32.mrb[0].mxu0
    %6419 = vmatprep.mubr.bf16.mxu0 %v6123
    %6420 = vmatmul.mubr.bf16.gmra.mrb[0].mxu0 %v5950
    %v6421 = vpop.f32.mrb[0].mxu0
    %v6422 = vadd.f32 %v6213, %v6421
    %v6423 = vpop.f32.mrb[0].mxu0
    %v6424 = vpop.f32.mrb[0].mxu0
    %v6425 = vadd.f32 %v6216, %v6424
    %v6426 = vpop.f32.mrb[0].mxu0
    %6427 = vmatprep.mubr.bf16.mxu0 %v6126
    %6428 = vmatmul.mubr.bf16.gmra.mrb[0].mxu0 %v5952
    %v6429 = vpop.f32.mrb[0].mxu0
    %v6430 = vadd.f32 %v6221, %v6429
    %v6431 = vpop.f32.mrb[0].mxu0
    %v6432 = vpop.f32.mrb[0].mxu0
    %v6433 = vadd.f32 %v6224, %v6432
    %v6434 = vpop.f32.mrb[0].mxu0
    %6435 = vmatprep.mubr.bf16.mxu0 %v6129
    %6436 = vmatmul.mubr.bf16.gmra.mrb[0].mxu0 %v5954
    %v6437 = vpop.f32.mrb[0].mxu0
    %v6438 = vadd.f32 %v6229, %v6437
    %v6439 = vpop.f32.mrb[0].mxu0
    %v6440 = vpop.f32.mrb[0].mxu0
    %v6441 = vadd.f32 %v6232, %v6440
    %v6442 = vpop.f32.mrb[0].mxu0
    %6443 = vmatprep.mubr.bf16.mxu0 %v6132
    %6444 = vmatmul.mubr.bf16.gmra.mrb[0].mxu0 %v5956
    %v6445 = vpop.f32.mrb[0].mxu0
    %v6446 = vadd.f32 %v6237, %v6445
    %v6447 = vpop.f32.mrb[0].mxu0
    %v6448 = vpop.f32.mrb[0].mxu0
    %v6449 = vadd.f32 %v6240, %v6448
    %v6450 = vpop.f32.mrb[0].mxu0
    %6451 = vmatprep.mubr.bf16.mxu0 %v6135
    %6452 = vmatmul.mubr.bf16.gmra.mrb[0].mxu0 %v5958
    %v6453 = vpop.f32.mrb[0].mxu0
    %v6454 = vadd.f32 %v6245, %v6453
    %v6455 = vpop.f32.mrb[0].mxu0
    %v6456 = vpop.f32.mrb[0].mxu0
    %v6457 = vadd.f32 %v6248, %v6456
    %v6458 = vpop.f32.mrb[0].mxu0
    %6459 = vmatprep.mubr.bf16.mxu0 %v6138
    %6460 = vmatmul.mubr.bf16.gmra.mrb[0].mxu0 %v5960
    %v6461 = vpop.f32.mrb[0].mxu0
    %v6462 = vadd.f32 %v6253, %v6461
    %v6463 = vpop.f32.mrb[0].mxu0
    %v6464 = vpop.f32.mrb[0].mxu0
    %v6465 = vadd.f32 %v6256, %v6464
    %v6466 = vpop.f32.mrb[0].mxu0
    %6467 = vdwg.mxu0
    %v6468 = vld [vmem:[#allocation2 + $0x220] sm:$0xff]
    %v6469 = vld [vmem:[#allocation2 + $0x228] sm:$0xff]
    %v6470 = vld [vmem:[#allocation2 + $0x230] sm:$0xff]
    %v6471 = vld [vmem:[#allocation2 + $0x238] sm:$0xff]
    %v6472 = vld [vmem:[#allocation2 + $0x240] sm:$0xff]
    %v6473 = vld [vmem:[#allocation2 + $0x248] sm:$0xff]
    %v6474 = vld [vmem:[#allocation2 + $0x250] sm:$0xff]
    %v6475 = vld [vmem:[#allocation2 + $0x258] sm:$0xff]
    %v6476 = vld [vmem:[#allocation2 + $0x260] sm:$0xff]
    %v6477 = vld [vmem:[#allocation2 + $0x268] sm:$0xff]
    %v6478 = vld [vmem:[#allocation2 + $0x270] sm:$0xff]
    %v6479 = vld [vmem:[#allocation2 + $0x278] sm:$0xff]
    %v6480 = vld [vmem:[#allocation2 + $0x280] sm:$0xff]
    %v6481 = vld [vmem:[#allocation2 + $0x288] sm:$0xff]
    %v6482 = vld [vmem:[#allocation2 + $0x290] sm:$0xff]
    %v6483 = vld [vmem:[#allocation2 + $0x298] sm:$0xff]
    %v6484 = vld [vmem:[#allocation2 + $0x2a0] sm:$0xff]
    %v6485 = vld [vmem:[#allocation2 + $0x2a8] sm:$0xff]
    %v6486 = vld [vmem:[#allocation2 + $0x2b0] sm:$0xff]
    %v6487 = vld [vmem:[#allocation2 + $0x2b8] sm:$0xff]
    %v6488 = vld [vmem:[%s1844] sm:$0xf]
    %v6489 = vld [vmem:[%s1844 + $0x4] sm:$0xf]
    %v6490 = vld [vmem:[%s1844 + $0x8] sm:$0xf]
    %v6491 = vld [vmem:[%s1844 + $0xc] sm:$0xf]
    %v6492 = vld [vmem:[%s1844 + $0x10] sm:$0xf]
    %v6493 = vld [vmem:[%s1844 + $0x14] sm:$0xf]
    %v6494 = vld [vmem:[%s1844 + $0x18] sm:$0xf]
    %v6495 = vld [vmem:[%s1844 + $0x1c] sm:$0xf]
    %v6496 = vld [vmem:[%s1844 + $0x20] sm:$0xf]
    %v6497 = vld [vmem:[%s1844 + $0x24] sm:$0xf]
    %v6498 = vld [vmem:[%s1844 + $0x28] sm:$0xf]
    %v6499 = vld [vmem:[%s1844 + $0x2c] sm:$0xf]
    %v6500 = vld [vmem:[%s1844 + $0x30] sm:$0xf]
    %v6501 = vld [vmem:[%s1844 + $0x34] sm:$0xf]
    %v6502 = vld [vmem:[%s1844 + $0x38] sm:$0xf]
    %v6503 = vld [vmem:[%s1844 + $0x3c] sm:$0xf]
    %v6504 = vld [vmem:[%s1844 + $0x40] sm:$0xf]
    %v6505 = vld [vmem:[%s1844 + $0x44] sm:$0xf]
    %v6506 = vld [vmem:[%s1844 + $0x48] sm:$0xf]
    %v6507 = vld [vmem:[%s1844 + $0x4c] sm:$0xf]
    %v6508 = vld [vmem:[%s1844 + $0x50] sm:$0xf]
    %v6509 = vld [vmem:[%s1844 + $0x54] sm:$0xf]
    %v6510 = vld [vmem:[%s1844 + $0x58] sm:$0xf]
    %v6511 = vld [vmem:[%s1844 + $0x5c] sm:$0xf]
    %v6512 = vld [vmem:[%s1844 + $0x60] sm:$0xf]
    %v6513 = vld [vmem:[%s1844 + $0x64] sm:$0xf]
    %v6514 = vld [vmem:[%s1844 + $0x68] sm:$0xf]
    %v6515 = vld [vmem:[%s1844 + $0x6c] sm:$0xf]
    %v6516 = vld [vmem:[%s1844 + $0x70] sm:$0xf]
    %v6517 = vld [vmem:[%s1844 + $0x74] sm:$0xf]
    %v6548 = vunpack.c.l.b16 %v6488
    %v6549 = vunpack.c.l.b16 %v6489
    %v6550 = vunpack.c.l.b16 %v6490
    %v6551 = vunpack.c.l.b16 %v6491
    %v6552 = vunpack.c.l.b16 %v6492
    %v6553 = vunpack.c.l.b16 %v6493
    %v6554 = vunpack.c.l.b16 %v6494
    %v6555 = vunpack.c.l.b16 %v6495
    %v6556 = vunpack.c.l.b16 %v6496
    %v6557 = vunpack.c.l.b16 %v6497
    %v6558 = vunpack.c.l.b16 %v6498
    %v6559 = vunpack.c.l.b16 %v6499
    %v6560 = vunpack.c.l.b16 %v6500
    %v6561 = vunpack.c.l.b16 %v6501
    %v6562 = vunpack.c.l.b16 %v6502
    %v6563 = vunpack.c.l.b16 %v6503
    %v6564 = vunpack.c.l.b16 %v6504
    %v6565 = vunpack.c.l.b16 %v6505
    %v6566 = vunpack.c.l.b16 %v6506
    %v6567 = vunpack.c.l.b16 %v6507
    %v6568 = vunpack.c.l.b16 %v6508
    %v6569 = vunpack.c.l.b16 %v6509
    %v6570 = vunpack.c.l.b16 %v6510
    %v6571 = vunpack.c.l.b16 %v6511
    %v6572 = vunpack.c.l.b16 %v6512
    %v6573 = vunpack.c.l.b16 %v6513
    %v6574 = vunpack.c.l.b16 %v6514
    %v6575 = vunpack.c.l.b16 %v6515
    %v6576 = vunpack.c.l.b16 %v6516
    %v6577 = vunpack.c.l.b16 %v6517
    %v6578 = vpack.c.b16 %v6549, %v6548
    %v6579 = vpack.c.b16 %v6551, %v6550
    %v6580 = vpack.c.b16 %v6553, %v6552
    %v6581 = vpack.c.b16 %v6555, %v6554
    %v6582 = vpack.c.b16 %v6557, %v6556
    %v6583 = vpack.c.b16 %v6559, %v6558
    %v6584 = vpack.c.b16 %v6561, %v6560
    %v6585 = vpack.c.b16 %v6563, %v6562
    %v6586 = vpack.c.b16 %v6565, %v6564
    %v6587 = vpack.c.b16 %v6567, %v6566
    %v6588 = vpack.c.b16 %v6569, %v6568
    %v6589 = vpack.c.b16 %v6571, %v6570
    %v6590 = vpack.c.b16 %v6573, %v6572
    %v6591 = vpack.c.b16 %v6575, %v6574
    %v6592 = vpack.c.b16 %v6577, %v6576
    %v6609 = vsel %vm860, %v6469, 0
    %v6612 = vsel %vm860, %v6471, 0
    %v6615 = vsel %vm860, %v6473, 0
    %v6618 = vsel %vm860, %v6475, 0
    %v6621 = vsel %vm860, %v6477, 0
    %v6624 = vsel %vm860, %v6479, 0
    %v6627 = vsel %vm860, %v6481, 0
    %v6630 = vsel %vm860, %v6483, 0
    %v6633 = vsel %vm860, %v6485, 0
    %v6636 = vsel %vm860, %v6487, 0
    %6638 = vmatprep.subr.bf16.mxu0 0
    %6639 = vmatpush1.bf16.msra.mxu0 %v6578
    %6640 = vmatprep.subr.bf16.mxu0 0
    %6641 = vmatpush1.bf16.msra.mxu0 %v6579
    %6642 = vmatprep.subr.bf16.mxu0 0
    %6643 = vmatpush1.bf16.msra.mxu0 %v6580
    %6644 = vmatprep.subr.bf16.mxu0 0
    %6645 = vmatpush1.bf16.msra.mxu0 %v6581
    %6646 = vmatprep.subr.bf16.mxu0 0
    %6647 = vmatpush1.bf16.msra.mxu0 %v6582
    %6648 = vmatprep.subr.bf16.mxu0 0
    %6649 = vmatpush1.bf16.msra.mxu0 %v6583
    %6650 = vmatprep.subr.bf16.mxu0 0
    %6651 = vmatpush1.bf16.msra.mxu0 %v6584
    %6652 = vmatprep.subr.bf16.mxu0 0
    %6653 = vmatpush1.bf16.msra.mxu0 %v6585
    %6654 = vmatprep.subr.bf16.mxu0 0
    %6655 = vmatpush1.bf16.msra.mxu0 %v6586
    %6656 = vmatprep.subr.bf16.mxu0 0
    %6657 = vmatpush1.bf16.msra.mxu0 %v6587
    %6658 = vmatprep.subr.bf16.mxu0 0
    %6659 = vmatpush1.bf16.msra.mxu0 %v6588
    %6660 = vmatprep.subr.bf16.mxu0 0
    %6661 = vmatpush1.bf16.msra.mxu0 %v6589
    %6662 = vmatprep.subr.bf16.mxu0 0
    %6663 = vmatpush1.bf16.msra.mxu0 %v6590
    %6664 = vmatprep.subr.bf16.mxu0 0
    %6665 = vmatpush1.bf16.msra.mxu0 %v6591
    %6666 = vmatprep.subr.bf16.mxu0 0
    %6667 = vmatpush1.bf16.msra.mxu0 %v6592
    %6668 = vmatprep.subr.bf16.mxu0 0
    %6669 = vmatpush1.bf16.msra.mxu0 0
    %6670 = vmatprep.mubr.bf16.mxu0 %v6609
    %6671 = vmatmul.mubr.bf16.gmra.mrb[0].mxu0 %v6468
    %v6672 = vpop.f32.mrb[0].mxu0
    %v6673 = vadd.f32 0.0, %v6672
    %v6674 = vpop.f32.mrb[0].mxu0
    %v6675 = vpop.f32.mrb[0].mxu0
    %v6676 = vadd.f32 0.0, %v6675
    %v6677 = vpop.f32.mrb[0].mxu0
    %6678 = vmatprep.mubr.bf16.mxu0 %v6612
    %6679 = vmatmul.mubr.bf16.gmra.mrb[0].mxu0 %v6470
    %v6680 = vpop.f32.mrb[0].mxu0
    %v6681 = vadd.f32 0.0, %v6680
    %v6682 = vpop.f32.mrb[0].mxu0
    %v6683 = vpop.f32.mrb[0].mxu0
    %v6684 = vadd.f32 0.0, %v6683
    %v6685 = vpop.f32.mrb[0].mxu0
    %6686 = vmatprep.mubr.bf16.mxu0 %v6615
    %6687 = vmatmul.mubr.bf16.gmra.mrb[0].mxu0 %v6472
    %v6688 = vpop.f32.mrb[0].mxu0
    %v6689 = vadd.f32 0.0, %v6688
    %v6690 = vpop.f32.mrb[0].mxu0
    %v6691 = vpop.f32.mrb[0].mxu0
    %v6692 = vadd.f32 0.0, %v6691
    %v6693 = vpop.f32.mrb[0].mxu0
    %6694 = vmatprep.mubr.bf16.mxu0 %v6618
    %6695 = vmatmul.mubr.bf16.gmra.mrb[0].mxu0 %v6474
    %v6696 = vpop.f32.mrb[0].mxu0
    %v6697 = vadd.f32 0.0, %v6696
    %v6698 = vpop.f32.mrb[0].mxu0
    %v6699 = vpop.f32.mrb[0].mxu0
    %v6700 = vadd.f32 0.0, %v6699
    %v6701 = vpop.f32.mrb[0].mxu0
    %6702 = vmatprep.mubr.bf16.mxu0 %v6621
    %6703 = vmatmul.mubr.bf16.gmra.mrb[0].mxu0 %v6476
    %v6704 = vpop.f32.mrb[0].mxu0
    %v6705 = vadd.f32 0.0, %v6704
    %v6706 = vpop.f32.mrb[0].mxu0
    %v6707 = vpop.f32.mrb[0].mxu0
    %v6708 = vadd.f32 0.0, %v6707
    %v6709 = vpop.f32.mrb[0].mxu0
    %6710 = vmatprep.mubr.bf16.mxu0 %v6624
    %6711 = vmatmul.mubr.bf16.gmra.mrb[0].mxu0 %v6478
    %v6712 = vpop.f32.mrb[0].mxu0
    %v6713 = vadd.f32 0.0, %v6712
    %v6714 = vpop.f32.mrb[0].mxu0
    %v6715 = vpop.f32.mrb[0].mxu0
    %v6716 = vadd.f32 0.0, %v6715
    %v6717 = vpop.f32.mrb[0].mxu0
    %6718 = vmatprep.mubr.bf16.mxu0 %v6627
    %6719 = vmatmul.mubr.bf16.gmra.mrb[0].mxu0 %v6480
    %v6720 = vpop.f32.mrb[0].mxu0
    %v6721 = vadd.f32 0.0, %v6720
    %v6722 = vpop.f32.mrb[0].mxu0
    %v6723 = vpop.f32.mrb[0].mxu0
    %v6724 = vadd.f32 0.0, %v6723
    %v6725 = vpop.f32.mrb[0].mxu0
    %6726 = vmatprep.mubr.bf16.mxu0 %v6630
    %6727 = vmatmul.mubr.bf16.gmra.mrb[0].mxu0 %v6482
    %v6728 = vpop.f32.mrb[0].mxu0
    %v6729 = vadd.f32 0.0, %v6728
    %v6730 = vpop.f32.mrb[0].mxu0
    %v6731 = vpop.f32.mrb[0].mxu0
    %v6732 = vadd.f32 0.0, %v6731
    %v6733 = vpop.f32.mrb[0].mxu0
    %6734 = vmatprep.mubr.bf16.mxu0 %v6633
    %6735 = vmatmul.mubr.bf16.gmra.mrb[0].mxu0 %v6484
    %v6736 = vpop.f32.mrb[0].mxu0
    %v6737 = vadd.f32 0.0, %v6736
    %v6738 = vpop.f32.mrb[0].mxu0
    %v6739 = vpop.f32.mrb[0].mxu0
    %v6740 = vadd.f32 0.0, %v6739
    %v6741 = vpop.f32.mrb[0].mxu0
    %6742 = vmatprep.mubr.bf16.mxu0 %v6636
    %6743 = vmatmul.mubr.bf16.gmra.mrb[0].mxu0 %v6486
    %v6744 = vpop.f32.mrb[0].mxu0
    %v6745 = vadd.f32 0.0, %v6744
    %v6746 = vpop.f32.mrb[0].mxu0
    %v6747 = vpop.f32.mrb[0].mxu0
    %v6748 = vadd.f32 0.0, %v6747
    %v6749 = vpop.f32.mrb[0].mxu0
    %6750 = vdwg.mxu0
    %v6751 = vadd.f32 %v6390, %v6673
    %v6752 = vadd.f32 %v6393, %v6676
    %v6753 = vadd.f32 %v6398, %v6681
    %v6754 = vadd.f32 %v6401, %v6684
    %v6755 = vadd.f32 %v6406, %v6689
    %v6756 = vadd.f32 %v6409, %v6692
    %v6757 = vadd.f32 %v6414, %v6697
    %v6758 = vadd.f32 %v6417, %v6700
    %v6759 = vadd.f32 %v6422, %v6705
    %v6760 = vadd.f32 %v6425, %v6708
    %v6761 = vadd.f32 %v6430, %v6713
    %v6762 = vadd.f32 %v6433, %v6716
    %v6763 = vadd.f32 %v6438, %v6721
    %v6764 = vadd.f32 %v6441, %v6724
    %v6765 = vadd.f32 %v6446, %v6729
    %v6766 = vadd.f32 %v6449, %v6732
    %v6767 = vadd.f32 %v6454, %v6737
    %v6768 = vadd.f32 %v6457, %v6740
    %v6769 = vadd.f32 %v6462, %v6745
    %v6770 = vadd.f32 %v6465, %v6748
    %v6771 = vld [vmem:[#allocation2 + $0x240] sm:$0xff]
    %v6772 = vld [vmem:[#allocation2 + $0x248] sm:$0xff]
    %v6773 = vld [vmem:[#allocation2 + $0x250] sm:$0xff]
    %v6774 = vld [vmem:[#allocation2 + $0x258] sm:$0xff]
    %v6775 = vld [vmem:[#allocation2 + $0x260] sm:$0xff]
    %v6776 = vld [vmem:[#allocation2 + $0x268] sm:$0xff]
    %v6777 = vld [vmem:[#allocation2 + $0x270] sm:$0xff]
    %v6778 = vld [vmem:[#allocation2 + $0x278] sm:$0xff]
    %v6779 = vld [vmem:[#allocation2 + $0x280] sm:$0xff]
    %v6780 = vld [vmem:[#allocation2 + $0x288] sm:$0xff]
    %v6781 = vld [vmem:[#allocation2 + $0x290] sm:$0xff]
    %v6782 = vld [vmem:[#allocation2 + $0x298] sm:$0xff]
    %v6783 = vld [vmem:[#allocation2 + $0x2a0] sm:$0xff]
    %v6784 = vld [vmem:[#allocation2 + $0x2a8] sm:$0xff]
    %v6785 = vld [vmem:[#allocation2 + $0x2b0] sm:$0xff]
    %v6786 = vld [vmem:[#allocation2 + $0x2b8] sm:$0xff]
    %v6787 = vld [vmem:[#allocation2 + $0x2c0] sm:$0xff]
    %v6788 = vld [vmem:[#allocation2 + $0x2c8] sm:$0xff]
    %v6789 = vld [vmem:[#allocation2 + $0x2d0] sm:$0xff]
    %v6790 = vld [vmem:[#allocation2 + $0x2d8] sm:$0xff]
    %v6791 = vld [vmem:[%s2148] sm:$0xf]
    %v6792 = vld [vmem:[%s2148 + $0x4] sm:$0xf]
    %v6793 = vld [vmem:[%s2148 + $0x8] sm:$0xf]
    %v6794 = vld [vmem:[%s2148 + $0xc] sm:$0xf]
    %v6795 = vld [vmem:[%s2148 + $0x10] sm:$0xf]
    %v6796 = vld [vmem:[%s2148 + $0x14] sm:$0xf]
    %v6797 = vld [vmem:[%s2148 + $0x18] sm:$0xf]
    %v6798 = vld [vmem:[%s2148 + $0x1c] sm:$0xf]
    %v6799 = vld [vmem:[%s2148 + $0x20] sm:$0xf]
    %v6800 = vld [vmem:[%s2148 + $0x24] sm:$0xf]
    %v6801 = vld [vmem:[%s2148 + $0x28] sm:$0xf]
    %v6802 = vld [vmem:[%s2148 + $0x2c] sm:$0xf]
    %v6803 = vld [vmem:[%s2148 + $0x30] sm:$0xf]
    %v6804 = vld [vmem:[%s2148 + $0x34] sm:$0xf]
    %v6805 = vld [vmem:[%s2148 + $0x38] sm:$0xf]
    %v6806 = vld [vmem:[%s2148 + $0x3c] sm:$0xf]
    %v6807 = vld [vmem:[%s2148 + $0x40] sm:$0xf]
    %v6808 = vld [vmem:[%s2148 + $0x44] sm:$0xf]
    %v6809 = vld [vmem:[%s2148 + $0x48] sm:$0xf]
    %v6810 = vld [vmem:[%s2148 + $0x4c] sm:$0xf]
    %v6811 = vld [vmem:[%s2148 + $0x50] sm:$0xf]
    %v6812 = vld [vmem:[%s2148 + $0x54] sm:$0xf]
    %v6813 = vld [vmem:[%s2148 + $0x58] sm:$0xf]
    %v6814 = vld [vmem:[%s2148 + $0x5c] sm:$0xf]
    %v6815 = vld [vmem:[%s2148 + $0x60] sm:$0xf]
    %v6816 = vld [vmem:[%s2148 + $0x64] sm:$0xf]
    %v6817 = vld [vmem:[%s2148 + $0x68] sm:$0xf]
    %v6818 = vld [vmem:[%s2148 + $0x6c] sm:$0xf]
    %v6819 = vld [vmem:[%s2148 + $0x70] sm:$0xf]
    %v6820 = vld [vmem:[%s2148 + $0x74] sm:$0xf]
    %v6851 = vunpack.c.l.b16 %v6791
    %v6852 = vunpack.c.l.b16 %v6792
    %v6853 = vunpack.c.l.b16 %v6793
    %v6854 = vunpack.c.l.b16 %v6794
    %v6855 = vunpack.c.l.b16 %v6795
    %v6856 = vunpack.c.l.b16 %v6796
    %v6857 = vunpack.c.l.b16 %v6797
    %v6858 = vunpack.c.l.b16 %v6798
    %v6859 = vunpack.c.l.b16 %v6799
    %v6860 = vunpack.c.l.b16 %v6800
    %v6861 = vunpack.c.l.b16 %v6801
    %v6862 = vunpack.c.l.b16 %v6802
    %v6863 = vunpack.c.l.b16 %v6803
    %v6864 = vunpack.c.l.b16 %v6804
    %v6865 = vunpack.c.l.b16 %v6805
    %v6866 = vunpack.c.l.b16 %v6806
    %v6867 = vunpack.c.l.b16 %v6807
    %v6868 = vunpack.c.l.b16 %v6808
    %v6869 = vunpack.c.l.b16 %v6809
    %v6870 = vunpack.c.l.b16 %v6810
    %v6871 = vunpack.c.l.b16 %v6811
    %v6872 = vunpack.c.l.b16 %v6812
    %v6873 = vunpack.c.l.b16 %v6813
    %v6874 = vunpack.c.l.b16 %v6814
    %v6875 = vunpack.c.l.b16 %v6815
    %v6876 = vunpack.c.l.b16 %v6816
    %v6877 = vunpack.c.l.b16 %v6817
    %v6878 = vunpack.c.l.b16 %v6818
    %v6879 = vunpack.c.l.b16 %v6819
    %v6880 = vunpack.c.l.b16 %v6820
    %v6881 = vpack.c.b16 %v6852, %v6851
    %v6882 = vpack.c.b16 %v6854, %v6853
    %v6883 = vpack.c.b16 %v6856, %v6855
    %v6884 = vpack.c.b16 %v6858, %v6857
    %v6885 = vpack.c.b16 %v6860, %v6859
    %v6886 = vpack.c.b16 %v6862, %v6861
    %v6887 = vpack.c.b16 %v6864, %v6863
    %v6888 = vpack.c.b16 %v6866, %v6865
    %v6889 = vpack.c.b16 %v6868, %v6867
    %v6890 = vpack.c.b16 %v6870, %v6869
    %v6891 = vpack.c.b16 %v6872, %v6871
    %v6892 = vpack.c.b16 %v6874, %v6873
    %v6893 = vpack.c.b16 %v6876, %v6875
    %v6894 = vpack.c.b16 %v6878, %v6877
    %v6895 = vpack.c.b16 %v6880, %v6879
    %v6912 = vsel %vm860, %v6772, 0
    %v6915 = vsel %vm860, %v6774, 0
    %v6918 = vsel %vm860, %v6776, 0
    %v6921 = vsel %vm860, %v6778, 0
    %v6924 = vsel %vm860, %v6780, 0
    %v6927 = vsel %vm860, %v6782, 0
    %v6930 = vsel %vm860, %v6784, 0
    %v6933 = vsel %vm860, %v6786, 0
    %v6936 = vsel %vm860, %v6788, 0
    %v6939 = vsel %vm860, %v6790, 0
    %6941 = vmatprep.subr.bf16.mxu0 0
    %6942 = vmatpush1.bf16.msra.mxu0 %v6881
    %6943 = vmatprep.subr.bf16.mxu0 0
    %6944 = vmatpush1.bf16.msra.mxu0 %v6882
    %6945 = vmatprep.subr.bf16.mxu0 0
    %6946 = vmatpush1.bf16.msra.mxu0 %v6883
    %6947 = vmatprep.subr.bf16.mxu0 0
    %6948 = vmatpush1.bf16.msra.mxu0 %v6884
    %6949 = vmatprep.subr.bf16.mxu0 0
    %6950 = vmatpush1.bf16.msra.mxu0 %v6885
    %6951 = vmatprep.subr.bf16.mxu0 0
    %6952 = vmatpush1.bf16.msra.mxu0 %v6886
    %6953 = vmatprep.subr.bf16.mxu0 0
    %6954 = vmatpush1.bf16.msra.mxu0 %v6887
    %6955 = vmatprep.subr.bf16.mxu0 0
    %6956 = vmatpush1.bf16.msra.mxu0 %v6888
    %6957 = vmatprep.subr.bf16.mxu0 0
    %6958 = vmatpush1.bf16.msra.mxu0 %v6889
    %6959 = vmatprep.subr.bf16.mxu0 0
    %6960 = vmatpush1.bf16.msra.mxu0 %v6890
    %6961 = vmatprep.subr.bf16.mxu0 0
    %6962 = vmatpush1.bf16.msra.mxu0 %v6891
    %6963 = vmatprep.subr.bf16.mxu0 0
    %6964 = vmatpush1.bf16.msra.mxu0 %v6892
    %6965 = vmatprep.subr.bf16.mxu0 0
    %6966 = vmatpush1.bf16.msra.mxu0 %v6893
    %6967 = vmatprep.subr.bf16.mxu0 0
    %6968 = vmatpush1.bf16.msra.mxu0 %v6894
    %6969 = vmatprep.subr.bf16.mxu0 0
    %6970 = vmatpush1.bf16.msra.mxu0 %v6895
    %6971 = vmatprep.subr.bf16.mxu0 0
    %6972 = vmatpush1.bf16.msra.mxu0 0
    %6973 = vmatprep.mubr.bf16.mxu0 %v6912
    %6974 = vmatmul.mubr.bf16.gmra.mrb[0].mxu0 %v6771
    %v6975 = vpop.f32.mrb[0].mxu0
    %v6976 = vadd.f32 0.0, %v6975
    %v6977 = vpop.f32.mrb[0].mxu0
    %v6978 = vpop.f32.mrb[0].mxu0
    %v6979 = vadd.f32 0.0, %v6978
    %v6980 = vpop.f32.mrb[0].mxu0
    %6981 = vmatprep.mubr.bf16.mxu0 %v6915
    %6982 = vmatmul.mubr.bf16.gmra.mrb[0].mxu0 %v6773
    %v6983 = vpop.f32.mrb[0].mxu0
    %v6984 = vadd.f32 0.0, %v6983
    %v6985 = vpop.f32.mrb[0].mxu0
    %v6986 = vpop.f32.mrb[0].mxu0
    %v6987 = vadd.f32 0.0, %v6986
    %v6988 = vpop.f32.mrb[0].mxu0
    %6989 = vmatprep.mubr.bf16.mxu0 %v6918
    %6990 = vmatmul.mubr.bf16.gmra.mrb[0].mxu0 %v6775
    %v6991 = vpop.f32.mrb[0].mxu0
    %v6992 = vadd.f32 0.0, %v6991
    %v6993 = vpop.f32.mrb[0].mxu0
    %v6994 = vpop.f32.mrb[0].mxu0
    %v6995 = vadd.f32 0.0, %v6994
    %v6996 = vpop.f32.mrb[0].mxu0
    %6997 = vmatprep.mubr.bf16.mxu0 %v6921
    %6998 = vmatmul.mubr.bf16.gmra.mrb[0].mxu0 %v6777
    %v6999 = vpop.f32.mrb[0].mxu0
    %v7000 = vadd.f32 0.0, %v6999
    %v7001 = vpop.f32.mrb[0].mxu0
    %v7002 = vpop.f32.mrb[0].mxu0
    %v7003 = vadd.f32 0.0, %v7002
    %v7004 = vpop.f32.mrb[0].mxu0
    %7005 = vmatprep.mubr.bf16.mxu0 %v6924
    %7006 = vmatmul.mubr.bf16.gmra.mrb[0].mxu0 %v6779
    %v7007 = vpop.f32.mrb[0].mxu0
    %v7008 = vadd.f32 0.0, %v7007
    %v7009 = vpop.f32.mrb[0].mxu0
    %v7010 = vpop.f32.mrb[0].mxu0
    %v7011 = vadd.f32 0.0, %v7010
    %v7012 = vpop.f32.mrb[0].mxu0
    %7013 = vmatprep.mubr.bf16.mxu0 %v6927
    %7014 = vmatmul.mubr.bf16.gmra.mrb[0].mxu0 %v6781
    %v7015 = vpop.f32.mrb[0].mxu0
    %v7016 = vadd.f32 0.0, %v7015
    %v7017 = vpop.f32.mrb[0].mxu0
    %v7018 = vpop.f32.mrb[0].mxu0
    %v7019 = vadd.f32 0.0, %v7018
    %v7020 = vpop.f32.mrb[0].mxu0
    %7021 = vmatprep.mubr.bf16.mxu0 %v6930
    %7022 = vmatmul.mubr.bf16.gmra.mrb[0].mxu0 %v6783
    %v7023 = vpop.f32.mrb[0].mxu0
    %v7024 = vadd.f32 0.0, %v7023
    %v7025 = vpop.f32.mrb[0].mxu0
    %v7026 = vpop.f32.mrb[0].mxu0
    %v7027 = vadd.f32 0.0, %v7026
    %v7028 = vpop.f32.mrb[0].mxu0
    %7029 = vmatprep.mubr.bf16.mxu0 %v6933
    %7030 = vmatmul.mubr.bf16.gmra.mrb[0].mxu0 %v6785
    %v7031 = vpop.f32.mrb[0].mxu0
    %v7032 = vadd.f32 0.0, %v7031
    %v7033 = vpop.f32.mrb[0].mxu0
    %v7034 = vpop.f32.mrb[0].mxu0
    %v7035 = vadd.f32 0.0, %v7034
    %v7036 = vpop.f32.mrb[0].mxu0
    %7037 = vmatprep.mubr.bf16.mxu0 %v6936
    %7038 = vmatmul.mubr.bf16.gmra.mrb[0].mxu0 %v6787
    %v7039 = vpop.f32.mrb[0].mxu0
    %v7040 = vadd.f32 0.0, %v7039
    %v7041 = vpop.f32.mrb[0].mxu0
    %v7042 = vpop.f32.mrb[0].mxu0
    %v7043 = vadd.f32 0.0, %v7042
    %v7044 = vpop.f32.mrb[0].mxu0
    %7045 = vmatprep.mubr.bf16.mxu0 %v6939
    %7046 = vmatmul.mubr.bf16.gmra.mrb[0].mxu0 %v6789
    %v7047 = vpop.f32.mrb[0].mxu0
    %v7048 = vadd.f32 0.0, %v7047
    %v7049 = vpop.f32.mrb[0].mxu0
    %v7050 = vpop.f32.mrb[0].mxu0
    %v7051 = vadd.f32 0.0, %v7050
    %v7052 = vpop.f32.mrb[0].mxu0
    %7053 = vdwg.mxu0
    %v7054 = vadd.f32 %v6751, %v6976
    %v7055 = vadd.f32 %v6752, %v6979
    %v7056 = vadd.f32 %v6753, %v6984
    %v7057 = vadd.f32 %v6754, %v6987
    %v7058 = vadd.f32 %v6755, %v6992
    %v7059 = vadd.f32 %v6756, %v6995
    %v7060 = vadd.f32 %v6757, %v7000
    %v7061 = vadd.f32 %v6758, %v7003
    %v7062 = vadd.f32 %v6759, %v7008
    %v7063 = vadd.f32 %v6760, %v7011
    %v7064 = vadd.f32 %v6761, %v7016
    %v7065 = vadd.f32 %v6762, %v7019
    %v7066 = vadd.f32 %v6763, %v7024
    %v7067 = vadd.f32 %v6764, %v7027
    %v7068 = vadd.f32 %v6765, %v7032
    %v7069 = vadd.f32 %v6766, %v7035
    %v7070 = vadd.f32 %v6767, %v7040
    %v7071 = vadd.f32 %v6768, %v7043
    %v7072 = vadd.f32 %v6769, %v7048
    %v7073 = vadd.f32 %v6770, %v7051
    %v7074 = vld [vmem:[#allocation2 + $0x260] sm:$0xff]
    %v7075 = vld [vmem:[#allocation2 + $0x268] sm:$0xff]
    %v7076 = vld [vmem:[#allocation2 + $0x270] sm:$0xff]
    %v7077 = vld [vmem:[#allocation2 + $0x278] sm:$0xff]
    %v7078 = vld [vmem:[#allocation2 + $0x280] sm:$0xff]
    %v7079 = vld [vmem:[#allocation2 + $0x288] sm:$0xff]
    %v7080 = vld [vmem:[#allocation2 + $0x290] sm:$0xff]
    %v7081 = vld [vmem:[#allocation2 + $0x298] sm:$0xff]
    %v7082 = vld [vmem:[#allocation2 + $0x2a0] sm:$0xff]
    %v7083 = vld [vmem:[#allocation2 + $0x2a8] sm:$0xff]
    %v7084 = vld [vmem:[#allocation2 + $0x2b0] sm:$0xff]
    %v7085 = vld [vmem:[#allocation2 + $0x2b8] sm:$0xff]
    %v7086 = vld [vmem:[#allocation2 + $0x2c0] sm:$0xff]
    %v7087 = vld [vmem:[#allocation2 + $0x2c8] sm:$0xff]
    %v7088 = vld [vmem:[#allocation2 + $0x2d0] sm:$0xff]
    %v7089 = vld [vmem:[#allocation2 + $0x2d8] sm:$0xff]
    %v7090 = vld [vmem:[#allocation2 + $0x2e0] sm:$0xff]
    %v7091 = vld [vmem:[#allocation2 + $0x2e8] sm:$0xff]
    %v7092 = vld [vmem:[#allocation2 + $0x2f0] sm:$0xff]
    %v7093 = vld [vmem:[#allocation2 + $0x2f8] sm:$0xff]
    %v7094 = vld [vmem:[%s2452] sm:$0xf]
    %v7095 = vld [vmem:[%s2452 + $0x4] sm:$0xf]
    %v7096 = vld [vmem:[%s2452 + $0x8] sm:$0xf]
    %v7097 = vld [vmem:[%s2452 + $0xc] sm:$0xf]
    %v7098 = vld [vmem:[%s2452 + $0x10] sm:$0xf]
    %v7099 = vld [vmem:[%s2452 + $0x14] sm:$0xf]
    %v7100 = vld [vmem:[%s2452 + $0x18] sm:$0xf]
    %v7101 = vld [vmem:[%s2452 + $0x1c] sm:$0xf]
    %v7102 = vld [vmem:[%s2452 + $0x20] sm:$0xf]
    %v7103 = vld [vmem:[%s2452 + $0x24] sm:$0xf]
    %v7104 = vld [vmem:[%s2452 + $0x28] sm:$0xf]
    %v7105 = vld [vmem:[%s2452 + $0x2c] sm:$0xf]
    %v7106 = vld [vmem:[%s2452 + $0x30] sm:$0xf]
    %v7107 = vld [vmem:[%s2452 + $0x34] sm:$0xf]
    %v7108 = vld [vmem:[%s2452 + $0x38] sm:$0xf]
    %v7109 = vld [vmem:[%s2452 + $0x3c] sm:$0xf]
    %v7110 = vld [vmem:[%s2452 + $0x40] sm:$0xf]
    %v7111 = vld [vmem:[%s2452 + $0x44] sm:$0xf]
    %v7112 = vld [vmem:[%s2452 + $0x48] sm:$0xf]
    %v7113 = vld [vmem:[%s2452 + $0x4c] sm:$0xf]
    %v7114 = vld [vmem:[%s2452 + $0x50] sm:$0xf]
    %v7115 = vld [vmem:[%s2452 + $0x54] sm:$0xf]
    %v7116 = vld [vmem:[%s2452 + $0x58] sm:$0xf]
    %v7117 = vld [vmem:[%s2452 + $0x5c] sm:$0xf]
    %v7118 = vld [vmem:[%s2452 + $0x60] sm:$0xf]
    %v7119 = vld [vmem:[%s2452 + $0x64] sm:$0xf]
    %v7120 = vld [vmem:[%s2452 + $0x68] sm:$0xf]
    %v7121 = vld [vmem:[%s2452 + $0x6c] sm:$0xf]
    %v7122 = vld [vmem:[%s2452 + $0x70] sm:$0xf]
    %v7123 = vld [vmem:[%s2452 + $0x74] sm:$0xf]
    %v7154 = vunpack.c.l.b16 %v7094
    %v7155 = vunpack.c.l.b16 %v7095
    %v7156 = vunpack.c.l.b16 %v7096
    %v7157 = vunpack.c.l.b16 %v7097
    %v7158 = vunpack.c.l.b16 %v7098
    %v7159 = vunpack.c.l.b16 %v7099
    %v7160 = vunpack.c.l.b16 %v7100
    %v7161 = vunpack.c.l.b16 %v7101
    %v7162 = vunpack.c.l.b16 %v7102
    %v7163 = vunpack.c.l.b16 %v7103
    %v7164 = vunpack.c.l.b16 %v7104
    %v7165 = vunpack.c.l.b16 %v7105
    %v7166 = vunpack.c.l.b16 %v7106
    %v7167 = vunpack.c.l.b16 %v7107
    %v7168 = vunpack.c.l.b16 %v7108
    %v7169 = vunpack.c.l.b16 %v7109
    %v7170 = vunpack.c.l.b16 %v7110
    %v7171 = vunpack.c.l.b16 %v7111
    %v7172 = vunpack.c.l.b16 %v7112
    %v7173 = vunpack.c.l.b16 %v7113
    %v7174 = vunpack.c.l.b16 %v7114
    %v7175 = vunpack.c.l.b16 %v7115
    %v7176 = vunpack.c.l.b16 %v7116
    %v7177 = vunpack.c.l.b16 %v7117
    %v7178 = vunpack.c.l.b16 %v7118
    %v7179 = vunpack.c.l.b16 %v7119
    %v7180 = vunpack.c.l.b16 %v7120
    %v7181 = vunpack.c.l.b16 %v7121
    %v7182 = vunpack.c.l.b16 %v7122
    %v7183 = vunpack.c.l.b16 %v7123
    %v7184 = vpack.c.b16 %v7155, %v7154
    %v7185 = vpack.c.b16 %v7157, %v7156
    %v7186 = vpack.c.b16 %v7159, %v7158
    %v7187 = vpack.c.b16 %v7161, %v7160
    %v7188 = vpack.c.b16 %v7163, %v7162
    %v7189 = vpack.c.b16 %v7165, %v7164
    %v7190 = vpack.c.b16 %v7167, %v7166
    %v7191 = vpack.c.b16 %v7169, %v7168
    %v7192 = vpack.c.b16 %v7171, %v7170
    %v7193 = vpack.c.b16 %v7173, %v7172
    %v7194 = vpack.c.b16 %v7175, %v7174
    %v7195 = vpack.c.b16 %v7177, %v7176
    %v7196 = vpack.c.b16 %v7179, %v7178
    %v7197 = vpack.c.b16 %v7181, %v7180
    %v7198 = vpack.c.b16 %v7183, %v7182
    %v7215 = vsel %vm860, %v7075, 0
    %v7218 = vsel %vm860, %v7077, 0
    %v7221 = vsel %vm860, %v7079, 0
    %v7224 = vsel %vm860, %v7081, 0
    %v7227 = vsel %vm860, %v7083, 0
    %v7230 = vsel %vm860, %v7085, 0
    %v7233 = vsel %vm860, %v7087, 0
    %v7236 = vsel %vm860, %v7089, 0
    %v7239 = vsel %vm860, %v7091, 0
    %v7242 = vsel %vm860, %v7093, 0
    %7244 = vmatprep.subr.bf16.mxu0 0
    %7245 = vmatpush1.bf16.msra.mxu0 %v7184
    %7246 = vmatprep.subr.bf16.mxu0 0
    %7247 = vmatpush1.bf16.msra.mxu0 %v7185
    %7248 = vmatprep.subr.bf16.mxu0 0
    %7249 = vmatpush1.bf16.msra.mxu0 %v7186
    %7250 = vmatprep.subr.bf16.mxu0 0
    %7251 = vmatpush1.bf16.msra.mxu0 %v7187
    %7252 = vmatprep.subr.bf16.mxu0 0
    %7253 = vmatpush1.bf16.msra.mxu0 %v7188
    %7254 = vmatprep.subr.bf16.mxu0 0
    %7255 = vmatpush1.bf16.msra.mxu0 %v7189
    %7256 = vmatprep.subr.bf16.mxu0 0
    %7257 = vmatpush1.bf16.msra.mxu0 %v7190
    %7258 = vmatprep.subr.bf16.mxu0 0
    %7259 = vmatpush1.bf16.msra.mxu0 %v7191
    %7260 = vmatprep.subr.bf16.mxu0 0
    %7261 = vmatpush1.bf16.msra.mxu0 %v7192
    %7262 = vmatprep.subr.bf16.mxu0 0
    %7263 = vmatpush1.bf16.msra.mxu0 %v7193
    %7264 = vmatprep.subr.bf16.mxu0 0
    %7265 = vmatpush1.bf16.msra.mxu0 %v7194
    %7266 = vmatprep.subr.bf16.mxu0 0
    %7267 = vmatpush1.bf16.msra.mxu0 %v7195
    %7268 = vmatprep.subr.bf16.mxu0 0
    %7269 = vmatpush1.bf16.msra.mxu0 %v7196
    %7270 = vmatprep.subr.bf16.mxu0 0
    %7271 = vmatpush1.bf16.msra.mxu0 %v7197
    %7272 = vmatprep.subr.bf16.mxu0 0
    %7273 = vmatpush1.bf16.msra.mxu0 %v7198
    %7274 = vmatprep.subr.bf16.mxu0 0
    %7275 = vmatpush1.bf16.msra.mxu0 0
    %7276 = vmatprep.mubr.bf16.mxu0 %v7215
    %7277 = vmatmul.mubr.bf16.gmra.mrb[0].mxu0 %v7074
    %v7278 = vpop.f32.mrb[0].mxu0
    %v7279 = vadd.f32 0.0, %v7278
    %v7280 = vpop.f32.mrb[0].mxu0
    %v7281 = vpop.f32.mrb[0].mxu0
    %v7282 = vadd.f32 0.0, %v7281
    %v7283 = vpop.f32.mrb[0].mxu0
    %7284 = vmatprep.mubr.bf16.mxu0 %v7218
    %7285 = vmatmul.mubr.bf16.gmra.mrb[0].mxu0 %v7076
    %v7286 = vpop.f32.mrb[0].mxu0
    %v7287 = vadd.f32 0.0, %v7286
    %v7288 = vpop.f32.mrb[0].mxu0
    %v7289 = vpop.f32.mrb[0].mxu0
    %v7290 = vadd.f32 0.0, %v7289
    %v7291 = vpop.f32.mrb[0].mxu0
    %7292 = vmatprep.mubr.bf16.mxu0 %v7221
    %7293 = vmatmul.mubr.bf16.gmra.mrb[0].mxu0 %v7078
    %v7294 = vpop.f32.mrb[0].mxu0
    %v7295 = vadd.f32 0.0, %v7294
    %v7296 = vpop.f32.mrb[0].mxu0
    %v7297 = vpop.f32.mrb[0].mxu0
    %v7298 = vadd.f32 0.0, %v7297
    %v7299 = vpop.f32.mrb[0].mxu0
    %7300 = vmatprep.mubr.bf16.mxu0 %v7224
    %7301 = vmatmul.mubr.bf16.gmra.mrb[0].mxu0 %v7080
    %v7302 = vpop.f32.mrb[0].mxu0
    %v7303 = vadd.f32 0.0, %v7302
    %v7304 = vpop.f32.mrb[0].mxu0
    %v7305 = vpop.f32.mrb[0].mxu0
    %v7306 = vadd.f32 0.0, %v7305
    %v7307 = vpop.f32.mrb[0].mxu0
    %7308 = vmatprep.mubr.bf16.mxu0 %v7227
    %7309 = vmatmul.mubr.bf16.gmra.mrb[0].mxu0 %v7082
    %v7310 = vpop.f32.mrb[0].mxu0
    %v7311 = vadd.f32 0.0, %v7310
    %v7312 = vpop.f32.mrb[0].mxu0
    %v7313 = vpop.f32.mrb[0].mxu0
    %v7314 = vadd.f32 0.0, %v7313
    %v7315 = vpop.f32.mrb[0].mxu0
    %7316 = vmatprep.mubr.bf16.mxu0 %v7230
    %7317 = vmatmul.mubr.bf16.gmra.mrb[0].mxu0 %v7084
    %v7318 = vpop.f32.mrb[0].mxu0
    %v7319 = vadd.f32 0.0, %v7318
    %v7320 = vpop.f32.mrb[0].mxu0
    %v7321 = vpop.f32.mrb[0].mxu0
    %v7322 = vadd.f32 0.0, %v7321
    %v7323 = vpop.f32.mrb[0].mxu0
    %7324 = vmatprep.mubr.bf16.mxu0 %v7233
    %7325 = vmatmul.mubr.bf16.gmra.mrb[0].mxu0 %v7086
    %v7326 = vpop.f32.mrb[0].mxu0
    %v7327 = vadd.f32 0.0, %v7326
    %v7328 = vpop.f32.mrb[0].mxu0
    %v7329 = vpop.f32.mrb[0].mxu0
    %v7330 = vadd.f32 0.0, %v7329
    %v7331 = vpop.f32.mrb[0].mxu0
    %7332 = vmatprep.mubr.bf16.mxu0 %v7236
    %7333 = vmatmul.mubr.bf16.gmra.mrb[0].mxu0 %v7088
    %v7334 = vpop.f32.mrb[0].mxu0
    %v7335 = vadd.f32 0.0, %v7334
    %v7336 = vpop.f32.mrb[0].mxu0
    %v7337 = vpop.f32.mrb[0].mxu0
    %v7338 = vadd.f32 0.0, %v7337
    %v7339 = vpop.f32.mrb[0].mxu0
    %7340 = vmatprep.mubr.bf16.mxu0 %v7239
    %7341 = vmatmul.mubr.bf16.gmra.mrb[0].mxu0 %v7090
    %v7342 = vpop.f32.mrb[0].mxu0
    %v7343 = vadd.f32 0.0, %v7342
    %v7344 = vpop.f32.mrb[0].mxu0
    %v7345 = vpop.f32.mrb[0].mxu0
    %v7346 = vadd.f32 0.0, %v7345
    %v7347 = vpop.f32.mrb[0].mxu0
    %7348 = vmatprep.mubr.bf16.mxu0 %v7242
    %7349 = vmatmul.mubr.bf16.gmra.mrb[0].mxu0 %v7092
    %v7350 = vpop.f32.mrb[0].mxu0
    %v7351 = vadd.f32 0.0, %v7350
    %v7352 = vpop.f32.mrb[0].mxu0
    %v7353 = vpop.f32.mrb[0].mxu0
    %v7354 = vadd.f32 0.0, %v7353
    %v7355 = vpop.f32.mrb[0].mxu0
    %7356 = vdwg.mxu0
    %v7357 = vadd.f32 %v7054, %v7279
    %v7358 = vadd.f32 %v7055, %v7282
    %v7359 = vadd.f32 %v7056, %v7287
    %v7360 = vadd.f32 %v7057, %v7290
    %v7361 = vadd.f32 %v7058, %v7295
    %v7362 = vadd.f32 %v7059, %v7298
    %v7363 = vadd.f32 %v7060, %v7303
    %v7364 = vadd.f32 %v7061, %v7306
    %v7365 = vadd.f32 %v7062, %v7311
    %v7366 = vadd.f32 %v7063, %v7314
    %v7367 = vadd.f32 %v7064, %v7319
    %v7368 = vadd.f32 %v7065, %v7322
    %v7369 = vadd.f32 %v7066, %v7327
    %v7370 = vadd.f32 %v7067, %v7330
    %v7371 = vadd.f32 %v7068, %v7335
    %v7372 = vadd.f32 %v7069, %v7338
    %v7373 = vadd.f32 %v7070, %v7343
    %v7374 = vadd.f32 %v7071, %v7346
    %v7375 = vadd.f32 %v7072, %v7351
    %v7376 = vadd.f32 %v7073, %v7354
    %v7377 = vmul.f32 %v7357, %v1277
    %v7378 = vmul.f32 %v7358, %v1278
    %v7379 = vmul.f32 %v7359, %v1279
    %v7380 = vmul.f32 %v7360, %v1280
    %v7381 = vmul.f32 %v7361, %v1281
    %v7382 = vmul.f32 %v7362, %v1282
    %v7383 = vmul.f32 %v7363, %v1283
    %v7384 = vmul.f32 %v7364, %v1284
    %v7385 = vmul.f32 %v7365, %v1285
    %v7386 = vmul.f32 %v7366, %v1286
    %v7387 = vmul.f32 %v7367, %v1287
    %v7388 = vmul.f32 %v7368, %v1288
    %v7389 = vmul.f32 %v7369, %v1289
    %v7390 = vmul.f32 %v7370, %v1290
    %v7391 = vmul.f32 %v7371, %v1291
    %v7392 = vmul.f32 %v7372, %v1292
    %v7393 = vmul.f32 %v7373, %v1293
    %v7394 = vmul.f32 %v7374, %v1294
    %v7395 = vmul.f32 %v7375, %v1295
    %v7396 = vmul.f32 %v7376, %v1296
    %v7397 = vadd.f32 %v7377, %v7378
    %v7398 = vadd.f32 %v7397, %v7379
    %v7399 = vadd.f32 %v7398, %v7380
    %v7400 = vadd.f32 %v7399, %v7381
    %v7401 = vadd.f32 %v7400, %v7382
    %v7402 = vadd.f32 %v7401, %v7383
    %v7403 = vadd.f32 %v7402, %v7384
    %v7404 = vadd.f32 %v7403, %v7385
    %v7405 = vadd.f32 %v7404, %v7386
    %v7406 = vadd.f32 %v7405, %v7387
    %v7407 = vadd.f32 %v7406, %v7388
    %v7408 = vadd.f32 %v7407, %v7389
    %v7409 = vadd.f32 %v7408, %v7390
    %v7410 = vadd.f32 %v7409, %v7391
    %v7411 = vadd.f32 %v7410, %v7392
    %v7412 = vadd.f32 %v7411, %v7393
    %v7413 = vadd.f32 %v7412, %v7394
    %v7414 = vadd.f32 %v7413, %v7395
    %v7415 = vadd.f32 %v7414, %v7396
    %v7416 = vrot.slane %v7415, 4
    %v7417 = vadd.f32 %v7415, %v7416
    %v7418 = vrot.slane %v7417, 2
    %v7419 = vadd.f32 %v7417, %v7418
    %v7420 = vrot.slane %v7419, 1
    %v7421 = vadd.f32 %v7419, %v7420
    %v7422 = vadd.f32 %v5875, %v7421
    %v7423 = vmul.f32 %v7377, %v7377
    %v7424 = vmul.f32 %v7378, %v7378
    %v7425 = vmul.f32 %v7379, %v7379
    %v7426 = vmul.f32 %v7380, %v7380
    %v7427 = vmul.f32 %v7381, %v7381
    %v7428 = vmul.f32 %v7382, %v7382
    %v7429 = vmul.f32 %v7383, %v7383
    %v7430 = vmul.f32 %v7384, %v7384
    %v7431 = vmul.f32 %v7385, %v7385
    %v7432 = vmul.f32 %v7386, %v7386
    %v7433 = vmul.f32 %v7387, %v7387
    %v7434 = vmul.f32 %v7388, %v7388
    %v7435 = vmul.f32 %v7389, %v7389
    %v7436 = vmul.f32 %v7390, %v7390
    %v7437 = vmul.f32 %v7391, %v7391
    %v7438 = vmul.f32 %v7392, %v7392
    %v7439 = vmul.f32 %v7393, %v7393
    %v7440 = vmul.f32 %v7394, %v7394
    %v7441 = vmul.f32 %v7395, %v7395
    %v7442 = vmul.f32 %v7396, %v7396
    %v7443 = vadd.f32 %v7423, %v7424
    %v7444 = vadd.f32 %v7443, %v7425
    %v7445 = vadd.f32 %v7444, %v7426
    %v7446 = vadd.f32 %v7445, %v7427
    %v7447 = vadd.f32 %v7446, %v7428
    %v7448 = vadd.f32 %v7447, %v7429
    %v7449 = vadd.f32 %v7448, %v7430
    %v7450 = vadd.f32 %v7449, %v7431
    %v7451 = vadd.f32 %v7450, %v7432
    %v7452 = vadd.f32 %v7451, %v7433
    %v7453 = vadd.f32 %v7452, %v7434
    %v7454 = vadd.f32 %v7453, %v7435
    %v7455 = vadd.f32 %v7454, %v7436
    %v7456 = vadd.f32 %v7455, %v7437
    %v7457 = vadd.f32 %v7456, %v7438
    %v7458 = vadd.f32 %v7457, %v7439
    %v7459 = vadd.f32 %v7458, %v7440
    %v7460 = vadd.f32 %v7459, %v7441
    %v7461 = vadd.f32 %v7460, %v7442
    %v7462 = vrot.slane %v7461, 4
    %v7463 = vadd.f32 %v7461, %v7462
    %v7464 = vrot.slane %v7463, 2
    %v7465 = vadd.f32 %v7463, %v7464
    %v7466 = vrot.slane %v7465, 1
    %v7467 = vadd.f32 %v7465, %v7466
    %v7468 = vadd.f32 %v5921, %v7467
    %7469 = vst [vmem:[#allocation8 + $0x1e0] sm:$0xff] %v7357
    %7470 = vst [vmem:[#allocation8 + $0x1e8] sm:$0xff] %v7358
    %7471 = vst [vmem:[#allocation8 + $0x1f0] sm:$0xff] %v7359
    %7472 = vst [vmem:[#allocation8 + $0x1f8] sm:$0xff] %v7360
    %7473 = vst [vmem:[#allocation8 + $0x200] sm:$0xff] %v7361
    %7474 = vst [vmem:[#allocation8 + $0x208] sm:$0xff] %v7362
    %7475 = vst [vmem:[#allocation8 + $0x210] sm:$0xff] %v7363
    %7476 = vst [vmem:[#allocation8 + $0x218] sm:$0xff] %v7364
    %7477 = vst [vmem:[#allocation8 + $0x220] sm:$0xff] %v7365
    %7478 = vst [vmem:[#allocation8 + $0x228] sm:$0xff] %v7366
    %7479 = vst [vmem:[#allocation8 + $0x230] sm:$0xff] %v7367
    %7480 = vst [vmem:[#allocation8 + $0x238] sm:$0xff] %v7368
    %7481 = vst [vmem:[#allocation8 + $0x240] sm:$0xff] %v7369
    %7482 = vst [vmem:[#allocation8 + $0x248] sm:$0xff] %v7370
    %7483 = vst [vmem:[#allocation8 + $0x250] sm:$0xff] %v7371
    %7484 = vst [vmem:[#allocation8 + $0x258] sm:$0xff] %v7372
    %7485 = vst [vmem:[#allocation8 + $0x260] sm:$0xff] %v7373
    %7486 = vst [vmem:[#allocation8 + $0x268] sm:$0xff] %v7374
    %7487 = vst [vmem:[#allocation8 + $0x270] sm:$0xff] %v7375
    %7488 = vst [vmem:[#allocation8 + $0x278] sm:$0xff] %v7376
    %v7489 = vld [vmem:[#allocation2 + $0x280] sm:$0xff]
    %v7490 = vld [vmem:[#allocation2 + $0x288] sm:$0xff]
    %v7491 = vld [vmem:[#allocation2 + $0x290] sm:$0xff]
    %v7492 = vld [vmem:[#allocation2 + $0x298] sm:$0xff]
    %v7493 = vld [vmem:[#allocation2 + $0x2a0] sm:$0xff]
    %v7494 = vld [vmem:[#allocation2 + $0x2a8] sm:$0xff]
    %v7495 = vld [vmem:[#allocation2 + $0x2b0] sm:$0xff]
    %v7496 = vld [vmem:[#allocation2 + $0x2b8] sm:$0xff]
    %v7497 = vld [vmem:[#allocation2 + $0x2c0] sm:$0xff]
    %v7498 = vld [vmem:[#allocation2 + $0x2c8] sm:$0xff]
    %v7499 = vld [vmem:[#allocation2 + $0x2d0] sm:$0xff]
    %v7500 = vld [vmem:[#allocation2 + $0x2d8] sm:$0xff]
    %v7501 = vld [vmem:[#allocation2 + $0x2e0] sm:$0xff]
    %v7502 = vld [vmem:[#allocation2 + $0x2e8] sm:$0xff]
    %v7503 = vld [vmem:[#allocation2 + $0x2f0] sm:$0xff]
    %v7504 = vld [vmem:[#allocation2 + $0x2f8] sm:$0xff]
    %v7505 = vld [vmem:[#allocation2 + $0x300] sm:$0xff]
    %v7506 = vld [vmem:[#allocation2 + $0x308] sm:$0xff]
    %v7507 = vld [vmem:[#allocation2 + $0x310] sm:$0xff]
    %v7508 = vld [vmem:[#allocation2 + $0x318] sm:$0xff]
    %v7509 = vld [vmem:[#allocation6] sm:$0xf]
    %v7510 = vld [vmem:[#allocation6 + $0x4] sm:$0xf]
    %v7511 = vld [vmem:[#allocation6 + $0x8] sm:$0xf]
    %v7512 = vld [vmem:[#allocation6 + $0xc] sm:$0xf]
    %v7513 = vld [vmem:[#allocation6 + $0x10] sm:$0xf]
    %v7514 = vld [vmem:[#allocation6 + $0x14] sm:$0xf]
    %v7515 = vld [vmem:[#allocation6 + $0x18] sm:$0xf]
    %v7516 = vld [vmem:[#allocation6 + $0x1c] sm:$0xf]
    %v7517 = vld [vmem:[#allocation6 + $0x20] sm:$0xf]
    %v7518 = vld [vmem:[#allocation6 + $0x24] sm:$0xf]
    %v7519 = vld [vmem:[#allocation6 + $0x28] sm:$0xf]
    %v7520 = vld [vmem:[#allocation6 + $0x2c] sm:$0xf]
    %v7521 = vld [vmem:[#allocation6 + $0x30] sm:$0xf]
    %v7522 = vld [vmem:[#allocation6 + $0x34] sm:$0xf]
    %v7523 = vld [vmem:[#allocation6 + $0x38] sm:$0xf]
    %v7524 = vld [vmem:[#allocation6 + $0x3c] sm:$0xf]
    %v7525 = vld [vmem:[#allocation6 + $0x40] sm:$0xf]
    %v7526 = vld [vmem:[#allocation6 + $0x44] sm:$0xf]
    %v7527 = vld [vmem:[#allocation6 + $0x48] sm:$0xf]
    %v7528 = vld [vmem:[#allocation6 + $0x4c] sm:$0xf]
    %v7529 = vld [vmem:[#allocation6 + $0x50] sm:$0xf]
    %v7530 = vld [vmem:[#allocation6 + $0x54] sm:$0xf]
    %v7531 = vld [vmem:[#allocation6 + $0x58] sm:$0xf]
    %v7532 = vld [vmem:[#allocation6 + $0x5c] sm:$0xf]
    %v7533 = vld [vmem:[#allocation6 + $0x60] sm:$0xf]
    %v7534 = vld [vmem:[#allocation6 + $0x64] sm:$0xf]
    %v7535 = vld [vmem:[#allocation6 + $0x68] sm:$0xf]
    %v7536 = vld [vmem:[#allocation6 + $0x6c] sm:$0xf]
    %v7537 = vld [vmem:[#allocation6 + $0x70] sm:$0xf]
    %v7538 = vld [vmem:[#allocation6 + $0x74] sm:$0xf]
    %v7539 = vld [vmem:[#allocation2 + $0x320] sm:$0xff]
    %v7540 = vld [vmem:[#allocation2 + $0x328] sm:$0xff]
    %v7541 = vld [vmem:[#allocation2 + $0x330] sm:$0xff]
    %v7542 = vld [vmem:[#allocation2 + $0x338] sm:$0xff]
    %v7543 = vld [vmem:[%s1351] sm:$0xf]
    %v7544 = vld [vmem:[%s1351 + $0x4] sm:$0xf]
    %v7545 = vld [vmem:[%s1351 + $0x8] sm:$0xf]
    %v7546 = vld [vmem:[%s1351 + $0xc] sm:$0xf]
    %v7547 = vld [vmem:[%s1351 + $0x10] sm:$0xf]
    %v7548 = vld [vmem:[%s1351 + $0x14] sm:$0xf]
    %v7549 = vld [vmem:[%s1351 + $0x18] sm:$0xf]
    %v7550 = vld [vmem:[%s1351 + $0x1c] sm:$0xf]
    %v7551 = vld [vmem:[%s1351 + $0x20] sm:$0xf]
    %v7552 = vld [vmem:[%s1351 + $0x24] sm:$0xf]
    %v7553 = vld [vmem:[%s1351 + $0x28] sm:$0xf]
    %v7554 = vld [vmem:[%s1351 + $0x2c] sm:$0xf]
    %v7555 = vld [vmem:[%s1351 + $0x30] sm:$0xf]
    %v7556 = vld [vmem:[%s1351 + $0x34] sm:$0xf]
    %v7557 = vld [vmem:[%s1351 + $0x38] sm:$0xf]
    %v7558 = vld [vmem:[%s1351 + $0x3c] sm:$0xf]
    %v7559 = vld [vmem:[%s1351 + $0x40] sm:$0xf]
    %v7560 = vld [vmem:[%s1351 + $0x44] sm:$0xf]
    %v7561 = vld [vmem:[%s1351 + $0x48] sm:$0xf]
    %v7562 = vld [vmem:[%s1351 + $0x4c] sm:$0xf]
    %v7563 = vld [vmem:[%s1351 + $0x50] sm:$0xf]
    %v7564 = vld [vmem:[%s1351 + $0x54] sm:$0xf]
    %v7565 = vld [vmem:[%s1351 + $0x58] sm:$0xf]
    %v7566 = vld [vmem:[%s1351 + $0x5c] sm:$0xf]
    %v7567 = vld [vmem:[%s1351 + $0x60] sm:$0xf]
    %v7568 = vld [vmem:[%s1351 + $0x64] sm:$0xf]
    %v7569 = vld [vmem:[%s1351 + $0x68] sm:$0xf]
    %v7570 = vld [vmem:[%s1351 + $0x6c] sm:$0xf]
    %v7571 = vld [vmem:[%s1351 + $0x70] sm:$0xf]
    %v7572 = vld [vmem:[%s1351 + $0x74] sm:$0xf]
    %v7603 = vunpack.c.l.b16 %v7543
    %v7604 = vunpack.c.l.b16 %v7544
    %v7605 = vunpack.c.l.b16 %v7545
    %v7606 = vunpack.c.l.b16 %v7546
    %v7607 = vunpack.c.l.b16 %v7547
    %v7608 = vunpack.c.l.b16 %v7548
    %v7609 = vunpack.c.l.b16 %v7549
    %v7610 = vunpack.c.l.b16 %v7550
    %v7611 = vunpack.c.l.b16 %v7551
    %v7612 = vunpack.c.l.b16 %v7552
    %v7613 = vunpack.c.l.b16 %v7553
    %v7614 = vunpack.c.l.b16 %v7554
    %v7615 = vunpack.c.l.b16 %v7555
    %v7616 = vunpack.c.l.b16 %v7556
    %v7617 = vunpack.c.l.b16 %v7557
    %v7618 = vunpack.c.l.b16 %v7558
    %v7619 = vunpack.c.l.b16 %v7559
    %v7620 = vunpack.c.l.b16 %v7560
    %v7621 = vunpack.c.l.b16 %v7561
    %v7622 = vunpack.c.l.b16 %v7562
    %v7623 = vunpack.c.l.b16 %v7563
    %v7624 = vunpack.c.l.b16 %v7564
    %v7625 = vunpack.c.l.b16 %v7565
    %v7626 = vunpack.c.l.b16 %v7566
    %v7627 = vunpack.c.l.b16 %v7567
    %v7628 = vunpack.c.l.b16 %v7568
    %v7629 = vunpack.c.l.b16 %v7569
    %v7630 = vunpack.c.l.b16 %v7570
    %v7631 = vunpack.c.l.b16 %v7571
    %v7632 = vunpack.c.l.b16 %v7572
    %v7633 = vpack.c.b16 %v7604, %v7603
    %v7634 = vpack.c.b16 %v7606, %v7605
    %v7635 = vpack.c.b16 %v7608, %v7607
    %v7636 = vpack.c.b16 %v7610, %v7609
    %v7637 = vpack.c.b16 %v7612, %v7611
    %v7638 = vpack.c.b16 %v7614, %v7613
    %v7639 = vpack.c.b16 %v7616, %v7615
    %v7640 = vpack.c.b16 %v7618, %v7617
    %v7641 = vpack.c.b16 %v7620, %v7619
    %v7642 = vpack.c.b16 %v7622, %v7621
    %v7643 = vpack.c.b16 %v7624, %v7623
    %v7644 = vpack.c.b16 %v7626, %v7625
    %v7645 = vpack.c.b16 %v7628, %v7627
    %v7646 = vpack.c.b16 %v7630, %v7629
    %v7647 = vpack.c.b16 %v7632, %v7631
    %v7664 = vsel %vm860, %v7494, 0
    %v7667 = vsel %vm860, %v7496, 0
    %v7670 = vsel %vm860, %v7498, 0
    %v7673 = vsel %vm860, %v7500, 0
    %v7676 = vsel %vm860, %v7502, 0
    %v7679 = vsel %vm860, %v7504, 0
    %v7682 = vsel %vm860, %v7506, 0
    %v7685 = vsel %vm860, %v7508, 0
    %v7688 = vsel %vm860, %v7540, 0
    %v7691 = vsel %vm860, %v7542, 0
    %7693 = vmatprep.subr.bf16.mxu0 0
    %7694 = vmatpush1.bf16.msra.mxu0 %v7633
    %7695 = vmatprep.subr.bf16.mxu0 0
    %7696 = vmatpush1.bf16.msra.mxu0 %v7634
    %7697 = vmatprep.subr.bf16.mxu0 0
    %7698 = vmatpush1.bf16.msra.mxu0 %v7635
    %7699 = vmatprep.subr.bf16.mxu0 0
    %7700 = vmatpush1.bf16.msra.mxu0 %v7636
    %7701 = vmatprep.subr.bf16.mxu0 0
    %7702 = vmatpush1.bf16.msra.mxu0 %v7637
    %7703 = vmatprep.subr.bf16.mxu0 0
    %7704 = vmatpush1.bf16.msra.mxu0 %v7638
    %7705 = vmatprep.subr.bf16.mxu0 0
    %7706 = vmatpush1.bf16.msra.mxu0 %v7639
    %7707 = vmatprep.subr.bf16.mxu0 0
    %7708 = vmatpush1.bf16.msra.mxu0 %v7640
    %7709 = vmatprep.subr.bf16.mxu0 0
    %7710 = vmatpush1.bf16.msra.mxu0 %v7641
    %7711 = vmatprep.subr.bf16.mxu0 0
    %7712 = vmatpush1.bf16.msra.mxu0 %v7642
    %7713 = vmatprep.subr.bf16.mxu0 0
    %7714 = vmatpush1.bf16.msra.mxu0 %v7643
    %7715 = vmatprep.subr.bf16.mxu0 0
    %7716 = vmatpush1.bf16.msra.mxu0 %v7644
    %7717 = vmatprep.subr.bf16.mxu0 0
    %7718 = vmatpush1.bf16.msra.mxu0 %v7645
    %7719 = vmatprep.subr.bf16.mxu0 0
    %7720 = vmatpush1.bf16.msra.mxu0 %v7646
    %7721 = vmatprep.subr.bf16.mxu0 0
    %7722 = vmatpush1.bf16.msra.mxu0 %v7647
    %7723 = vmatprep.subr.bf16.mxu0 0
    %7724 = vmatpush1.bf16.msra.mxu0 0
    %7725 = vmatprep.mubr.bf16.mxu0 %v7664
    %7726 = vmatmul.mubr.bf16.gmra.mrb[0].mxu0 %v7493
    %v7727 = vpop.f32.mrb[0].mxu0
    %v7728 = vadd.f32 0.0, %v7727
    %v7729 = vpop.f32.mrb[0].mxu0
    %v7730 = vpop.f32.mrb[0].mxu0
    %v7731 = vadd.f32 0.0, %v7730
    %v7732 = vpop.f32.mrb[0].mxu0
    %7733 = vmatprep.mubr.bf16.mxu0 %v7667
    %7734 = vmatmul.mubr.bf16.gmra.mrb[0].mxu0 %v7495
    %v7735 = vpop.f32.mrb[0].mxu0
    %v7736 = vadd.f32 0.0, %v7735
    %v7737 = vpop.f32.mrb[0].mxu0
    %v7738 = vpop.f32.mrb[0].mxu0
    %v7739 = vadd.f32 0.0, %v7738
    %v7740 = vpop.f32.mrb[0].mxu0
    %7741 = vmatprep.mubr.bf16.mxu0 %v7670
    %7742 = vmatmul.mubr.bf16.gmra.mrb[0].mxu0 %v7497
    %v7743 = vpop.f32.mrb[0].mxu0
    %v7744 = vadd.f32 0.0, %v7743
    %v7745 = vpop.f32.mrb[0].mxu0
    %v7746 = vpop.f32.mrb[0].mxu0
    %v7747 = vadd.f32 0.0, %v7746
    %v7748 = vpop.f32.mrb[0].mxu0
    %7749 = vmatprep.mubr.bf16.mxu0 %v7673
    %7750 = vmatmul.mubr.bf16.gmra.mrb[0].mxu0 %v7499
    %v7751 = vpop.f32.mrb[0].mxu0
    %v7752 = vadd.f32 0.0, %v7751
    %v7753 = vpop.f32.mrb[0].mxu0
    %v7754 = vpop.f32.mrb[0].mxu0
    %v7755 = vadd.f32 0.0, %v7754
    %v7756 = vpop.f32.mrb[0].mxu0
    %7757 = vmatprep.mubr.bf16.mxu0 %v7676
    %7758 = vmatmul.mubr.bf16.gmra.mrb[0].mxu0 %v7501
    %v7759 = vpop.f32.mrb[0].mxu0
    %v7760 = vadd.f32 0.0, %v7759
    %v7761 = vpop.f32.mrb[0].mxu0
    %v7762 = vpop.f32.mrb[0].mxu0
    %v7763 = vadd.f32 0.0, %v7762
    %v7764 = vpop.f32.mrb[0].mxu0
    %7765 = vmatprep.mubr.bf16.mxu0 %v7679
    %7766 = vmatmul.mubr.bf16.gmra.mrb[0].mxu0 %v7503
    %v7767 = vpop.f32.mrb[0].mxu0
    %v7768 = vadd.f32 0.0, %v7767
    %v7769 = vpop.f32.mrb[0].mxu0
    %v7770 = vpop.f32.mrb[0].mxu0
    %v7771 = vadd.f32 0.0, %v7770
    %v7772 = vpop.f32.mrb[0].mxu0
    %7773 = vmatprep.mubr.bf16.mxu0 %v7682
    %7774 = vmatmul.mubr.bf16.gmra.mrb[0].mxu0 %v7505
    %v7775 = vpop.f32.mrb[0].mxu0
    %v7776 = vadd.f32 0.0, %v7775
    %v7777 = vpop.f32.mrb[0].mxu0
    %v7778 = vpop.f32.mrb[0].mxu0
    %v7779 = vadd.f32 0.0, %v7778
    %v7780 = vpop.f32.mrb[0].mxu0
    %7781 = vmatprep.mubr.bf16.mxu0 %v7685
    %7782 = vmatmul.mubr.bf16.gmra.mrb[0].mxu0 %v7507
    %v7783 = vpop.f32.mrb[0].mxu0
    %v7784 = vadd.f32 0.0, %v7783
    %v7785 = vpop.f32.mrb[0].mxu0
    %v7786 = vpop.f32.mrb[0].mxu0
    %v7787 = vadd.f32 0.0, %v7786
    %v7788 = vpop.f32.mrb[0].mxu0
    %7789 = vmatprep.mubr.bf16.mxu0 %v7688
    %7790 = vmatmul.mubr.bf16.gmra.mrb[0].mxu0 %v7539
    %v7791 = vpop.f32.mrb[0].mxu0
    %v7792 = vadd.f32 0.0, %v7791
    %v7793 = vpop.f32.mrb[0].mxu0
    %v7794 = vpop.f32.mrb[0].mxu0
    %v7795 = vadd.f32 0.0, %v7794
    %v7796 = vpop.f32.mrb[0].mxu0
    %7797 = vmatprep.mubr.bf16.mxu0 %v7691
    %7798 = vmatmul.mubr.bf16.gmra.mrb[0].mxu0 %v7541
    %v7799 = vpop.f32.mrb[0].mxu0
    %v7800 = vadd.f32 0.0, %v7799
    %v7801 = vpop.f32.mrb[0].mxu0
    %v7802 = vpop.f32.mrb[0].mxu0
    %v7803 = vadd.f32 0.0, %v7802
    %v7804 = vpop.f32.mrb[0].mxu0
    %7805 = vdwg.mxu0
    %v7836 = vunpack.c.l.b16 %v7509
    %v7837 = vunpack.c.l.b16 %v7510
    %v7838 = vunpack.c.l.b16 %v7511
    %v7839 = vunpack.c.l.b16 %v7512
    %v7840 = vunpack.c.l.b16 %v7513
    %v7841 = vunpack.c.l.b16 %v7514
    %v7842 = vunpack.c.l.b16 %v7515
    %v7843 = vunpack.c.l.b16 %v7516
    %v7844 = vunpack.c.l.b16 %v7517
    %v7845 = vunpack.c.l.b16 %v7518
    %v7846 = vunpack.c.l.b16 %v7519
    %v7847 = vunpack.c.l.b16 %v7520
    %v7848 = vunpack.c.l.b16 %v7521
    %v7849 = vunpack.c.l.b16 %v7522
    %v7850 = vunpack.c.l.b16 %v7523
    %v7851 = vunpack.c.l.b16 %v7524
    %v7852 = vunpack.c.l.b16 %v7525
    %v7853 = vunpack.c.l.b16 %v7526
    %v7854 = vunpack.c.l.b16 %v7527
    %v7855 = vunpack.c.l.b16 %v7528
    %v7856 = vunpack.c.l.b16 %v7529
    %v7857 = vunpack.c.l.b16 %v7530
    %v7858 = vunpack.c.l.b16 %v7531
    %v7859 = vunpack.c.l.b16 %v7532
    %v7860 = vunpack.c.l.b16 %v7533
    %v7861 = vunpack.c.l.b16 %v7534
    %v7862 = vunpack.c.l.b16 %v7535
    %v7863 = vunpack.c.l.b16 %v7536
    %v7864 = vunpack.c.l.b16 %v7537
    %v7865 = vunpack.c.l.b16 %v7538
    %v7866 = vpack.c.b16 %v7837, %v7836
    %v7867 = vpack.c.b16 %v7839, %v7838
    %v7868 = vpack.c.b16 %v7841, %v7840
    %v7869 = vpack.c.b16 %v7843, %v7842
    %v7870 = vpack.c.b16 %v7845, %v7844
    %v7871 = vpack.c.b16 %v7847, %v7846
    %v7872 = vpack.c.b16 %v7849, %v7848
    %v7873 = vpack.c.b16 %v7851, %v7850
    %v7874 = vpack.c.b16 %v7853, %v7852
    %v7875 = vpack.c.b16 %v7855, %v7854
    %v7876 = vpack.c.b16 %v7857, %v7856
    %v7877 = vpack.c.b16 %v7859, %v7858
    %v7878 = vpack.c.b16 %v7861, %v7860
    %v7879 = vpack.c.b16 %v7863, %v7862
    %v7880 = vpack.c.b16 %v7865, %v7864
    %v7897 = vsel %vm860, %v7490, 0
    %v7900 = vsel %vm860, %v7492, 0
    %7902 = vmatprep.subr.bf16.mxu0 0
    %7903 = vmatpush1.bf16.msra.mxu0 %v7866
    %7904 = vmatprep.subr.bf16.mxu0 0
    %7905 = vmatpush1.bf16.msra.mxu0 %v7867
    %7906 = vmatprep.subr.bf16.mxu0 0
    %7907 = vmatpush1.bf16.msra.mxu0 %v7868
    %7908 = vmatprep.subr.bf16.mxu0 0
    %7909 = vmatpush1.bf16.msra.mxu0 %v7869
    %7910 = vmatprep.subr.bf16.mxu0 0
    %7911 = vmatpush1.bf16.msra.mxu0 %v7870
    %7912 = vmatprep.subr.bf16.mxu0 0
    %7913 = vmatpush1.bf16.msra.mxu0 %v7871
    %7914 = vmatprep.subr.bf16.mxu0 0
    %7915 = vmatpush1.bf16.msra.mxu0 %v7872
    %7916 = vmatprep.subr.bf16.mxu0 0
    %7917 = vmatpush1.bf16.msra.mxu0 %v7873
    %7918 = vmatprep.subr.bf16.mxu0 0
    %7919 = vmatpush1.bf16.msra.mxu0 %v7874
    %7920 = vmatprep.subr.bf16.mxu0 0
    %7921 = vmatpush1.bf16.msra.mxu0 %v7875
    %7922 = vmatprep.subr.bf16.mxu0 0
    %7923 = vmatpush1.bf16.msra.mxu0 %v7876
    %7924 = vmatprep.subr.bf16.mxu0 0
    %7925 = vmatpush1.bf16.msra.mxu0 %v7877
    %7926 = vmatprep.subr.bf16.mxu0 0
    %7927 = vmatpush1.bf16.msra.mxu0 %v7878
    %7928 = vmatprep.subr.bf16.mxu0 0
    %7929 = vmatpush1.bf16.msra.mxu0 %v7879
    %7930 = vmatprep.subr.bf16.mxu0 0
    %7931 = vmatpush1.bf16.msra.mxu0 %v7880
    %7932 = vmatprep.subr.bf16.mxu0 0
    %7933 = vmatpush1.bf16.msra.mxu0 0
    %7934 = vmatprep.mubr.bf16.mxu0 %v7897
    %7935 = vmatmul.mubr.bf16.gmra.mrb[0].mxu0 %v7489
    %v7936 = vpop.f32.mrb[0].mxu0
    %v7937 = vadd.f32 %v7728, %v7936
    %v7938 = vpop.f32.mrb[0].mxu0
    %v7939 = vpop.f32.mrb[0].mxu0
    %v7940 = vadd.f32 %v7731, %v7939
    %v7941 = vpop.f32.mrb[0].mxu0
    %7942 = vmatprep.mubr.bf16.mxu0 %v7900
    %7943 = vmatmul.mubr.bf16.gmra.mrb[0].mxu0 %v7491
    %v7944 = vpop.f32.mrb[0].mxu0
    %v7945 = vadd.f32 %v7736, %v7944
    %v7946 = vpop.f32.mrb[0].mxu0
    %v7947 = vpop.f32.mrb[0].mxu0
    %v7948 = vadd.f32 %v7739, %v7947
    %v7949 = vpop.f32.mrb[0].mxu0
    %7950 = vmatprep.mubr.bf16.mxu0 %v7664
    %7951 = vmatmul.mubr.bf16.gmra.mrb[0].mxu0 %v7493
    %v7952 = vpop.f32.mrb[0].mxu0
    %v7953 = vadd.f32 %v7744, %v7952
    %v7954 = vpop.f32.mrb[0].mxu0
    %v7955 = vpop.f32.mrb[0].mxu0
    %v7956 = vadd.f32 %v7747, %v7955
    %v7957 = vpop.f32.mrb[0].mxu0
    %7958 = vmatprep.mubr.bf16.mxu0 %v7667
    %7959 = vmatmul.mubr.bf16.gmra.mrb[0].mxu0 %v7495
    %v7960 = vpop.f32.mrb[0].mxu0
    %v7961 = vadd.f32 %v7752, %v7960
    %v7962 = vpop.f32.mrb[0].mxu0
    %v7963 = vpop.f32.mrb[0].mxu0
    %v7964 = vadd.f32 %v7755, %v7963
    %v7965 = vpop.f32.mrb[0].mxu0
    %7966 = vmatprep.mubr.bf16.mxu0 %v7670
    %7967 = vmatmul.mubr.bf16.gmra.mrb[0].mxu0 %v7497
    %v7968 = vpop.f32.mrb[0].mxu0
    %v7969 = vadd.f32 %v7760, %v7968
    %v7970 = vpop.f32.mrb[0].mxu0
    %v7971 = vpop.f32.mrb[0].mxu0
    %v7972 = vadd.f32 %v7763, %v7971
    %v7973 = vpop.f32.mrb[0].mxu0
    %7974 = vmatprep.mubr.bf16.mxu0 %v7673
    %7975 = vmatmul.mubr.bf16.gmra.mrb[0].mxu0 %v7499
    %v7976 = vpop.f32.mrb[0].mxu0
    %v7977 = vadd.f32 %v7768, %v7976
    %v7978 = vpop.f32.mrb[0].mxu0
    %v7979 = vpop.f32.mrb[0].mxu0
    %v7980 = vadd.f32 %v7771, %v7979
    %v7981 = vpop.f32.mrb[0].mxu0
    %7982 = vmatprep.mubr.bf16.mxu0 %v7676
    %7983 = vmatmul.mubr.bf16.gmra.mrb[0].mxu0 %v7501
    %v7984 = vpop.f32.mrb[0].mxu0
    %v7985 = vadd.f32 %v7776, %v7984
    %v7986 = vpop.f32.mrb[0].mxu0
    %v7987 = vpop.f32.mrb[0].mxu0
    %v7988 = vadd.f32 %v7779, %v7987
    %v7989 = vpop.f32.mrb[0].mxu0
    %7990 = vmatprep.mubr.bf16.mxu0 %v7679
    %7991 = vmatmul.mubr.bf16.gmra.mrb[0].mxu0 %v7503
    %v7992 = vpop.f32.mrb[0].mxu0
    %v7993 = vadd.f32 %v7784, %v7992
    %v7994 = vpop.f32.mrb[0].mxu0
    %v7995 = vpop.f32.mrb[0].mxu0
    %v7996 = vadd.f32 %v7787, %v7995
    %v7997 = vpop.f32.mrb[0].mxu0
    %7998 = vmatprep.mubr.bf16.mxu0 %v7682
    %7999 = vmatmul.mubr.bf16.gmra.mrb[0].mxu0 %v7505
    %v8000 = vpop.f32.mrb[0].mxu0
    %v8001 = vadd.f32 %v7792, %v8000
    %v8002 = vpop.f32.mrb[0].mxu0
    %v8003 = vpop.f32.mrb[0].mxu0
    %v8004 = vadd.f32 %v7795, %v8003
    %v8005 = vpop.f32.mrb[0].mxu0
    %8006 = vmatprep.mubr.bf16.mxu0 %v7685
    %8007 = vmatmul.mubr.bf16.gmra.mrb[0].mxu0 %v7507
    %v8008 = vpop.f32.mrb[0].mxu0
    %v8009 = vadd.f32 %v7800, %v8008
    %v8010 = vpop.f32.mrb[0].mxu0
    %v8011 = vpop.f32.mrb[0].mxu0
    %v8012 = vadd.f32 %v7803, %v8011
    %v8013 = vpop.f32.mrb[0].mxu0
    %8014 = vdwg.mxu0
    %v8015 = vld [vmem:[#allocation2 + $0x2c0] sm:$0xff]
    %v8016 = vld [vmem:[#allocation2 + $0x2c8] sm:$0xff]
    %v8017 = vld [vmem:[#allocation2 + $0x2d0] sm:$0xff]
    %v8018 = vld [vmem:[#allocation2 + $0x2d8] sm:$0xff]
    %v8019 = vld [vmem:[#allocation2 + $0x2e0] sm:$0xff]
    %v8020 = vld [vmem:[#allocation2 + $0x2e8] sm:$0xff]
    %v8021 = vld [vmem:[#allocation2 + $0x2f0] sm:$0xff]
    %v8022 = vld [vmem:[#allocation2 + $0x2f8] sm:$0xff]
    %v8023 = vld [vmem:[#allocation2 + $0x300] sm:$0xff]
    %v8024 = vld [vmem:[#allocation2 + $0x308] sm:$0xff]
    %v8025 = vld [vmem:[#allocation2 + $0x310] sm:$0xff]
    %v8026 = vld [vmem:[#allocation2 + $0x318] sm:$0xff]
    %v8027 = vld [vmem:[#allocation2 + $0x320] sm:$0xff]
    %v8028 = vld [vmem:[#allocation2 + $0x328] sm:$0xff]
    %v8029 = vld [vmem:[#allocation2 + $0x330] sm:$0xff]
    %v8030 = vld [vmem:[#allocation2 + $0x338] sm:$0xff]
    %v8031 = vld [vmem:[#allocation2 + $0x340] sm:$0xff]
    %v8032 = vld [vmem:[#allocation2 + $0x348] sm:$0xff]
    %v8033 = vld [vmem:[#allocation2 + $0x350] sm:$0xff]
    %v8034 = vld [vmem:[#allocation2 + $0x358] sm:$0xff]
    %v8035 = vld [vmem:[%s1844] sm:$0xf]
    %v8036 = vld [vmem:[%s1844 + $0x4] sm:$0xf]
    %v8037 = vld [vmem:[%s1844 + $0x8] sm:$0xf]
    %v8038 = vld [vmem:[%s1844 + $0xc] sm:$0xf]
    %v8039 = vld [vmem:[%s1844 + $0x10] sm:$0xf]
    %v8040 = vld [vmem:[%s1844 + $0x14] sm:$0xf]
    %v8041 = vld [vmem:[%s1844 + $0x18] sm:$0xf]
    %v8042 = vld [vmem:[%s1844 + $0x1c] sm:$0xf]
    %v8043 = vld [vmem:[%s1844 + $0x20] sm:$0xf]
    %v8044 = vld [vmem:[%s1844 + $0x24] sm:$0xf]
    %v8045 = vld [vmem:[%s1844 + $0x28] sm:$0xf]
    %v8046 = vld [vmem:[%s1844 + $0x2c] sm:$0xf]
    %v8047 = vld [vmem:[%s1844 + $0x30] sm:$0xf]
    %v8048 = vld [vmem:[%s1844 + $0x34] sm:$0xf]
    %v8049 = vld [vmem:[%s1844 + $0x38] sm:$0xf]
    %v8050 = vld [vmem:[%s1844 + $0x3c] sm:$0xf]
    %v8051 = vld [vmem:[%s1844 + $0x40] sm:$0xf]
    %v8052 = vld [vmem:[%s1844 + $0x44] sm:$0xf]
    %v8053 = vld [vmem:[%s1844 + $0x48] sm:$0xf]
    %v8054 = vld [vmem:[%s1844 + $0x4c] sm:$0xf]
    %v8055 = vld [vmem:[%s1844 + $0x50] sm:$0xf]
    %v8056 = vld [vmem:[%s1844 + $0x54] sm:$0xf]
    %v8057 = vld [vmem:[%s1844 + $0x58] sm:$0xf]
    %v8058 = vld [vmem:[%s1844 + $0x5c] sm:$0xf]
    %v8059 = vld [vmem:[%s1844 + $0x60] sm:$0xf]
    %v8060 = vld [vmem:[%s1844 + $0x64] sm:$0xf]
    %v8061 = vld [vmem:[%s1844 + $0x68] sm:$0xf]
    %v8062 = vld [vmem:[%s1844 + $0x6c] sm:$0xf]
    %v8063 = vld [vmem:[%s1844 + $0x70] sm:$0xf]
    %v8064 = vld [vmem:[%s1844 + $0x74] sm:$0xf]
    %v8095 = vunpack.c.l.b16 %v8035
    %v8096 = vunpack.c.l.b16 %v8036
    %v8097 = vunpack.c.l.b16 %v8037
    %v8098 = vunpack.c.l.b16 %v8038
    %v8099 = vunpack.c.l.b16 %v8039
    %v8100 = vunpack.c.l.b16 %v8040
    %v8101 = vunpack.c.l.b16 %v8041
    %v8102 = vunpack.c.l.b16 %v8042
    %v8103 = vunpack.c.l.b16 %v8043
    %v8104 = vunpack.c.l.b16 %v8044
    %v8105 = vunpack.c.l.b16 %v8045
    %v8106 = vunpack.c.l.b16 %v8046
    %v8107 = vunpack.c.l.b16 %v8047
    %v8108 = vunpack.c.l.b16 %v8048
    %v8109 = vunpack.c.l.b16 %v8049
    %v8110 = vunpack.c.l.b16 %v8050
    %v8111 = vunpack.c.l.b16 %v8051
    %v8112 = vunpack.c.l.b16 %v8052
    %v8113 = vunpack.c.l.b16 %v8053
    %v8114 = vunpack.c.l.b16 %v8054
    %v8115 = vunpack.c.l.b16 %v8055
    %v8116 = vunpack.c.l.b16 %v8056
    %v8117 = vunpack.c.l.b16 %v8057
    %v8118 = vunpack.c.l.b16 %v8058
    %v8119 = vunpack.c.l.b16 %v8059
    %v8120 = vunpack.c.l.b16 %v8060
    %v8121 = vunpack.c.l.b16 %v8061
    %v8122 = vunpack.c.l.b16 %v8062
    %v8123 = vunpack.c.l.b16 %v8063
    %v8124 = vunpack.c.l.b16 %v8064
    %v8125 = vpack.c.b16 %v8096, %v8095
    %v8126 = vpack.c.b16 %v8098, %v8097
    %v8127 = vpack.c.b16 %v8100, %v8099
    %v8128 = vpack.c.b16 %v8102, %v8101
    %v8129 = vpack.c.b16 %v8104, %v8103
    %v8130 = vpack.c.b16 %v8106, %v8105
    %v8131 = vpack.c.b16 %v8108, %v8107
    %v8132 = vpack.c.b16 %v8110, %v8109
    %v8133 = vpack.c.b16 %v8112, %v8111
    %v8134 = vpack.c.b16 %v8114, %v8113
    %v8135 = vpack.c.b16 %v8116, %v8115
    %v8136 = vpack.c.b16 %v8118, %v8117
    %v8137 = vpack.c.b16 %v8120, %v8119
    %v8138 = vpack.c.b16 %v8122, %v8121
    %v8139 = vpack.c.b16 %v8124, %v8123
    %v8156 = vsel %vm860, %v8016, 0
    %v8159 = vsel %vm860, %v8018, 0
    %v8162 = vsel %vm860, %v8020, 0
    %v8165 = vsel %vm860, %v8022, 0
    %v8168 = vsel %vm860, %v8024, 0
    %v8171 = vsel %vm860, %v8026, 0
    %v8174 = vsel %vm860, %v8028, 0
    %v8177 = vsel %vm860, %v8030, 0
    %v8180 = vsel %vm860, %v8032, 0
    %v8183 = vsel %vm860, %v8034, 0
    %8185 = vmatprep.subr.bf16.mxu0 0
    %8186 = vmatpush1.bf16.msra.mxu0 %v8125
    %8187 = vmatprep.subr.bf16.mxu0 0
    %8188 = vmatpush1.bf16.msra.mxu0 %v8126
    %8189 = vmatprep.subr.bf16.mxu0 0
    %8190 = vmatpush1.bf16.msra.mxu0 %v8127
    %8191 = vmatprep.subr.bf16.mxu0 0
    %8192 = vmatpush1.bf16.msra.mxu0 %v8128
    %8193 = vmatprep.subr.bf16.mxu0 0
    %8194 = vmatpush1.bf16.msra.mxu0 %v8129
    %8195 = vmatprep.subr.bf16.mxu0 0
    %8196 = vmatpush1.bf16.msra.mxu0 %v8130
    %8197 = vmatprep.subr.bf16.mxu0 0
    %8198 = vmatpush1.bf16.msra.mxu0 %v8131
    %8199 = vmatprep.subr.bf16.mxu0 0
    %8200 = vmatpush1.bf16.msra.mxu0 %v8132
    %8201 = vmatprep.subr.bf16.mxu0 0
    %8202 = vmatpush1.bf16.msra.mxu0 %v8133
    %8203 = vmatprep.subr.bf16.mxu0 0
    %8204 = vmatpush1.bf16.msra.mxu0 %v8134
    %8205 = vmatprep.subr.bf16.mxu0 0
    %8206 = vmatpush1.bf16.msra.mxu0 %v8135
    %8207 = vmatprep.subr.bf16.mxu0 0
    %8208 = vmatpush1.bf16.msra.mxu0 %v8136
    %8209 = vmatprep.subr.bf16.mxu0 0
    %8210 = vmatpush1.bf16.msra.mxu0 %v8137
    %8211 = vmatprep.subr.bf16.mxu0 0
    %8212 = vmatpush1.bf16.msra.mxu0 %v8138
    %8213 = vmatprep.subr.bf16.mxu0 0
    %8214 = vmatpush1.bf16.msra.mxu0 %v8139
    %8215 = vmatprep.subr.bf16.mxu0 0
    %8216 = vmatpush1.bf16.msra.mxu0 0
    %8217 = vmatprep.mubr.bf16.mxu0 %v8156
    %8218 = vmatmul.mubr.bf16.gmra.mrb[0].mxu0 %v8015
    %v8219 = vpop.f32.mrb[0].mxu0
    %v8220 = vadd.f32 0.0, %v8219
    %v8221 = vpop.f32.mrb[0].mxu0
    %v8222 = vpop.f32.mrb[0].mxu0
    %v8223 = vadd.f32 0.0, %v8222
    %v8224 = vpop.f32.mrb[0].mxu0
    %8225 = vmatprep.mubr.bf16.mxu0 %v8159
    %8226 = vmatmul.mubr.bf16.gmra.mrb[0].mxu0 %v8017
    %v8227 = vpop.f32.mrb[0].mxu0
    %v8228 = vadd.f32 0.0, %v8227
    %v8229 = vpop.f32.mrb[0].mxu0
    %v8230 = vpop.f32.mrb[0].mxu0
    %v8231 = vadd.f32 0.0, %v8230
    %v8232 = vpop.f32.mrb[0].mxu0
    %8233 = vmatprep.mubr.bf16.mxu0 %v8162
    %8234 = vmatmul.mubr.bf16.gmra.mrb[0].mxu0 %v8019
    %v8235 = vpop.f32.mrb[0].mxu0
    %v8236 = vadd.f32 0.0, %v8235
    %v8237 = vpop.f32.mrb[0].mxu0
    %v8238 = vpop.f32.mrb[0].mxu0
    %v8239 = vadd.f32 0.0, %v8238
    %v8240 = vpop.f32.mrb[0].mxu0
    %8241 = vmatprep.mubr.bf16.mxu0 %v8165
    %8242 = vmatmul.mubr.bf16.gmra.mrb[0].mxu0 %v8021
    %v8243 = vpop.f32.mrb[0].mxu0
    %v8244 = vadd.f32 0.0, %v8243
    %v8245 = vpop.f32.mrb[0].mxu0
    %v8246 = vpop.f32.mrb[0].mxu0
    %v8247 = vadd.f32 0.0, %v8246
    %v8248 = vpop.f32.mrb[0].mxu0
    %8249 = vmatprep.mubr.bf16.mxu0 %v8168
    %8250 = vmatmul.mubr.bf16.gmra.mrb[0].mxu0 %v8023
    %v8251 = vpop.f32.mrb[0].mxu0
    %v8252 = vadd.f32 0.0, %v8251
    %v8253 = vpop.f32.mrb[0].mxu0
    %v8254 = vpop.f32.mrb[0].mxu0
    %v8255 = vadd.f32 0.0, %v8254
    %v8256 = vpop.f32.mrb[0].mxu0
    %8257 = vmatprep.mubr.bf16.mxu0 %v8171
    %8258 = vmatmul.mubr.bf16.gmra.mrb[0].mxu0 %v8025
    %v8259 = vpop.f32.mrb[0].mxu0
    %v8260 = vadd.f32 0.0, %v8259
    %v8261 = vpop.f32.mrb[0].mxu0
    %v8262 = vpop.f32.mrb[0].mxu0
    %v8263 = vadd.f32 0.0, %v8262
    %v8264 = vpop.f32.mrb[0].mxu0
    %8265 = vmatprep.mubr.bf16.mxu0 %v8174
    %8266 = vmatmul.mubr.bf16.gmra.mrb[0].mxu0 %v8027
    %v8267 = vpop.f32.mrb[0].mxu0
    %v8268 = vadd.f32 0.0, %v8267
    %v8269 = vpop.f32.mrb[0].mxu0
    %v8270 = vpop.f32.mrb[0].mxu0
    %v8271 = vadd.f32 0.0, %v8270
    %v8272 = vpop.f32.mrb[0].mxu0
    %8273 = vmatprep.mubr.bf16.mxu0 %v8177
    %8274 = vmatmul.mubr.bf16.gmra.mrb[0].mxu0 %v8029
    %v8275 = vpop.f32.mrb[0].mxu0
    %v8276 = vadd.f32 0.0, %v8275
    %v8277 = vpop.f32.mrb[0].mxu0
    %v8278 = vpop.f32.mrb[0].mxu0
    %v8279 = vadd.f32 0.0, %v8278
    %v8280 = vpop.f32.mrb[0].mxu0
    %8281 = vmatprep.mubr.bf16.mxu0 %v8180
    %8282 = vmatmul.mubr.bf16.gmra.mrb[0].mxu0 %v8031
    %v8283 = vpop.f32.mrb[0].mxu0
    %v8284 = vadd.f32 0.0, %v8283
    %v8285 = vpop.f32.mrb[0].mxu0
    %v8286 = vpop.f32.mrb[0].mxu0
    %v8287 = vadd.f32 0.0, %v8286
    %v8288 = vpop.f32.mrb[0].mxu0
    %8289 = vmatprep.mubr.bf16.mxu0 %v8183
    %8290 = vmatmul.mubr.bf16.gmra.mrb[0].mxu0 %v8033
    %v8291 = vpop.f32.mrb[0].mxu0
    %v8292 = vadd.f32 0.0, %v8291
    %v8293 = vpop.f32.mrb[0].mxu0
    %v8294 = vpop.f32.mrb[0].mxu0
    %v8295 = vadd.f32 0.0, %v8294
    %v8296 = vpop.f32.mrb[0].mxu0
    %8297 = vdwg.mxu0
    %v8298 = vadd.f32 %v7937, %v8220
    %v8299 = vadd.f32 %v7940, %v8223
    %v8300 = vadd.f32 %v7945, %v8228
    %v8301 = vadd.f32 %v7948, %v8231
    %v8302 = vadd.f32 %v7953, %v8236
    %v8303 = vadd.f32 %v7956, %v8239
    %v8304 = vadd.f32 %v7961, %v8244
    %v8305 = vadd.f32 %v7964, %v8247
    %v8306 = vadd.f32 %v7969, %v8252
    %v8307 = vadd.f32 %v7972, %v8255
    %v8308 = vadd.f32 %v7977, %v8260
    %v8309 = vadd.f32 %v7980, %v8263
    %v8310 = vadd.f32 %v7985, %v8268
    %v8311 = vadd.f32 %v7988, %v8271
    %v8312 = vadd.f32 %v7993, %v8276
    %v8313 = vadd.f32 %v7996, %v8279
    %v8314 = vadd.f32 %v8001, %v8284
    %v8315 = vadd.f32 %v8004, %v8287
    %v8316 = vadd.f32 %v8009, %v8292
    %v8317 = vadd.f32 %v8012, %v8295
    %v8318 = vld [vmem:[#allocation2 + $0x2e0] sm:$0xff]
    %v8319 = vld [vmem:[#allocation2 + $0x2e8] sm:$0xff]
    %v8320 = vld [vmem:[#allocation2 + $0x2f0] sm:$0xff]
    %v8321 = vld [vmem:[#allocation2 + $0x2f8] sm:$0xff]
    %v8322 = vld [vmem:[#allocation2 + $0x300] sm:$0xff]
    %v8323 = vld [vmem:[#allocation2 + $0x308] sm:$0xff]
    %v8324 = vld [vmem:[#allocation2 + $0x310] sm:$0xff]
    %v8325 = vld [vmem:[#allocation2 + $0x318] sm:$0xff]
    %v8326 = vld [vmem:[#allocation2 + $0x320] sm:$0xff]
    %v8327 = vld [vmem:[#allocation2 + $0x328] sm:$0xff]
    %v8328 = vld [vmem:[#allocation2 + $0x330] sm:$0xff]
    %v8329 = vld [vmem:[#allocation2 + $0x338] sm:$0xff]
    %v8330 = vld [vmem:[#allocation2 + $0x340] sm:$0xff]
    %v8331 = vld [vmem:[#allocation2 + $0x348] sm:$0xff]
    %v8332 = vld [vmem:[#allocation2 + $0x350] sm:$0xff]
    %v8333 = vld [vmem:[#allocation2 + $0x358] sm:$0xff]
    %v8334 = vld [vmem:[#allocation2 + $0x360] sm:$0xff]
    %v8335 = vld [vmem:[#allocation2 + $0x368] sm:$0xff]
    %v8336 = vld [vmem:[#allocation2 + $0x370] sm:$0xff]
    %v8337 = vld [vmem:[#allocation2 + $0x378] sm:$0xff]
    %v8338 = vld [vmem:[%s2148] sm:$0xf]
    %v8339 = vld [vmem:[%s2148 + $0x4] sm:$0xf]
    %v8340 = vld [vmem:[%s2148 + $0x8] sm:$0xf]
    %v8341 = vld [vmem:[%s2148 + $0xc] sm:$0xf]
    %v8342 = vld [vmem:[%s2148 + $0x10] sm:$0xf]
    %v8343 = vld [vmem:[%s2148 + $0x14] sm:$0xf]
    %v8344 = vld [vmem:[%s2148 + $0x18] sm:$0xf]
    %v8345 = vld [vmem:[%s2148 + $0x1c] sm:$0xf]
    %v8346 = vld [vmem:[%s2148 + $0x20] sm:$0xf]
    %v8347 = vld [vmem:[%s2148 + $0x24] sm:$0xf]
    %v8348 = vld [vmem:[%s2148 + $0x28] sm:$0xf]
    %v8349 = vld [vmem:[%s2148 + $0x2c] sm:$0xf]
    %v8350 = vld [vmem:[%s2148 + $0x30] sm:$0xf]
    %v8351 = vld [vmem:[%s2148 + $0x34] sm:$0xf]
    %v8352 = vld [vmem:[%s2148 + $0x38] sm:$0xf]
    %v8353 = vld [vmem:[%s2148 + $0x3c] sm:$0xf]
    %v8354 = vld [vmem:[%s2148 + $0x40] sm:$0xf]
    %v8355 = vld [vmem:[%s2148 + $0x44] sm:$0xf]
    %v8356 = vld [vmem:[%s2148 + $0x48] sm:$0xf]
    %v8357 = vld [vmem:[%s2148 + $0x4c] sm:$0xf]
    %v8358 = vld [vmem:[%s2148 + $0x50] sm:$0xf]
    %v8359 = vld [vmem:[%s2148 + $0x54] sm:$0xf]
    %v8360 = vld [vmem:[%s2148 + $0x58] sm:$0xf]
    %v8361 = vld [vmem:[%s2148 + $0x5c] sm:$0xf]
    %v8362 = vld [vmem:[%s2148 + $0x60] sm:$0xf]
    %v8363 = vld [vmem:[%s2148 + $0x64] sm:$0xf]
    %v8364 = vld [vmem:[%s2148 + $0x68] sm:$0xf]
    %v8365 = vld [vmem:[%s2148 + $0x6c] sm:$0xf]
    %v8366 = vld [vmem:[%s2148 + $0x70] sm:$0xf]
    %v8367 = vld [vmem:[%s2148 + $0x74] sm:$0xf]
    %v8398 = vunpack.c.l.b16 %v8338
    %v8399 = vunpack.c.l.b16 %v8339
    %v8400 = vunpack.c.l.b16 %v8340
    %v8401 = vunpack.c.l.b16 %v8341
    %v8402 = vunpack.c.l.b16 %v8342
    %v8403 = vunpack.c.l.b16 %v8343
    %v8404 = vunpack.c.l.b16 %v8344
    %v8405 = vunpack.c.l.b16 %v8345
    %v8406 = vunpack.c.l.b16 %v8346
    %v8407 = vunpack.c.l.b16 %v8347
    %v8408 = vunpack.c.l.b16 %v8348
    %v8409 = vunpack.c.l.b16 %v8349
    %v8410 = vunpack.c.l.b16 %v8350
    %v8411 = vunpack.c.l.b16 %v8351
    %v8412 = vunpack.c.l.b16 %v8352
    %v8413 = vunpack.c.l.b16 %v8353
    %v8414 = vunpack.c.l.b16 %v8354
    %v8415 = vunpack.c.l.b16 %v8355
    %v8416 = vunpack.c.l.b16 %v8356
    %v8417 = vunpack.c.l.b16 %v8357
    %v8418 = vunpack.c.l.b16 %v8358
    %v8419 = vunpack.c.l.b16 %v8359
    %v8420 = vunpack.c.l.b16 %v8360
    %v8421 = vunpack.c.l.b16 %v8361
    %v8422 = vunpack.c.l.b16 %v8362
    %v8423 = vunpack.c.l.b16 %v8363
    %v8424 = vunpack.c.l.b16 %v8364
    %v8425 = vunpack.c.l.b16 %v8365
    %v8426 = vunpack.c.l.b16 %v8366
    %v8427 = vunpack.c.l.b16 %v8367
    %v8428 = vpack.c.b16 %v8399, %v8398
    %v8429 = vpack.c.b16 %v8401, %v8400
    %v8430 = vpack.c.b16 %v8403, %v8402
    %v8431 = vpack.c.b16 %v8405, %v8404
    %v8432 = vpack.c.b16 %v8407, %v8406
    %v8433 = vpack.c.b16 %v8409, %v8408
    %v8434 = vpack.c.b16 %v8411, %v8410
    %v8435 = vpack.c.b16 %v8413, %v8412
    %v8436 = vpack.c.b16 %v8415, %v8414
    %v8437 = vpack.c.b16 %v8417, %v8416
    %v8438 = vpack.c.b16 %v8419, %v8418
    %v8439 = vpack.c.b16 %v8421, %v8420
    %v8440 = vpack.c.b16 %v8423, %v8422
    %v8441 = vpack.c.b16 %v8425, %v8424
    %v8442 = vpack.c.b16 %v8427, %v8426
    %v8459 = vsel %vm860, %v8319, 0
    %v8462 = vsel %vm860, %v8321, 0
    %v8465 = vsel %vm860, %v8323, 0
    %v8468 = vsel %vm860, %v8325, 0
    %v8471 = vsel %vm860, %v8327, 0
    %v8474 = vsel %vm860, %v8329, 0
    %v8477 = vsel %vm860, %v8331, 0
    %v8480 = vsel %vm860, %v8333, 0
    %v8483 = vsel %vm860, %v8335, 0
    %v8486 = vsel %vm860, %v8337, 0
    %8488 = vmatprep.subr.bf16.mxu0 0
    %8489 = vmatpush1.bf16.msra.mxu0 %v8428
    %8490 = vmatprep.subr.bf16.mxu0 0
    %8491 = vmatpush1.bf16.msra.mxu0 %v8429
    %8492 = vmatprep.subr.bf16.mxu0 0
    %8493 = vmatpush1.bf16.msra.mxu0 %v8430
    %8494 = vmatprep.subr.bf16.mxu0 0
    %8495 = vmatpush1.bf16.msra.mxu0 %v8431
    %8496 = vmatprep.subr.bf16.mxu0 0
    %8497 = vmatpush1.bf16.msra.mxu0 %v8432
    %8498 = vmatprep.subr.bf16.mxu0 0
    %8499 = vmatpush1.bf16.msra.mxu0 %v8433
    %8500 = vmatprep.subr.bf16.mxu0 0
    %8501 = vmatpush1.bf16.msra.mxu0 %v8434
    %8502 = vmatprep.subr.bf16.mxu0 0
    %8503 = vmatpush1.bf16.msra.mxu0 %v8435
    %8504 = vmatprep.subr.bf16.mxu0 0
    %8505 = vmatpush1.bf16.msra.mxu0 %v8436
    %8506 = vmatprep.subr.bf16.mxu0 0
    %8507 = vmatpush1.bf16.msra.mxu0 %v8437
    %8508 = vmatprep.subr.bf16.mxu0 0
    %8509 = vmatpush1.bf16.msra.mxu0 %v8438
    %8510 = vmatprep.subr.bf16.mxu0 0
    %8511 = vmatpush1.bf16.msra.mxu0 %v8439
    %8512 = vmatprep.subr.bf16.mxu0 0
    %8513 = vmatpush1.bf16.msra.mxu0 %v8440
    %8514 = vmatprep.subr.bf16.mxu0 0
    %8515 = vmatpush1.bf16.msra.mxu0 %v8441
    %8516 = vmatprep.subr.bf16.mxu0 0
    %8517 = vmatpush1.bf16.msra.mxu0 %v8442
    %8518 = vmatprep.subr.bf16.mxu0 0
    %8519 = vmatpush1.bf16.msra.mxu0 0
    %8520 = vmatprep.mubr.bf16.mxu0 %v8459
    %8521 = vmatmul.mubr.bf16.gmra.mrb[0].mxu0 %v8318
    %v8522 = vpop.f32.mrb[0].mxu0
    %v8523 = vadd.f32 0.0, %v8522
    %v8524 = vpop.f32.mrb[0].mxu0
    %v8525 = vpop.f32.mrb[0].mxu0
    %v8526 = vadd.f32 0.0, %v8525
    %v8527 = vpop.f32.mrb[0].mxu0
    %8528 = vmatprep.mubr.bf16.mxu0 %v8462
    %8529 = vmatmul.mubr.bf16.gmra.mrb[0].mxu0 %v8320
    %v8530 = vpop.f32.mrb[0].mxu0
    %v8531 = vadd.f32 0.0, %v8530
    %v8532 = vpop.f32.mrb[0].mxu0
    %v8533 = vpop.f32.mrb[0].mxu0
    %v8534 = vadd.f32 0.0, %v8533
    %v8535 = vpop.f32.mrb[0].mxu0
    %8536 = vmatprep.mubr.bf16.mxu0 %v8465
    %8537 = vmatmul.mubr.bf16.gmra.mrb[0].mxu0 %v8322
    %v8538 = vpop.f32.mrb[0].mxu0
    %v8539 = vadd.f32 0.0, %v8538
    %v8540 = vpop.f32.mrb[0].mxu0
    %v8541 = vpop.f32.mrb[0].mxu0
    %v8542 = vadd.f32 0.0, %v8541
    %v8543 = vpop.f32.mrb[0].mxu0
    %8544 = vmatprep.mubr.bf16.mxu0 %v8468
    %8545 = vmatmul.mubr.bf16.gmra.mrb[0].mxu0 %v8324
    %v8546 = vpop.f32.mrb[0].mxu0
    %v8547 = vadd.f32 0.0, %v8546
    %v8548 = vpop.f32.mrb[0].mxu0
    %v8549 = vpop.f32.mrb[0].mxu0
    %v8550 = vadd.f32 0.0, %v8549
    %v8551 = vpop.f32.mrb[0].mxu0
    %8552 = vmatprep.mubr.bf16.mxu0 %v8471
    %8553 = vmatmul.mubr.bf16.gmra.mrb[0].mxu0 %v8326
    %v8554 = vpop.f32.mrb[0].mxu0
    %v8555 = vadd.f32 0.0, %v8554
    %v8556 = vpop.f32.mrb[0].mxu0
    %v8557 = vpop.f32.mrb[0].mxu0
    %v8558 = vadd.f32 0.0, %v8557
    %v8559 = vpop.f32.mrb[0].mxu0
    %8560 = vmatprep.mubr.bf16.mxu0 %v8474
    %8561 = vmatmul.mubr.bf16.gmra.mrb[0].mxu0 %v8328
    %v8562 = vpop.f32.mrb[0].mxu0
    %v8563 = vadd.f32 0.0, %v8562
    %v8564 = vpop.f32.mrb[0].mxu0
    %v8565 = vpop.f32.mrb[0].mxu0
    %v8566 = vadd.f32 0.0, %v8565
    %v8567 = vpop.f32.mrb[0].mxu0
    %8568 = vmatprep.mubr.bf16.mxu0 %v8477
    %8569 = vmatmul.mubr.bf16.gmra.mrb[0].mxu0 %v8330
    %v8570 = vpop.f32.mrb[0].mxu0
    %v8571 = vadd.f32 0.0, %v8570
    %v8572 = vpop.f32.mrb[0].mxu0
    %v8573 = vpop.f32.mrb[0].mxu0
    %v8574 = vadd.f32 0.0, %v8573
    %v8575 = vpop.f32.mrb[0].mxu0
    %8576 = vmatprep.mubr.bf16.mxu0 %v8480
    %8577 = vmatmul.mubr.bf16.gmra.mrb[0].mxu0 %v8332
    %v8578 = vpop.f32.mrb[0].mxu0
    %v8579 = vadd.f32 0.0, %v8578
    %v8580 = vpop.f32.mrb[0].mxu0
    %v8581 = vpop.f32.mrb[0].mxu0
    %v8582 = vadd.f32 0.0, %v8581
    %v8583 = vpop.f32.mrb[0].mxu0
    %8584 = vmatprep.mubr.bf16.mxu0 %v8483
    %8585 = vmatmul.mubr.bf16.gmra.mrb[0].mxu0 %v8334
    %v8586 = vpop.f32.mrb[0].mxu0
    %v8587 = vadd.f32 0.0, %v8586
    %v8588 = vpop.f32.mrb[0].mxu0
    %v8589 = vpop.f32.mrb[0].mxu0
    %v8590 = vadd.f32 0.0, %v8589
    %v8591 = vpop.f32.mrb[0].mxu0
    %8592 = vmatprep.mubr.bf16.mxu0 %v8486
    %8593 = vmatmul.mubr.bf16.gmra.mrb[0].mxu0 %v8336
    %v8594 = vpop.f32.mrb[0].mxu0
    %v8595 = vadd.f32 0.0, %v8594
    %v8596 = vpop.f32.mrb[0].mxu0
    %v8597 = vpop.f32.mrb[0].mxu0
    %v8598 = vadd.f32 0.0, %v8597
    %v8599 = vpop.f32.mrb[0].mxu0
    %8600 = vdwg.mxu0
    %v8601 = vadd.f32 %v8298, %v8523
    %v8602 = vadd.f32 %v8299, %v8526
    %v8603 = vadd.f32 %v8300, %v8531
    %v8604 = vadd.f32 %v8301, %v8534
    %v8605 = vadd.f32 %v8302, %v8539
    %v8606 = vadd.f32 %v8303, %v8542
    %v8607 = vadd.f32 %v8304, %v8547
    %v8608 = vadd.f32 %v8305, %v8550
    %v8609 = vadd.f32 %v8306, %v8555
    %v8610 = vadd.f32 %v8307, %v8558
    %v8611 = vadd.f32 %v8308, %v8563
    %v8612 = vadd.f32 %v8309, %v8566
    %v8613 = vadd.f32 %v8310, %v8571
    %v8614 = vadd.f32 %v8311, %v8574
    %v8615 = vadd.f32 %v8312, %v8579
    %v8616 = vadd.f32 %v8313, %v8582
    %v8617 = vadd.f32 %v8314, %v8587
    %v8618 = vadd.f32 %v8315, %v8590
    %v8619 = vadd.f32 %v8316, %v8595
    %v8620 = vadd.f32 %v8317, %v8598
    %v8621 = vld [vmem:[#allocation2 + $0x300] sm:$0xff]
    %v8622 = vld [vmem:[#allocation2 + $0x308] sm:$0xff]
    %v8623 = vld [vmem:[#allocation2 + $0x310] sm:$0xff]
    %v8624 = vld [vmem:[#allocation2 + $0x318] sm:$0xff]
    %v8625 = vld [vmem:[#allocation2 + $0x320] sm:$0xff]
    %v8626 = vld [vmem:[#allocation2 + $0x328] sm:$0xff]
    %v8627 = vld [vmem:[#allocation2 + $0x330] sm:$0xff]
    %v8628 = vld [vmem:[#allocation2 + $0x338] sm:$0xff]
    %v8629 = vld [vmem:[#allocation2 + $0x340] sm:$0xff]
    %v8630 = vld [vmem:[#allocation2 + $0x348] sm:$0xff]
    %v8631 = vld [vmem:[#allocation2 + $0x350] sm:$0xff]
    %v8632 = vld [vmem:[#allocation2 + $0x358] sm:$0xff]
    %v8633 = vld [vmem:[#allocation2 + $0x360] sm:$0xff]
    %v8634 = vld [vmem:[#allocation2 + $0x368] sm:$0xff]
    %v8635 = vld [vmem:[#allocation2 + $0x370] sm:$0xff]
    %v8636 = vld [vmem:[#allocation2 + $0x378] sm:$0xff]
    %v8637 = vld [vmem:[#allocation2 + $0x380] sm:$0xff]
    %v8638 = vld [vmem:[#allocation2 + $0x388] sm:$0xff]
    %v8639 = vld [vmem:[#allocation2 + $0x390] sm:$0xff]
    %v8640 = vld [vmem:[#allocation2 + $0x398] sm:$0xff]
    %v8641 = vld [vmem:[%s2452] sm:$0xf]
    %v8642 = vld [vmem:[%s2452 + $0x4] sm:$0xf]
    %v8643 = vld [vmem:[%s2452 + $0x8] sm:$0xf]
    %v8644 = vld [vmem:[%s2452 + $0xc] sm:$0xf]
    %v8645 = vld [vmem:[%s2452 + $0x10] sm:$0xf]
    %v8646 = vld [vmem:[%s2452 + $0x14] sm:$0xf]
    %v8647 = vld [vmem:[%s2452 + $0x18] sm:$0xf]
    %v8648 = vld [vmem:[%s2452 + $0x1c] sm:$0xf]
    %v8649 = vld [vmem:[%s2452 + $0x20] sm:$0xf]
    %v8650 = vld [vmem:[%s2452 + $0x24] sm:$0xf]
    %v8651 = vld [vmem:[%s2452 + $0x28] sm:$0xf]
    %v8652 = vld [vmem:[%s2452 + $0x2c] sm:$0xf]
    %v8653 = vld [vmem:[%s2452 + $0x30] sm:$0xf]
    %v8654 = vld [vmem:[%s2452 + $0x34] sm:$0xf]
    %v8655 = vld [vmem:[%s2452 + $0x38] sm:$0xf]
    %v8656 = vld [vmem:[%s2452 + $0x3c] sm:$0xf]
    %v8657 = vld [vmem:[%s2452 + $0x40] sm:$0xf]
    %v8658 = vld [vmem:[%s2452 + $0x44] sm:$0xf]
    %v8659 = vld [vmem:[%s2452 + $0x48] sm:$0xf]
    %v8660 = vld [vmem:[%s2452 + $0x4c] sm:$0xf]
    %v8661 = vld [vmem:[%s2452 + $0x50] sm:$0xf]
    %v8662 = vld [vmem:[%s2452 + $0x54] sm:$0xf]
    %v8663 = vld [vmem:[%s2452 + $0x58] sm:$0xf]
    %v8664 = vld [vmem:[%s2452 + $0x5c] sm:$0xf]
    %v8665 = vld [vmem:[%s2452 + $0x60] sm:$0xf]
    %v8666 = vld [vmem:[%s2452 + $0x64] sm:$0xf]
    %v8667 = vld [vmem:[%s2452 + $0x68] sm:$0xf]
    %v8668 = vld [vmem:[%s2452 + $0x6c] sm:$0xf]
    %v8669 = vld [vmem:[%s2452 + $0x70] sm:$0xf]
    %v8670 = vld [vmem:[%s2452 + $0x74] sm:$0xf]
    %v8701 = vunpack.c.l.b16 %v8641
    %v8702 = vunpack.c.l.b16 %v8642
    %v8703 = vunpack.c.l.b16 %v8643
    %v8704 = vunpack.c.l.b16 %v8644
    %v8705 = vunpack.c.l.b16 %v8645
    %v8706 = vunpack.c.l.b16 %v8646
    %v8707 = vunpack.c.l.b16 %v8647
    %v8708 = vunpack.c.l.b16 %v8648
    %v8709 = vunpack.c.l.b16 %v8649
    %v8710 = vunpack.c.l.b16 %v8650
    %v8711 = vunpack.c.l.b16 %v8651
    %v8712 = vunpack.c.l.b16 %v8652
    %v8713 = vunpack.c.l.b16 %v8653
    %v8714 = vunpack.c.l.b16 %v8654
    %v8715 = vunpack.c.l.b16 %v8655
    %v8716 = vunpack.c.l.b16 %v8656
    %v8717 = vunpack.c.l.b16 %v8657
    %v8718 = vunpack.c.l.b16 %v8658
    %v8719 = vunpack.c.l.b16 %v8659
    %v8720 = vunpack.c.l.b16 %v8660
    %v8721 = vunpack.c.l.b16 %v8661
    %v8722 = vunpack.c.l.b16 %v8662
    %v8723 = vunpack.c.l.b16 %v8663
    %v8724 = vunpack.c.l.b16 %v8664
    %v8725 = vunpack.c.l.b16 %v8665
    %v8726 = vunpack.c.l.b16 %v8666
    %v8727 = vunpack.c.l.b16 %v8667
    %v8728 = vunpack.c.l.b16 %v8668
    %v8729 = vunpack.c.l.b16 %v8669
    %v8730 = vunpack.c.l.b16 %v8670
    %v8731 = vpack.c.b16 %v8702, %v8701
    %v8732 = vpack.c.b16 %v8704, %v8703
    %v8733 = vpack.c.b16 %v8706, %v8705
    %v8734 = vpack.c.b16 %v8708, %v8707
    %v8735 = vpack.c.b16 %v8710, %v8709
    %v8736 = vpack.c.b16 %v8712, %v8711
    %v8737 = vpack.c.b16 %v8714, %v8713
    %v8738 = vpack.c.b16 %v8716, %v8715
    %v8739 = vpack.c.b16 %v8718, %v8717
    %v8740 = vpack.c.b16 %v8720, %v8719
    %v8741 = vpack.c.b16 %v8722, %v8721
    %v8742 = vpack.c.b16 %v8724, %v8723
    %v8743 = vpack.c.b16 %v8726, %v8725
    %v8744 = vpack.c.b16 %v8728, %v8727
    %v8745 = vpack.c.b16 %v8730, %v8729
    %v8762 = vsel %vm860, %v8622, 0
    %v8765 = vsel %vm860, %v8624, 0
    %v8768 = vsel %vm860, %v8626, 0
    %v8771 = vsel %vm860, %v8628, 0
    %v8774 = vsel %vm860, %v8630, 0
    %v8777 = vsel %vm860, %v8632, 0
    %v8780 = vsel %vm860, %v8634, 0
    %v8783 = vsel %vm860, %v8636, 0
    %v8786 = vsel %vm860, %v8638, 0
    %v8789 = vsel %vm860, %v8640, 0
    %8791 = vmatprep.subr.bf16.mxu0 0
    %8792 = vmatpush1.bf16.msra.mxu0 %v8731
    %8793 = vmatprep.subr.bf16.mxu0 0
    %8794 = vmatpush1.bf16.msra.mxu0 %v8732
    %8795 = vmatprep.subr.bf16.mxu0 0
    %8796 = vmatpush1.bf16.msra.mxu0 %v8733
    %8797 = vmatprep.subr.bf16.mxu0 0
    %8798 = vmatpush1.bf16.msra.mxu0 %v8734
    %8799 = vmatprep.subr.bf16.mxu0 0
    %8800 = vmatpush1.bf16.msra.mxu0 %v8735
    %8801 = vmatprep.subr.bf16.mxu0 0
    %8802 = vmatpush1.bf16.msra.mxu0 %v8736
    %8803 = vmatprep.subr.bf16.mxu0 0
    %8804 = vmatpush1.bf16.msra.mxu0 %v8737
    %8805 = vmatprep.subr.bf16.mxu0 0
    %8806 = vmatpush1.bf16.msra.mxu0 %v8738
    %8807 = vmatprep.subr.bf16.mxu0 0
    %8808 = vmatpush1.bf16.msra.mxu0 %v8739
    %8809 = vmatprep.subr.bf16.mxu0 0
    %8810 = vmatpush1.bf16.msra.mxu0 %v8740
    %8811 = vmatprep.subr.bf16.mxu0 0
    %8812 = vmatpush1.bf16.msra.mxu0 %v8741
    %8813 = vmatprep.subr.bf16.mxu0 0
    %8814 = vmatpush1.bf16.msra.mxu0 %v8742
    %8815 = vmatprep.subr.bf16.mxu0 0
    %8816 = vmatpush1.bf16.msra.mxu0 %v8743
    %8817 = vmatprep.subr.bf16.mxu0 0
    %8818 = vmatpush1.bf16.msra.mxu0 %v8744
    %8819 = vmatprep.subr.bf16.mxu0 0
    %8820 = vmatpush1.bf16.msra.mxu0 %v8745
    %8821 = vmatprep.subr.bf16.mxu0 0
    %8822 = vmatpush1.bf16.msra.mxu0 0
    %8823 = vmatprep.mubr.bf16.mxu0 %v8762
    %8824 = vmatmul.mubr.bf16.gmra.mrb[0].mxu0 %v8621
    %v8825 = vpop.f32.mrb[0].mxu0
    %v8826 = vadd.f32 0.0, %v8825
    %v8827 = vpop.f32.mrb[0].mxu0
    %v8828 = vpop.f32.mrb[0].mxu0
    %v8829 = vadd.f32 0.0, %v8828
    %v8830 = vpop.f32.mrb[0].mxu0
    %8831 = vmatprep.mubr.bf16.mxu0 %v8765
    %8832 = vmatmul.mubr.bf16.gmra.mrb[0].mxu0 %v8623
    %v8833 = vpop.f32.mrb[0].mxu0
    %v8834 = vadd.f32 0.0, %v8833
    %v8835 = vpop.f32.mrb[0].mxu0
    %v8836 = vpop.f32.mrb[0].mxu0
    %v8837 = vadd.f32 0.0, %v8836
    %v8838 = vpop.f32.mrb[0].mxu0
    %8839 = vmatprep.mubr.bf16.mxu0 %v8768
    %8840 = vmatmul.mubr.bf16.gmra.mrb[0].mxu0 %v8625
    %v8841 = vpop.f32.mrb[0].mxu0
    %v8842 = vadd.f32 0.0, %v8841
    %v8843 = vpop.f32.mrb[0].mxu0
    %v8844 = vpop.f32.mrb[0].mxu0
    %v8845 = vadd.f32 0.0, %v8844
    %v8846 = vpop.f32.mrb[0].mxu0
    %8847 = vmatprep.mubr.bf16.mxu0 %v8771
    %8848 = vmatmul.mubr.bf16.gmra.mrb[0].mxu0 %v8627
    %v8849 = vpop.f32.mrb[0].mxu0
    %v8850 = vadd.f32 0.0, %v8849
    %v8851 = vpop.f32.mrb[0].mxu0
    %v8852 = vpop.f32.mrb[0].mxu0
    %v8853 = vadd.f32 0.0, %v8852
    %v8854 = vpop.f32.mrb[0].mxu0
    %8855 = vmatprep.mubr.bf16.mxu0 %v8774
    %8856 = vmatmul.mubr.bf16.gmra.mrb[0].mxu0 %v8629
    %v8857 = vpop.f32.mrb[0].mxu0
    %v8858 = vadd.f32 0.0, %v8857
    %v8859 = vpop.f32.mrb[0].mxu0
    %v8860 = vpop.f32.mrb[0].mxu0
    %v8861 = vadd.f32 0.0, %v8860
    %v8862 = vpop.f32.mrb[0].mxu0
    %8863 = vmatprep.mubr.bf16.mxu0 %v8777
    %8864 = vmatmul.mubr.bf16.gmra.mrb[0].mxu0 %v8631
    %v8865 = vpop.f32.mrb[0].mxu0
    %v8866 = vadd.f32 0.0, %v8865
    %v8867 = vpop.f32.mrb[0].mxu0
    %v8868 = vpop.f32.mrb[0].mxu0
    %v8869 = vadd.f32 0.0, %v8868
    %v8870 = vpop.f32.mrb[0].mxu0
    %8871 = vmatprep.mubr.bf16.mxu0 %v8780
    %8872 = vmatmul.mubr.bf16.gmra.mrb[0].mxu0 %v8633
    %v8873 = vpop.f32.mrb[0].mxu0
    %v8874 = vadd.f32 0.0, %v8873
    %v8875 = vpop.f32.mrb[0].mxu0
    %v8876 = vpop.f32.mrb[0].mxu0
    %v8877 = vadd.f32 0.0, %v8876
    %v8878 = vpop.f32.mrb[0].mxu0
    %8879 = vmatprep.mubr.bf16.mxu0 %v8783
    %8880 = vmatmul.mubr.bf16.gmra.mrb[0].mxu0 %v8635
    %v8881 = vpop.f32.mrb[0].mxu0
    %v8882 = vadd.f32 0.0, %v8881
    %v8883 = vpop.f32.mrb[0].mxu0
    %v8884 = vpop.f32.mrb[0].mxu0
    %v8885 = vadd.f32 0.0, %v8884
    %v8886 = vpop.f32.mrb[0].mxu0
    %8887 = vmatprep.mubr.bf16.mxu0 %v8786
    %8888 = vmatmul.mubr.bf16.gmra.mrb[0].mxu0 %v8637
    %v8889 = vpop.f32.mrb[0].mxu0
    %v8890 = vadd.f32 0.0, %v8889
    %v8891 = vpop.f32.mrb[0].mxu0
    %v8892 = vpop.f32.mrb[0].mxu0
    %v8893 = vadd.f32 0.0, %v8892
    %v8894 = vpop.f32.mrb[0].mxu0
    %8895 = vmatprep.mubr.bf16.mxu0 %v8789
    %8896 = vmatmul.mubr.bf16.gmra.mrb[0].mxu0 %v8639
    %v8897 = vpop.f32.mrb[0].mxu0
    %v8898 = vadd.f32 0.0, %v8897
    %v8899 = vpop.f32.mrb[0].mxu0
    %v8900 = vpop.f32.mrb[0].mxu0
    %v8901 = vadd.f32 0.0, %v8900
    %v8902 = vpop.f32.mrb[0].mxu0
    %8903 = vdwg.mxu0
    %v8904 = vadd.f32 %v8601, %v8826
    %v8905 = vadd.f32 %v8602, %v8829
    %v8906 = vadd.f32 %v8603, %v8834
    %v8907 = vadd.f32 %v8604, %v8837
    %v8908 = vadd.f32 %v8605, %v8842
    %v8909 = vadd.f32 %v8606, %v8845
    %v8910 = vadd.f32 %v8607, %v8850
    %v8911 = vadd.f32 %v8608, %v8853
    %v8912 = vadd.f32 %v8609, %v8858
    %v8913 = vadd.f32 %v8610, %v8861
    %v8914 = vadd.f32 %v8611, %v8866
    %v8915 = vadd.f32 %v8612, %v8869
    %v8916 = vadd.f32 %v8613, %v8874
    %v8917 = vadd.f32 %v8614, %v8877
    %v8918 = vadd.f32 %v8615, %v8882
    %v8919 = vadd.f32 %v8616, %v8885
    %v8920 = vadd.f32 %v8617, %v8890
    %v8921 = vadd.f32 %v8618, %v8893
    %v8922 = vadd.f32 %v8619, %v8898
    %v8923 = vadd.f32 %v8620, %v8901
    %v8924 = vmul.f32 %v8904, %v1277
    %v8925 = vmul.f32 %v8905, %v1278
    %v8926 = vmul.f32 %v8906, %v1279
    %v8927 = vmul.f32 %v8907, %v1280
    %v8928 = vmul.f32 %v8908, %v1281
    %v8929 = vmul.f32 %v8909, %v1282
    %v8930 = vmul.f32 %v8910, %v1283
    %v8931 = vmul.f32 %v8911, %v1284
    %v8932 = vmul.f32 %v8912, %v1285
    %v8933 = vmul.f32 %v8913, %v1286
    %v8934 = vmul.f32 %v8914, %v1287
    %v8935 = vmul.f32 %v8915, %v1288
    %v8936 = vmul.f32 %v8916, %v1289
    %v8937 = vmul.f32 %v8917, %v1290
    %v8938 = vmul.f32 %v8918, %v1291
    %v8939 = vmul.f32 %v8919, %v1292
    %v8940 = vmul.f32 %v8920, %v1293
    %v8941 = vmul.f32 %v8921, %v1294
    %v8942 = vmul.f32 %v8922, %v1295
    %v8943 = vmul.f32 %v8923, %v1296
    %v8944 = vadd.f32 %v8924, %v8925
    %v8945 = vadd.f32 %v8944, %v8926
    %v8946 = vadd.f32 %v8945, %v8927
    %v8947 = vadd.f32 %v8946, %v8928
    %v8948 = vadd.f32 %v8947, %v8929
    %v8949 = vadd.f32 %v8948, %v8930
    %v8950 = vadd.f32 %v8949, %v8931
    %v8951 = vadd.f32 %v8950, %v8932
    %v8952 = vadd.f32 %v8951, %v8933
    %v8953 = vadd.f32 %v8952, %v8934
    %v8954 = vadd.f32 %v8953, %v8935
    %v8955 = vadd.f32 %v8954, %v8936
    %v8956 = vadd.f32 %v8955, %v8937
    %v8957 = vadd.f32 %v8956, %v8938
    %v8958 = vadd.f32 %v8957, %v8939
    %v8959 = vadd.f32 %v8958, %v8940
    %v8960 = vadd.f32 %v8959, %v8941
    %v8961 = vadd.f32 %v8960, %v8942
    %v8962 = vadd.f32 %v8961, %v8943
    %v8963 = vrot.slane %v8962, 4
    %v8964 = vadd.f32 %v8962, %v8963
    %v8965 = vrot.slane %v8964, 2
    %v8966 = vadd.f32 %v8964, %v8965
    %v8967 = vrot.slane %v8966, 1
    %v8968 = vadd.f32 %v8966, %v8967
    %v8969 = vadd.f32 %v7422, %v8968
    %v8970 = vmul.f32 %v8924, %v8924
    %v8971 = vmul.f32 %v8925, %v8925
    %v8972 = vmul.f32 %v8926, %v8926
    %v8973 = vmul.f32 %v8927, %v8927
    %v8974 = vmul.f32 %v8928, %v8928
    %v8975 = vmul.f32 %v8929, %v8929
    %v8976 = vmul.f32 %v8930, %v8930
    %v8977 = vmul.f32 %v8931, %v8931
    %v8978 = vmul.f32 %v8932, %v8932
    %v8979 = vmul.f32 %v8933, %v8933
    %v8980 = vmul.f32 %v8934, %v8934
    %v8981 = vmul.f32 %v8935, %v8935
    %v8982 = vmul.f32 %v8936, %v8936
    %v8983 = vmul.f32 %v8937, %v8937
    %v8984 = vmul.f32 %v8938, %v8938
    %v8985 = vmul.f32 %v8939, %v8939
    %v8986 = vmul.f32 %v8940, %v8940
    %v8987 = vmul.f32 %v8941, %v8941
    %v8988 = vmul.f32 %v8942, %v8942
    %v8989 = vmul.f32 %v8943, %v8943
    %v8990 = vadd.f32 %v8970, %v8971
    %v8991 = vadd.f32 %v8990, %v8972
    %v8992 = vadd.f32 %v8991, %v8973
    %v8993 = vadd.f32 %v8992, %v8974
    %v8994 = vadd.f32 %v8993, %v8975
    %v8995 = vadd.f32 %v8994, %v8976
    %v8996 = vadd.f32 %v8995, %v8977
    %v8997 = vadd.f32 %v8996, %v8978
    %v8998 = vadd.f32 %v8997, %v8979
    %v8999 = vadd.f32 %v8998, %v8980
    %v9000 = vadd.f32 %v8999, %v8981
    %v9001 = vadd.f32 %v9000, %v8982
    %v9002 = vadd.f32 %v9001, %v8983
    %v9003 = vadd.f32 %v9002, %v8984
    %v9004 = vadd.f32 %v9003, %v8985
    %v9005 = vadd.f32 %v9004, %v8986
    %v9006 = vadd.f32 %v9005, %v8987
    %v9007 = vadd.f32 %v9006, %v8988
    %v9008 = vadd.f32 %v9007, %v8989
    %v9009 = vrot.slane %v9008, 4
    %v9010 = vadd.f32 %v9008, %v9009
    %v9011 = vrot.slane %v9010, 2
    %v9012 = vadd.f32 %v9010, %v9011
    %v9013 = vrot.slane %v9012, 1
    %v9014 = vadd.f32 %v9012, %v9013
    %v9015 = vadd.f32 %v7468, %v9014
    %9016 = vst [vmem:[#allocation8 + $0x280] sm:$0xff] %v8904
    %9017 = vst [vmem:[#allocation8 + $0x288] sm:$0xff] %v8905
    %9018 = vst [vmem:[#allocation8 + $0x290] sm:$0xff] %v8906
    %9019 = vst [vmem:[#allocation8 + $0x298] sm:$0xff] %v8907
    %9020 = vst [vmem:[#allocation8 + $0x2a0] sm:$0xff] %v8908
    %9021 = vst [vmem:[#allocation8 + $0x2a8] sm:$0xff] %v8909
    %9022 = vst [vmem:[#allocation8 + $0x2b0] sm:$0xff] %v8910
    %9023 = vst [vmem:[#allocation8 + $0x2b8] sm:$0xff] %v8911
    %9024 = vst [vmem:[#allocation8 + $0x2c0] sm:$0xff] %v8912
    %9025 = vst [vmem:[#allocation8 + $0x2c8] sm:$0xff] %v8913
    %9026 = vst [vmem:[#allocation8 + $0x2d0] sm:$0xff] %v8914
    %9027 = vst [vmem:[#allocation8 + $0x2d8] sm:$0xff] %v8915
    %9028 = vst [vmem:[#allocation8 + $0x2e0] sm:$0xff] %v8916
    %9029 = vst [vmem:[#allocation8 + $0x2e8] sm:$0xff] %v8917
    %9030 = vst [vmem:[#allocation8 + $0x2f0] sm:$0xff] %v8918
    %9031 = vst [vmem:[#allocation8 + $0x2f8] sm:$0xff] %v8919
    %9032 = vst [vmem:[#allocation8 + $0x300] sm:$0xff] %v8920
    %9033 = vst [vmem:[#allocation8 + $0x308] sm:$0xff] %v8921
    %9034 = vst [vmem:[#allocation8 + $0x310] sm:$0xff] %v8922
    %9035 = vst [vmem:[#allocation8 + $0x318] sm:$0xff] %v8923
    %v9036 = vmul.f32 %v8969, 0.0016
    %v9037 = vmul.f32 %v9015, 0.0016
    %v9038 = vmul.f32 %v9036, %v9036
    %v9039 = vsub.f32 %v9037, %v9038
    %v9040 = vmax.f32 %v9039, 0.0
    %v9041 = vld [vmem:[%s2] sm:$0x1]
    %v9042 = vadd.f32 %v9040, 0.001
    %v9043 = vrsqrt.pop %v9042
    %v9044 = vmul.f32 %v9041, %v9043
    %v9045 = vld [vmem:[%s3] sm:$0x1]
    %v9046 = vmul.f32 %v9036, %v9044
    %v9047 = vsub.f32 %v9045, %v9046
    %v9048 = vld [vmem:[#allocation8] sm:$0xff]
    %v9049 = vld [vmem:[#allocation8 + $0x8] sm:$0xff]
    %v9050 = vld [vmem:[#allocation8 + $0x10] sm:$0xff]
    %v9051 = vld [vmem:[#allocation8 + $0x18] sm:$0xff]
    %v9052 = vld [vmem:[#allocation8 + $0x20] sm:$0xff]
    %v9053 = vld [vmem:[#allocation8 + $0x28] sm:$0xff]
    %v9054 = vld [vmem:[#allocation8 + $0x30] sm:$0xff]
    %v9055 = vld [vmem:[#allocation8 + $0x38] sm:$0xff]
    %v9056 = vld [vmem:[#allocation8 + $0x40] sm:$0xff]
    %v9057 = vld [vmem:[#allocation8 + $0x48] sm:$0xff]
    %v9058 = vld [vmem:[#allocation8 + $0x50] sm:$0xff]
    %v9059 = vld [vmem:[#allocation8 + $0x58] sm:$0xff]
    %v9060 = vld [vmem:[#allocation8 + $0x60] sm:$0xff]
    %v9061 = vld [vmem:[#allocation8 + $0x68] sm:$0xff]
    %v9062 = vld [vmem:[#allocation8 + $0x70] sm:$0xff]
    %v9063 = vld [vmem:[#allocation8 + $0x78] sm:$0xff]
    %v9064 = vld [vmem:[#allocation8 + $0x80] sm:$0xff]
    %v9065 = vld [vmem:[#allocation8 + $0x88] sm:$0xff]
    %v9066 = vld [vmem:[#allocation8 + $0x90] sm:$0xff]
    %v9067 = vld [vmem:[#allocation8 + $0x98] sm:$0xff]
    %v9068 = vld [vmem:[#allocation8 + $0xa0] sm:$0xff]
    %v9069 = vld [vmem:[#allocation8 + $0xa8] sm:$0xff]
    %v9070 = vld [vmem:[#allocation8 + $0xb0] sm:$0xff]
    %v9071 = vld [vmem:[#allocation8 + $0xb8] sm:$0xff]
    %v9072 = vld [vmem:[#allocation8 + $0xc0] sm:$0xff]
    %v9073 = vld [vmem:[#allocation8 + $0xc8] sm:$0xff]
    %v9074 = vld [vmem:[#allocation8 + $0xd0] sm:$0xff]
    %v9075 = vld [vmem:[#allocation8 + $0xd8] sm:$0xff]
    %v9076 = vld [vmem:[#allocation8 + $0xe0] sm:$0xff]
    %v9077 = vld [vmem:[#allocation8 + $0xe8] sm:$0xff]
    %v9078 = vld [vmem:[#allocation8 + $0xf0] sm:$0xff]
    %v9079 = vld [vmem:[#allocation8 + $0xf8] sm:$0xff]
    %v9080 = vld [vmem:[#allocation8 + $0x100] sm:$0xff]
    %v9081 = vld [vmem:[#allocation8 + $0x108] sm:$0xff]
    %v9082 = vld [vmem:[#allocation8 + $0x110] sm:$0xff]
    %v9083 = vld [vmem:[#allocation8 + $0x118] sm:$0xff]
    %v9084 = vld [vmem:[#allocation8 + $0x120] sm:$0xff]
    %v9085 = vld [vmem:[#allocation8 + $0x128] sm:$0xff]
    %v9086 = vld [vmem:[#allocation8 + $0x130] sm:$0xff]
    %v9087 = vld [vmem:[#allocation8 + $0x138] sm:$0xff]
    %v9088 = vld [vmem:[#allocation8 + $0x140] sm:$0xff]
    %v9089 = vld [vmem:[#allocation8 + $0x148] sm:$0xff]
    %v9090 = vld [vmem:[#allocation8 + $0x150] sm:$0xff]
    %v9091 = vld [vmem:[#allocation8 + $0x158] sm:$0xff]
    %v9092 = vld [vmem:[#allocation8 + $0x160] sm:$0xff]
    %v9093 = vld [vmem:[#allocation8 + $0x168] sm:$0xff]
    %v9094 = vld [vmem:[#allocation8 + $0x170] sm:$0xff]
    %v9095 = vld [vmem:[#allocation8 + $0x178] sm:$0xff]
    %v9096 = vld [vmem:[#allocation8 + $0x180] sm:$0xff]
    %v9097 = vld [vmem:[#allocation8 + $0x188] sm:$0xff]
    %v9098 = vld [vmem:[#allocation8 + $0x190] sm:$0xff]
    %v9099 = vld [vmem:[#allocation8 + $0x198] sm:$0xff]
    %v9100 = vld [vmem:[#allocation8 + $0x1a0] sm:$0xff]
    %v9101 = vld [vmem:[#allocation8 + $0x1a8] sm:$0xff]
    %v9102 = vld [vmem:[#allocation8 + $0x1b0] sm:$0xff]
    %v9103 = vld [vmem:[#allocation8 + $0x1b8] sm:$0xff]
    %v9104 = vld [vmem:[#allocation8 + $0x1c0] sm:$0xff]
    %v9105 = vld [vmem:[#allocation8 + $0x1c8] sm:$0xff]
    %v9106 = vld [vmem:[#allocation8 + $0x1d0] sm:$0xff]
    %v9107 = vld [vmem:[#allocation8 + $0x1d8] sm:$0xff]
    %v9108 = vld [vmem:[#allocation8 + $0x1e0] sm:$0xff]
    %v9109 = vld [vmem:[#allocation8 + $0x1e8] sm:$0xff]
    %v9110 = vld [vmem:[#allocation8 + $0x1f0] sm:$0xff]
    %v9111 = vld [vmem:[#allocation8 + $0x1f8] sm:$0xff]
    %v9112 = vld [vmem:[#allocation8 + $0x200] sm:$0xff]
    %v9113 = vld [vmem:[#allocation8 + $0x208] sm:$0xff]
    %v9114 = vld [vmem:[#allocation8 + $0x210] sm:$0xff]
    %v9115 = vld [vmem:[#allocation8 + $0x218] sm:$0xff]
    %v9116 = vld [vmem:[#allocation8 + $0x220] sm:$0xff]
    %v9117 = vld [vmem:[#allocation8 + $0x228] sm:$0xff]
    %v9118 = vld [vmem:[#allocation8 + $0x230] sm:$0xff]
    %v9119 = vld [vmem:[#allocation8 + $0x238] sm:$0xff]
    %v9120 = vld [vmem:[#allocation8 + $0x240] sm:$0xff]
    %v9121 = vld [vmem:[#allocation8 + $0x248] sm:$0xff]
    %v9122 = vld [vmem:[#allocation8 + $0x250] sm:$0xff]
    %v9123 = vld [vmem:[#allocation8 + $0x258] sm:$0xff]
    %v9124 = vld [vmem:[#allocation8 + $0x260] sm:$0xff]
    %v9125 = vld [vmem:[#allocation8 + $0x268] sm:$0xff]
    %v9126 = vld [vmem:[#allocation8 + $0x270] sm:$0xff]
    %v9127 = vld [vmem:[#allocation8 + $0x278] sm:$0xff]
    %v9128 = vld [vmem:[#allocation8 + $0x280] sm:$0xff]
    %v9129 = vld [vmem:[#allocation8 + $0x288] sm:$0xff]
    %v9130 = vld [vmem:[#allocation8 + $0x290] sm:$0xff]
    %v9131 = vld [vmem:[#allocation8 + $0x298] sm:$0xff]
    %v9132 = vld [vmem:[#allocation8 + $0x2a0] sm:$0xff]
    %v9133 = vld [vmem:[#allocation8 + $0x2a8] sm:$0xff]
    %v9134 = vld [vmem:[#allocation8 + $0x2b0] sm:$0xff]
    %v9135 = vld [vmem:[#allocation8 + $0x2b8] sm:$0xff]
    %v9136 = vld [vmem:[#allocation8 + $0x2c0] sm:$0xff]
    %v9137 = vld [vmem:[#allocation8 + $0x2c8] sm:$0xff]
    %v9138 = vld [vmem:[#allocation8 + $0x2d0] sm:$0xff]
    %v9139 = vld [vmem:[#allocation8 + $0x2d8] sm:$0xff]
    %v9140 = vld [vmem:[#allocation8 + $0x2e0] sm:$0xff]
    %v9141 = vld [vmem:[#allocation8 + $0x2e8] sm:$0xff]
    %v9142 = vld [vmem:[#allocation8 + $0x2f0] sm:$0xff]
    %v9143 = vld [vmem:[#allocation8 + $0x2f8] sm:$0xff]
    %v9144 = vld [vmem:[#allocation8 + $0x300] sm:$0xff]
    %v9145 = vld [vmem:[#allocation8 + $0x308] sm:$0xff]
    %v9146 = vld [vmem:[#allocation8 + $0x310] sm:$0xff]
    %v9147 = vld [vmem:[#allocation8 + $0x318] sm:$0xff]
    %v9149 = vlaneseq
    %v9150 = vshrl.u32 %v9149, 7
    %v9151 = vsub.s32 0, %v9150
    %v9152 = vrot.slane %v9044, %v9151
    %v9154 = vmul.f32 %v9048, %v9152
    %v9155 = vmul.f32 %v9049, %v9152
    %v9156 = vmul.f32 %v9050, %v9152
    %v9157 = vmul.f32 %v9051, %v9152
    %v9158 = vmul.f32 %v9052, %v9152
    %v9159 = vmul.f32 %v9053, %v9152
    %v9160 = vmul.f32 %v9054, %v9152
    %v9161 = vmul.f32 %v9055, %v9152
    %v9162 = vmul.f32 %v9056, %v9152
    %v9163 = vmul.f32 %v9057, %v9152
    %v9164 = vmul.f32 %v9058, %v9152
    %v9165 = vmul.f32 %v9059, %v9152
    %v9166 = vmul.f32 %v9060, %v9152
    %v9167 = vmul.f32 %v9061, %v9152
    %v9168 = vmul.f32 %v9062, %v9152
    %v9169 = vmul.f32 %v9063, %v9152
    %v9170 = vmul.f32 %v9064, %v9152
    %v9171 = vmul.f32 %v9065, %v9152
    %v9172 = vmul.f32 %v9066, %v9152
    %v9173 = vmul.f32 %v9067, %v9152
    %v9174 = vmul.f32 %v9068, %v9152
    %v9175 = vmul.f32 %v9069, %v9152
    %v9176 = vmul.f32 %v9070, %v9152
    %v9177 = vmul.f32 %v9071, %v9152
    %v9178 = vmul.f32 %v9072, %v9152
    %v9179 = vmul.f32 %v9073, %v9152
    %v9180 = vmul.f32 %v9074, %v9152
    %v9181 = vmul.f32 %v9075, %v9152
    %v9182 = vmul.f32 %v9076, %v9152
    %v9183 = vmul.f32 %v9077, %v9152
    %v9184 = vmul.f32 %v9078, %v9152
    %v9185 = vmul.f32 %v9079, %v9152
    %v9186 = vmul.f32 %v9080, %v9152
    %v9187 = vmul.f32 %v9081, %v9152
    %v9188 = vmul.f32 %v9082, %v9152
    %v9189 = vmul.f32 %v9083, %v9152
    %v9190 = vmul.f32 %v9084, %v9152
    %v9191 = vmul.f32 %v9085, %v9152
    %v9192 = vmul.f32 %v9086, %v9152
    %v9193 = vmul.f32 %v9087, %v9152
    %v9194 = vmul.f32 %v9088, %v9152
    %v9195 = vmul.f32 %v9089, %v9152
    %v9196 = vmul.f32 %v9090, %v9152
    %v9197 = vmul.f32 %v9091, %v9152
    %v9198 = vmul.f32 %v9092, %v9152
    %v9199 = vmul.f32 %v9093, %v9152
    %v9200 = vmul.f32 %v9094, %v9152
    %v9201 = vmul.f32 %v9095, %v9152
    %v9202 = vmul.f32 %v9096, %v9152
    %v9203 = vmul.f32 %v9097, %v9152
    %v9204 = vmul.f32 %v9098, %v9152
    %v9205 = vmul.f32 %v9099, %v9152
    %v9206 = vmul.f32 %v9100, %v9152
    %v9207 = vmul.f32 %v9101, %v9152
    %v9208 = vmul.f32 %v9102, %v9152
    %v9209 = vmul.f32 %v9103, %v9152
    %v9210 = vmul.f32 %v9104, %v9152
    %v9211 = vmul.f32 %v9105, %v9152
    %v9212 = vmul.f32 %v9106, %v9152
    %v9213 = vmul.f32 %v9107, %v9152
    %v9214 = vmul.f32 %v9108, %v9152
    %v9215 = vmul.f32 %v9109, %v9152
    %v9216 = vmul.f32 %v9110, %v9152
    %v9217 = vmul.f32 %v9111, %v9152
    %v9218 = vmul.f32 %v9112, %v9152
    %v9219 = vmul.f32 %v9113, %v9152
    %v9220 = vmul.f32 %v9114, %v9152
    %v9221 = vmul.f32 %v9115, %v9152
    %v9222 = vmul.f32 %v9116, %v9152
    %v9223 = vmul.f32 %v9117, %v9152
    %v9224 = vmul.f32 %v9118, %v9152
    %v9225 = vmul.f32 %v9119, %v9152
    %v9226 = vmul.f32 %v9120, %v9152
    %v9227 = vmul.f32 %v9121, %v9152
    %v9228 = vmul.f32 %v9122, %v9152
    %v9229 = vmul.f32 %v9123, %v9152
    %v9230 = vmul.f32 %v9124, %v9152
    %v9231 = vmul.f32 %v9125, %v9152
    %v9232 = vmul.f32 %v9126, %v9152
    %v9233 = vmul.f32 %v9127, %v9152
    %v9234 = vmul.f32 %v9128, %v9152
    %v9235 = vmul.f32 %v9129, %v9152
    %v9236 = vmul.f32 %v9130, %v9152
    %v9237 = vmul.f32 %v9131, %v9152
    %v9238 = vmul.f32 %v9132, %v9152
    %v9239 = vmul.f32 %v9133, %v9152
    %v9240 = vmul.f32 %v9134, %v9152
    %v9241 = vmul.f32 %v9135, %v9152
    %v9242 = vmul.f32 %v9136, %v9152
    %v9243 = vmul.f32 %v9137, %v9152
    %v9244 = vmul.f32 %v9138, %v9152
    %v9245 = vmul.f32 %v9139, %v9152
    %v9246 = vmul.f32 %v9140, %v9152
    %v9247 = vmul.f32 %v9141, %v9152
    %v9248 = vmul.f32 %v9142, %v9152
    %v9249 = vmul.f32 %v9143, %v9152
    %v9250 = vmul.f32 %v9144, %v9152
    %v9251 = vmul.f32 %v9145, %v9152
    %v9252 = vmul.f32 %v9146, %v9152
    %v9253 = vmul.f32 %v9147, %v9152
    %v9255 = vlaneseq
    %v9256 = vshrl.u32 %v9255, 7
    %v9257 = vsub.s32 0, %v9256
    %v9258 = vrot.slane %v9047, %v9257
    %v9260 = vadd.f32 %v9154, %v9258
    %v9261 = vadd.f32 %v9155, %v9258
    %v9262 = vadd.f32 %v9156, %v9258
    %v9263 = vadd.f32 %v9157, %v9258
    %v9264 = vadd.f32 %v9158, %v9258
    %v9265 = vadd.f32 %v9159, %v9258
    %v9266 = vadd.f32 %v9160, %v9258
    %v9267 = vadd.f32 %v9161, %v9258
    %v9268 = vadd.f32 %v9162, %v9258
    %v9269 = vadd.f32 %v9163, %v9258
    %v9270 = vadd.f32 %v9164, %v9258
    %v9271 = vadd.f32 %v9165, %v9258
    %v9272 = vadd.f32 %v9166, %v9258
    %v9273 = vadd.f32 %v9167, %v9258
    %v9274 = vadd.f32 %v9168, %v9258
    %v9275 = vadd.f32 %v9169, %v9258
    %v9276 = vadd.f32 %v9170, %v9258
    %v9277 = vadd.f32 %v9171, %v9258
    %v9278 = vadd.f32 %v9172, %v9258
    %v9279 = vadd.f32 %v9173, %v9258
    %v9280 = vadd.f32 %v9174, %v9258
    %v9281 = vadd.f32 %v9175, %v9258
    %v9282 = vadd.f32 %v9176, %v9258
    %v9283 = vadd.f32 %v9177, %v9258
    %v9284 = vadd.f32 %v9178, %v9258
    %v9285 = vadd.f32 %v9179, %v9258
    %v9286 = vadd.f32 %v9180, %v9258
    %v9287 = vadd.f32 %v9181, %v9258
    %v9288 = vadd.f32 %v9182, %v9258
    %v9289 = vadd.f32 %v9183, %v9258
    %v9290 = vadd.f32 %v9184, %v9258
    %v9291 = vadd.f32 %v9185, %v9258
    %v9292 = vadd.f32 %v9186, %v9258
    %v9293 = vadd.f32 %v9187, %v9258
    %v9294 = vadd.f32 %v9188, %v9258
    %v9295 = vadd.f32 %v9189, %v9258
    %v9296 = vadd.f32 %v9190, %v9258
    %v9297 = vadd.f32 %v9191, %v9258
    %v9298 = vadd.f32 %v9192, %v9258
    %v9299 = vadd.f32 %v9193, %v9258
    %v9300 = vadd.f32 %v9194, %v9258
    %v9301 = vadd.f32 %v9195, %v9258
    %v9302 = vadd.f32 %v9196, %v9258
    %v9303 = vadd.f32 %v9197, %v9258
    %v9304 = vadd.f32 %v9198, %v9258
    %v9305 = vadd.f32 %v9199, %v9258
    %v9306 = vadd.f32 %v9200, %v9258
    %v9307 = vadd.f32 %v9201, %v9258
    %v9308 = vadd.f32 %v9202, %v9258
    %v9309 = vadd.f32 %v9203, %v9258
    %v9310 = vadd.f32 %v9204, %v9258
    %v9311 = vadd.f32 %v9205, %v9258
    %v9312 = vadd.f32 %v9206, %v9258
    %v9313 = vadd.f32 %v9207, %v9258
    %v9314 = vadd.f32 %v9208, %v9258
    %v9315 = vadd.f32 %v9209, %v9258
    %v9316 = vadd.f32 %v9210, %v9258
    %v9317 = vadd.f32 %v9211, %v9258
    %v9318 = vadd.f32 %v9212, %v9258
    %v9319 = vadd.f32 %v9213, %v9258
    %v9320 = vadd.f32 %v9214, %v9258
    %v9321 = vadd.f32 %v9215, %v9258
    %v9322 = vadd.f32 %v9216, %v9258
    %v9323 = vadd.f32 %v9217, %v9258
    %v9324 = vadd.f32 %v9218, %v9258
    %v9325 = vadd.f32 %v9219, %v9258
    %v9326 = vadd.f32 %v9220, %v9258
    %v9327 = vadd.f32 %v9221, %v9258
    %v9328 = vadd.f32 %v9222, %v9258
    %v9329 = vadd.f32 %v9223, %v9258
    %v9330 = vadd.f32 %v9224, %v9258
    %v9331 = vadd.f32 %v9225, %v9258
    %v9332 = vadd.f32 %v9226, %v9258
    %v9333 = vadd.f32 %v9227, %v9258
    %v9334 = vadd.f32 %v9228, %v9258
    %v9335 = vadd.f32 %v9229, %v9258
    %v9336 = vadd.f32 %v9230, %v9258
    %v9337 = vadd.f32 %v9231, %v9258
    %v9338 = vadd.f32 %v9232, %v9258
    %v9339 = vadd.f32 %v9233, %v9258
    %v9340 = vadd.f32 %v9234, %v9258
    %v9341 = vadd.f32 %v9235, %v9258
    %v9342 = vadd.f32 %v9236, %v9258
    %v9343 = vadd.f32 %v9237, %v9258
    %v9344 = vadd.f32 %v9238, %v9258
    %v9345 = vadd.f32 %v9239, %v9258
    %v9346 = vadd.f32 %v9240, %v9258
    %v9347 = vadd.f32 %v9241, %v9258
    %v9348 = vadd.f32 %v9242, %v9258
    %v9349 = vadd.f32 %v9243, %v9258
    %v9350 = vadd.f32 %v9244, %v9258
    %v9351 = vadd.f32 %v9245, %v9258
    %v9352 = vadd.f32 %v9246, %v9258
    %v9353 = vadd.f32 %v9247, %v9258
    %v9354 = vadd.f32 %v9248, %v9258
    %v9355 = vadd.f32 %v9249, %v9258
    %v9356 = vadd.f32 %v9250, %v9258
    %v9357 = vadd.f32 %v9251, %v9258
    %v9358 = vadd.f32 %v9252, %v9258
    %v9359 = vadd.f32 %v9253, %v9258
    %v9360 = vmax.f32 %v9260, 0.0
    %v9361 = vmax.f32 %v9261, 0.0
    %v9362 = vmax.f32 %v9262, 0.0
    %v9363 = vmax.f32 %v9263, 0.0
    %v9364 = vmax.f32 %v9264, 0.0
    %v9365 = vmax.f32 %v9265, 0.0
    %v9366 = vmax.f32 %v9266, 0.0
    %v9367 = vmax.f32 %v9267, 0.0
    %v9368 = vmax.f32 %v9268, 0.0
    %v9369 = vmax.f32 %v9269, 0.0
    %v9370 = vmax.f32 %v9270, 0.0
    %v9371 = vmax.f32 %v9271, 0.0
    %v9372 = vmax.f32 %v9272, 0.0
    %v9373 = vmax.f32 %v9273, 0.0
    %v9374 = vmax.f32 %v9274, 0.0
    %v9375 = vmax.f32 %v9275, 0.0
    %v9376 = vmax.f32 %v9276, 0.0
    %v9377 = vmax.f32 %v9277, 0.0
    %v9378 = vmax.f32 %v9278, 0.0
    %v9379 = vmax.f32 %v9279, 0.0
    %v9380 = vmax.f32 %v9280, 0.0
    %v9381 = vmax.f32 %v9281, 0.0
    %v9382 = vmax.f32 %v9282, 0.0
    %v9383 = vmax.f32 %v9283, 0.0
    %v9384 = vmax.f32 %v9284, 0.0
    %v9385 = vmax.f32 %v9285, 0.0
    %v9386 = vmax.f32 %v9286, 0.0
    %v9387 = vmax.f32 %v9287, 0.0
    %v9388 = vmax.f32 %v9288, 0.0
    %v9389 = vmax.f32 %v9289, 0.0
    %v9390 = vmax.f32 %v9290, 0.0
    %v9391 = vmax.f32 %v9291, 0.0
    %v9392 = vmax.f32 %v9292, 0.0
    %v9393 = vmax.f32 %v9293, 0.0
    %v9394 = vmax.f32 %v9294, 0.0
    %v9395 = vmax.f32 %v9295, 0.0
    %v9396 = vmax.f32 %v9296, 0.0
    %v9397 = vmax.f32 %v9297, 0.0
    %v9398 = vmax.f32 %v9298, 0.0
    %v9399 = vmax.f32 %v9299, 0.0
    %v9400 = vmax.f32 %v9300, 0.0
    %v9401 = vmax.f32 %v9301, 0.0
    %v9402 = vmax.f32 %v9302, 0.0
    %v9403 = vmax.f32 %v9303, 0.0
    %v9404 = vmax.f32 %v9304, 0.0
    %v9405 = vmax.f32 %v9305, 0.0
    %v9406 = vmax.f32 %v9306, 0.0
    %v9407 = vmax.f32 %v9307, 0.0
    %v9408 = vmax.f32 %v9308, 0.0
    %v9409 = vmax.f32 %v9309, 0.0
    %v9410 = vmax.f32 %v9310, 0.0
    %v9411 = vmax.f32 %v9311, 0.0
    %v9412 = vmax.f32 %v9312, 0.0
    %v9413 = vmax.f32 %v9313, 0.0
    %v9414 = vmax.f32 %v9314, 0.0
    %v9415 = vmax.f32 %v9315, 0.0
    %v9416 = vmax.f32 %v9316, 0.0
    %v9417 = vmax.f32 %v9317, 0.0
    %v9418 = vmax.f32 %v9318, 0.0
    %v9419 = vmax.f32 %v9319, 0.0
    %v9420 = vmax.f32 %v9320, 0.0
    %v9421 = vmax.f32 %v9321, 0.0
    %v9422 = vmax.f32 %v9322, 0.0
    %v9423 = vmax.f32 %v9323, 0.0
    %v9424 = vmax.f32 %v9324, 0.0
    %v9425 = vmax.f32 %v9325, 0.0
    %v9426 = vmax.f32 %v9326, 0.0
    %v9427 = vmax.f32 %v9327, 0.0
    %v9428 = vmax.f32 %v9328, 0.0
    %v9429 = vmax.f32 %v9329, 0.0
    %v9430 = vmax.f32 %v9330, 0.0
    %v9431 = vmax.f32 %v9331, 0.0
    %v9432 = vmax.f32 %v9332, 0.0
    %v9433 = vmax.f32 %v9333, 0.0
    %v9434 = vmax.f32 %v9334, 0.0
    %v9435 = vmax.f32 %v9335, 0.0
    %v9436 = vmax.f32 %v9336, 0.0
    %v9437 = vmax.f32 %v9337, 0.0
    %v9438 = vmax.f32 %v9338, 0.0
    %v9439 = vmax.f32 %v9339, 0.0
    %v9440 = vmax.f32 %v9340, 0.0
    %v9441 = vmax.f32 %v9341, 0.0
    %v9442 = vmax.f32 %v9342, 0.0
    %v9443 = vmax.f32 %v9343, 0.0
    %v9444 = vmax.f32 %v9344, 0.0
    %v9445 = vmax.f32 %v9345, 0.0
    %v9446 = vmax.f32 %v9346, 0.0
    %v9447 = vmax.f32 %v9347, 0.0
    %v9448 = vmax.f32 %v9348, 0.0
    %v9449 = vmax.f32 %v9349, 0.0
    %v9450 = vmax.f32 %v9350, 0.0
    %v9451 = vmax.f32 %v9351, 0.0
    %v9452 = vmax.f32 %v9352, 0.0
    %v9453 = vmax.f32 %v9353, 0.0
    %v9454 = vmax.f32 %v9354, 0.0
    %v9455 = vmax.f32 %v9355, 0.0
    %v9456 = vmax.f32 %v9356, 0.0
    %v9457 = vmax.f32 %v9357, 0.0
    %v9458 = vmax.f32 %v9358, 0.0
    %v9459 = vmax.f32 %v9359, 0.0
    %9460 = vst [vmem:[#allocation8] sm:$0xff] %v9360
    %9461 = vst [vmem:[#allocation8 + $0x8] sm:$0xff] %v9361
    %9462 = vst [vmem:[#allocation8 + $0x10] sm:$0xff] %v9362
    %9463 = vst [vmem:[#allocation8 + $0x18] sm:$0xff] %v9363
    %9464 = vst [vmem:[#allocation8 + $0x20] sm:$0xff] %v9364
    %9465 = vst [vmem:[#allocation8 + $0x28] sm:$0xff] %v9365
    %9466 = vst [vmem:[#allocation8 + $0x30] sm:$0xff] %v9366
    %9467 = vst [vmem:[#allocation8 + $0x38] sm:$0xff] %v9367
    %9468 = vst [vmem:[#allocation8 + $0x40] sm:$0xff] %v9368
    %9469 = vst [vmem:[#allocation8 + $0x48] sm:$0xff] %v9369
    %9470 = vst [vmem:[#allocation8 + $0x50] sm:$0xff] %v9370
    %9471 = vst [vmem:[#allocation8 + $0x58] sm:$0xff] %v9371
    %9472 = vst [vmem:[#allocation8 + $0x60] sm:$0xff] %v9372
    %9473 = vst [vmem:[#allocation8 + $0x68] sm:$0xff] %v9373
    %9474 = vst [vmem:[#allocation8 + $0x70] sm:$0xff] %v9374
    %9475 = vst [vmem:[#allocation8 + $0x78] sm:$0xff] %v9375
    %9476 = vst [vmem:[#allocation8 + $0x80] sm:$0xff] %v9376
    %9477 = vst [vmem:[#allocation8 + $0x88] sm:$0xff] %v9377
    %9478 = vst [vmem:[#allocation8 + $0x90] sm:$0xff] %v9378
    %9479 = vst [vmem:[#allocation8 + $0x98] sm:$0xff] %v9379
    %9480 = vst [vmem:[#allocation8 + $0xa0] sm:$0xff] %v9380
    %9481 = vst [vmem:[#allocation8 + $0xa8] sm:$0xff] %v9381
    %9482 = vst [vmem:[#allocation8 + $0xb0] sm:$0xff] %v9382
    %9483 = vst [vmem:[#allocation8 + $0xb8] sm:$0xff] %v9383
    %9484 = vst [vmem:[#allocation8 + $0xc0] sm:$0xff] %v9384
    %9485 = vst [vmem:[#allocation8 + $0xc8] sm:$0xff] %v9385
    %9486 = vst [vmem:[#allocation8 + $0xd0] sm:$0xff] %v9386
    %9487 = vst [vmem:[#allocation8 + $0xd8] sm:$0xff] %v9387
    %9488 = vst [vmem:[#allocation8 + $0xe0] sm:$0xff] %v9388
    %9489 = vst [vmem:[#allocation8 + $0xe8] sm:$0xff] %v9389
    %9490 = vst [vmem:[#allocation8 + $0xf0] sm:$0xff] %v9390
    %9491 = vst [vmem:[#allocation8 + $0xf8] sm:$0xff] %v9391
    %9492 = vst [vmem:[#allocation8 + $0x100] sm:$0xff] %v9392
    %9493 = vst [vmem:[#allocation8 + $0x108] sm:$0xff] %v9393
    %9494 = vst [vmem:[#allocation8 + $0x110] sm:$0xff] %v9394
    %9495 = vst [vmem:[#allocation8 + $0x118] sm:$0xff] %v9395
    %9496 = vst [vmem:[#allocation8 + $0x120] sm:$0xff] %v9396
    %9497 = vst [vmem:[#allocation8 + $0x128] sm:$0xff] %v9397
    %9498 = vst [vmem:[#allocation8 + $0x130] sm:$0xff] %v9398
    %9499 = vst [vmem:[#allocation8 + $0x138] sm:$0xff] %v9399
    %9500 = vst [vmem:[#allocation8 + $0x140] sm:$0xff] %v9400
    %9501 = vst [vmem:[#allocation8 + $0x148] sm:$0xff] %v9401
    %9502 = vst [vmem:[#allocation8 + $0x150] sm:$0xff] %v9402
    %9503 = vst [vmem:[#allocation8 + $0x158] sm:$0xff] %v9403
    %9504 = vst [vmem:[#allocation8 + $0x160] sm:$0xff] %v9404
    %9505 = vst [vmem:[#allocation8 + $0x168] sm:$0xff] %v9405
    %9506 = vst [vmem:[#allocation8 + $0x170] sm:$0xff] %v9406
    %9507 = vst [vmem:[#allocation8 + $0x178] sm:$0xff] %v9407
    %9508 = vst [vmem:[#allocation8 + $0x180] sm:$0xff] %v9408
    %9509 = vst [vmem:[#allocation8 + $0x188] sm:$0xff] %v9409
    %9510 = vst [vmem:[#allocation8 + $0x190] sm:$0xff] %v9410
    %9511 = vst [vmem:[#allocation8 + $0x198] sm:$0xff] %v9411
    %9512 = vst [vmem:[#allocation8 + $0x1a0] sm:$0xff] %v9412
    %9513 = vst [vmem:[#allocation8 + $0x1a8] sm:$0xff] %v9413
    %9514 = vst [vmem:[#allocation8 + $0x1b0] sm:$0xff] %v9414
    %9515 = vst [vmem:[#allocation8 + $0x1b8] sm:$0xff] %v9415
    %9516 = vst [vmem:[#allocation8 + $0x1c0] sm:$0xff] %v9416
    %9517 = vst [vmem:[#allocation8 + $0x1c8] sm:$0xff] %v9417
    %9518 = vst [vmem:[#allocation8 + $0x1d0] sm:$0xff] %v9418
    %9519 = vst [vmem:[#allocation8 + $0x1d8] sm:$0xff] %v9419
    %9520 = vst [vmem:[#allocation8 + $0x1e0] sm:$0xff] %v9420
    %9521 = vst [vmem:[#allocation8 + $0x1e8] sm:$0xff] %v9421
    %9522 = vst [vmem:[#allocation8 + $0x1f0] sm:$0xff] %v9422
    %9523 = vst [vmem:[#allocation8 + $0x1f8] sm:$0xff] %v9423
    %9524 = vst [vmem:[#allocation8 + $0x200] sm:$0xff] %v9424
    %9525 = vst [vmem:[#allocation8 + $0x208] sm:$0xff] %v9425
    %9526 = vst [vmem:[#allocation8 + $0x210] sm:$0xff] %v9426
    %9527 = vst [vmem:[#allocation8 + $0x218] sm:$0xff] %v9427
    %9528 = vst [vmem:[#allocation8 + $0x220] sm:$0xff] %v9428
    %9529 = vst [vmem:[#allocation8 + $0x228] sm:$0xff] %v9429
    %9530 = vst [vmem:[#allocation8 + $0x230] sm:$0xff] %v9430
    %9531 = vst [vmem:[#allocation8 + $0x238] sm:$0xff] %v9431
    %9532 = vst [vmem:[#allocation8 + $0x240] sm:$0xff] %v9432
    %9533 = vst [vmem:[#allocation8 + $0x248] sm:$0xff] %v9433
    %9534 = vst [vmem:[#allocation8 + $0x250] sm:$0xff] %v9434
    %9535 = vst [vmem:[#allocation8 + $0x258] sm:$0xff] %v9435
    %9536 = vst [vmem:[#allocation8 + $0x260] sm:$0xff] %v9436
    %9537 = vst [vmem:[#allocation8 + $0x268] sm:$0xff] %v9437
    %9538 = vst [vmem:[#allocation8 + $0x270] sm:$0xff] %v9438
    %9539 = vst [vmem:[#allocation8 + $0x278] sm:$0xff] %v9439
    %9540 = vst [vmem:[#allocation8 + $0x280] sm:$0xff] %v9440
    %9541 = vst [vmem:[#allocation8 + $0x288] sm:$0xff] %v9441
    %9542 = vst [vmem:[#allocation8 + $0x290] sm:$0xff] %v9442
    %9543 = vst [vmem:[#allocation8 + $0x298] sm:$0xff] %v9443
    %9544 = vst [vmem:[#allocation8 + $0x2a0] sm:$0xff] %v9444
    %9545 = vst [vmem:[#allocation8 + $0x2a8] sm:$0xff] %v9445
    %9546 = vst [vmem:[#allocation8 + $0x2b0] sm:$0xff] %v9446
    %9547 = vst [vmem:[#allocation8 + $0x2b8] sm:$0xff] %v9447
    %9548 = vst [vmem:[#allocation8 + $0x2c0] sm:$0xff] %v9448
    %9549 = vst [vmem:[#allocation8 + $0x2c8] sm:$0xff] %v9449
    %9550 = vst [vmem:[#allocation8 + $0x2d0] sm:$0xff] %v9450
    %9551 = vst [vmem:[#allocation8 + $0x2d8] sm:$0xff] %v9451
    %9552 = vst [vmem:[#allocation8 + $0x2e0] sm:$0xff] %v9452
    %9553 = vst [vmem:[#allocation8 + $0x2e8] sm:$0xff] %v9453
    %9554 = vst [vmem:[#allocation8 + $0x2f0] sm:$0xff] %v9454
    %9555 = vst [vmem:[#allocation8 + $0x2f8] sm:$0xff] %v9455
    %9556 = vst [vmem:[#allocation8 + $0x300] sm:$0xff] %v9456
    %9557 = vst [vmem:[#allocation8 + $0x308] sm:$0xff] %v9457
    %9558 = vst [vmem:[#allocation8 + $0x310] sm:$0xff] %v9458
    %9559 = vst [vmem:[#allocation8 + $0x318] sm:$0xff] %v9459
    // Predicated region
    $region26: #{tpu_custom_call.1} parent=1 // pred_check
      _
    $region27: #{tpu_custom_call.1} parent=1 // pred_check_branch
      %9561 = sbr.rel (0) target = $region29
    $region28: #{tpu_custom_call.1} parent=1 // pred_region
      %s9563 = ssub.s32 12800, 12800
      %9564 = vsyncadd [#allocation5], %s9563
      %s9565 = sshll.u32 [#allocation8], 4
      %s9566 = int_to_ptr.vmem [resolvable:$true] %s9565
      %9571 = dma.vmem_to_hbm [thread:$0]  %s9566, 12800, %s4, [#allocation5], 128, 128, 8
    $region29: #{tpu_custom_call.1} parent=1 // pred_fallthru
      _
    // Predicated region
    $region30: #{tpu_custom_call.1} parent=1 // pred_check
      _
    $region31: #{tpu_custom_call.1} parent=1 // pred_check_branch
      %9573 = sbr.rel (0) target = $region33
    $region32: #{tpu_custom_call.1} parent=1 // pred_region
      %9574 = dma.done [#allocation5], 12800
    $region33: #{tpu_custom_call.1} parent=1 // pred_fallthru
      _
    %9575 = vsyncpa [#allocation4], 1
    %9576 = vsyncpa [#allocation7], 1
    %9577 = vsyncpa [#allocation5], 1

</llo_original>
